<compile_context>
chip_gen: v6e
topology: v6e:2x2x1
jax: 0.10.0
libtpu: 0.0.40
codegen_flags: <defaults>
</compile_context>

<pallas_src>
import numpy as np
import jax
import jax.numpy as jnp
from jax.experimental import pallas as pl
from jax.experimental.pallas import tpu as pltpu


# ----------------------------- Pallas kernel -----------------------------

def _dwconv3d_kernel(xp_ref, w_ref, b_ref, o_ref):
    # xp_ref: (X+2, Y+2, Z+2, TC) zero-padded channels-last grid for one (batch, channel-tile)
    # w_ref : (27, TC) depthwise taps, flat index k = dx*9 + dy*3 + dz  (== torch w[c,0,dx,dy,dz])
    # b_ref : (1, TC)
    # o_ref : (X, Y, Z, TC)
    X, Y, Z, TC = o_ref.shape

    # Single full load of the padded block; single load of all taps.
    xp = xp_ref[...].astype(jnp.float32)                       # (X+2, Y+2, Z+2, TC)
    w = w_ref[...].astype(jnp.float32)                         # (27, TC)

    # Hoist the dz (sublane-axis) shift out of the 27-tap loop: 3 pre-sliced views computed once
    # instead of 18 sublane-misaligned slices inside the unrolled loop.
    xz = [xp[:, :, dz:dz + Z, :] for dz in range(3)]           # each (X+2, Y+2, Z, TC)

    # Hoisted per-tap broadcasts (computed once, reused across the whole volume).
    taps = [w[k, :].reshape(1, 1, 1, TC) for k in range(27)]
    bias = b_ref[...].astype(jnp.float32).reshape(1, 1, 1, TC)

    acc = jnp.broadcast_to(bias, (X, Y, Z, TC))
    for dx in range(3):
        for dy in range(3):
            for dz in range(3):
                # dx/dy slices only touch leading (non-tiled) dims -> cheap vreg selection.
                acc = acc + xz[dz][dx:dx + X, dy:dy + Y, :, :] * taps[dx * 9 + dy * 3 + dz]

    o_ref[...] = acc.astype(o_ref.dtype)


# ----------------------------- wrappers -----------------------------

def _pick_channel_tile(C, X, Y, Z, itemsize, vmem_budget=48 * 1024 * 1024):
    """Largest lane-dense (multiple-of-128) channel tile whose working set fits the VMEM budget."""
    candidates = [tc for tc in (512, 256, 128) if C % tc == 0]
    if not candidates:
        candidates = [C]  # small-C path: block must equal the full array dim
    for tc in candidates:
        in_blk = (X + 2) * (Y + 2) * (Z + 2) * tc * itemsize
        out_blk = X * Y * Z * tc * itemsize
        # 2x double-buffered in/out blocks + ~4 input-sized live values inside the kernel body.
        if 2 * (in_blk + out_blk) + 4 * in_blk <= vmem_budget:
            return tc
    return candidates[-1]


def _dwconv_scale(tokens, grid_xyz, w27, bias):
    B, n_tok, C = tokens.shape
    X, Y, Z = grid_xyz
    assert n_tok == X * Y * Z
    itemsize = jnp.dtype(tokens.dtype).itemsize

    xg = tokens.reshape(B, X, Y, Z, C)
    # TODO(synk): for very large spatial extents the padded volume per channel tile no longer fits
    # VMEM even at TC=128; that regime needs halo tiling along X with manual DMA (not needed here).
    xpad = jnp.pad(xg, ((0, 0), (1, 1), (1, 1), (1, 1), (0, 0)))

    tc = _pick_channel_tile(C, X, Y, Z, itemsize)
    n_ct = C // tc

    in_blk = (X + 2) * (Y + 2) * (Z + 2) * tc * itemsize
    out_blk = X * Y * Z * tc * itemsize
    vmem_need = 2 * (in_blk + out_blk + 28 * tc * itemsize) + 4 * in_blk + (1 << 20)
    vmem_limit = int(min(64 * 1024 * 1024, max(16 * 1024 * 1024, vmem_need)))

    cost = pl.CostEstimate(
        flops=2 * 27 * B * X * Y * Z * C,
        transcendentals=0,
        bytes_accessed=(xpad.size + w27.size + bias.size + B * n_tok * C) * itemsize,
    )

    out = pl.pallas_call(
        _dwconv3d_kernel,
        out_shape=jax.ShapeDtypeStruct((B, X, Y, Z, C), tokens.dtype),
        grid=(B, n_ct),
        in_specs=[
            pl.BlockSpec((None, X + 2, Y + 2, Z + 2, tc), lambda b, ci: (b, 0, 0, 0, ci)),
            pl.BlockSpec((27, tc), lambda b, ci: (0, ci)),
            pl.BlockSpec((1, tc), lambda b, ci: (0, ci)),
        ],
        out_specs=pl.BlockSpec((None, X, Y, Z, tc), lambda b, ci: (b, 0, 0, 0, ci)),
        compiler_params=pltpu.CompilerParams(
            dimension_semantics=("parallel", "parallel"),
            vmem_limit_bytes=vmem_limit,
        ),
        cost_estimate=cost,
    )(xpad, w27, bias.reshape(1, C))
    return out.reshape(B, n_tok, C)


def dwconv_forward(x, H, W, D, weight, bias):
    """DWConv.forward.

    x      : (B, N, C) tokens, N = 73 * H*W*D
    weight : (C, 3, 3, 3)  -- torch Conv3d(groups=C) weight (C, 1, 3, 3, 3) squeezed
    bias   : (C,)
    """
    B, N, C = x.shape
    n = N // 73
    # (C, 3, 3, 3) -> (27, C); flat index k = dx*9 + dy*3 + dz  == torch weight[c, 0, dx, dy, dz]
    w27 = weight.reshape(C, 27).T

    y1 = _dwconv_scale(x[:, : 64 * n, :], (4 * H, 4 * W, 4 * D), w27, bias)
    y2 = _dwconv_scale(x[:, 64 * n: 72 * n, :], (2 * H, 2 * W, 2 * D), w27, bias)
    y3 = _dwconv_scale(x[:, 72 * n:, :], (H, W, D), w27, bias)
    return jnp.concatenate([y1, y2, y3], axis=1)


# ----------------------------- pure-JAX reference -----------------------------

def _ref_forward(x, H, W, D, weight, bias):
    B, N, C = x.shape
    n = N // 73
    w = jnp.transpose(weight, (1, 2, 3, 0))[..., None, :]  # (3, 3, 3, 1, C) DHWIO depthwise

    def dw(tok, X, Y, Z):
        xg = tok.reshape(B, X, Y, Z, C)
        yg = jax.lax.conv_general_dilated(
            xg, w, window_strides=(1, 1, 1), padding=((1, 1), (1, 1), (1, 1)),
            dimension_numbers=("NDHWC", "DHWIO", "NDHWC"),
            feature_group_count=C, precision=jax.lax.Precision.HIGHEST)
        return (yg + bias).reshape(B, X * Y * Z, C)

    return jnp.concatenate([
        dw(x[:, : 64 * n], 4 * H, 4 * W, 4 * D),
        dw(x[:, 64 * n: 72 * n], 2 * H, 2 * W, 2 * D),
        dw(x[:, 72 * n:], H, W, D)], axis=1)


# ----------------------------- main -----------------------------

if __name__ == "__main__":
    key = jax.random.PRNGKey(0)
    B, H, W, D = 2, 2, 2, 2
    C = 384                       # dim; multiple of 128 so channel tiles are lane-dense
    n = H * W * D
    N = 73 * n                    # 64n (4x scale) + 8n (2x scale) + n (1x scale)

    kx, kw, kb = jax.random.split(key, 3)
    x = jax.random.normal(kx, (B, N, C), jnp.float32)
    weight = jax.random.normal(kw, (C, 3, 3, 3), jnp.float32) * 0.1   # torch (C,1,3,3,3) squeezed
    bias = jax.random.normal(kb, (C,), jnp.float32) * 0.1

    out = dwconv_forward(x, H, W, D, weight, bias)
    jax.block_until_ready(out)
    assert out.shape == (B, N, C)

    ref = _ref_forward(x, H, W, D, weight, bias)
    np.testing.assert_allclose(np.asarray(out), np.asarray(ref), rtol=1e-4, atol=1e-4)
    print("KERNEL_OK")
</pallas_src>

<mosaic_0001>
module attributes {stable_mosaic.version = 11 : i64} {
  func.func @_dwconv3d_kernel(%arg0: i32, %arg1: i32, %arg2: memref<1x10x10x10x128xf32, #tpu.memory_space<vmem>>, %arg3: memref<27x128xf32, #tpu.memory_space<vmem>>, %arg4: memref<1x128xf32, #tpu.memory_space<vmem>>, %arg5: memref<1x8x8x8x128xf32, #tpu.memory_space<vmem>>) attributes {dimension_semantics = [#tpu.dimension_semantics<parallel>, #tpu.dimension_semantics<parallel>], iteration_bounds = array<i64: 2, 3>, scalar_prefetch = 0 : i64, scratch_operands = 0 : i64, tpu.core_type = #tpu.core_type<tc>, window_params = [{transform_indices = @transform_0, window_bounds = array<i64: 1, 10, 10, 10, 128>}, {transform_indices = @transform_1, window_bounds = array<i64: 27, 128>}, {transform_indices = @transform_2, window_bounds = array<i64: 1, 128>}, {transform_indices = @transform_3, window_bounds = array<i64: 1, 8, 8, 8, 128>}]} {
    %c0 = arith.constant 0 : index
    %c0_0 = arith.constant 0 : index
    %c0_1 = arith.constant 0 : index
    %c0_2 = arith.constant 0 : index
    %c0_3 = arith.constant 0 : index
    %0 = vector.load %arg2[%c0, %c0_0, %c0_1, %c0_2, %c0_3] : memref<1x10x10x10x128xf32, #tpu.memory_space<vmem>>, vector<1x10x10x10x128xf32>
    %1 = vector.shape_cast %0 : vector<1x10x10x10x128xf32> to vector<10x10x10x128xf32>
    %c0_4 = arith.constant 0 : index
    %c0_5 = arith.constant 0 : index
    %2 = vector.load %arg3[%c0_4, %c0_5] : memref<27x128xf32, #tpu.memory_space<vmem>>, vector<27x128xf32>
    %3 = vector.extract_strided_slice %1 {offsets = [0, 0, 0, 0], sizes = [10, 10, 8, 128], strides = [1, 1, 1, 1]} : vector<10x10x10x128xf32> to vector<10x10x8x128xf32>
    %4 = vector.extract_strided_slice %1 {offsets = [0, 0, 1, 0], sizes = [10, 10, 8, 128], strides = [1, 1, 1, 1]} : vector<10x10x10x128xf32> to vector<10x10x8x128xf32>
    %5 = vector.extract_strided_slice %1 {offsets = [0, 0, 2, 0], sizes = [10, 10, 8, 128], strides = [1, 1, 1, 1]} : vector<10x10x10x128xf32> to vector<10x10x8x128xf32>
    %6 = vector.extract_strided_slice %2 {offsets = [0, 0], sizes = [1, 128], strides = [1, 1]} : vector<27x128xf32> to vector<1x128xf32>
    %7 = vector.shape_cast %6 : vector<1x128xf32> to vector<128xf32>
    %8 = vector.shape_cast %7 : vector<128xf32> to vector<1x1x1x128xf32>
    %9 = vector.extract_strided_slice %2 {offsets = [1, 0], sizes = [1, 128], strides = [1, 1]} : vector<27x128xf32> to vector<1x128xf32>
    %10 = vector.shape_cast %9 : vector<1x128xf32> to vector<128xf32>
    %11 = vector.shape_cast %10 : vector<128xf32> to vector<1x1x1x128xf32>
    %12 = vector.extract_strided_slice %2 {offsets = [2, 0], sizes = [1, 128], strides = [1, 1]} : vector<27x128xf32> to vector<1x128xf32>
    %13 = vector.shape_cast %12 : vector<1x128xf32> to vector<128xf32>
    %14 = vector.shape_cast %13 : vector<128xf32> to vector<1x1x1x128xf32>
    %15 = vector.extract_strided_slice %2 {offsets = [3, 0], sizes = [1, 128], strides = [1, 1]} : vector<27x128xf32> to vector<1x128xf32>
    %16 = vector.shape_cast %15 : vector<1x128xf32> to vector<128xf32>
    %17 = vector.shape_cast %16 : vector<128xf32> to vector<1x1x1x128xf32>
    %18 = vector.extract_strided_slice %2 {offsets = [4, 0], sizes = [1, 128], strides = [1, 1]} : vector<27x128xf32> to vector<1x128xf32>
    %19 = vector.shape_cast %18 : vector<1x128xf32> to vector<128xf32>
    %20 = vector.shape_cast %19 : vector<128xf32> to vector<1x1x1x128xf32>
    %21 = vector.extract_strided_slice %2 {offsets = [5, 0], sizes = [1, 128], strides = [1, 1]} : vector<27x128xf32> to vector<1x128xf32>
    %22 = vector.shape_cast %21 : vector<1x128xf32> to vector<128xf32>
    %23 = vector.shape_cast %22 : vector<128xf32> to vector<1x1x1x128xf32>
    %24 = vector.extract_strided_slice %2 {offsets = [6, 0], sizes = [1, 128], strides = [1, 1]} : vector<27x128xf32> to vector<1x128xf32>
    %25 = vector.shape_cast %24 : vector<1x128xf32> to vector<128xf32>
    %26 = vector.shape_cast %25 : vector<128xf32> to vector<1x1x1x128xf32>
    %27 = vector.extract_strided_slice %2 {offsets = [7, 0], sizes = [1, 128], strides = [1, 1]} : vector<27x128xf32> to vector<1x128xf32>
    %28 = vector.shape_cast %27 : vector<1x128xf32> to vector<128xf32>
    %29 = vector.shape_cast %28 : vector<128xf32> to vector<1x1x1x128xf32>
    %30 = vector.extract_strided_slice %2 {offsets = [8, 0], sizes = [1, 128], strides = [1, 1]} : vector<27x128xf32> to vector<1x128xf32>
    %31 = vector.shape_cast %30 : vector<1x128xf32> to vector<128xf32>
    %32 = vector.shape_cast %31 : vector<128xf32> to vector<1x1x1x128xf32>
    %33 = vector.extract_strided_slice %2 {offsets = [9, 0], sizes = [1, 128], strides = [1, 1]} : vector<27x128xf32> to vector<1x128xf32>
    %34 = vector.shape_cast %33 : vector<1x128xf32> to vector<128xf32>
    %35 = vector.shape_cast %34 : vector<128xf32> to vector<1x1x1x128xf32>
    %36 = vector.extract_strided_slice %2 {offsets = [10, 0], sizes = [1, 128], strides = [1, 1]} : vector<27x128xf32> to vector<1x128xf32>
    %37 = vector.shape_cast %36 : vector<1x128xf32> to vector<128xf32>
    %38 = vector.shape_cast %37 : vector<128xf32> to vector<1x1x1x128xf32>
    %39 = vector.extract_strided_slice %2 {offsets = [11, 0], sizes = [1, 128], strides = [1, 1]} : vector<27x128xf32> to vector<1x128xf32>
    %40 = vector.shape_cast %39 : vector<1x128xf32> to vector<128xf32>
    %41 = vector.shape_cast %40 : vector<128xf32> to vector<1x1x1x128xf32>
    %42 = vector.extract_strided_slice %2 {offsets = [12, 0], sizes = [1, 128], strides = [1, 1]} : vector<27x128xf32> to vector<1x128xf32>
    %43 = vector.shape_cast %42 : vector<1x128xf32> to vector<128xf32>
    %44 = vector.shape_cast %43 : vector<128xf32> to vector<1x1x1x128xf32>
    %45 = vector.extract_strided_slice %2 {offsets = [13, 0], sizes = [1, 128], strides = [1, 1]} : vector<27x128xf32> to vector<1x128xf32>
    %46 = vector.shape_cast %45 : vector<1x128xf32> to vector<128xf32>
    %47 = vector.shape_cast %46 : vector<128xf32> to vector<1x1x1x128xf32>
    %48 = vector.extract_strided_slice %2 {offsets = [14, 0], sizes = [1, 128], strides = [1, 1]} : vector<27x128xf32> to vector<1x128xf32>
    %49 = vector.shape_cast %48 : vector<1x128xf32> to vector<128xf32>
    %50 = vector.shape_cast %49 : vector<128xf32> to vector<1x1x1x128xf32>
    %51 = vector.extract_strided_slice %2 {offsets = [15, 0], sizes = [1, 128], strides = [1, 1]} : vector<27x128xf32> to vector<1x128xf32>
    %52 = vector.shape_cast %51 : vector<1x128xf32> to vector<128xf32>
    %53 = vector.shape_cast %52 : vector<128xf32> to vector<1x1x1x128xf32>
    %54 = vector.extract_strided_slice %2 {offsets = [16, 0], sizes = [1, 128], strides = [1, 1]} : vector<27x128xf32> to vector<1x128xf32>
    %55 = vector.shape_cast %54 : vector<1x128xf32> to vector<128xf32>
    %56 = vector.shape_cast %55 : vector<128xf32> to vector<1x1x1x128xf32>
    %57 = vector.extract_strided_slice %2 {offsets = [17, 0], sizes = [1, 128], strides = [1, 1]} : vector<27x128xf32> to vector<1x128xf32>
    %58 = vector.shape_cast %57 : vector<1x128xf32> to vector<128xf32>
    %59 = vector.shape_cast %58 : vector<128xf32> to vector<1x1x1x128xf32>
    %60 = vector.extract_strided_slice %2 {offsets = [18, 0], sizes = [1, 128], strides = [1, 1]} : vector<27x128xf32> to vector<1x128xf32>
    %61 = vector.shape_cast %60 : vector<1x128xf32> to vector<128xf32>
    %62 = vector.shape_cast %61 : vector<128xf32> to vector<1x1x1x128xf32>
    %63 = vector.extract_strided_slice %2 {offsets = [19, 0], sizes = [1, 128], strides = [1, 1]} : vector<27x128xf32> to vector<1x128xf32>
    %64 = vector.shape_cast %63 : vector<1x128xf32> to vector<128xf32>
    %65 = vector.shape_cast %64 : vector<128xf32> to vector<1x1x1x128xf32>
    %66 = vector.extract_strided_slice %2 {offsets = [20, 0], sizes = [1, 128], strides = [1, 1]} : vector<27x128xf32> to vector<1x128xf32>
    %67 = vector.shape_cast %66 : vector<1x128xf32> to vector<128xf32>
    %68 = vector.shape_cast %67 : vector<128xf32> to vector<1x1x1x128xf32>
    %69 = vector.extract_strided_slice %2 {offsets = [21, 0], sizes = [1, 128], strides = [1, 1]} : vector<27x128xf32> to vector<1x128xf32>
    %70 = vector.shape_cast %69 : vector<1x128xf32> to vector<128xf32>
    %71 = vector.shape_cast %70 : vector<128xf32> to vector<1x1x1x128xf32>
    %72 = vector.extract_strided_slice %2 {offsets = [22, 0], sizes = [1, 128], strides = [1, 1]} : vector<27x128xf32> to vector<1x128xf32>
    %73 = vector.shape_cast %72 : vector<1x128xf32> to vector<128xf32>
    %74 = vector.shape_cast %73 : vector<128xf32> to vector<1x1x1x128xf32>
    %75 = vector.extract_strided_slice %2 {offsets = [23, 0], sizes = [1, 128], strides = [1, 1]} : vector<27x128xf32> to vector<1x128xf32>
    %76 = vector.shape_cast %75 : vector<1x128xf32> to vector<128xf32>
    %77 = vector.shape_cast %76 : vector<128xf32> to vector<1x1x1x128xf32>
    %78 = vector.extract_strided_slice %2 {offsets = [24, 0], sizes = [1, 128], strides = [1, 1]} : vector<27x128xf32> to vector<1x128xf32>
    %79 = vector.shape_cast %78 : vector<1x128xf32> to vector<128xf32>
    %80 = vector.shape_cast %79 : vector<128xf32> to vector<1x1x1x128xf32>
    %81 = vector.extract_strided_slice %2 {offsets = [25, 0], sizes = [1, 128], strides = [1, 1]} : vector<27x128xf32> to vector<1x128xf32>
    %82 = vector.shape_cast %81 : vector<1x128xf32> to vector<128xf32>
    %83 = vector.shape_cast %82 : vector<128xf32> to vector<1x1x1x128xf32>
    %84 = vector.extract_strided_slice %2 {offsets = [26, 0], sizes = [1, 128], strides = [1, 1]} : vector<27x128xf32> to vector<1x128xf32>
    %85 = vector.shape_cast %84 : vector<1x128xf32> to vector<128xf32>
    %86 = vector.shape_cast %85 : vector<128xf32> to vector<1x1x1x128xf32>
    %c0_6 = arith.constant 0 : index
    %c0_7 = arith.constant 0 : index
    %87 = vector.load %arg4[%c0_6, %c0_7] : memref<1x128xf32, #tpu.memory_space<vmem>>, vector<1x128xf32>
    %88 = vector.shape_cast %87 : vector<1x128xf32> to vector<1x1x1x128xf32>
    %89 = vector.shape_cast %88 : vector<1x1x1x128xf32> to vector<1x1x1x128xf32>
    %90 = vector.broadcast %89 : vector<1x1x1x128xf32> to vector<8x8x8x128xf32>
    %91 = vector.extract_strided_slice %3 {offsets = [0, 0, 0, 0], sizes = [8, 8, 8, 128], strides = [1, 1, 1, 1]} : vector<10x10x8x128xf32> to vector<8x8x8x128xf32>
    %92 = vector.broadcast %8 : vector<1x1x1x128xf32> to vector<8x8x8x128xf32>
    %93 = arith.mulf %91, %92 : vector<8x8x8x128xf32>
    %94 = arith.addf %90, %93 : vector<8x8x8x128xf32>
    %95 = vector.extract_strided_slice %4 {offsets = [0, 0, 0, 0], sizes = [8, 8, 8, 128], strides = [1, 1, 1, 1]} : vector<10x10x8x128xf32> to vector<8x8x8x128xf32>
    %96 = vector.broadcast %11 : vector<1x1x1x128xf32> to vector<8x8x8x128xf32>
    %97 = arith.mulf %95, %96 : vector<8x8x8x128xf32>
    %98 = arith.addf %94, %97 : vector<8x8x8x128xf32>
    %99 = vector.extract_strided_slice %5 {offsets = [0, 0, 0, 0], sizes = [8, 8, 8, 128], strides = [1, 1, 1, 1]} : vector<10x10x8x128xf32> to vector<8x8x8x128xf32>
    %100 = vector.broadcast %14 : vector<1x1x1x128xf32> to vector<8x8x8x128xf32>
    %101 = arith.mulf %99, %100 : vector<8x8x8x128xf32>
    %102 = arith.addf %98, %101 : vector<8x8x8x128xf32>
    %103 = vector.extract_strided_slice %3 {offsets = [0, 1, 0, 0], sizes = [8, 8, 8, 128], strides = [1, 1, 1, 1]} : vector<10x10x8x128xf32> to vector<8x8x8x128xf32>
    %104 = vector.broadcast %17 : vector<1x1x1x128xf32> to vector<8x8x8x128xf32>
    %105 = arith.mulf %103, %104 : vector<8x8x8x128xf32>
    %106 = arith.addf %102, %105 : vector<8x8x8x128xf32>
    %107 = vector.extract_strided_slice %4 {offsets = [0, 1, 0, 0], sizes = [8, 8, 8, 128], strides = [1, 1, 1, 1]} : vector<10x10x8x128xf32> to vector<8x8x8x128xf32>
    %108 = vector.broadcast %20 : vector<1x1x1x128xf32> to vector<8x8x8x128xf32>
    %109 = arith.mulf %107, %108 : vector<8x8x8x128xf32>
    %110 = arith.addf %106, %109 : vector<8x8x8x128xf32>
    %111 = vector.extract_strided_slice %5 {offsets = [0, 1, 0, 0], sizes = [8, 8, 8, 128], strides = [1, 1, 1, 1]} : vector<10x10x8x128xf32> to vector<8x8x8x128xf32>
    %112 = vector.broadcast %23 : vector<1x1x1x128xf32> to vector<8x8x8x128xf32>
    %113 = arith.mulf %111, %112 : vector<8x8x8x128xf32>
    %114 = arith.addf %110, %113 : vector<8x8x8x128xf32>
    %115 = vector.extract_strided_slice %3 {offsets = [0, 2, 0, 0], sizes = [8, 8, 8, 128], strides = [1, 1, 1, 1]} : vector<10x10x8x128xf32> to vector<8x8x8x128xf32>
    %116 = vector.broadcast %26 : vector<1x1x1x128xf32> to vector<8x8x8x128xf32>
    %117 = arith.mulf %115, %116 : vector<8x8x8x128xf32>
    %118 = arith.addf %114, %117 : vector<8x8x8x128xf32>
    %119 = vector.extract_strided_slice %4 {offsets = [0, 2, 0, 0], sizes = [8, 8, 8, 128], strides = [1, 1, 1, 1]} : vector<10x10x8x128xf32> to vector<8x8x8x128xf32>
    %120 = vector.broadcast %29 : vector<1x1x1x128xf32> to vector<8x8x8x128xf32>
    %121 = arith.mulf %119, %120 : vector<8x8x8x128xf32>
    %122 = arith.addf %118, %121 : vector<8x8x8x128xf32>
    %123 = vector.extract_strided_slice %5 {offsets = [0, 2, 0, 0], sizes = [8, 8, 8, 128], strides = [1, 1, 1, 1]} : vector<10x10x8x128xf32> to vector<8x8x8x128xf32>
    %124 = vector.broadcast %32 : vector<1x1x1x128xf32> to vector<8x8x8x128xf32>
    %125 = arith.mulf %123, %124 : vector<8x8x8x128xf32>
    %126 = arith.addf %122, %125 : vector<8x8x8x128xf32>
    %127 = vector.extract_strided_slice %3 {offsets = [1, 0, 0, 0], sizes = [8, 8, 8, 128], strides = [1, 1, 1, 1]} : vector<10x10x8x128xf32> to vector<8x8x8x128xf32>
    %128 = vector.broadcast %35 : vector<1x1x1x128xf32> to vector<8x8x8x128xf32>
    %129 = arith.mulf %127, %128 : vector<8x8x8x128xf32>
    %130 = arith.addf %126, %129 : vector<8x8x8x128xf32>
    %131 = vector.extract_strided_slice %4 {offsets = [1, 0, 0, 0], sizes = [8, 8, 8, 128], strides = [1, 1, 1, 1]} : vector<10x10x8x128xf32> to vector<8x8x8x128xf32>
    %132 = vector.broadcast %38 : vector<1x1x1x128xf32> to vector<8x8x8x128xf32>
    %133 = arith.mulf %131, %132 : vector<8x8x8x128xf32>
    %134 = arith.addf %130, %133 : vector<8x8x8x128xf32>
    %135 = vector.extract_strided_slice %5 {offsets = [1, 0, 0, 0], sizes = [8, 8, 8, 128], strides = [1, 1, 1, 1]} : vector<10x10x8x128xf32> to vector<8x8x8x128xf32>
    %136 = vector.broadcast %41 : vector<1x1x1x128xf32> to vector<8x8x8x128xf32>
    %137 = arith.mulf %135, %136 : vector<8x8x8x128xf32>
    %138 = arith.addf %134, %137 : vector<8x8x8x128xf32>
    %139 = vector.extract_strided_slice %3 {offsets = [1, 1, 0, 0], sizes = [8, 8, 8, 128], strides = [1, 1, 1, 1]} : vector<10x10x8x128xf32> to vector<8x8x8x128xf32>
    %140 = vector.broadcast %44 : vector<1x1x1x128xf32> to vector<8x8x8x128xf32>
    %141 = arith.mulf %139, %140 : vector<8x8x8x128xf32>
    %142 = arith.addf %138, %141 : vector<8x8x8x128xf32>
    %143 = vector.extract_strided_slice %4 {offsets = [1, 1, 0, 0], sizes = [8, 8, 8, 128], strides = [1, 1, 1, 1]} : vector<10x10x8x128xf32> to vector<8x8x8x128xf32>
    %144 = vector.broadcast %47 : vector<1x1x1x128xf32> to vector<8x8x8x128xf32>
    %145 = arith.mulf %143, %144 : vector<8x8x8x128xf32>
    %146 = arith.addf %142, %145 : vector<8x8x8x128xf32>
    %147 = vector.extract_strided_slice %5 {offsets = [1, 1, 0, 0], sizes = [8, 8, 8, 128], strides = [1, 1, 1, 1]} : vector<10x10x8x128xf32> to vector<8x8x8x128xf32>
    %148 = vector.broadcast %50 : vector<1x1x1x128xf32> to vector<8x8x8x128xf32>
    %149 = arith.mulf %147, %148 : vector<8x8x8x128xf32>
    %150 = arith.addf %146, %149 : vector<8x8x8x128xf32>
    %151 = vector.extract_strided_slice %3 {offsets = [1, 2, 0, 0], sizes = [8, 8, 8, 128], strides = [1, 1, 1, 1]} : vector<10x10x8x128xf32> to vector<8x8x8x128xf32>
    %152 = vector.broadcast %53 : vector<1x1x1x128xf32> to vector<8x8x8x128xf32>
    %153 = arith.mulf %151, %152 : vector<8x8x8x128xf32>
    %154 = arith.addf %150, %153 : vector<8x8x8x128xf32>
    %155 = vector.extract_strided_slice %4 {offsets = [1, 2, 0, 0], sizes = [8, 8, 8, 128], strides = [1, 1, 1, 1]} : vector<10x10x8x128xf32> to vector<8x8x8x128xf32>
    %156 = vector.broadcast %56 : vector<1x1x1x128xf32> to vector<8x8x8x128xf32>
    %157 = arith.mulf %155, %156 : vector<8x8x8x128xf32>
    %158 = arith.addf %154, %157 : vector<8x8x8x128xf32>
    %159 = vector.extract_strided_slice %5 {offsets = [1, 2, 0, 0], sizes = [8, 8, 8, 128], strides = [1, 1, 1, 1]} : vector<10x10x8x128xf32> to vector<8x8x8x128xf32>
    %160 = vector.broadcast %59 : vector<1x1x1x128xf32> to vector<8x8x8x128xf32>
    %161 = arith.mulf %159, %160 : vector<8x8x8x128xf32>
    %162 = arith.addf %158, %161 : vector<8x8x8x128xf32>
    %163 = vector.extract_strided_slice %3 {offsets = [2, 0, 0, 0], sizes = [8, 8, 8, 128], strides = [1, 1, 1, 1]} : vector<10x10x8x128xf32> to vector<8x8x8x128xf32>
    %164 = vector.broadcast %62 : vector<1x1x1x128xf32> to vector<8x8x8x128xf32>
    %165 = arith.mulf %163, %164 : vector<8x8x8x128xf32>
    %166 = arith.addf %162, %165 : vector<8x8x8x128xf32>
    %167 = vector.extract_strided_slice %4 {offsets = [2, 0, 0, 0], sizes = [8, 8, 8, 128], strides = [1, 1, 1, 1]} : vector<10x10x8x128xf32> to vector<8x8x8x128xf32>
    %168 = vector.broadcast %65 : vector<1x1x1x128xf32> to vector<8x8x8x128xf32>
    %169 = arith.mulf %167, %168 : vector<8x8x8x128xf32>
    %170 = arith.addf %166, %169 : vector<8x8x8x128xf32>
    %171 = vector.extract_strided_slice %5 {offsets = [2, 0, 0, 0], sizes = [8, 8, 8, 128], strides = [1, 1, 1, 1]} : vector<10x10x8x128xf32> to vector<8x8x8x128xf32>
    %172 = vector.broadcast %68 : vector<1x1x1x128xf32> to vector<8x8x8x128xf32>
    %173 = arith.mulf %171, %172 : vector<8x8x8x128xf32>
    %174 = arith.addf %170, %173 : vector<8x8x8x128xf32>
    %175 = vector.extract_strided_slice %3 {offsets = [2, 1, 0, 0], sizes = [8, 8, 8, 128], strides = [1, 1, 1, 1]} : vector<10x10x8x128xf32> to vector<8x8x8x128xf32>
    %176 = vector.broadcast %71 : vector<1x1x1x128xf32> to vector<8x8x8x128xf32>
    %177 = arith.mulf %175, %176 : vector<8x8x8x128xf32>
    %178 = arith.addf %174, %177 : vector<8x8x8x128xf32>
    %179 = vector.extract_strided_slice %4 {offsets = [2, 1, 0, 0], sizes = [8, 8, 8, 128], strides = [1, 1, 1, 1]} : vector<10x10x8x128xf32> to vector<8x8x8x128xf32>
    %180 = vector.broadcast %74 : vector<1x1x1x128xf32> to vector<8x8x8x128xf32>
    %181 = arith.mulf %179, %180 : vector<8x8x8x128xf32>
    %182 = arith.addf %178, %181 : vector<8x8x8x128xf32>
    %183 = vector.extract_strided_slice %5 {offsets = [2, 1, 0, 0], sizes = [8, 8, 8, 128], strides = [1, 1, 1, 1]} : vector<10x10x8x128xf32> to vector<8x8x8x128xf32>
    %184 = vector.broadcast %77 : vector<1x1x1x128xf32> to vector<8x8x8x128xf32>
    %185 = arith.mulf %183, %184 : vector<8x8x8x128xf32>
    %186 = arith.addf %182, %185 : vector<8x8x8x128xf32>
    %187 = vector.extract_strided_slice %3 {offsets = [2, 2, 0, 0], sizes = [8, 8, 8, 128], strides = [1, 1, 1, 1]} : vector<10x10x8x128xf32> to vector<8x8x8x128xf32>
    %188 = vector.broadcast %80 : vector<1x1x1x128xf32> to vector<8x8x8x128xf32>
    %189 = arith.mulf %187, %188 : vector<8x8x8x128xf32>
    %190 = arith.addf %186, %189 : vector<8x8x8x128xf32>
    %191 = vector.extract_strided_slice %4 {offsets = [2, 2, 0, 0], sizes = [8, 8, 8, 128], strides = [1, 1, 1, 1]} : vector<10x10x8x128xf32> to vector<8x8x8x128xf32>
    %192 = vector.broadcast %83 : vector<1x1x1x128xf32> to vector<8x8x8x128xf32>
    %193 = arith.mulf %191, %192 : vector<8x8x8x128xf32>
    %194 = arith.addf %190, %193 : vector<8x8x8x128xf32>
    %195 = vector.extract_strided_slice %5 {offsets = [2, 2, 0, 0], sizes = [8, 8, 8, 128], strides = [1, 1, 1, 1]} : vector<10x10x8x128xf32> to vector<8x8x8x128xf32>
    %196 = vector.broadcast %86 : vector<1x1x1x128xf32> to vector<8x8x8x128xf32>
    %197 = arith.mulf %195, %196 : vector<8x8x8x128xf32>
    %198 = arith.addf %194, %197 : vector<8x8x8x128xf32>
    %c0_8 = arith.constant 0 : index
    %c0_9 = arith.constant 0 : index
    %c0_10 = arith.constant 0 : index
    %c0_11 = arith.constant 0 : index
    %c0_12 = arith.constant 0 : index
    %199 = vector.load %arg5[%c0_8, %c0_9, %c0_10, %c0_11, %c0_12] : memref<1x8x8x8x128xf32, #tpu.memory_space<vmem>>, vector<1x8x8x8x128xf32>
    %200 = vector.shape_cast %199 : vector<1x8x8x8x128xf32> to vector<8x8x8x128xf32>
    %201 = vector.shape_cast %198 : vector<8x8x8x128xf32> to vector<1x8x8x8x128xf32>
    tpu.vector_store %arg5[%c0_8, %c0_9, %c0_10, %c0_11, %c0_12], %201 {strides = array<i32>} : memref<1x8x8x8x128xf32, #tpu.memory_space<vmem>>, vector<1x8x8x8x128xf32>,
    return
  }
  func.func @transform_0(%arg0: i32, %arg1: i32) -> (i32, i32, i32, i32, i32) {
    %c0_i32 = arith.constant 0 : i32
    %c0_i32_0 = arith.constant 0 : i32
    %c0_i32_1 = arith.constant 0 : i32
    %c0_i32_2 = arith.constant 0 : i32
    return %arg0, %c0_i32, %c0_i32_0, %c0_i32_1, %arg1 : i32, i32, i32, i32, i32
  }
  func.func @transform_1(%arg0: i32, %arg1: i32) -> (i32, i32) {
    %c0_i32 = arith.constant 0 : i32
    %c0_i32_0 = arith.constant 0 : i32
    return %c0_i32, %arg1 : i32, i32
  }
  func.func @transform_2(%arg0: i32, %arg1: i32) -> (i32, i32) {
    %c0_i32 = arith.constant 0 : i32
    %c0_i32_0 = arith.constant 0 : i32
    return %c0_i32, %arg1 : i32, i32
  }
  func.func @transform_3(%arg0: i32, %arg1: i32) -> (i32, i32, i32, i32, i32) {
    %c0_i32 = arith.constant 0 : i32
    %c0_i32_0 = arith.constant 0 : i32
    %c0_i32_1 = arith.constant 0 : i32
    %c0_i32_2 = arith.constant 0 : i32
    return %arg0, %c0_i32, %c0_i32_0, %c0_i32_1, %arg1 : i32, i32, i32, i32, i32
  }
}

</mosaic_0001>

<llo_original>
// kernel: tpu_custom_call.1
$region0: #{tpu_custom_call.1}
  #allocation0 [shape = 'u32[]', space=smem, size = 0x4, offset = 0x4, fixed_abs, tag = 'smem constant byte address 0x4 - core index']
  #allocation1 [shape = 'u32[144,128]{1,0:T(1,128)}', space=vmem, size = 0x12000, scoped, tag = 'internal scratch']
  %s0 = inlined_call_operand.vmem [shape: f32[2,10,10,10,384], index: 0, kind: input, shape index: {}]
  %s1 = inlined_call_operand.vmem [shape: f32[27,384], index: 1, kind: input, shape index: {}]
  %s2 = inlined_call_operand.vmem [shape: f32[1,384], index: 2, kind: input, shape index: {}]
  %s3 = inlined_call_operand.hbm [shape: f32[2,8,8,8,384], index: 3, kind: output, shape index: {}]
  %s4 = sld [smem:[#allocation0]]
  $region121: #{tpu_custom_call.1} parent=0
    _
  %s6 = ssub.s32 1, %s4
  %s7 = scalar_select 0, %s6, %s4
  $region1: #{tpu_custom_call.1} parent=0
    #allocation2 [shape = 'u8[1638400]{0}', space=vmem, size = 0x190000, scoped, tag = 'input window, operand 0']
    #allocation3 [shape = 'u8[32768]{0}', space=vmem, size = 0x8000, scoped, tag = 'input window, operand 1']
    #allocation4 [shape = 'u8[524288]{0}', space=vmem, size = 0x80000, scoped, tag = 'output window, operand 0']
    #allocation5 [shape = 's32[2]{0}', space=sflag, size = 0x8, scoped, tag = 'scoped memory for tpu_custom_call.1']
    %8 = vsyncpa [#allocation5], 0
    %s9 = scalar_lea.sflag [#allocation5], 1
    %10 = vsyncpa %s9, 0
    loop: start=0, step=1, limit=8
    $region2: #{tpu_custom_call.1} parent=1 // loop_pre_header
      _
    $region3: #{tpu_custom_call.1} parent=1 // loop_header
      %s12 = sphi 0, %s16
      %p13 = scmp.ge.s32.totalorder %s12, 8
      %s19 = sphi 0, %s31
      %s20 = sphi 0, %s27
      %s21 = sphi 0, %s19
      %s22 = sphi 0, %s20
      %s23 = sphi 0, %s21
      %s24 = sphi 0, %s22
      %s36 = sphi 0, %s38
      %s39 = sphi 0, %s36
      %s40 = sphi 0, %s39
      %s56 = sphi 0, %s40
      %s62 = sphi 0, %s64
      %s65 = sphi 0, %s62
      %s66 = sphi 0, %s65
      %s82 = sphi 0, %s66
      %s88 = sphi 0, %s90
      %s91 = sphi 0, %s88
      %s92 = sphi 0, %s91
      %s108 = sphi 0, %s92
      %s116 = sphi 0, %s118
      %s119 = sphi 0, %s116
      %s120 = sphi 0, %s119
      %s136 = sphi 0, %s120
    $region4: #{tpu_custom_call.1} parent=1 // loop_header_branch
      %15 = sbr.rel (%p13) target = $region8
    $region5: #{tpu_custom_call.1} parent=1 // loop_body
      %s17 = ssub.s32 %s12, 1
      %s18 = ssub.s32 %s12, 2
      %s25 = sadd.s32 1, %s20
      %p26 = scmp.ge.s32.totalorder %s25, 3
      %s27 = scalar_select %p26, 0, %s25
      %s28 = sadd.s32 1, %s19
      %s29 = scalar_select %p26, %s28, %s19
      %p30 = scmp.ge.s32.totalorder %s29, 2
      %s31 = scalar_select %p30, 0, %s29
      %s32 = ssub.s32 %s19, %s31
      %s33 = ssub.s32 %s20, %s27
      %s34 = sor.u32 %s32, %s33
      %p35 = scmp.eq.s32.totalorder %s34, 0
      %s37 = sadd.s32 %s36, 1
      %s38 = scalar_select %p35, %s36, %s37
      %p41 = pneg %p35
      %p42 = scmp.eq.s32.totalorder %s12, 5
      %p43 = por %p41, %p42
      %p44 = scmp.ne.s32.totalorder %s36, %s39
      %p45 = scmp.eq.s32.totalorder %s12, 0
      %p46 = por %p44, %p45
      %p47 = scmp.ne.s32.totalorder %s36, %s39
      %p48 = scmp.eq.s32.totalorder %s17, 5
      %p49 = por %p47, %p48
      %p50 = scmp.ne.s32.totalorder %s39, %s40
      %p51 = scmp.eq.s32.totalorder %s17, 0
      %p52 = por %p50, %p51
      %p53 = scmp.ne.s32.totalorder %s39, %s40
      %p54 = scmp.eq.s32.totalorder %s18, 5
      %p55 = por %p53, %p54
      %p57 = scmp.ne.s32.totalorder %s40, %s56
      %p58 = scmp.eq.s32.totalorder %s18, 0
      %p59 = por %p57, %p58
      %s60 = ssub.s32 %s20, %s27
      %p61 = scmp.eq.s32.totalorder %s60, 0
      %s63 = sadd.s32 %s62, 1
      %s64 = scalar_select %p61, %s62, %s63
      %p67 = pneg %p61
      %p68 = scmp.eq.s32.totalorder %s12, 5
      %p69 = por %p67, %p68
      %p70 = scmp.ne.s32.totalorder %s62, %s65
      %p71 = scmp.eq.s32.totalorder %s12, 0
      %p72 = por %p70, %p71
      %p73 = scmp.ne.s32.totalorder %s62, %s65
      %p74 = scmp.eq.s32.totalorder %s17, 5
      %p75 = por %p73, %p74
      %p76 = scmp.ne.s32.totalorder %s65, %s66
      %p77 = scmp.eq.s32.totalorder %s17, 0
      %p78 = por %p76, %p77
      %p79 = scmp.ne.s32.totalorder %s65, %s66
      %p80 = scmp.eq.s32.totalorder %s18, 5
      %p81 = por %p79, %p80
      %p83 = scmp.ne.s32.totalorder %s66, %s82
      %p84 = scmp.eq.s32.totalorder %s18, 0
      %p85 = por %p83, %p84
      %s86 = ssub.s32 %s20, %s27
      %p87 = scmp.eq.s32.totalorder %s86, 0
      %s89 = sadd.s32 %s88, 1
      %s90 = scalar_select %p87, %s88, %s89
      %p93 = pneg %p87
      %p94 = scmp.eq.s32.totalorder %s12, 5
      %p95 = por %p93, %p94
      %p96 = scmp.ne.s32.totalorder %s88, %s91
      %p97 = scmp.eq.s32.totalorder %s12, 0
      %p98 = por %p96, %p97
      %p99 = scmp.ne.s32.totalorder %s88, %s91
      %p100 = scmp.eq.s32.totalorder %s17, 5
      %p101 = por %p99, %p100
      %p102 = scmp.ne.s32.totalorder %s91, %s92
      %p103 = scmp.eq.s32.totalorder %s17, 0
      %p104 = por %p102, %p103
      %p105 = scmp.ne.s32.totalorder %s91, %s92
      %p106 = scmp.eq.s32.totalorder %s18, 5
      %p107 = por %p105, %p106
      %p109 = scmp.ne.s32.totalorder %s92, %s108
      %p110 = scmp.eq.s32.totalorder %s18, 0
      %p111 = por %p109, %p110
      %s112 = ssub.s32 %s19, %s31
      %s113 = ssub.s32 %s20, %s27
      %s114 = sor.u32 %s112, %s113
      %p115 = scmp.eq.s32.totalorder %s114, 0
      %s117 = sadd.s32 %s116, 1
      %s118 = scalar_select %p115, %s116, %s117
      %p121 = pneg %p115
      %p122 = scmp.eq.s32.totalorder %s12, 5
      %p123 = por %p121, %p122
      %p124 = scmp.ne.s32.totalorder %s116, %s119
      %p125 = scmp.eq.s32.totalorder %s12, 0
      %p126 = por %p124, %p125
      %p127 = scmp.ne.s32.totalorder %s116, %s119
      %p128 = scmp.eq.s32.totalorder %s17, 5
      %p129 = por %p127, %p128
      %p130 = scmp.ne.s32.totalorder %s119, %s120
      %p131 = scmp.eq.s32.totalorder %s17, 0
      %p132 = por %p130, %p131
      %p133 = scmp.ne.s32.totalorder %s119, %s120
      %p134 = scmp.eq.s32.totalorder %s18, 5
      %p135 = por %p133, %p134
      %p137 = scmp.ne.s32.totalorder %s120, %s136
      %p138 = scmp.eq.s32.totalorder %s18, 0
      %p139 = por %p137, %p138
      %p140 = scmp.le.s32.totalorder 1, %s12
      %p141 = scmp.lt.s32.totalorder %s12, 7
      %p142 = pnand %p140, %p141
      %p143 = pneg %p142
      // Predicated region
      $region9: #{tpu_custom_call.1} parent=5 // pred_check
        _
      $region10: #{tpu_custom_call.1} parent=5 // pred_check_branch
        %145 = sbr.rel (%p142) target = $region12
      $region11: #{tpu_custom_call.1} parent=5 // pred_region
        %s146 = ssub.s32 %s12, 1
      $region12: #{tpu_custom_call.1} parent=5 // pred_fallthru
        _
      %p147 = scmp.lt.s32.totalorder %s12, 6
      // Predicated region
      $region13: #{tpu_custom_call.1} parent=5 // pred_check
        %p148 = pneg %p147
      $region14: #{tpu_custom_call.1} parent=5 // pred_check_branch
        %150 = sbr.rel (%p148) target = $region16
      $region15: #{tpu_custom_call.1} parent=5 // pred_region
        // Predicated region
        $region17: #{tpu_custom_call.1} parent=15 // pred_check
          %p151 = pneg %p46
        $region18: #{tpu_custom_call.1} parent=15 // pred_check_branch
          %153 = sbr.rel (%p151) target = $region20
        $region19: #{tpu_custom_call.1} parent=15 // pred_region
          %s154 = sand.u32 %s36, 1
          %s155 = sand.u32 %s36, 1
          %s156 = smul.addr %s155, 1600
          %s157 = scalar_lea.vmem [#allocation2], %s156
          %s158 = smul.addr %s19, 600
          %s159 = sadd.s32 %s20, %s158
          %s160 = smul.addr %s159, 8
          %s161 = scalar_lea.vmem %s0, %s160
          // Predicated region
          $region21: #{tpu_custom_call.1} parent=19 // pred_check
            _
          $region22: #{tpu_custom_call.1} parent=19 // pred_check_branch
            %163 = sbr.rel (0) target = $region24
          $region23: #{tpu_custom_call.1} parent=19 // pred_region
            // Predicated region
            $region25: #{tpu_custom_call.1} parent=23 // pred_check
              _
            $region26: #{tpu_custom_call.1} parent=23 // pred_check_branch
              %165 = sbr.rel (0) target = $region28
            $region27: #{tpu_custom_call.1} parent=23 // pred_region
              // Predicated region
              $region40: #{tpu_custom_call.1} parent=27 // pred_check
                _
              $region41: #{tpu_custom_call.1} parent=27 // pred_check_branch
                %579 = sbr.rel (0) target = $region43
              $region42: #{tpu_custom_call.1} parent=27 // pred_region
                loop: start=0, step=1, limit=1
                $region44: #{tpu_custom_call.1} parent=42 // loop_pre_header
                  _
                $region45: #{tpu_custom_call.1} parent=42 // loop_header
                  %s581 = sphi 0, %s585
                  %p582 = scmp.ge.s32.totalorder %s581, 1
                  %s586 = sphi %s161, %s161
                  %s587 = sphi %s157, %s157
                $region46: #{tpu_custom_call.1} parent=42 // loop_header_branch
                  %584 = sbr.rel (%p582) target = $region50
                $region47: #{tpu_custom_call.1} parent=42 // loop_body
                  %v588 = vld [vmem:[%s586] sm:$0xff]
                  %589 = vst [vmem:[%s587] sm:$0xff] %v588
                  %v590 = vld [vmem:[%s586 + $0x18] sm:$0xff]
                  %591 = vst [vmem:[%s587 + $0x8] sm:$0xff] %v590
                  %v592 = vld [vmem:[%s586 + $0x30] sm:$0xff]
                  %593 = vst [vmem:[%s587 + $0x10] sm:$0xff] %v592
                  %v594 = vld [vmem:[%s586 + $0x48] sm:$0xff]
                  %595 = vst [vmem:[%s587 + $0x18] sm:$0xff] %v594
                  %v596 = vld [vmem:[%s586 + $0x60] sm:$0xff]
                  %597 = vst [vmem:[%s587 + $0x20] sm:$0xff] %v596
                  %v598 = vld [vmem:[%s586 + $0x78] sm:$0xff]
                  %599 = vst [vmem:[%s587 + $0x28] sm:$0xff] %v598
                  %v600 = vld [vmem:[%s586 + $0x90] sm:$0xff]
                  %601 = vst [vmem:[%s587 + $0x30] sm:$0xff] %v600
                  %v602 = vld [vmem:[%s586 + $0xa8] sm:$0xff]
                  %603 = vst [vmem:[%s587 + $0x38] sm:$0xff] %v602
                  %v604 = vld [vmem:[%s586 + $0xc0] sm:$0xff]
                  %605 = vst [vmem:[%s587 + $0x40] sm:$0xff] %v604
                  %v606 = vld [vmem:[%s586 + $0xd8] sm:$0xff]
                  %607 = vst [vmem:[%s587 + $0x48] sm:$0xff] %v606
                  %v608 = vld [vmem:[%s586 + $0xf0] sm:$0xff]
                  %609 = vst [vmem:[%s587 + $0x50] sm:$0xff] %v608
                  %v610 = vld [vmem:[%s586 + $0x108] sm:$0xff]
                  %611 = vst [vmem:[%s587 + $0x58] sm:$0xff] %v610
                  %v612 = vld [vmem:[%s586 + $0x120] sm:$0xff]
                  %613 = vst [vmem:[%s587 + $0x60] sm:$0xff] %v612
                  %v614 = vld [vmem:[%s586 + $0x138] sm:$0xff]
                  %615 = vst [vmem:[%s587 + $0x68] sm:$0xff] %v614
                  %v616 = vld [vmem:[%s586 + $0x150] sm:$0xff]
                  %617 = vst [vmem:[%s587 + $0x70] sm:$0xff] %v616
                  %v618 = vld [vmem:[%s586 + $0x168] sm:$0xff]
                  %619 = vst [vmem:[%s587 + $0x78] sm:$0xff] %v618
                  %v620 = vld [vmem:[%s586 + $0x180] sm:$0xff]
                  %621 = vst [vmem:[%s587 + $0x80] sm:$0xff] %v620
                  %v622 = vld [vmem:[%s586 + $0x198] sm:$0xff]
                  %623 = vst [vmem:[%s587 + $0x88] sm:$0xff] %v622
                  %v624 = vld [vmem:[%s586 + $0x1b0] sm:$0xff]
                  %625 = vst [vmem:[%s587 + $0x90] sm:$0xff] %v624
                  %v626 = vld [vmem:[%s586 + $0x1c8] sm:$0xff]
                  %627 = vst [vmem:[%s587 + $0x98] sm:$0xff] %v626
                  %v628 = vld [vmem:[%s586 + $0x1e0] sm:$0xff]
                  %629 = vst [vmem:[%s587 + $0xa0] sm:$0xff] %v628
                  %v630 = vld [vmem:[%s586 + $0x1f8] sm:$0xff]
                  %631 = vst [vmem:[%s587 + $0xa8] sm:$0xff] %v630
                  %v632 = vld [vmem:[%s586 + $0x210] sm:$0xff]
                  %633 = vst [vmem:[%s587 + $0xb0] sm:$0xff] %v632
                  %v634 = vld [vmem:[%s586 + $0x228] sm:$0xff]
                  %635 = vst [vmem:[%s587 + $0xb8] sm:$0xff] %v634
                  %v636 = vld [vmem:[%s586 + $0x240] sm:$0xff]
                  %637 = vst [vmem:[%s587 + $0xc0] sm:$0xff] %v636
                  %v638 = vld [vmem:[%s586 + $0x258] sm:$0xff]
                  %639 = vst [vmem:[%s587 + $0xc8] sm:$0xff] %v638
                  %v640 = vld [vmem:[%s586 + $0x270] sm:$0xff]
                  %641 = vst [vmem:[%s587 + $0xd0] sm:$0xff] %v640
                  %v642 = vld [vmem:[%s586 + $0x288] sm:$0xff]
                  %643 = vst [vmem:[%s587 + $0xd8] sm:$0xff] %v642
                  %v644 = vld [vmem:[%s586 + $0x2a0] sm:$0xff]
                  %645 = vst [vmem:[%s587 + $0xe0] sm:$0xff] %v644
                  %v646 = vld [vmem:[%s586 + $0x2b8] sm:$0xff]
                  %647 = vst [vmem:[%s587 + $0xe8] sm:$0xff] %v646
                  %v648 = vld [vmem:[%s586 + $0x2d0] sm:$0xff]
                  %649 = vst [vmem:[%s587 + $0xf0] sm:$0xff] %v648
                  %v650 = vld [vmem:[%s586 + $0x2e8] sm:$0xff]
                  %651 = vst [vmem:[%s587 + $0xf8] sm:$0xff] %v650
                  %v652 = vld [vmem:[%s586 + $0x300] sm:$0xff]
                  %653 = vst [vmem:[%s587 + $0x100] sm:$0xff] %v652
                  %v654 = vld [vmem:[%s586 + $0x318] sm:$0xff]
                  %655 = vst [vmem:[%s587 + $0x108] sm:$0xff] %v654
                  %v656 = vld [vmem:[%s586 + $0x330] sm:$0xff]
                  %657 = vst [vmem:[%s587 + $0x110] sm:$0xff] %v656
                  %v658 = vld [vmem:[%s586 + $0x348] sm:$0xff]
                  %659 = vst [vmem:[%s587 + $0x118] sm:$0xff] %v658
                  %v660 = vld [vmem:[%s586 + $0x360] sm:$0xff]
                  %661 = vst [vmem:[%s587 + $0x120] sm:$0xff] %v660
                  %v662 = vld [vmem:[%s586 + $0x378] sm:$0xff]
                  %663 = vst [vmem:[%s587 + $0x128] sm:$0xff] %v662
                  %v664 = vld [vmem:[%s586 + $0x390] sm:$0xff]
                  %665 = vst [vmem:[%s587 + $0x130] sm:$0xff] %v664
                  %v666 = vld [vmem:[%s586 + $0x3a8] sm:$0xff]
                  %667 = vst [vmem:[%s587 + $0x138] sm:$0xff] %v666
                  %v668 = vld [vmem:[%s586 + $0x3c0] sm:$0xff]
                  %669 = vst [vmem:[%s587 + $0x140] sm:$0xff] %v668
                  %v670 = vld [vmem:[%s586 + $0x3d8] sm:$0xff]
                  %671 = vst [vmem:[%s587 + $0x148] sm:$0xff] %v670
                  %v672 = vld [vmem:[%s586 + $0x3f0] sm:$0xff]
                  %673 = vst [vmem:[%s587 + $0x150] sm:$0xff] %v672
                  %v674 = vld [vmem:[%s586 + $0x408] sm:$0xff]
                  %675 = vst [vmem:[%s587 + $0x158] sm:$0xff] %v674
                  %v676 = vld [vmem:[%s586 + $0x420] sm:$0xff]
                  %677 = vst [vmem:[%s587 + $0x160] sm:$0xff] %v676
                  %v678 = vld [vmem:[%s586 + $0x438] sm:$0xff]
                  %679 = vst [vmem:[%s587 + $0x168] sm:$0xff] %v678
                  %v680 = vld [vmem:[%s586 + $0x450] sm:$0xff]
                  %681 = vst [vmem:[%s587 + $0x170] sm:$0xff] %v680
                  %v682 = vld [vmem:[%s586 + $0x468] sm:$0xff]
                  %683 = vst [vmem:[%s587 + $0x178] sm:$0xff] %v682
                  %v684 = vld [vmem:[%s586 + $0x480] sm:$0xff]
                  %685 = vst [vmem:[%s587 + $0x180] sm:$0xff] %v684
                  %v686 = vld [vmem:[%s586 + $0x498] sm:$0xff]
                  %687 = vst [vmem:[%s587 + $0x188] sm:$0xff] %v686
                  %v688 = vld [vmem:[%s586 + $0x4b0] sm:$0xff]
                  %689 = vst [vmem:[%s587 + $0x190] sm:$0xff] %v688
                  %v690 = vld [vmem:[%s586 + $0x4c8] sm:$0xff]
                  %691 = vst [vmem:[%s587 + $0x198] sm:$0xff] %v690
                  %v692 = vld [vmem:[%s586 + $0x4e0] sm:$0xff]
                  %693 = vst [vmem:[%s587 + $0x1a0] sm:$0xff] %v692
                  %v694 = vld [vmem:[%s586 + $0x4f8] sm:$0xff]
                  %695 = vst [vmem:[%s587 + $0x1a8] sm:$0xff] %v694
                  %v696 = vld [vmem:[%s586 + $0x510] sm:$0xff]
                  %697 = vst [vmem:[%s587 + $0x1b0] sm:$0xff] %v696
                  %v698 = vld [vmem:[%s586 + $0x528] sm:$0xff]
                  %699 = vst [vmem:[%s587 + $0x1b8] sm:$0xff] %v698
                  %v700 = vld [vmem:[%s586 + $0x540] sm:$0xff]
                  %701 = vst [vmem:[%s587 + $0x1c0] sm:$0xff] %v700
                  %v702 = vld [vmem:[%s586 + $0x558] sm:$0xff]
                  %703 = vst [vmem:[%s587 + $0x1c8] sm:$0xff] %v702
                  %v704 = vld [vmem:[%s586 + $0x570] sm:$0xff]
                  %705 = vst [vmem:[%s587 + $0x1d0] sm:$0xff] %v704
                  %v706 = vld [vmem:[%s586 + $0x588] sm:$0xff]
                  %707 = vst [vmem:[%s587 + $0x1d8] sm:$0xff] %v706
                  %v708 = vld [vmem:[%s586 + $0x5a0] sm:$0xff]
                  %709 = vst [vmem:[%s587 + $0x1e0] sm:$0xff] %v708
                  %v710 = vld [vmem:[%s586 + $0x5b8] sm:$0xff]
                  %711 = vst [vmem:[%s587 + $0x1e8] sm:$0xff] %v710
                  %v712 = vld [vmem:[%s586 + $0x5d0] sm:$0xff]
                  %713 = vst [vmem:[%s587 + $0x1f0] sm:$0xff] %v712
                  %v714 = vld [vmem:[%s586 + $0x5e8] sm:$0xff]
                  %715 = vst [vmem:[%s587 + $0x1f8] sm:$0xff] %v714
                  %v716 = vld [vmem:[%s586 + $0x600] sm:$0xff]
                  %717 = vst [vmem:[%s587 + $0x200] sm:$0xff] %v716
                  %v718 = vld [vmem:[%s586 + $0x618] sm:$0xff]
                  %719 = vst [vmem:[%s587 + $0x208] sm:$0xff] %v718
                  %v720 = vld [vmem:[%s586 + $0x630] sm:$0xff]
                  %721 = vst [vmem:[%s587 + $0x210] sm:$0xff] %v720
                  %v722 = vld [vmem:[%s586 + $0x648] sm:$0xff]
                  %723 = vst [vmem:[%s587 + $0x218] sm:$0xff] %v722
                  %v724 = vld [vmem:[%s586 + $0x660] sm:$0xff]
                  %725 = vst [vmem:[%s587 + $0x220] sm:$0xff] %v724
                  %v726 = vld [vmem:[%s586 + $0x678] sm:$0xff]
                  %727 = vst [vmem:[%s587 + $0x228] sm:$0xff] %v726
                  %v728 = vld [vmem:[%s586 + $0x690] sm:$0xff]
                  %729 = vst [vmem:[%s587 + $0x230] sm:$0xff] %v728
                  %v730 = vld [vmem:[%s586 + $0x6a8] sm:$0xff]
                  %731 = vst [vmem:[%s587 + $0x238] sm:$0xff] %v730
                  %v732 = vld [vmem:[%s586 + $0x6c0] sm:$0xff]
                  %733 = vst [vmem:[%s587 + $0x240] sm:$0xff] %v732
                  %v734 = vld [vmem:[%s586 + $0x6d8] sm:$0xff]
                  %735 = vst [vmem:[%s587 + $0x248] sm:$0xff] %v734
                  %v736 = vld [vmem:[%s586 + $0x6f0] sm:$0xff]
                  %737 = vst [vmem:[%s587 + $0x250] sm:$0xff] %v736
                  %v738 = vld [vmem:[%s586 + $0x708] sm:$0xff]
                  %739 = vst [vmem:[%s587 + $0x258] sm:$0xff] %v738
                  %v740 = vld [vmem:[%s586 + $0x720] sm:$0xff]
                  %741 = vst [vmem:[%s587 + $0x260] sm:$0xff] %v740
                  %v742 = vld [vmem:[%s586 + $0x738] sm:$0xff]
                  %743 = vst [vmem:[%s587 + $0x268] sm:$0xff] %v742
                  %v744 = vld [vmem:[%s586 + $0x750] sm:$0xff]
                  %745 = vst [vmem:[%s587 + $0x270] sm:$0xff] %v744
                  %v746 = vld [vmem:[%s586 + $0x768] sm:$0xff]
                  %747 = vst [vmem:[%s587 + $0x278] sm:$0xff] %v746
                  %v748 = vld [vmem:[%s586 + $0x780] sm:$0xff]
                  %749 = vst [vmem:[%s587 + $0x280] sm:$0xff] %v748
                  %v750 = vld [vmem:[%s586 + $0x798] sm:$0xff]
                  %751 = vst [vmem:[%s587 + $0x288] sm:$0xff] %v750
                  %v752 = vld [vmem:[%s586 + $0x7b0] sm:$0xff]
                  %753 = vst [vmem:[%s587 + $0x290] sm:$0xff] %v752
                  %v754 = vld [vmem:[%s586 + $0x7c8] sm:$0xff]
                  %755 = vst [vmem:[%s587 + $0x298] sm:$0xff] %v754
                  %v756 = vld [vmem:[%s586 + $0x7e0] sm:$0xff]
                  %757 = vst [vmem:[%s587 + $0x2a0] sm:$0xff] %v756
                  %v758 = vld [vmem:[%s586 + $0x7f8] sm:$0xff]
                  %759 = vst [vmem:[%s587 + $0x2a8] sm:$0xff] %v758
                  %v760 = vld [vmem:[%s586 + $0x810] sm:$0xff]
                  %761 = vst [vmem:[%s587 + $0x2b0] sm:$0xff] %v760
                  %v762 = vld [vmem:[%s586 + $0x828] sm:$0xff]
                  %763 = vst [vmem:[%s587 + $0x2b8] sm:$0xff] %v762
                  %v764 = vld [vmem:[%s586 + $0x840] sm:$0xff]
                  %765 = vst [vmem:[%s587 + $0x2c0] sm:$0xff] %v764
                  %v766 = vld [vmem:[%s586 + $0x858] sm:$0xff]
                  %767 = vst [vmem:[%s587 + $0x2c8] sm:$0xff] %v766
                  %v768 = vld [vmem:[%s586 + $0x870] sm:$0xff]
                  %769 = vst [vmem:[%s587 + $0x2d0] sm:$0xff] %v768
                  %v770 = vld [vmem:[%s586 + $0x888] sm:$0xff]
                  %771 = vst [vmem:[%s587 + $0x2d8] sm:$0xff] %v770
                  %v772 = vld [vmem:[%s586 + $0x8a0] sm:$0xff]
                  %773 = vst [vmem:[%s587 + $0x2e0] sm:$0xff] %v772
                  %v774 = vld [vmem:[%s586 + $0x8b8] sm:$0xff]
                  %775 = vst [vmem:[%s587 + $0x2e8] sm:$0xff] %v774
                  %v776 = vld [vmem:[%s586 + $0x8d0] sm:$0xff]
                  %777 = vst [vmem:[%s587 + $0x2f0] sm:$0xff] %v776
                  %v778 = vld [vmem:[%s586 + $0x8e8] sm:$0xff]
                  %779 = vst [vmem:[%s587 + $0x2f8] sm:$0xff] %v778
                  %v780 = vld [vmem:[%s586 + $0x900] sm:$0xff]
                  %781 = vst [vmem:[%s587 + $0x300] sm:$0xff] %v780
                  %v782 = vld [vmem:[%s586 + $0x918] sm:$0xff]
                  %783 = vst [vmem:[%s587 + $0x308] sm:$0xff] %v782
                  %v784 = vld [vmem:[%s586 + $0x930] sm:$0xff]
                  %785 = vst [vmem:[%s587 + $0x310] sm:$0xff] %v784
                  %v786 = vld [vmem:[%s586 + $0x948] sm:$0xff]
                  %787 = vst [vmem:[%s587 + $0x318] sm:$0xff] %v786
                  %v788 = vld [vmem:[%s586 + $0x960] sm:$0xff]
                  %789 = vst [vmem:[%s587 + $0x320] sm:$0xff] %v788
                  %v790 = vld [vmem:[%s586 + $0x978] sm:$0xff]
                  %791 = vst [vmem:[%s587 + $0x328] sm:$0xff] %v790
                  %v792 = vld [vmem:[%s586 + $0x990] sm:$0xff]
                  %793 = vst [vmem:[%s587 + $0x330] sm:$0xff] %v792
                  %v794 = vld [vmem:[%s586 + $0x9a8] sm:$0xff]
                  %795 = vst [vmem:[%s587 + $0x338] sm:$0xff] %v794
                  %v796 = vld [vmem:[%s586 + $0x9c0] sm:$0xff]
                  %797 = vst [vmem:[%s587 + $0x340] sm:$0xff] %v796
                  %v798 = vld [vmem:[%s586 + $0x9d8] sm:$0xff]
                  %799 = vst [vmem:[%s587 + $0x348] sm:$0xff] %v798
                  %v800 = vld [vmem:[%s586 + $0x9f0] sm:$0xff]
                  %801 = vst [vmem:[%s587 + $0x350] sm:$0xff] %v800
                  %v802 = vld [vmem:[%s586 + $0xa08] sm:$0xff]
                  %803 = vst [vmem:[%s587 + $0x358] sm:$0xff] %v802
                  %v804 = vld [vmem:[%s586 + $0xa20] sm:$0xff]
                  %805 = vst [vmem:[%s587 + $0x360] sm:$0xff] %v804
                  %v806 = vld [vmem:[%s586 + $0xa38] sm:$0xff]
                  %807 = vst [vmem:[%s587 + $0x368] sm:$0xff] %v806
                  %v808 = vld [vmem:[%s586 + $0xa50] sm:$0xff]
                  %809 = vst [vmem:[%s587 + $0x370] sm:$0xff] %v808
                  %v810 = vld [vmem:[%s586 + $0xa68] sm:$0xff]
                  %811 = vst [vmem:[%s587 + $0x378] sm:$0xff] %v810
                  %v812 = vld [vmem:[%s586 + $0xa80] sm:$0xff]
                  %813 = vst [vmem:[%s587 + $0x380] sm:$0xff] %v812
                  %v814 = vld [vmem:[%s586 + $0xa98] sm:$0xff]
                  %815 = vst [vmem:[%s587 + $0x388] sm:$0xff] %v814
                  %v816 = vld [vmem:[%s586 + $0xab0] sm:$0xff]
                  %817 = vst [vmem:[%s587 + $0x390] sm:$0xff] %v816
                  %v818 = vld [vmem:[%s586 + $0xac8] sm:$0xff]
                  %819 = vst [vmem:[%s587 + $0x398] sm:$0xff] %v818
                  %v820 = vld [vmem:[%s586 + $0xae0] sm:$0xff]
                  %821 = vst [vmem:[%s587 + $0x3a0] sm:$0xff] %v820
                  %v822 = vld [vmem:[%s586 + $0xaf8] sm:$0xff]
                  %823 = vst [vmem:[%s587 + $0x3a8] sm:$0xff] %v822
                  %v824 = vld [vmem:[%s586 + $0xb10] sm:$0xff]
                  %825 = vst [vmem:[%s587 + $0x3b0] sm:$0xff] %v824
                  %v826 = vld [vmem:[%s586 + $0xb28] sm:$0xff]
                  %827 = vst [vmem:[%s587 + $0x3b8] sm:$0xff] %v826
                  %v828 = vld [vmem:[%s586 + $0xb40] sm:$0xff]
                  %829 = vst [vmem:[%s587 + $0x3c0] sm:$0xff] %v828
                  %v830 = vld [vmem:[%s586 + $0xb58] sm:$0xff]
                  %831 = vst [vmem:[%s587 + $0x3c8] sm:$0xff] %v830
                  %v832 = vld [vmem:[%s586 + $0xb70] sm:$0xff]
                  %833 = vst [vmem:[%s587 + $0x3d0] sm:$0xff] %v832
                  %v834 = vld [vmem:[%s586 + $0xb88] sm:$0xff]
                  %835 = vst [vmem:[%s587 + $0x3d8] sm:$0xff] %v834
                  %v836 = vld [vmem:[%s586 + $0xba0] sm:$0xff]
                  %837 = vst [vmem:[%s587 + $0x3e0] sm:$0xff] %v836
                  %v838 = vld [vmem:[%s586 + $0xbb8] sm:$0xff]
                  %839 = vst [vmem:[%s587 + $0x3e8] sm:$0xff] %v838
                  %v840 = vld [vmem:[%s586 + $0xbd0] sm:$0xff]
                  %841 = vst [vmem:[%s587 + $0x3f0] sm:$0xff] %v840
                  %v842 = vld [vmem:[%s586 + $0xbe8] sm:$0xff]
                  %843 = vst [vmem:[%s587 + $0x3f8] sm:$0xff] %v842
                  %v844 = vld [vmem:[%s586 + $0xc00] sm:$0xff]
                  %845 = vst [vmem:[%s587 + $0x400] sm:$0xff] %v844
                  %v846 = vld [vmem:[%s586 + $0xc18] sm:$0xff]
                  %847 = vst [vmem:[%s587 + $0x408] sm:$0xff] %v846
                  %v848 = vld [vmem:[%s586 + $0xc30] sm:$0xff]
                  %849 = vst [vmem:[%s587 + $0x410] sm:$0xff] %v848
                  %v850 = vld [vmem:[%s586 + $0xc48] sm:$0xff]
                  %851 = vst [vmem:[%s587 + $0x418] sm:$0xff] %v850
                  %v852 = vld [vmem:[%s586 + $0xc60] sm:$0xff]
                  %853 = vst [vmem:[%s587 + $0x420] sm:$0xff] %v852
                  %v854 = vld [vmem:[%s586 + $0xc78] sm:$0xff]
                  %855 = vst [vmem:[%s587 + $0x428] sm:$0xff] %v854
                  %v856 = vld [vmem:[%s586 + $0xc90] sm:$0xff]
                  %857 = vst [vmem:[%s587 + $0x430] sm:$0xff] %v856
                  %v858 = vld [vmem:[%s586 + $0xca8] sm:$0xff]
                  %859 = vst [vmem:[%s587 + $0x438] sm:$0xff] %v858
                  %v860 = vld [vmem:[%s586 + $0xcc0] sm:$0xff]
                  %861 = vst [vmem:[%s587 + $0x440] sm:$0xff] %v860
                  %v862 = vld [vmem:[%s586 + $0xcd8] sm:$0xff]
                  %863 = vst [vmem:[%s587 + $0x448] sm:$0xff] %v862
                  %v864 = vld [vmem:[%s586 + $0xcf0] sm:$0xff]
                  %865 = vst [vmem:[%s587 + $0x450] sm:$0xff] %v864
                  %v866 = vld [vmem:[%s586 + $0xd08] sm:$0xff]
                  %867 = vst [vmem:[%s587 + $0x458] sm:$0xff] %v866
                  %v868 = vld [vmem:[%s586 + $0xd20] sm:$0xff]
                  %869 = vst [vmem:[%s587 + $0x460] sm:$0xff] %v868
                  %v870 = vld [vmem:[%s586 + $0xd38] sm:$0xff]
                  %871 = vst [vmem:[%s587 + $0x468] sm:$0xff] %v870
                  %v872 = vld [vmem:[%s586 + $0xd50] sm:$0xff]
                  %873 = vst [vmem:[%s587 + $0x470] sm:$0xff] %v872
                  %v874 = vld [vmem:[%s586 + $0xd68] sm:$0xff]
                  %875 = vst [vmem:[%s587 + $0x478] sm:$0xff] %v874
                  %v876 = vld [vmem:[%s586 + $0xd80] sm:$0xff]
                  %877 = vst [vmem:[%s587 + $0x480] sm:$0xff] %v876
                  %v878 = vld [vmem:[%s586 + $0xd98] sm:$0xff]
                  %879 = vst [vmem:[%s587 + $0x488] sm:$0xff] %v878
                  %v880 = vld [vmem:[%s586 + $0xdb0] sm:$0xff]
                  %881 = vst [vmem:[%s587 + $0x490] sm:$0xff] %v880
                  %v882 = vld [vmem:[%s586 + $0xdc8] sm:$0xff]
                  %883 = vst [vmem:[%s587 + $0x498] sm:$0xff] %v882
                  %v884 = vld [vmem:[%s586 + $0xde0] sm:$0xff]
                  %885 = vst [vmem:[%s587 + $0x4a0] sm:$0xff] %v884
                  %v886 = vld [vmem:[%s586 + $0xdf8] sm:$0xff]
                  %887 = vst [vmem:[%s587 + $0x4a8] sm:$0xff] %v886
                  %v888 = vld [vmem:[%s586 + $0xe10] sm:$0xff]
                  %889 = vst [vmem:[%s587 + $0x4b0] sm:$0xff] %v888
                  %v890 = vld [vmem:[%s586 + $0xe28] sm:$0xff]
                  %891 = vst [vmem:[%s587 + $0x4b8] sm:$0xff] %v890
                  %v892 = vld [vmem:[%s586 + $0xe40] sm:$0xff]
                  %893 = vst [vmem:[%s587 + $0x4c0] sm:$0xff] %v892
                  %v894 = vld [vmem:[%s586 + $0xe58] sm:$0xff]
                  %895 = vst [vmem:[%s587 + $0x4c8] sm:$0xff] %v894
                  %v896 = vld [vmem:[%s586 + $0xe70] sm:$0xff]
                  %897 = vst [vmem:[%s587 + $0x4d0] sm:$0xff] %v896
                  %v898 = vld [vmem:[%s586 + $0xe88] sm:$0xff]
                  %899 = vst [vmem:[%s587 + $0x4d8] sm:$0xff] %v898
                  %v900 = vld [vmem:[%s586 + $0xea0] sm:$0xff]
                  %901 = vst [vmem:[%s587 + $0x4e0] sm:$0xff] %v900
                  %v902 = vld [vmem:[%s586 + $0xeb8] sm:$0xff]
                  %903 = vst [vmem:[%s587 + $0x4e8] sm:$0xff] %v902
                  %v904 = vld [vmem:[%s586 + $0xed0] sm:$0xff]
                  %905 = vst [vmem:[%s587 + $0x4f0] sm:$0xff] %v904
                  %v906 = vld [vmem:[%s586 + $0xee8] sm:$0xff]
                  %907 = vst [vmem:[%s587 + $0x4f8] sm:$0xff] %v906
                  %v908 = vld [vmem:[%s586 + $0xf00] sm:$0xff]
                  %909 = vst [vmem:[%s587 + $0x500] sm:$0xff] %v908
                  %v910 = vld [vmem:[%s586 + $0xf18] sm:$0xff]
                  %911 = vst [vmem:[%s587 + $0x508] sm:$0xff] %v910
                  %v912 = vld [vmem:[%s586 + $0xf30] sm:$0xff]
                  %913 = vst [vmem:[%s587 + $0x510] sm:$0xff] %v912
                  %v914 = vld [vmem:[%s586 + $0xf48] sm:$0xff]
                  %915 = vst [vmem:[%s587 + $0x518] sm:$0xff] %v914
                  %v916 = vld [vmem:[%s586 + $0xf60] sm:$0xff]
                  %917 = vst [vmem:[%s587 + $0x520] sm:$0xff] %v916
                  %v918 = vld [vmem:[%s586 + $0xf78] sm:$0xff]
                  %919 = vst [vmem:[%s587 + $0x528] sm:$0xff] %v918
                  %v920 = vld [vmem:[%s586 + $0xf90] sm:$0xff]
                  %921 = vst [vmem:[%s587 + $0x530] sm:$0xff] %v920
                  %v922 = vld [vmem:[%s586 + $0xfa8] sm:$0xff]
                  %923 = vst [vmem:[%s587 + $0x538] sm:$0xff] %v922
                  %v924 = vld [vmem:[%s586 + $0xfc0] sm:$0xff]
                  %925 = vst [vmem:[%s587 + $0x540] sm:$0xff] %v924
                  %v926 = vld [vmem:[%s586 + $0xfd8] sm:$0xff]
                  %927 = vst [vmem:[%s587 + $0x548] sm:$0xff] %v926
                  %v928 = vld [vmem:[%s586 + $0xff0] sm:$0xff]
                  %929 = vst [vmem:[%s587 + $0x550] sm:$0xff] %v928
                  %v930 = vld [vmem:[%s586 + $0x1008] sm:$0xff]
                  %931 = vst [vmem:[%s587 + $0x558] sm:$0xff] %v930
                  %v932 = vld [vmem:[%s586 + $0x1020] sm:$0xff]
                  %933 = vst [vmem:[%s587 + $0x560] sm:$0xff] %v932
                  %v934 = vld [vmem:[%s586 + $0x1038] sm:$0xff]
                  %935 = vst [vmem:[%s587 + $0x568] sm:$0xff] %v934
                  %v936 = vld [vmem:[%s586 + $0x1050] sm:$0xff]
                  %937 = vst [vmem:[%s587 + $0x570] sm:$0xff] %v936
                  %v938 = vld [vmem:[%s586 + $0x1068] sm:$0xff]
                  %939 = vst [vmem:[%s587 + $0x578] sm:$0xff] %v938
                  %v940 = vld [vmem:[%s586 + $0x1080] sm:$0xff]
                  %941 = vst [vmem:[%s587 + $0x580] sm:$0xff] %v940
                  %v942 = vld [vmem:[%s586 + $0x1098] sm:$0xff]
                  %943 = vst [vmem:[%s587 + $0x588] sm:$0xff] %v942
                  %v944 = vld [vmem:[%s586 + $0x10b0] sm:$0xff]
                  %945 = vst [vmem:[%s587 + $0x590] sm:$0xff] %v944
                  %v946 = vld [vmem:[%s586 + $0x10c8] sm:$0xff]
                  %947 = vst [vmem:[%s587 + $0x598] sm:$0xff] %v946
                  %v948 = vld [vmem:[%s586 + $0x10e0] sm:$0xff]
                  %949 = vst [vmem:[%s587 + $0x5a0] sm:$0xff] %v948
                  %v950 = vld [vmem:[%s586 + $0x10f8] sm:$0xff]
                  %951 = vst [vmem:[%s587 + $0x5a8] sm:$0xff] %v950
                  %v952 = vld [vmem:[%s586 + $0x1110] sm:$0xff]
                  %953 = vst [vmem:[%s587 + $0x5b0] sm:$0xff] %v952
                  %v954 = vld [vmem:[%s586 + $0x1128] sm:$0xff]
                  %955 = vst [vmem:[%s587 + $0x5b8] sm:$0xff] %v954
                  %v956 = vld [vmem:[%s586 + $0x1140] sm:$0xff]
                  %957 = vst [vmem:[%s587 + $0x5c0] sm:$0xff] %v956
                  %v958 = vld [vmem:[%s586 + $0x1158] sm:$0xff]
                  %959 = vst [vmem:[%s587 + $0x5c8] sm:$0xff] %v958
                  %v960 = vld [vmem:[%s586 + $0x1170] sm:$0xff]
                  %961 = vst [vmem:[%s587 + $0x5d0] sm:$0xff] %v960
                  %v962 = vld [vmem:[%s586 + $0x1188] sm:$0xff]
                  %963 = vst [vmem:[%s587 + $0x5d8] sm:$0xff] %v962
                  %v964 = vld [vmem:[%s586 + $0x11a0] sm:$0xff]
                  %965 = vst [vmem:[%s587 + $0x5e0] sm:$0xff] %v964
                  %v966 = vld [vmem:[%s586 + $0x11b8] sm:$0xff]
                  %967 = vst [vmem:[%s587 + $0x5e8] sm:$0xff] %v966
                  %v968 = vld [vmem:[%s586 + $0x11d0] sm:$0xff]
                  %969 = vst [vmem:[%s587 + $0x5f0] sm:$0xff] %v968
                  %v970 = vld [vmem:[%s586 + $0x11e8] sm:$0xff]
                  %971 = vst [vmem:[%s587 + $0x5f8] sm:$0xff] %v970
                  %v972 = vld [vmem:[%s586 + $0x1200] sm:$0xff]
                  %973 = vst [vmem:[%s587 + $0x600] sm:$0xff] %v972
                  %v974 = vld [vmem:[%s586 + $0x1218] sm:$0xff]
                  %975 = vst [vmem:[%s587 + $0x608] sm:$0xff] %v974
                  %v976 = vld [vmem:[%s586 + $0x1230] sm:$0xff]
                  %977 = vst [vmem:[%s587 + $0x610] sm:$0xff] %v976
                  %v978 = vld [vmem:[%s586 + $0x1248] sm:$0xff]
                  %979 = vst [vmem:[%s587 + $0x618] sm:$0xff] %v978
                  %v980 = vld [vmem:[%s586 + $0x1260] sm:$0xff]
                  %981 = vst [vmem:[%s587 + $0x620] sm:$0xff] %v980
                  %v982 = vld [vmem:[%s586 + $0x1278] sm:$0xff]
                  %983 = vst [vmem:[%s587 + $0x628] sm:$0xff] %v982
                  %v984 = vld [vmem:[%s586 + $0x1290] sm:$0xff]
                  %985 = vst [vmem:[%s587 + $0x630] sm:$0xff] %v984
                  %v986 = vld [vmem:[%s586 + $0x12a8] sm:$0xff]
                  %987 = vst [vmem:[%s587 + $0x638] sm:$0xff] %v986
                $region48: #{tpu_custom_call.1} parent=42 // loop_footer
                  %s585 = sadd.s32 1, %s581
                $region49: #{tpu_custom_call.1} parent=42 // loop_footer_branch
                  %580 = sbr.rel target = $region45
                $region50: #{tpu_custom_call.1} parent=42 // loop_exit
                  _
              $region43: #{tpu_custom_call.1} parent=27 // pred_fallthru
                _
              // Predicated region
              $region51: #{tpu_custom_call.1} parent=27 // pred_check
                _
              $region52: #{tpu_custom_call.1} parent=27 // pred_check_branch
                %989 = sbr.rel target = $region54
              $region53: #{tpu_custom_call.1} parent=27 // pred_region
                _
              $region54: #{tpu_custom_call.1} parent=27 // pred_fallthru
                _
            $region28: #{tpu_custom_call.1} parent=23 // pred_fallthru
              _
            // Predicated region
            $region29: #{tpu_custom_call.1} parent=23 // pred_check
              _
            $region30: #{tpu_custom_call.1} parent=23 // pred_check_branch
              %167 = sbr.rel target = $region32
            $region31: #{tpu_custom_call.1} parent=23 // pred_region
              %s169 = ssub.s32 256, 1
              loop: start=0, step=1, limit=1
              $region33: #{tpu_custom_call.1} parent=31 // loop_pre_header
                _
              $region34: #{tpu_custom_call.1} parent=31 // loop_header
                %s171 = sphi 0, %s175
                %p172 = scmp.ge.s32.totalorder %s171, 1
                %s176 = sphi %s161, %s161
                %s177 = sphi %s157, %s157
              $region35: #{tpu_custom_call.1} parent=31 // loop_header_branch
                %174 = sbr.rel (%p172) target = $region39
              $region36: #{tpu_custom_call.1} parent=31 // loop_body
                %v178 = vld [vmem:[%s176] sm:%s169]
                %179 = vst [vmem:[%s177] sm:%s169] %v178
                %v180 = vld [vmem:[%s176 + $0x18] sm:%s169]
                %181 = vst [vmem:[%s177 + $0x8] sm:%s169] %v180
                %v182 = vld [vmem:[%s176 + $0x30] sm:%s169]
                %183 = vst [vmem:[%s177 + $0x10] sm:%s169] %v182
                %v184 = vld [vmem:[%s176 + $0x48] sm:%s169]
                %185 = vst [vmem:[%s177 + $0x18] sm:%s169] %v184
                %v186 = vld [vmem:[%s176 + $0x60] sm:%s169]
                %187 = vst [vmem:[%s177 + $0x20] sm:%s169] %v186
                %v188 = vld [vmem:[%s176 + $0x78] sm:%s169]
                %189 = vst [vmem:[%s177 + $0x28] sm:%s169] %v188
                %v190 = vld [vmem:[%s176 + $0x90] sm:%s169]
                %191 = vst [vmem:[%s177 + $0x30] sm:%s169] %v190
                %v192 = vld [vmem:[%s176 + $0xa8] sm:%s169]
                %193 = vst [vmem:[%s177 + $0x38] sm:%s169] %v192
                %v194 = vld [vmem:[%s176 + $0xc0] sm:%s169]
                %195 = vst [vmem:[%s177 + $0x40] sm:%s169] %v194
                %v196 = vld [vmem:[%s176 + $0xd8] sm:%s169]
                %197 = vst [vmem:[%s177 + $0x48] sm:%s169] %v196
                %v198 = vld [vmem:[%s176 + $0xf0] sm:%s169]
                %199 = vst [vmem:[%s177 + $0x50] sm:%s169] %v198
                %v200 = vld [vmem:[%s176 + $0x108] sm:%s169]
                %201 = vst [vmem:[%s177 + $0x58] sm:%s169] %v200
                %v202 = vld [vmem:[%s176 + $0x120] sm:%s169]
                %203 = vst [vmem:[%s177 + $0x60] sm:%s169] %v202
                %v204 = vld [vmem:[%s176 + $0x138] sm:%s169]
                %205 = vst [vmem:[%s177 + $0x68] sm:%s169] %v204
                %v206 = vld [vmem:[%s176 + $0x150] sm:%s169]
                %207 = vst [vmem:[%s177 + $0x70] sm:%s169] %v206
                %v208 = vld [vmem:[%s176 + $0x168] sm:%s169]
                %209 = vst [vmem:[%s177 + $0x78] sm:%s169] %v208
                %v210 = vld [vmem:[%s176 + $0x180] sm:%s169]
                %211 = vst [vmem:[%s177 + $0x80] sm:%s169] %v210
                %v212 = vld [vmem:[%s176 + $0x198] sm:%s169]
                %213 = vst [vmem:[%s177 + $0x88] sm:%s169] %v212
                %v214 = vld [vmem:[%s176 + $0x1b0] sm:%s169]
                %215 = vst [vmem:[%s177 + $0x90] sm:%s169] %v214
                %v216 = vld [vmem:[%s176 + $0x1c8] sm:%s169]
                %217 = vst [vmem:[%s177 + $0x98] sm:%s169] %v216
                %v218 = vld [vmem:[%s176 + $0x1e0] sm:%s169]
                %219 = vst [vmem:[%s177 + $0xa0] sm:%s169] %v218
                %v220 = vld [vmem:[%s176 + $0x1f8] sm:%s169]
                %221 = vst [vmem:[%s177 + $0xa8] sm:%s169] %v220
                %v222 = vld [vmem:[%s176 + $0x210] sm:%s169]
                %223 = vst [vmem:[%s177 + $0xb0] sm:%s169] %v222
                %v224 = vld [vmem:[%s176 + $0x228] sm:%s169]
                %225 = vst [vmem:[%s177 + $0xb8] sm:%s169] %v224
                %v226 = vld [vmem:[%s176 + $0x240] sm:%s169]
                %227 = vst [vmem:[%s177 + $0xc0] sm:%s169] %v226
                %v228 = vld [vmem:[%s176 + $0x258] sm:%s169]
                %229 = vst [vmem:[%s177 + $0xc8] sm:%s169] %v228
                %v230 = vld [vmem:[%s176 + $0x270] sm:%s169]
                %231 = vst [vmem:[%s177 + $0xd0] sm:%s169] %v230
                %v232 = vld [vmem:[%s176 + $0x288] sm:%s169]
                %233 = vst [vmem:[%s177 + $0xd8] sm:%s169] %v232
                %v234 = vld [vmem:[%s176 + $0x2a0] sm:%s169]
                %235 = vst [vmem:[%s177 + $0xe0] sm:%s169] %v234
                %v236 = vld [vmem:[%s176 + $0x2b8] sm:%s169]
                %237 = vst [vmem:[%s177 + $0xe8] sm:%s169] %v236
                %v238 = vld [vmem:[%s176 + $0x2d0] sm:%s169]
                %239 = vst [vmem:[%s177 + $0xf0] sm:%s169] %v238
                %v240 = vld [vmem:[%s176 + $0x2e8] sm:%s169]
                %241 = vst [vmem:[%s177 + $0xf8] sm:%s169] %v240
                %v242 = vld [vmem:[%s176 + $0x300] sm:%s169]
                %243 = vst [vmem:[%s177 + $0x100] sm:%s169] %v242
                %v244 = vld [vmem:[%s176 + $0x318] sm:%s169]
                %245 = vst [vmem:[%s177 + $0x108] sm:%s169] %v244
                %v246 = vld [vmem:[%s176 + $0x330] sm:%s169]
                %247 = vst [vmem:[%s177 + $0x110] sm:%s169] %v246
                %v248 = vld [vmem:[%s176 + $0x348] sm:%s169]
                %249 = vst [vmem:[%s177 + $0x118] sm:%s169] %v248
                %v250 = vld [vmem:[%s176 + $0x360] sm:%s169]
                %251 = vst [vmem:[%s177 + $0x120] sm:%s169] %v250
                %v252 = vld [vmem:[%s176 + $0x378] sm:%s169]
                %253 = vst [vmem:[%s177 + $0x128] sm:%s169] %v252
                %v254 = vld [vmem:[%s176 + $0x390] sm:%s169]
                %255 = vst [vmem:[%s177 + $0x130] sm:%s169] %v254
                %v256 = vld [vmem:[%s176 + $0x3a8] sm:%s169]
                %257 = vst [vmem:[%s177 + $0x138] sm:%s169] %v256
                %v258 = vld [vmem:[%s176 + $0x3c0] sm:%s169]
                %259 = vst [vmem:[%s177 + $0x140] sm:%s169] %v258
                %v260 = vld [vmem:[%s176 + $0x3d8] sm:%s169]
                %261 = vst [vmem:[%s177 + $0x148] sm:%s169] %v260
                %v262 = vld [vmem:[%s176 + $0x3f0] sm:%s169]
                %263 = vst [vmem:[%s177 + $0x150] sm:%s169] %v262
                %v264 = vld [vmem:[%s176 + $0x408] sm:%s169]
                %265 = vst [vmem:[%s177 + $0x158] sm:%s169] %v264
                %v266 = vld [vmem:[%s176 + $0x420] sm:%s169]
                %267 = vst [vmem:[%s177 + $0x160] sm:%s169] %v266
                %v268 = vld [vmem:[%s176 + $0x438] sm:%s169]
                %269 = vst [vmem:[%s177 + $0x168] sm:%s169] %v268
                %v270 = vld [vmem:[%s176 + $0x450] sm:%s169]
                %271 = vst [vmem:[%s177 + $0x170] sm:%s169] %v270
                %v272 = vld [vmem:[%s176 + $0x468] sm:%s169]
                %273 = vst [vmem:[%s177 + $0x178] sm:%s169] %v272
                %v274 = vld [vmem:[%s176 + $0x480] sm:%s169]
                %275 = vst [vmem:[%s177 + $0x180] sm:%s169] %v274
                %v276 = vld [vmem:[%s176 + $0x498] sm:%s169]
                %277 = vst [vmem:[%s177 + $0x188] sm:%s169] %v276
                %v278 = vld [vmem:[%s176 + $0x4b0] sm:%s169]
                %279 = vst [vmem:[%s177 + $0x190] sm:%s169] %v278
                %v280 = vld [vmem:[%s176 + $0x4c8] sm:%s169]
                %281 = vst [vmem:[%s177 + $0x198] sm:%s169] %v280
                %v282 = vld [vmem:[%s176 + $0x4e0] sm:%s169]
                %283 = vst [vmem:[%s177 + $0x1a0] sm:%s169] %v282
                %v284 = vld [vmem:[%s176 + $0x4f8] sm:%s169]
                %285 = vst [vmem:[%s177 + $0x1a8] sm:%s169] %v284
                %v286 = vld [vmem:[%s176 + $0x510] sm:%s169]
                %287 = vst [vmem:[%s177 + $0x1b0] sm:%s169] %v286
                %v288 = vld [vmem:[%s176 + $0x528] sm:%s169]
                %289 = vst [vmem:[%s177 + $0x1b8] sm:%s169] %v288
                %v290 = vld [vmem:[%s176 + $0x540] sm:%s169]
                %291 = vst [vmem:[%s177 + $0x1c0] sm:%s169] %v290
                %v292 = vld [vmem:[%s176 + $0x558] sm:%s169]
                %293 = vst [vmem:[%s177 + $0x1c8] sm:%s169] %v292
                %v294 = vld [vmem:[%s176 + $0x570] sm:%s169]
                %295 = vst [vmem:[%s177 + $0x1d0] sm:%s169] %v294
                %v296 = vld [vmem:[%s176 + $0x588] sm:%s169]
                %297 = vst [vmem:[%s177 + $0x1d8] sm:%s169] %v296
                %v298 = vld [vmem:[%s176 + $0x5a0] sm:%s169]
                %299 = vst [vmem:[%s177 + $0x1e0] sm:%s169] %v298
                %v300 = vld [vmem:[%s176 + $0x5b8] sm:%s169]
                %301 = vst [vmem:[%s177 + $0x1e8] sm:%s169] %v300
                %v302 = vld [vmem:[%s176 + $0x5d0] sm:%s169]
                %303 = vst [vmem:[%s177 + $0x1f0] sm:%s169] %v302
                %v304 = vld [vmem:[%s176 + $0x5e8] sm:%s169]
                %305 = vst [vmem:[%s177 + $0x1f8] sm:%s169] %v304
                %v306 = vld [vmem:[%s176 + $0x600] sm:%s169]
                %307 = vst [vmem:[%s177 + $0x200] sm:%s169] %v306
                %v308 = vld [vmem:[%s176 + $0x618] sm:%s169]
                %309 = vst [vmem:[%s177 + $0x208] sm:%s169] %v308
                %v310 = vld [vmem:[%s176 + $0x630] sm:%s169]
                %311 = vst [vmem:[%s177 + $0x210] sm:%s169] %v310
                %v312 = vld [vmem:[%s176 + $0x648] sm:%s169]
                %313 = vst [vmem:[%s177 + $0x218] sm:%s169] %v312
                %v314 = vld [vmem:[%s176 + $0x660] sm:%s169]
                %315 = vst [vmem:[%s177 + $0x220] sm:%s169] %v314
                %v316 = vld [vmem:[%s176 + $0x678] sm:%s169]
                %317 = vst [vmem:[%s177 + $0x228] sm:%s169] %v316
                %v318 = vld [vmem:[%s176 + $0x690] sm:%s169]
                %319 = vst [vmem:[%s177 + $0x230] sm:%s169] %v318
                %v320 = vld [vmem:[%s176 + $0x6a8] sm:%s169]
                %321 = vst [vmem:[%s177 + $0x238] sm:%s169] %v320
                %v322 = vld [vmem:[%s176 + $0x6c0] sm:%s169]
                %323 = vst [vmem:[%s177 + $0x240] sm:%s169] %v322
                %v324 = vld [vmem:[%s176 + $0x6d8] sm:%s169]
                %325 = vst [vmem:[%s177 + $0x248] sm:%s169] %v324
                %v326 = vld [vmem:[%s176 + $0x6f0] sm:%s169]
                %327 = vst [vmem:[%s177 + $0x250] sm:%s169] %v326
                %v328 = vld [vmem:[%s176 + $0x708] sm:%s169]
                %329 = vst [vmem:[%s177 + $0x258] sm:%s169] %v328
                %v330 = vld [vmem:[%s176 + $0x720] sm:%s169]
                %331 = vst [vmem:[%s177 + $0x260] sm:%s169] %v330
                %v332 = vld [vmem:[%s176 + $0x738] sm:%s169]
                %333 = vst [vmem:[%s177 + $0x268] sm:%s169] %v332
                %v334 = vld [vmem:[%s176 + $0x750] sm:%s169]
                %335 = vst [vmem:[%s177 + $0x270] sm:%s169] %v334
                %v336 = vld [vmem:[%s176 + $0x768] sm:%s169]
                %337 = vst [vmem:[%s177 + $0x278] sm:%s169] %v336
                %v338 = vld [vmem:[%s176 + $0x780] sm:%s169]
                %339 = vst [vmem:[%s177 + $0x280] sm:%s169] %v338
                %v340 = vld [vmem:[%s176 + $0x798] sm:%s169]
                %341 = vst [vmem:[%s177 + $0x288] sm:%s169] %v340
                %v342 = vld [vmem:[%s176 + $0x7b0] sm:%s169]
                %343 = vst [vmem:[%s177 + $0x290] sm:%s169] %v342
                %v344 = vld [vmem:[%s176 + $0x7c8] sm:%s169]
                %345 = vst [vmem:[%s177 + $0x298] sm:%s169] %v344
                %v346 = vld [vmem:[%s176 + $0x7e0] sm:%s169]
                %347 = vst [vmem:[%s177 + $0x2a0] sm:%s169] %v346
                %v348 = vld [vmem:[%s176 + $0x7f8] sm:%s169]
                %349 = vst [vmem:[%s177 + $0x2a8] sm:%s169] %v348
                %v350 = vld [vmem:[%s176 + $0x810] sm:%s169]
                %351 = vst [vmem:[%s177 + $0x2b0] sm:%s169] %v350
                %v352 = vld [vmem:[%s176 + $0x828] sm:%s169]
                %353 = vst [vmem:[%s177 + $0x2b8] sm:%s169] %v352
                %v354 = vld [vmem:[%s176 + $0x840] sm:%s169]
                %355 = vst [vmem:[%s177 + $0x2c0] sm:%s169] %v354
                %v356 = vld [vmem:[%s176 + $0x858] sm:%s169]
                %357 = vst [vmem:[%s177 + $0x2c8] sm:%s169] %v356
                %v358 = vld [vmem:[%s176 + $0x870] sm:%s169]
                %359 = vst [vmem:[%s177 + $0x2d0] sm:%s169] %v358
                %v360 = vld [vmem:[%s176 + $0x888] sm:%s169]
                %361 = vst [vmem:[%s177 + $0x2d8] sm:%s169] %v360
                %v362 = vld [vmem:[%s176 + $0x8a0] sm:%s169]
                %363 = vst [vmem:[%s177 + $0x2e0] sm:%s169] %v362
                %v364 = vld [vmem:[%s176 + $0x8b8] sm:%s169]
                %365 = vst [vmem:[%s177 + $0x2e8] sm:%s169] %v364
                %v366 = vld [vmem:[%s176 + $0x8d0] sm:%s169]
                %367 = vst [vmem:[%s177 + $0x2f0] sm:%s169] %v366
                %v368 = vld [vmem:[%s176 + $0x8e8] sm:%s169]
                %369 = vst [vmem:[%s177 + $0x2f8] sm:%s169] %v368
                %v370 = vld [vmem:[%s176 + $0x900] sm:%s169]
                %371 = vst [vmem:[%s177 + $0x300] sm:%s169] %v370
                %v372 = vld [vmem:[%s176 + $0x918] sm:%s169]
                %373 = vst [vmem:[%s177 + $0x308] sm:%s169] %v372
                %v374 = vld [vmem:[%s176 + $0x930] sm:%s169]
                %375 = vst [vmem:[%s177 + $0x310] sm:%s169] %v374
                %v376 = vld [vmem:[%s176 + $0x948] sm:%s169]
                %377 = vst [vmem:[%s177 + $0x318] sm:%s169] %v376
                %v378 = vld [vmem:[%s176 + $0x960] sm:%s169]
                %379 = vst [vmem:[%s177 + $0x320] sm:%s169] %v378
                %v380 = vld [vmem:[%s176 + $0x978] sm:%s169]
                %381 = vst [vmem:[%s177 + $0x328] sm:%s169] %v380
                %v382 = vld [vmem:[%s176 + $0x990] sm:%s169]
                %383 = vst [vmem:[%s177 + $0x330] sm:%s169] %v382
                %v384 = vld [vmem:[%s176 + $0x9a8] sm:%s169]
                %385 = vst [vmem:[%s177 + $0x338] sm:%s169] %v384
                %v386 = vld [vmem:[%s176 + $0x9c0] sm:%s169]
                %387 = vst [vmem:[%s177 + $0x340] sm:%s169] %v386
                %v388 = vld [vmem:[%s176 + $0x9d8] sm:%s169]
                %389 = vst [vmem:[%s177 + $0x348] sm:%s169] %v388
                %v390 = vld [vmem:[%s176 + $0x9f0] sm:%s169]
                %391 = vst [vmem:[%s177 + $0x350] sm:%s169] %v390
                %v392 = vld [vmem:[%s176 + $0xa08] sm:%s169]
                %393 = vst [vmem:[%s177 + $0x358] sm:%s169] %v392
                %v394 = vld [vmem:[%s176 + $0xa20] sm:%s169]
                %395 = vst [vmem:[%s177 + $0x360] sm:%s169] %v394
                %v396 = vld [vmem:[%s176 + $0xa38] sm:%s169]
                %397 = vst [vmem:[%s177 + $0x368] sm:%s169] %v396
                %v398 = vld [vmem:[%s176 + $0xa50] sm:%s169]
                %399 = vst [vmem:[%s177 + $0x370] sm:%s169] %v398
                %v400 = vld [vmem:[%s176 + $0xa68] sm:%s169]
                %401 = vst [vmem:[%s177 + $0x378] sm:%s169] %v400
                %v402 = vld [vmem:[%s176 + $0xa80] sm:%s169]
                %403 = vst [vmem:[%s177 + $0x380] sm:%s169] %v402
                %v404 = vld [vmem:[%s176 + $0xa98] sm:%s169]
                %405 = vst [vmem:[%s177 + $0x388] sm:%s169] %v404
                %v406 = vld [vmem:[%s176 + $0xab0] sm:%s169]
                %407 = vst [vmem:[%s177 + $0x390] sm:%s169] %v406
                %v408 = vld [vmem:[%s176 + $0xac8] sm:%s169]
                %409 = vst [vmem:[%s177 + $0x398] sm:%s169] %v408
                %v410 = vld [vmem:[%s176 + $0xae0] sm:%s169]
                %411 = vst [vmem:[%s177 + $0x3a0] sm:%s169] %v410
                %v412 = vld [vmem:[%s176 + $0xaf8] sm:%s169]
                %413 = vst [vmem:[%s177 + $0x3a8] sm:%s169] %v412
                %v414 = vld [vmem:[%s176 + $0xb10] sm:%s169]
                %415 = vst [vmem:[%s177 + $0x3b0] sm:%s169] %v414
                %v416 = vld [vmem:[%s176 + $0xb28] sm:%s169]
                %417 = vst [vmem:[%s177 + $0x3b8] sm:%s169] %v416
                %v418 = vld [vmem:[%s176 + $0xb40] sm:%s169]
                %419 = vst [vmem:[%s177 + $0x3c0] sm:%s169] %v418
                %v420 = vld [vmem:[%s176 + $0xb58] sm:%s169]
                %421 = vst [vmem:[%s177 + $0x3c8] sm:%s169] %v420
                %v422 = vld [vmem:[%s176 + $0xb70] sm:%s169]
                %423 = vst [vmem:[%s177 + $0x3d0] sm:%s169] %v422
                %v424 = vld [vmem:[%s176 + $0xb88] sm:%s169]
                %425 = vst [vmem:[%s177 + $0x3d8] sm:%s169] %v424
                %v426 = vld [vmem:[%s176 + $0xba0] sm:%s169]
                %427 = vst [vmem:[%s177 + $0x3e0] sm:%s169] %v426
                %v428 = vld [vmem:[%s176 + $0xbb8] sm:%s169]
                %429 = vst [vmem:[%s177 + $0x3e8] sm:%s169] %v428
                %v430 = vld [vmem:[%s176 + $0xbd0] sm:%s169]
                %431 = vst [vmem:[%s177 + $0x3f0] sm:%s169] %v430
                %v432 = vld [vmem:[%s176 + $0xbe8] sm:%s169]
                %433 = vst [vmem:[%s177 + $0x3f8] sm:%s169] %v432
                %v434 = vld [vmem:[%s176 + $0xc00] sm:%s169]
                %435 = vst [vmem:[%s177 + $0x400] sm:%s169] %v434
                %v436 = vld [vmem:[%s176 + $0xc18] sm:%s169]
                %437 = vst [vmem:[%s177 + $0x408] sm:%s169] %v436
                %v438 = vld [vmem:[%s176 + $0xc30] sm:%s169]
                %439 = vst [vmem:[%s177 + $0x410] sm:%s169] %v438
                %v440 = vld [vmem:[%s176 + $0xc48] sm:%s169]
                %441 = vst [vmem:[%s177 + $0x418] sm:%s169] %v440
                %v442 = vld [vmem:[%s176 + $0xc60] sm:%s169]
                %443 = vst [vmem:[%s177 + $0x420] sm:%s169] %v442
                %v444 = vld [vmem:[%s176 + $0xc78] sm:%s169]
                %445 = vst [vmem:[%s177 + $0x428] sm:%s169] %v444
                %v446 = vld [vmem:[%s176 + $0xc90] sm:%s169]
                %447 = vst [vmem:[%s177 + $0x430] sm:%s169] %v446
                %v448 = vld [vmem:[%s176 + $0xca8] sm:%s169]
                %449 = vst [vmem:[%s177 + $0x438] sm:%s169] %v448
                %v450 = vld [vmem:[%s176 + $0xcc0] sm:%s169]
                %451 = vst [vmem:[%s177 + $0x440] sm:%s169] %v450
                %v452 = vld [vmem:[%s176 + $0xcd8] sm:%s169]
                %453 = vst [vmem:[%s177 + $0x448] sm:%s169] %v452
                %v454 = vld [vmem:[%s176 + $0xcf0] sm:%s169]
                %455 = vst [vmem:[%s177 + $0x450] sm:%s169] %v454
                %v456 = vld [vmem:[%s176 + $0xd08] sm:%s169]
                %457 = vst [vmem:[%s177 + $0x458] sm:%s169] %v456
                %v458 = vld [vmem:[%s176 + $0xd20] sm:%s169]
                %459 = vst [vmem:[%s177 + $0x460] sm:%s169] %v458
                %v460 = vld [vmem:[%s176 + $0xd38] sm:%s169]
                %461 = vst [vmem:[%s177 + $0x468] sm:%s169] %v460
                %v462 = vld [vmem:[%s176 + $0xd50] sm:%s169]
                %463 = vst [vmem:[%s177 + $0x470] sm:%s169] %v462
                %v464 = vld [vmem:[%s176 + $0xd68] sm:%s169]
                %465 = vst [vmem:[%s177 + $0x478] sm:%s169] %v464
                %v466 = vld [vmem:[%s176 + $0xd80] sm:%s169]
                %467 = vst [vmem:[%s177 + $0x480] sm:%s169] %v466
                %v468 = vld [vmem:[%s176 + $0xd98] sm:%s169]
                %469 = vst [vmem:[%s177 + $0x488] sm:%s169] %v468
                %v470 = vld [vmem:[%s176 + $0xdb0] sm:%s169]
                %471 = vst [vmem:[%s177 + $0x490] sm:%s169] %v470
                %v472 = vld [vmem:[%s176 + $0xdc8] sm:%s169]
                %473 = vst [vmem:[%s177 + $0x498] sm:%s169] %v472
                %v474 = vld [vmem:[%s176 + $0xde0] sm:%s169]
                %475 = vst [vmem:[%s177 + $0x4a0] sm:%s169] %v474
                %v476 = vld [vmem:[%s176 + $0xdf8] sm:%s169]
                %477 = vst [vmem:[%s177 + $0x4a8] sm:%s169] %v476
                %v478 = vld [vmem:[%s176 + $0xe10] sm:%s169]
                %479 = vst [vmem:[%s177 + $0x4b0] sm:%s169] %v478
                %v480 = vld [vmem:[%s176 + $0xe28] sm:%s169]
                %481 = vst [vmem:[%s177 + $0x4b8] sm:%s169] %v480
                %v482 = vld [vmem:[%s176 + $0xe40] sm:%s169]
                %483 = vst [vmem:[%s177 + $0x4c0] sm:%s169] %v482
                %v484 = vld [vmem:[%s176 + $0xe58] sm:%s169]
                %485 = vst [vmem:[%s177 + $0x4c8] sm:%s169] %v484
                %v486 = vld [vmem:[%s176 + $0xe70] sm:%s169]
                %487 = vst [vmem:[%s177 + $0x4d0] sm:%s169] %v486
                %v488 = vld [vmem:[%s176 + $0xe88] sm:%s169]
                %489 = vst [vmem:[%s177 + $0x4d8] sm:%s169] %v488
                %v490 = vld [vmem:[%s176 + $0xea0] sm:%s169]
                %491 = vst [vmem:[%s177 + $0x4e0] sm:%s169] %v490
                %v492 = vld [vmem:[%s176 + $0xeb8] sm:%s169]
                %493 = vst [vmem:[%s177 + $0x4e8] sm:%s169] %v492
                %v494 = vld [vmem:[%s176 + $0xed0] sm:%s169]
                %495 = vst [vmem:[%s177 + $0x4f0] sm:%s169] %v494
                %v496 = vld [vmem:[%s176 + $0xee8] sm:%s169]
                %497 = vst [vmem:[%s177 + $0x4f8] sm:%s169] %v496
                %v498 = vld [vmem:[%s176 + $0xf00] sm:%s169]
                %499 = vst [vmem:[%s177 + $0x500] sm:%s169] %v498
                %v500 = vld [vmem:[%s176 + $0xf18] sm:%s169]
                %501 = vst [vmem:[%s177 + $0x508] sm:%s169] %v500
                %v502 = vld [vmem:[%s176 + $0xf30] sm:%s169]
                %503 = vst [vmem:[%s177 + $0x510] sm:%s169] %v502
                %v504 = vld [vmem:[%s176 + $0xf48] sm:%s169]
                %505 = vst [vmem:[%s177 + $0x518] sm:%s169] %v504
                %v506 = vld [vmem:[%s176 + $0xf60] sm:%s169]
                %507 = vst [vmem:[%s177 + $0x520] sm:%s169] %v506
                %v508 = vld [vmem:[%s176 + $0xf78] sm:%s169]
                %509 = vst [vmem:[%s177 + $0x528] sm:%s169] %v508
                %v510 = vld [vmem:[%s176 + $0xf90] sm:%s169]
                %511 = vst [vmem:[%s177 + $0x530] sm:%s169] %v510
                %v512 = vld [vmem:[%s176 + $0xfa8] sm:%s169]
                %513 = vst [vmem:[%s177 + $0x538] sm:%s169] %v512
                %v514 = vld [vmem:[%s176 + $0xfc0] sm:%s169]
                %515 = vst [vmem:[%s177 + $0x540] sm:%s169] %v514
                %v516 = vld [vmem:[%s176 + $0xfd8] sm:%s169]
                %517 = vst [vmem:[%s177 + $0x548] sm:%s169] %v516
                %v518 = vld [vmem:[%s176 + $0xff0] sm:%s169]
                %519 = vst [vmem:[%s177 + $0x550] sm:%s169] %v518
                %v520 = vld [vmem:[%s176 + $0x1008] sm:%s169]
                %521 = vst [vmem:[%s177 + $0x558] sm:%s169] %v520
                %v522 = vld [vmem:[%s176 + $0x1020] sm:%s169]
                %523 = vst [vmem:[%s177 + $0x560] sm:%s169] %v522
                %v524 = vld [vmem:[%s176 + $0x1038] sm:%s169]
                %525 = vst [vmem:[%s177 + $0x568] sm:%s169] %v524
                %v526 = vld [vmem:[%s176 + $0x1050] sm:%s169]
                %527 = vst [vmem:[%s177 + $0x570] sm:%s169] %v526
                %v528 = vld [vmem:[%s176 + $0x1068] sm:%s169]
                %529 = vst [vmem:[%s177 + $0x578] sm:%s169] %v528
                %v530 = vld [vmem:[%s176 + $0x1080] sm:%s169]
                %531 = vst [vmem:[%s177 + $0x580] sm:%s169] %v530
                %v532 = vld [vmem:[%s176 + $0x1098] sm:%s169]
                %533 = vst [vmem:[%s177 + $0x588] sm:%s169] %v532
                %v534 = vld [vmem:[%s176 + $0x10b0] sm:%s169]
                %535 = vst [vmem:[%s177 + $0x590] sm:%s169] %v534
                %v536 = vld [vmem:[%s176 + $0x10c8] sm:%s169]
                %537 = vst [vmem:[%s177 + $0x598] sm:%s169] %v536
                %v538 = vld [vmem:[%s176 + $0x10e0] sm:%s169]
                %539 = vst [vmem:[%s177 + $0x5a0] sm:%s169] %v538
                %v540 = vld [vmem:[%s176 + $0x10f8] sm:%s169]
                %541 = vst [vmem:[%s177 + $0x5a8] sm:%s169] %v540
                %v542 = vld [vmem:[%s176 + $0x1110] sm:%s169]
                %543 = vst [vmem:[%s177 + $0x5b0] sm:%s169] %v542
                %v544 = vld [vmem:[%s176 + $0x1128] sm:%s169]
                %545 = vst [vmem:[%s177 + $0x5b8] sm:%s169] %v544
                %v546 = vld [vmem:[%s176 + $0x1140] sm:%s169]
                %547 = vst [vmem:[%s177 + $0x5c0] sm:%s169] %v546
                %v548 = vld [vmem:[%s176 + $0x1158] sm:%s169]
                %549 = vst [vmem:[%s177 + $0x5c8] sm:%s169] %v548
                %v550 = vld [vmem:[%s176 + $0x1170] sm:%s169]
                %551 = vst [vmem:[%s177 + $0x5d0] sm:%s169] %v550
                %v552 = vld [vmem:[%s176 + $0x1188] sm:%s169]
                %553 = vst [vmem:[%s177 + $0x5d8] sm:%s169] %v552
                %v554 = vld [vmem:[%s176 + $0x11a0] sm:%s169]
                %555 = vst [vmem:[%s177 + $0x5e0] sm:%s169] %v554
                %v556 = vld [vmem:[%s176 + $0x11b8] sm:%s169]
                %557 = vst [vmem:[%s177 + $0x5e8] sm:%s169] %v556
                %v558 = vld [vmem:[%s176 + $0x11d0] sm:%s169]
                %559 = vst [vmem:[%s177 + $0x5f0] sm:%s169] %v558
                %v560 = vld [vmem:[%s176 + $0x11e8] sm:%s169]
                %561 = vst [vmem:[%s177 + $0x5f8] sm:%s169] %v560
                %v562 = vld [vmem:[%s176 + $0x1200] sm:%s169]
                %563 = vst [vmem:[%s177 + $0x600] sm:%s169] %v562
                %v564 = vld [vmem:[%s176 + $0x1218] sm:%s169]
                %565 = vst [vmem:[%s177 + $0x608] sm:%s169] %v564
                %v566 = vld [vmem:[%s176 + $0x1230] sm:%s169]
                %567 = vst [vmem:[%s177 + $0x610] sm:%s169] %v566
                %v568 = vld [vmem:[%s176 + $0x1248] sm:%s169]
                %569 = vst [vmem:[%s177 + $0x618] sm:%s169] %v568
                %v570 = vld [vmem:[%s176 + $0x1260] sm:%s169]
                %571 = vst [vmem:[%s177 + $0x620] sm:%s169] %v570
                %v572 = vld [vmem:[%s176 + $0x1278] sm:%s169]
                %573 = vst [vmem:[%s177 + $0x628] sm:%s169] %v572
                %v574 = vld [vmem:[%s176 + $0x1290] sm:%s169]
                %575 = vst [vmem:[%s177 + $0x630] sm:%s169] %v574
                %v576 = vld [vmem:[%s176 + $0x12a8] sm:%s169]
                %577 = vst [vmem:[%s177 + $0x638] sm:%s169] %v576
              $region37: #{tpu_custom_call.1} parent=31 // loop_footer
                %s175 = sadd.s32 1, %s171
              $region38: #{tpu_custom_call.1} parent=31 // loop_footer_branch
                %170 = sbr.rel target = $region34
              $region39: #{tpu_custom_call.1} parent=31 // loop_exit
                _
            $region32: #{tpu_custom_call.1} parent=23 // pred_fallthru
              _
          $region24: #{tpu_custom_call.1} parent=19 // pred_fallthru
            _
          %990 = vnop
        $region20: #{tpu_custom_call.1} parent=15 // pred_fallthru
          _
        // Predicated region
        $region55: #{tpu_custom_call.1} parent=15 // pred_check
          %p991 = pneg %p72
        $region56: #{tpu_custom_call.1} parent=15 // pred_check_branch
          %993 = sbr.rel (%p991) target = $region58
        $region57: #{tpu_custom_call.1} parent=15 // pred_region
          %s994 = sand.u32 %s62, 1
          %s995 = sand.u32 %s62, 1
          %s996 = smul.addr %s995, 32
          %s997 = scalar_lea.vmem [#allocation3], %s996
          %s998 = smul.addr %s20, 8
          %s999 = scalar_lea.vmem %s1, %s998
          // Predicated region
          $region59: #{tpu_custom_call.1} parent=57 // pred_check
            _
          $region60: #{tpu_custom_call.1} parent=57 // pred_check_branch
            %1001 = sbr.rel (0) target = $region62
          $region61: #{tpu_custom_call.1} parent=57 // pred_region
            // Predicated region
            $region63: #{tpu_custom_call.1} parent=61 // pred_check
              _
            $region64: #{tpu_custom_call.1} parent=61 // pred_check_branch
              %1003 = sbr.rel (0) target = $region66
            $region65: #{tpu_custom_call.1} parent=61 // pred_region
              // Predicated region
              $region78: #{tpu_custom_call.1} parent=65 // pred_check
                _
              $region79: #{tpu_custom_call.1} parent=65 // pred_check_branch
                %1025 = sbr.rel (0) target = $region81
              $region80: #{tpu_custom_call.1} parent=65 // pred_region
                loop: start=0, step=1, limit=1
                $region82: #{tpu_custom_call.1} parent=80 // loop_pre_header
                  _
                $region83: #{tpu_custom_call.1} parent=80 // loop_header
                  %s1027 = sphi 0, %s1031
                  %p1028 = scmp.ge.s32.totalorder %s1027, 1
                  %s1032 = sphi %s999, %s999
                  %s1033 = sphi %s997, %s997
                $region84: #{tpu_custom_call.1} parent=80 // loop_header_branch
                  %1030 = sbr.rel (%p1028) target = $region88
                $region85: #{tpu_custom_call.1} parent=80 // loop_body
                  %v1034 = vld [vmem:[%s1032] sm:$0xff]
                  %1035 = vst [vmem:[%s1033] sm:$0xff] %v1034
                  %v1036 = vld [vmem:[%s1032 + $0x18] sm:$0xff]
                  %1037 = vst [vmem:[%s1033 + $0x8] sm:$0xff] %v1036
                  %v1038 = vld [vmem:[%s1032 + $0x30] sm:$0xff]
                  %1039 = vst [vmem:[%s1033 + $0x10] sm:$0xff] %v1038
                  %v1040 = vld [vmem:[%s1032 + $0x48] sm:$0xff]
                  %1041 = vst [vmem:[%s1033 + $0x18] sm:$0xff] %v1040
                $region86: #{tpu_custom_call.1} parent=80 // loop_footer
                  %s1031 = sadd.s32 1, %s1027
                $region87: #{tpu_custom_call.1} parent=80 // loop_footer_branch
                  %1026 = sbr.rel target = $region83
                $region88: #{tpu_custom_call.1} parent=80 // loop_exit
                  _
              $region81: #{tpu_custom_call.1} parent=65 // pred_fallthru
                _
              // Predicated region
              $region89: #{tpu_custom_call.1} parent=65 // pred_check
                _
              $region90: #{tpu_custom_call.1} parent=65 // pred_check_branch
                %1043 = sbr.rel target = $region92
              $region91: #{tpu_custom_call.1} parent=65 // pred_region
                _
              $region92: #{tpu_custom_call.1} parent=65 // pred_fallthru
                _
            $region66: #{tpu_custom_call.1} parent=61 // pred_fallthru
              _
            // Predicated region
            $region67: #{tpu_custom_call.1} parent=61 // pred_check
              _
            $region68: #{tpu_custom_call.1} parent=61 // pred_check_branch
              %1005 = sbr.rel target = $region70
            $region69: #{tpu_custom_call.1} parent=61 // pred_region
              %s1007 = ssub.s32 256, 1
              loop: start=0, step=1, limit=1
              $region71: #{tpu_custom_call.1} parent=69 // loop_pre_header
                _
              $region72: #{tpu_custom_call.1} parent=69 // loop_header
                %s1009 = sphi 0, %s1013
                %p1010 = scmp.ge.s32.totalorder %s1009, 1
                %s1014 = sphi %s999, %s999
                %s1015 = sphi %s997, %s997
              $region73: #{tpu_custom_call.1} parent=69 // loop_header_branch
                %1012 = sbr.rel (%p1010) target = $region77
              $region74: #{tpu_custom_call.1} parent=69 // loop_body
                %v1016 = vld [vmem:[%s1014] sm:%s1007]
                %1017 = vst [vmem:[%s1015] sm:%s1007] %v1016
                %v1018 = vld [vmem:[%s1014 + $0x18] sm:%s1007]
                %1019 = vst [vmem:[%s1015 + $0x8] sm:%s1007] %v1018
                %v1020 = vld [vmem:[%s1014 + $0x30] sm:%s1007]
                %1021 = vst [vmem:[%s1015 + $0x10] sm:%s1007] %v1020
                %v1022 = vld [vmem:[%s1014 + $0x48] sm:%s1007]
                %1023 = vst [vmem:[%s1015 + $0x18] sm:%s1007] %v1022
              $region75: #{tpu_custom_call.1} parent=69 // loop_footer
                %s1013 = sadd.s32 1, %s1009
              $region76: #{tpu_custom_call.1} parent=69 // loop_footer_branch
                %1008 = sbr.rel target = $region72
              $region77: #{tpu_custom_call.1} parent=69 // loop_exit
                _
            $region70: #{tpu_custom_call.1} parent=61 // pred_fallthru
              _
          $region62: #{tpu_custom_call.1} parent=57 // pred_fallthru
            _
          %1044 = vnop
        $region58: #{tpu_custom_call.1} parent=15 // pred_fallthru
          _
        // Predicated region
        $region93: #{tpu_custom_call.1} parent=15 // pred_check
          %p1045 = pneg %p98
        $region94: #{tpu_custom_call.1} parent=15 // pred_check_branch
          %1047 = sbr.rel (%p1045) target = $region96
        $region95: #{tpu_custom_call.1} parent=15 // pred_region
          %p1048 = scmp.lt.s32.totalorder %s20, 2
          %s1049 = scalar_select %p1048, %s20, 2
          %s1050 = scalar_lea.vmem %s2, %s1049
        $region96: #{tpu_custom_call.1} parent=15 // pred_fallthru
          _
      $region16: #{tpu_custom_call.1} parent=5 // pred_fallthru
        _
      %p1051 = scmp.le.s32.totalorder 1, %s12
      %p1052 = scmp.lt.s32.totalorder %s12, 7
      %p1053 = pnand %p1051, %p1052
      %p1054 = pneg %p1053
      // Predicated region
      $region97: #{tpu_custom_call.1} parent=5 // pred_check
        _
      $region98: #{tpu_custom_call.1} parent=5 // pred_check_branch
        %1056 = sbr.rel (%p1053) target = $region100
      $region99: #{tpu_custom_call.1} parent=5 // pred_region
        %s1057 = ssub.s32 %s12, 1
        %s1058 = sand.u32 %s39, 1
        %s1059 = sand.u32 %s39, 1
        %s1060 = smul.addr %s1059, 1600
        %s1061 = scalar_lea.vmem [#allocation2], %s1060
        // Predicated region
        $region101: #{tpu_custom_call.1} parent=99 // pred_check
          %p1062 = pneg %p52
        $region102: #{tpu_custom_call.1} parent=99 // pred_check_branch
          %1064 = sbr.rel (%p1062) target = $region104
        $region103: #{tpu_custom_call.1} parent=99 // pred_region
          _
        $region104: #{tpu_custom_call.1} parent=99 // pred_fallthru
          _
        %s1065 = sand.u32 %s65, 1
        %s1066 = sand.u32 %s65, 1
        %s1067 = smul.addr %s1066, 32
        %s1068 = scalar_lea.vmem [#allocation3], %s1067
        // Predicated region
        $region105: #{tpu_custom_call.1} parent=99 // pred_check
          %p1069 = pneg %p78
        $region106: #{tpu_custom_call.1} parent=99 // pred_check_branch
          %1071 = sbr.rel (%p1069) target = $region108
        $region107: #{tpu_custom_call.1} parent=99 // pred_region
          _
        $region108: #{tpu_custom_call.1} parent=99 // pred_fallthru
          _
        %s1072 = sand.u32 %s39, 1
        %s1073 = sand.u32 %s39, 1
        %s1074 = smul.addr %s1073, 1600
        %s1075 = scalar_lea.vmem [#allocation2], %s1074
        %p1076 = pneg %p52
        %p1077 = pneg %p49
        %s1078 = sand.u32 %s65, 1
        %s1079 = sand.u32 %s65, 1
        %s1080 = smul.addr %s1079, 32
        %s1081 = scalar_lea.vmem [#allocation3], %s1080
        %p1082 = pneg %p78
        %p1083 = pneg %p75
        %p1084 = scmp.lt.s32.totalorder %s22, 2
        %s1085 = scalar_select %p1084, %s22, 2
        %s1086 = scalar_lea.vmem %s2, %s1085
        %p1087 = pneg %p104
        %p1088 = pneg %p101
        %p1089 = pneg %p132
        %p1090 = pneg %p129
        %s1091 = sand.u32 %s119, 1
        %s1092 = scalar_lea.sflag [#allocation5], %s1091
        %s1093 = sand.u32 %s119, 1
        %s1094 = smul.addr %s1093, 512
        %s1095 = scalar_lea.vmem [#allocation4], %s1094
        %p1096 = scmp.lt.s32.totalorder %s22, 2
        %s1097 = scalar_select %p1096, %s22, 2
        %s1098 = scalar_lea.vmem %s2, %s1097
        %v1099 = vld [vmem:[%s1061] sm:$0xff]
        %v1100 = vld [vmem:[%s1061 + $0x8] sm:$0x3]
        %v1101 = vld [vmem:[%s1061 + $0x10] sm:$0xff]
        %v1102 = vld [vmem:[%s1061 + $0x18] sm:$0x3]
        %v1103 = vld [vmem:[%s1061 + $0x20] sm:$0xff]
        %v1104 = vld [vmem:[%s1061 + $0x28] sm:$0x3]
        %v1105 = vld [vmem:[%s1061 + $0x30] sm:$0xff]
        %v1106 = vld [vmem:[%s1061 + $0x38] sm:$0x3]
        %v1107 = vld [vmem:[%s1061 + $0x40] sm:$0xff]
        %v1108 = vld [vmem:[%s1061 + $0x48] sm:$0x3]
        %v1109 = vld [vmem:[%s1061 + $0x50] sm:$0xff]
        %v1110 = vld [vmem:[%s1061 + $0x58] sm:$0x3]
        %v1111 = vld [vmem:[%s1061 + $0x60] sm:$0xff]
        %v1112 = vld [vmem:[%s1061 + $0x68] sm:$0x3]
        %v1113 = vld [vmem:[%s1061 + $0x70] sm:$0xff]
        %v1114 = vld [vmem:[%s1061 + $0x78] sm:$0x3]
        %v1115 = vld [vmem:[%s1061 + $0x80] sm:$0xff]
        %v1116 = vld [vmem:[%s1061 + $0x88] sm:$0x3]
        %v1117 = vld [vmem:[%s1061 + $0x90] sm:$0xff]
        %v1118 = vld [vmem:[%s1061 + $0x98] sm:$0x3]
        %v1119 = vld [vmem:[%s1061 + $0xa0] sm:$0xff]
        %v1120 = vld [vmem:[%s1061 + $0xa8] sm:$0x3]
        %v1121 = vld [vmem:[%s1061 + $0xb0] sm:$0xff]
        %v1122 = vld [vmem:[%s1061 + $0xb8] sm:$0x3]
        %v1123 = vld [vmem:[%s1061 + $0xc0] sm:$0xff]
        %v1124 = vld [vmem:[%s1061 + $0xc8] sm:$0x3]
        %v1125 = vld [vmem:[%s1061 + $0xd0] sm:$0xff]
        %v1126 = vld [vmem:[%s1061 + $0xd8] sm:$0x3]
        %v1127 = vld [vmem:[%s1061 + $0xe0] sm:$0xff]
        %v1128 = vld [vmem:[%s1061 + $0xe8] sm:$0x3]
        %v1129 = vld [vmem:[%s1061 + $0xf0] sm:$0xff]
        %v1130 = vld [vmem:[%s1061 + $0xf8] sm:$0x3]
        %v1131 = vld [vmem:[%s1061 + $0x100] sm:$0xff]
        %v1132 = vld [vmem:[%s1061 + $0x108] sm:$0x3]
        %v1133 = vld [vmem:[%s1061 + $0x110] sm:$0xff]
        %v1134 = vld [vmem:[%s1061 + $0x118] sm:$0x3]
        %v1135 = vld [vmem:[%s1061 + $0x120] sm:$0xff]
        %v1136 = vld [vmem:[%s1061 + $0x128] sm:$0x3]
        %v1137 = vld [vmem:[%s1061 + $0x130] sm:$0xff]
        %v1138 = vld [vmem:[%s1061 + $0x138] sm:$0x3]
        %v1139 = vld [vmem:[%s1061 + $0x140] sm:$0xff]
        %v1140 = vld [vmem:[%s1061 + $0x148] sm:$0x3]
        %v1141 = vld [vmem:[%s1061 + $0x150] sm:$0xff]
        %v1142 = vld [vmem:[%s1061 + $0x158] sm:$0x3]
        %v1143 = vld [vmem:[%s1061 + $0x160] sm:$0xff]
        %v1144 = vld [vmem:[%s1061 + $0x168] sm:$0x3]
        %v1145 = vld [vmem:[%s1061 + $0x170] sm:$0xff]
        %v1146 = vld [vmem:[%s1061 + $0x178] sm:$0x3]
        %v1147 = vld [vmem:[%s1061 + $0x180] sm:$0xff]
        %v1148 = vld [vmem:[%s1061 + $0x188] sm:$0x3]
        %v1149 = vld [vmem:[%s1061 + $0x190] sm:$0xff]
        %v1150 = vld [vmem:[%s1061 + $0x198] sm:$0x3]
        %v1151 = vld [vmem:[%s1061 + $0x1a0] sm:$0xff]
        %v1152 = vld [vmem:[%s1061 + $0x1a8] sm:$0x3]
        %v1153 = vld [vmem:[%s1061 + $0x1b0] sm:$0xff]
        %v1154 = vld [vmem:[%s1061 + $0x1b8] sm:$0x3]
        %v1155 = vld [vmem:[%s1061 + $0x1c0] sm:$0xff]
        %v1156 = vld [vmem:[%s1061 + $0x1c8] sm:$0x3]
        %v1157 = vld [vmem:[%s1061 + $0x1d0] sm:$0xff]
        %v1158 = vld [vmem:[%s1061 + $0x1d8] sm:$0x3]
        %v1159 = vld [vmem:[%s1061 + $0x1e0] sm:$0xff]
        %v1160 = vld [vmem:[%s1061 + $0x1e8] sm:$0x3]
        %v1161 = vld [vmem:[%s1061 + $0x1f0] sm:$0xff]
        %v1162 = vld [vmem:[%s1061 + $0x1f8] sm:$0x3]
        %v1163 = vld [vmem:[%s1061 + $0x200] sm:$0xff]
        %v1164 = vld [vmem:[%s1061 + $0x208] sm:$0x3]
        %v1165 = vld [vmem:[%s1061 + $0x210] sm:$0xff]
        %v1166 = vld [vmem:[%s1061 + $0x218] sm:$0x3]
        %v1167 = vld [vmem:[%s1061 + $0x220] sm:$0xff]
        %v1168 = vld [vmem:[%s1061 + $0x228] sm:$0x3]
        %v1169 = vld [vmem:[%s1061 + $0x230] sm:$0xff]
        %v1170 = vld [vmem:[%s1061 + $0x238] sm:$0x3]
        %v1171 = vld [vmem:[%s1061 + $0x240] sm:$0xff]
        %v1172 = vld [vmem:[%s1061 + $0x248] sm:$0x3]
        %v1173 = vld [vmem:[%s1061 + $0x250] sm:$0xff]
        %v1174 = vld [vmem:[%s1061 + $0x258] sm:$0x3]
        %v1175 = vld [vmem:[%s1061 + $0x260] sm:$0xff]
        %v1176 = vld [vmem:[%s1061 + $0x268] sm:$0x3]
        %v1177 = vld [vmem:[%s1061 + $0x270] sm:$0xff]
        %v1178 = vld [vmem:[%s1061 + $0x278] sm:$0x3]
        %v1179 = vld [vmem:[%s1061 + $0x280] sm:$0xff]
        %v1180 = vld [vmem:[%s1061 + $0x288] sm:$0x3]
        %v1181 = vld [vmem:[%s1061 + $0x290] sm:$0xff]
        %v1182 = vld [vmem:[%s1061 + $0x298] sm:$0x3]
        %v1183 = vld [vmem:[%s1061 + $0x2a0] sm:$0xff]
        %v1184 = vld [vmem:[%s1061 + $0x2a8] sm:$0x3]
        %v1185 = vld [vmem:[%s1061 + $0x2b0] sm:$0xff]
        %v1186 = vld [vmem:[%s1061 + $0x2b8] sm:$0x3]
        %v1187 = vld [vmem:[%s1061 + $0x2c0] sm:$0xff]
        %v1188 = vld [vmem:[%s1061 + $0x2c8] sm:$0x3]
        %v1189 = vld [vmem:[%s1061 + $0x2d0] sm:$0xff]
        %v1190 = vld [vmem:[%s1061 + $0x2d8] sm:$0x3]
        %v1191 = vld [vmem:[%s1061 + $0x2e0] sm:$0xff]
        %v1192 = vld [vmem:[%s1061 + $0x2e8] sm:$0x3]
        %v1193 = vld [vmem:[%s1061 + $0x2f0] sm:$0xff]
        %v1194 = vld [vmem:[%s1061 + $0x2f8] sm:$0x3]
        %v1195 = vld [vmem:[%s1061 + $0x300] sm:$0xff]
        %v1196 = vld [vmem:[%s1061 + $0x308] sm:$0x3]
        %v1197 = vld [vmem:[%s1061 + $0x310] sm:$0xff]
        %v1198 = vld [vmem:[%s1061 + $0x318] sm:$0x3]
        %v1199 = vld [vmem:[%s1061 + $0x320] sm:$0xff]
        %v1200 = vld [vmem:[%s1061 + $0x328] sm:$0x3]
        %v1201 = vld [vmem:[%s1061 + $0x330] sm:$0xff]
        %v1202 = vld [vmem:[%s1061 + $0x338] sm:$0x3]
        %v1203 = vld [vmem:[%s1061 + $0x340] sm:$0xff]
        %v1204 = vld [vmem:[%s1061 + $0x348] sm:$0x3]
        %v1205 = vld [vmem:[%s1061 + $0x350] sm:$0xff]
        %v1206 = vld [vmem:[%s1061 + $0x358] sm:$0x3]
        %v1207 = vld [vmem:[%s1061 + $0x360] sm:$0xff]
        %v1208 = vld [vmem:[%s1061 + $0x368] sm:$0x3]
        %v1209 = vld [vmem:[%s1061 + $0x370] sm:$0xff]
        %v1210 = vld [vmem:[%s1061 + $0x378] sm:$0x3]
        %v1211 = vld [vmem:[%s1061 + $0x380] sm:$0xff]
        %v1212 = vld [vmem:[%s1061 + $0x388] sm:$0x3]
        %v1213 = vld [vmem:[%s1061 + $0x390] sm:$0xff]
        %v1214 = vld [vmem:[%s1061 + $0x398] sm:$0x3]
        %v1215 = vld [vmem:[%s1061 + $0x3a0] sm:$0xff]
        %v1216 = vld [vmem:[%s1061 + $0x3a8] sm:$0x3]
        %v1217 = vld [vmem:[%s1061 + $0x3b0] sm:$0xff]
        %v1218 = vld [vmem:[%s1061 + $0x3b8] sm:$0x3]
        %v1219 = vld [vmem:[%s1061 + $0x3c0] sm:$0xff]
        %v1220 = vld [vmem:[%s1061 + $0x3c8] sm:$0x3]
        %v1221 = vld [vmem:[%s1061 + $0x3d0] sm:$0xff]
        %v1222 = vld [vmem:[%s1061 + $0x3d8] sm:$0x3]
        %v1223 = vld [vmem:[%s1061 + $0x3e0] sm:$0xff]
        %v1224 = vld [vmem:[%s1061 + $0x3e8] sm:$0x3]
        %v1225 = vld [vmem:[%s1061 + $0x3f0] sm:$0xff]
        %v1226 = vld [vmem:[%s1061 + $0x3f8] sm:$0x3]
        %v1227 = vld [vmem:[%s1061 + $0x400] sm:$0xff]
        %v1228 = vld [vmem:[%s1061 + $0x408] sm:$0x3]
        %v1229 = vld [vmem:[%s1061 + $0x410] sm:$0xff]
        %v1230 = vld [vmem:[%s1061 + $0x418] sm:$0x3]
        %v1231 = vld [vmem:[%s1061 + $0x420] sm:$0xff]
        %v1232 = vld [vmem:[%s1061 + $0x428] sm:$0x3]
        %v1233 = vld [vmem:[%s1061 + $0x430] sm:$0xff]
        %v1234 = vld [vmem:[%s1061 + $0x438] sm:$0x3]
        %v1235 = vld [vmem:[%s1061 + $0x440] sm:$0xff]
        %v1236 = vld [vmem:[%s1061 + $0x448] sm:$0x3]
        %v1237 = vld [vmem:[%s1061 + $0x450] sm:$0xff]
        %v1238 = vld [vmem:[%s1061 + $0x458] sm:$0x3]
        %v1239 = vld [vmem:[%s1061 + $0x460] sm:$0xff]
        %v1240 = vld [vmem:[%s1061 + $0x468] sm:$0x3]
        %v1241 = vld [vmem:[%s1061 + $0x470] sm:$0xff]
        %v1242 = vld [vmem:[%s1061 + $0x478] sm:$0x3]
        %v1243 = vld [vmem:[%s1061 + $0x480] sm:$0xff]
        %v1244 = vld [vmem:[%s1061 + $0x488] sm:$0x3]
        %v1245 = vld [vmem:[%s1061 + $0x490] sm:$0xff]
        %v1246 = vld [vmem:[%s1061 + $0x498] sm:$0x3]
        %v1247 = vld [vmem:[%s1061 + $0x4a0] sm:$0xff]
        %v1248 = vld [vmem:[%s1061 + $0x4a8] sm:$0x3]
        %v1249 = vld [vmem:[%s1061 + $0x4b0] sm:$0xff]
        %v1250 = vld [vmem:[%s1061 + $0x4b8] sm:$0x3]
        %v1251 = vld [vmem:[%s1061 + $0x4c0] sm:$0xff]
        %v1252 = vld [vmem:[%s1061 + $0x4c8] sm:$0x3]
        %v1253 = vld [vmem:[%s1061 + $0x4d0] sm:$0xff]
        %v1254 = vld [vmem:[%s1061 + $0x4d8] sm:$0x3]
        %v1255 = vld [vmem:[%s1061 + $0x4e0] sm:$0xff]
        %v1256 = vld [vmem:[%s1061 + $0x4e8] sm:$0x3]
        %v1257 = vld [vmem:[%s1061 + $0x4f0] sm:$0xff]
        %v1258 = vld [vmem:[%s1061 + $0x4f8] sm:$0x3]
        %v1259 = vld [vmem:[%s1061 + $0x500] sm:$0xff]
        %v1260 = vld [vmem:[%s1061 + $0x508] sm:$0x3]
        %v1261 = vld [vmem:[%s1061 + $0x510] sm:$0xff]
        %v1262 = vld [vmem:[%s1061 + $0x518] sm:$0x3]
        %v1263 = vld [vmem:[%s1061 + $0x520] sm:$0xff]
        %v1264 = vld [vmem:[%s1061 + $0x528] sm:$0x3]
        %v1265 = vld [vmem:[%s1061 + $0x530] sm:$0xff]
        %v1266 = vld [vmem:[%s1061 + $0x538] sm:$0x3]
        %v1267 = vld [vmem:[%s1061 + $0x540] sm:$0xff]
        %v1268 = vld [vmem:[%s1061 + $0x548] sm:$0x3]
        %v1269 = vld [vmem:[%s1061 + $0x550] sm:$0xff]
        %v1270 = vld [vmem:[%s1061 + $0x558] sm:$0x3]
        %v1271 = vld [vmem:[%s1061 + $0x560] sm:$0xff]
        %v1272 = vld [vmem:[%s1061 + $0x568] sm:$0x3]
        %v1273 = vld [vmem:[%s1061 + $0x570] sm:$0xff]
        %v1274 = vld [vmem:[%s1061 + $0x578] sm:$0x3]
        %v1275 = vld [vmem:[%s1061 + $0x580] sm:$0xff]
        %v1276 = vld [vmem:[%s1061 + $0x588] sm:$0x3]
        %v1277 = vld [vmem:[%s1061 + $0x590] sm:$0xff]
        %v1278 = vld [vmem:[%s1061 + $0x598] sm:$0x3]
        %v1279 = vld [vmem:[%s1061 + $0x5a0] sm:$0xff]
        %v1280 = vld [vmem:[%s1061 + $0x5a8] sm:$0x3]
        %v1281 = vld [vmem:[%s1061 + $0x5b0] sm:$0xff]
        %v1282 = vld [vmem:[%s1061 + $0x5b8] sm:$0x3]
        %v1283 = vld [vmem:[%s1061 + $0x5c0] sm:$0xff]
        %v1284 = vld [vmem:[%s1061 + $0x5c8] sm:$0x3]
        %v1285 = vld [vmem:[%s1061 + $0x5d0] sm:$0xff]
        %v1286 = vld [vmem:[%s1061 + $0x5d8] sm:$0x3]
        %v1287 = vld [vmem:[%s1061 + $0x5e0] sm:$0xff]
        %v1288 = vld [vmem:[%s1061 + $0x5e8] sm:$0x3]
        %v1289 = vld [vmem:[%s1061 + $0x5f0] sm:$0xff]
        %v1290 = vld [vmem:[%s1061 + $0x5f8] sm:$0x3]
        %v1291 = vld [vmem:[%s1061 + $0x600] sm:$0xff]
        %v1292 = vld [vmem:[%s1061 + $0x608] sm:$0x3]
        %v1293 = vld [vmem:[%s1061 + $0x610] sm:$0xff]
        %v1294 = vld [vmem:[%s1061 + $0x618] sm:$0x3]
        %v1295 = vld [vmem:[%s1061 + $0x620] sm:$0xff]
        %v1296 = vld [vmem:[%s1061 + $0x628] sm:$0x3]
        %v1297 = vld [vmem:[%s1061 + $0x630] sm:$0xff]
        %v1298 = vld [vmem:[%s1061 + $0x638] sm:$0x3]
        %v1299 = vld [vmem:[%s1068] sm:$0xff]
        %v1300 = vld [vmem:[%s1068 + $0x8] sm:$0xff]
        %v1301 = vld [vmem:[%s1068 + $0x10] sm:$0xff]
        %v1302 = vld [vmem:[%s1068 + $0x18] sm:$0x7]
        %v1303 = vld [vmem:[%s1098] sm:$0x1]
        %v1305 = vlaneseq
        %v1306 = vshrl.u32 %v1305, 7
        %v1307 = vsub.s32 0, %v1306
        %v1308 = vrot.slane %v1303, %v1307
        %v1310 = vlaneseq
        %v1311 = vshrl.u32 %v1310, 7
        %v1312 = vsub.s32 0, %v1311
        %v1313 = vrot.slane %v1299, %v1312
        %v1314 = vmul.f32 %v1099, %v1313
        %v1315 = vmul.f32 %v1101, %v1313
        %v1316 = vmul.f32 %v1103, %v1313
        %v1317 = vmul.f32 %v1105, %v1313
        %v1318 = vmul.f32 %v1107, %v1313
        %v1319 = vmul.f32 %v1109, %v1313
        %v1320 = vmul.f32 %v1111, %v1313
        %v1321 = vmul.f32 %v1113, %v1313
        %v1322 = vmul.f32 %v1119, %v1313
        %v1323 = vmul.f32 %v1121, %v1313
        %v1324 = vmul.f32 %v1123, %v1313
        %v1325 = vmul.f32 %v1125, %v1313
        %v1326 = vmul.f32 %v1127, %v1313
        %v1327 = vmul.f32 %v1129, %v1313
        %v1328 = vmul.f32 %v1131, %v1313
        %v1329 = vmul.f32 %v1133, %v1313
        %v1330 = vmul.f32 %v1139, %v1313
        %v1331 = vmul.f32 %v1141, %v1313
        %v1332 = vmul.f32 %v1143, %v1313
        %v1333 = vmul.f32 %v1145, %v1313
        %v1334 = vmul.f32 %v1147, %v1313
        %v1335 = vmul.f32 %v1149, %v1313
        %v1336 = vmul.f32 %v1151, %v1313
        %v1337 = vmul.f32 %v1153, %v1313
        %v1338 = vmul.f32 %v1159, %v1313
        %v1339 = vmul.f32 %v1161, %v1313
        %v1340 = vmul.f32 %v1163, %v1313
        %v1341 = vmul.f32 %v1165, %v1313
        %v1342 = vmul.f32 %v1167, %v1313
        %v1343 = vmul.f32 %v1169, %v1313
        %v1344 = vmul.f32 %v1171, %v1313
        %v1345 = vmul.f32 %v1173, %v1313
        %v1346 = vmul.f32 %v1179, %v1313
        %v1347 = vmul.f32 %v1181, %v1313
        %v1348 = vmul.f32 %v1183, %v1313
        %v1349 = vmul.f32 %v1185, %v1313
        %v1350 = vmul.f32 %v1187, %v1313
        %v1351 = vmul.f32 %v1189, %v1313
        %v1352 = vmul.f32 %v1191, %v1313
        %v1353 = vmul.f32 %v1193, %v1313
        %v1354 = vmul.f32 %v1199, %v1313
        %v1355 = vmul.f32 %v1201, %v1313
        %v1356 = vmul.f32 %v1203, %v1313
        %v1357 = vmul.f32 %v1205, %v1313
        %v1358 = vmul.f32 %v1207, %v1313
        %v1359 = vmul.f32 %v1209, %v1313
        %v1360 = vmul.f32 %v1211, %v1313
        %v1361 = vmul.f32 %v1213, %v1313
        %v1362 = vmul.f32 %v1219, %v1313
        %v1363 = vmul.f32 %v1221, %v1313
        %v1364 = vmul.f32 %v1223, %v1313
        %v1365 = vmul.f32 %v1225, %v1313
        %v1366 = vmul.f32 %v1227, %v1313
        %v1367 = vmul.f32 %v1229, %v1313
        %v1368 = vmul.f32 %v1231, %v1313
        %v1369 = vmul.f32 %v1233, %v1313
        %v1370 = vmul.f32 %v1239, %v1313
        %v1371 = vmul.f32 %v1241, %v1313
        %v1372 = vmul.f32 %v1243, %v1313
        %v1373 = vmul.f32 %v1245, %v1313
        %v1374 = vmul.f32 %v1247, %v1313
        %v1375 = vmul.f32 %v1249, %v1313
        %v1376 = vmul.f32 %v1251, %v1313
        %v1377 = vmul.f32 %v1253, %v1313
        %v1378 = vadd.f32 %v1308, %v1314
        %v1379 = vadd.f32 %v1308, %v1315
        %v1380 = vadd.f32 %v1308, %v1316
        %v1381 = vadd.f32 %v1308, %v1317
        %v1382 = vadd.f32 %v1308, %v1318
        %v1383 = vadd.f32 %v1308, %v1319
        %v1384 = vadd.f32 %v1308, %v1320
        %v1385 = vadd.f32 %v1308, %v1321
        %v1386 = vadd.f32 %v1308, %v1322
        %v1387 = vadd.f32 %v1308, %v1323
        %v1388 = vadd.f32 %v1308, %v1324
        %v1389 = vadd.f32 %v1308, %v1325
        %v1390 = vadd.f32 %v1308, %v1326
        %v1391 = vadd.f32 %v1308, %v1327
        %v1392 = vadd.f32 %v1308, %v1328
        %v1393 = vadd.f32 %v1308, %v1329
        %v1394 = vadd.f32 %v1308, %v1330
        %v1395 = vadd.f32 %v1308, %v1331
        %v1396 = vadd.f32 %v1308, %v1332
        %v1397 = vadd.f32 %v1308, %v1333
        %v1398 = vadd.f32 %v1308, %v1334
        %v1399 = vadd.f32 %v1308, %v1335
        %v1400 = vadd.f32 %v1308, %v1336
        %v1401 = vadd.f32 %v1308, %v1337
        %v1402 = vadd.f32 %v1308, %v1338
        %v1403 = vadd.f32 %v1308, %v1339
        %v1404 = vadd.f32 %v1308, %v1340
        %v1405 = vadd.f32 %v1308, %v1341
        %v1406 = vadd.f32 %v1308, %v1342
        %v1407 = vadd.f32 %v1308, %v1343
        %v1408 = vadd.f32 %v1308, %v1344
        %v1409 = vadd.f32 %v1308, %v1345
        %v1410 = vadd.f32 %v1308, %v1346
        %v1411 = vadd.f32 %v1308, %v1347
        %v1412 = vadd.f32 %v1308, %v1348
        %v1413 = vadd.f32 %v1308, %v1349
        %v1414 = vadd.f32 %v1308, %v1350
        %v1415 = vadd.f32 %v1308, %v1351
        %v1416 = vadd.f32 %v1308, %v1352
        %v1417 = vadd.f32 %v1308, %v1353
        %v1418 = vadd.f32 %v1308, %v1354
        %v1419 = vadd.f32 %v1308, %v1355
        %v1420 = vadd.f32 %v1308, %v1356
        %v1421 = vadd.f32 %v1308, %v1357
        %v1422 = vadd.f32 %v1308, %v1358
        %v1423 = vadd.f32 %v1308, %v1359
        %v1424 = vadd.f32 %v1308, %v1360
        %v1425 = vadd.f32 %v1308, %v1361
        %v1426 = vadd.f32 %v1308, %v1362
        %v1427 = vadd.f32 %v1308, %v1363
        %v1428 = vadd.f32 %v1308, %v1364
        %v1429 = vadd.f32 %v1308, %v1365
        %v1430 = vadd.f32 %v1308, %v1366
        %v1431 = vadd.f32 %v1308, %v1367
        %v1432 = vadd.f32 %v1308, %v1368
        %v1433 = vadd.f32 %v1308, %v1369
        %v1434 = vadd.f32 %v1308, %v1370
        %v1435 = vadd.f32 %v1308, %v1371
        %v1436 = vadd.f32 %v1308, %v1372
        %v1437 = vadd.f32 %v1308, %v1373
        %v1438 = vadd.f32 %v1308, %v1374
        %v1439 = vadd.f32 %v1308, %v1375
        %v1440 = vadd.f32 %v1308, %v1376
        %v1441 = vadd.f32 %v1308, %v1377
        %v1442 = vlaneseq
        %v1443 = vshrl.u32 %v1442, 7
        %v1444 = vsub.s32 1, %v1443
        %v1445 = vrot.slane %v1299, %v1444
        %v1446 = vmul.f32 %v1099, %v1445
        %v1447 = vmul.f32 %v1100, %v1445
        %v1448 = vmul.f32 %v1101, %v1445
        %v1449 = vmul.f32 %v1102, %v1445
        %v1450 = vmul.f32 %v1103, %v1445
        %v1451 = vmul.f32 %v1104, %v1445
        %v1452 = vmul.f32 %v1105, %v1445
        %v1453 = vmul.f32 %v1106, %v1445
        %v1454 = vmul.f32 %v1107, %v1445
        %v1455 = vmul.f32 %v1108, %v1445
        %v1456 = vmul.f32 %v1109, %v1445
        %v1457 = vmul.f32 %v1110, %v1445
        %v1458 = vmul.f32 %v1111, %v1445
        %v1459 = vmul.f32 %v1112, %v1445
        %v1460 = vmul.f32 %v1113, %v1445
        %v1461 = vmul.f32 %v1114, %v1445
        %v1462 = vmul.f32 %v1119, %v1445
        %v1463 = vmul.f32 %v1120, %v1445
        %v1464 = vmul.f32 %v1121, %v1445
        %v1465 = vmul.f32 %v1122, %v1445
        %v1466 = vmul.f32 %v1123, %v1445
        %v1467 = vmul.f32 %v1124, %v1445
        %v1468 = vmul.f32 %v1125, %v1445
        %v1469 = vmul.f32 %v1126, %v1445
        %v1470 = vmul.f32 %v1127, %v1445
        %v1471 = vmul.f32 %v1128, %v1445
        %v1472 = vmul.f32 %v1129, %v1445
        %v1473 = vmul.f32 %v1130, %v1445
        %v1474 = vmul.f32 %v1131, %v1445
        %v1475 = vmul.f32 %v1132, %v1445
        %v1476 = vmul.f32 %v1133, %v1445
        %v1477 = vmul.f32 %v1134, %v1445
        %v1478 = vmul.f32 %v1139, %v1445
        %v1479 = vmul.f32 %v1140, %v1445
        %v1480 = vmul.f32 %v1141, %v1445
        %v1481 = vmul.f32 %v1142, %v1445
        %v1482 = vmul.f32 %v1143, %v1445
        %v1483 = vmul.f32 %v1144, %v1445
        %v1484 = vmul.f32 %v1145, %v1445
        %v1485 = vmul.f32 %v1146, %v1445
        %v1486 = vmul.f32 %v1147, %v1445
        %v1487 = vmul.f32 %v1148, %v1445
        %v1488 = vmul.f32 %v1149, %v1445
        %v1489 = vmul.f32 %v1150, %v1445
        %v1490 = vmul.f32 %v1151, %v1445
        %v1491 = vmul.f32 %v1152, %v1445
        %v1492 = vmul.f32 %v1153, %v1445
        %v1493 = vmul.f32 %v1154, %v1445
        %v1494 = vmul.f32 %v1159, %v1445
        %v1495 = vmul.f32 %v1160, %v1445
        %v1496 = vmul.f32 %v1161, %v1445
        %v1497 = vmul.f32 %v1162, %v1445
        %v1498 = vmul.f32 %v1163, %v1445
        %v1499 = vmul.f32 %v1164, %v1445
        %v1500 = vmul.f32 %v1165, %v1445
        %v1501 = vmul.f32 %v1166, %v1445
        %v1502 = vmul.f32 %v1167, %v1445
        %v1503 = vmul.f32 %v1168, %v1445
        %v1504 = vmul.f32 %v1169, %v1445
        %v1505 = vmul.f32 %v1170, %v1445
        %v1506 = vmul.f32 %v1171, %v1445
        %v1507 = vmul.f32 %v1172, %v1445
        %v1508 = vmul.f32 %v1173, %v1445
        %v1509 = vmul.f32 %v1174, %v1445
        %v1510 = vmul.f32 %v1179, %v1445
        %v1511 = vmul.f32 %v1180, %v1445
        %v1512 = vmul.f32 %v1181, %v1445
        %v1513 = vmul.f32 %v1182, %v1445
        %v1514 = vmul.f32 %v1183, %v1445
        %v1515 = vmul.f32 %v1184, %v1445
        %v1516 = vmul.f32 %v1185, %v1445
        %v1517 = vmul.f32 %v1186, %v1445
        %v1518 = vmul.f32 %v1187, %v1445
        %v1519 = vmul.f32 %v1188, %v1445
        %v1520 = vmul.f32 %v1189, %v1445
        %v1521 = vmul.f32 %v1190, %v1445
        %v1522 = vmul.f32 %v1191, %v1445
        %v1523 = vmul.f32 %v1192, %v1445
        %v1524 = vmul.f32 %v1193, %v1445
        %v1525 = vmul.f32 %v1194, %v1445
        %v1526 = vmul.f32 %v1199, %v1445
        %v1527 = vmul.f32 %v1200, %v1445
        %v1528 = vmul.f32 %v1201, %v1445
        %v1529 = vmul.f32 %v1202, %v1445
        %v1530 = vmul.f32 %v1203, %v1445
        %v1531 = vmul.f32 %v1204, %v1445
        %v1532 = vmul.f32 %v1205, %v1445
        %v1533 = vmul.f32 %v1206, %v1445
        %v1534 = vmul.f32 %v1207, %v1445
        %v1535 = vmul.f32 %v1208, %v1445
        %v1536 = vmul.f32 %v1209, %v1445
        %v1537 = vmul.f32 %v1210, %v1445
        %v1538 = vmul.f32 %v1211, %v1445
        %v1539 = vmul.f32 %v1212, %v1445
        %v1540 = vmul.f32 %v1213, %v1445
        %v1541 = vmul.f32 %v1214, %v1445
        %v1542 = vmul.f32 %v1219, %v1445
        %v1543 = vmul.f32 %v1220, %v1445
        %v1544 = vmul.f32 %v1221, %v1445
        %v1545 = vmul.f32 %v1222, %v1445
        %v1546 = vmul.f32 %v1223, %v1445
        %v1547 = vmul.f32 %v1224, %v1445
        %v1548 = vmul.f32 %v1225, %v1445
        %v1549 = vmul.f32 %v1226, %v1445
        %v1550 = vmul.f32 %v1227, %v1445
        %v1551 = vmul.f32 %v1228, %v1445
        %v1552 = vmul.f32 %v1229, %v1445
        %v1553 = vmul.f32 %v1230, %v1445
        %v1554 = vmul.f32 %v1231, %v1445
        %v1555 = vmul.f32 %v1232, %v1445
        %v1556 = vmul.f32 %v1233, %v1445
        %v1557 = vmul.f32 %v1234, %v1445
        %v1558 = vmul.f32 %v1239, %v1445
        %v1559 = vmul.f32 %v1240, %v1445
        %v1560 = vmul.f32 %v1241, %v1445
        %v1561 = vmul.f32 %v1242, %v1445
        %v1562 = vmul.f32 %v1243, %v1445
        %v1563 = vmul.f32 %v1244, %v1445
        %v1564 = vmul.f32 %v1245, %v1445
        %v1565 = vmul.f32 %v1246, %v1445
        %v1566 = vmul.f32 %v1247, %v1445
        %v1567 = vmul.f32 %v1248, %v1445
        %v1568 = vmul.f32 %v1249, %v1445
        %v1569 = vmul.f32 %v1250, %v1445
        %v1570 = vmul.f32 %v1251, %v1445
        %v1571 = vmul.f32 %v1252, %v1445
        %v1572 = vmul.f32 %v1253, %v1445
        %v1573 = vmul.f32 %v1254, %v1445
        %vm1702 = vcmask 1046528
        %v1703 = vrot.slane %v1446, 1
        %v1704 = vrot.slane %v1447, 1
        %v1705 = vsel %vm1702, %v1703, %v1704
        %v1706 = vrot.slane %v1448, 1
        %v1707 = vrot.slane %v1449, 1
        %v1708 = vsel %vm1702, %v1706, %v1707
        %v1709 = vrot.slane %v1450, 1
        %v1710 = vrot.slane %v1451, 1
        %v1711 = vsel %vm1702, %v1709, %v1710
        %v1712 = vrot.slane %v1452, 1
        %v1713 = vrot.slane %v1453, 1
        %v1714 = vsel %vm1702, %v1712, %v1713
        %v1715 = vrot.slane %v1454, 1
        %v1716 = vrot.slane %v1455, 1
        %v1717 = vsel %vm1702, %v1715, %v1716
        %v1718 = vrot.slane %v1456, 1
        %v1719 = vrot.slane %v1457, 1
        %v1720 = vsel %vm1702, %v1718, %v1719
        %v1721 = vrot.slane %v1458, 1
        %v1722 = vrot.slane %v1459, 1
        %v1723 = vsel %vm1702, %v1721, %v1722
        %v1724 = vrot.slane %v1460, 1
        %v1725 = vrot.slane %v1461, 1
        %v1726 = vsel %vm1702, %v1724, %v1725
        %v1727 = vrot.slane %v1462, 1
        %v1728 = vrot.slane %v1463, 1
        %v1729 = vsel %vm1702, %v1727, %v1728
        %v1730 = vrot.slane %v1464, 1
        %v1731 = vrot.slane %v1465, 1
        %v1732 = vsel %vm1702, %v1730, %v1731
        %v1733 = vrot.slane %v1466, 1
        %v1734 = vrot.slane %v1467, 1
        %v1735 = vsel %vm1702, %v1733, %v1734
        %v1736 = vrot.slane %v1468, 1
        %v1737 = vrot.slane %v1469, 1
        %v1738 = vsel %vm1702, %v1736, %v1737
        %v1739 = vrot.slane %v1470, 1
        %v1740 = vrot.slane %v1471, 1
        %v1741 = vsel %vm1702, %v1739, %v1740
        %v1742 = vrot.slane %v1472, 1
        %v1743 = vrot.slane %v1473, 1
        %v1744 = vsel %vm1702, %v1742, %v1743
        %v1745 = vrot.slane %v1474, 1
        %v1746 = vrot.slane %v1475, 1
        %v1747 = vsel %vm1702, %v1745, %v1746
        %v1748 = vrot.slane %v1476, 1
        %v1749 = vrot.slane %v1477, 1
        %v1750 = vsel %vm1702, %v1748, %v1749
        %v1751 = vrot.slane %v1478, 1
        %v1752 = vrot.slane %v1479, 1
        %v1753 = vsel %vm1702, %v1751, %v1752
        %v1754 = vrot.slane %v1480, 1
        %v1755 = vrot.slane %v1481, 1
        %v1756 = vsel %vm1702, %v1754, %v1755
        %v1757 = vrot.slane %v1482, 1
        %v1758 = vrot.slane %v1483, 1
        %v1759 = vsel %vm1702, %v1757, %v1758
        %v1760 = vrot.slane %v1484, 1
        %v1761 = vrot.slane %v1485, 1
        %v1762 = vsel %vm1702, %v1760, %v1761
        %v1763 = vrot.slane %v1486, 1
        %v1764 = vrot.slane %v1487, 1
        %v1765 = vsel %vm1702, %v1763, %v1764
        %v1766 = vrot.slane %v1488, 1
        %v1767 = vrot.slane %v1489, 1
        %v1768 = vsel %vm1702, %v1766, %v1767
        %v1769 = vrot.slane %v1490, 1
        %v1770 = vrot.slane %v1491, 1
        %v1771 = vsel %vm1702, %v1769, %v1770
        %v1772 = vrot.slane %v1492, 1
        %v1773 = vrot.slane %v1493, 1
        %v1774 = vsel %vm1702, %v1772, %v1773
        %v1775 = vrot.slane %v1494, 1
        %v1776 = vrot.slane %v1495, 1
        %v1777 = vsel %vm1702, %v1775, %v1776
        %v1778 = vrot.slane %v1496, 1
        %v1779 = vrot.slane %v1497, 1
        %v1780 = vsel %vm1702, %v1778, %v1779
        %v1781 = vrot.slane %v1498, 1
        %v1782 = vrot.slane %v1499, 1
        %v1783 = vsel %vm1702, %v1781, %v1782
        %v1784 = vrot.slane %v1500, 1
        %v1785 = vrot.slane %v1501, 1
        %v1786 = vsel %vm1702, %v1784, %v1785
        %v1787 = vrot.slane %v1502, 1
        %v1788 = vrot.slane %v1503, 1
        %v1789 = vsel %vm1702, %v1787, %v1788
        %v1790 = vrot.slane %v1504, 1
        %v1791 = vrot.slane %v1505, 1
        %v1792 = vsel %vm1702, %v1790, %v1791
        %v1793 = vrot.slane %v1506, 1
        %v1794 = vrot.slane %v1507, 1
        %v1795 = vsel %vm1702, %v1793, %v1794
        %v1796 = vrot.slane %v1508, 1
        %v1797 = vrot.slane %v1509, 1
        %v1798 = vsel %vm1702, %v1796, %v1797
        %v1799 = vrot.slane %v1510, 1
        %v1800 = vrot.slane %v1511, 1
        %v1801 = vsel %vm1702, %v1799, %v1800
        %v1802 = vrot.slane %v1512, 1
        %v1803 = vrot.slane %v1513, 1
        %v1804 = vsel %vm1702, %v1802, %v1803
        %v1805 = vrot.slane %v1514, 1
        %v1806 = vrot.slane %v1515, 1
        %v1807 = vsel %vm1702, %v1805, %v1806
        %v1808 = vrot.slane %v1516, 1
        %v1809 = vrot.slane %v1517, 1
        %v1810 = vsel %vm1702, %v1808, %v1809
        %v1811 = vrot.slane %v1518, 1
        %v1812 = vrot.slane %v1519, 1
        %v1813 = vsel %vm1702, %v1811, %v1812
        %v1814 = vrot.slane %v1520, 1
        %v1815 = vrot.slane %v1521, 1
        %v1816 = vsel %vm1702, %v1814, %v1815
        %v1817 = vrot.slane %v1522, 1
        %v1818 = vrot.slane %v1523, 1
        %v1819 = vsel %vm1702, %v1817, %v1818
        %v1820 = vrot.slane %v1524, 1
        %v1821 = vrot.slane %v1525, 1
        %v1822 = vsel %vm1702, %v1820, %v1821
        %v1823 = vrot.slane %v1526, 1
        %v1824 = vrot.slane %v1527, 1
        %v1825 = vsel %vm1702, %v1823, %v1824
        %v1826 = vrot.slane %v1528, 1
        %v1827 = vrot.slane %v1529, 1
        %v1828 = vsel %vm1702, %v1826, %v1827
        %v1829 = vrot.slane %v1530, 1
        %v1830 = vrot.slane %v1531, 1
        %v1831 = vsel %vm1702, %v1829, %v1830
        %v1832 = vrot.slane %v1532, 1
        %v1833 = vrot.slane %v1533, 1
        %v1834 = vsel %vm1702, %v1832, %v1833
        %v1835 = vrot.slane %v1534, 1
        %v1836 = vrot.slane %v1535, 1
        %v1837 = vsel %vm1702, %v1835, %v1836
        %v1838 = vrot.slane %v1536, 1
        %v1839 = vrot.slane %v1537, 1
        %v1840 = vsel %vm1702, %v1838, %v1839
        %v1841 = vrot.slane %v1538, 1
        %v1842 = vrot.slane %v1539, 1
        %v1843 = vsel %vm1702, %v1841, %v1842
        %v1844 = vrot.slane %v1540, 1
        %v1845 = vrot.slane %v1541, 1
        %v1846 = vsel %vm1702, %v1844, %v1845
        %v1847 = vrot.slane %v1542, 1
        %v1848 = vrot.slane %v1543, 1
        %v1849 = vsel %vm1702, %v1847, %v1848
        %v1850 = vrot.slane %v1544, 1
        %v1851 = vrot.slane %v1545, 1
        %v1852 = vsel %vm1702, %v1850, %v1851
        %v1853 = vrot.slane %v1546, 1
        %v1854 = vrot.slane %v1547, 1
        %v1855 = vsel %vm1702, %v1853, %v1854
        %v1856 = vrot.slane %v1548, 1
        %v1857 = vrot.slane %v1549, 1
        %v1858 = vsel %vm1702, %v1856, %v1857
        %v1859 = vrot.slane %v1550, 1
        %v1860 = vrot.slane %v1551, 1
        %v1861 = vsel %vm1702, %v1859, %v1860
        %v1862 = vrot.slane %v1552, 1
        %v1863 = vrot.slane %v1553, 1
        %v1864 = vsel %vm1702, %v1862, %v1863
        %v1865 = vrot.slane %v1554, 1
        %v1866 = vrot.slane %v1555, 1
        %v1867 = vsel %vm1702, %v1865, %v1866
        %v1868 = vrot.slane %v1556, 1
        %v1869 = vrot.slane %v1557, 1
        %v1870 = vsel %vm1702, %v1868, %v1869
        %v1871 = vrot.slane %v1558, 1
        %v1872 = vrot.slane %v1559, 1
        %v1873 = vsel %vm1702, %v1871, %v1872
        %v1874 = vrot.slane %v1560, 1
        %v1875 = vrot.slane %v1561, 1
        %v1876 = vsel %vm1702, %v1874, %v1875
        %v1877 = vrot.slane %v1562, 1
        %v1878 = vrot.slane %v1563, 1
        %v1879 = vsel %vm1702, %v1877, %v1878
        %v1880 = vrot.slane %v1564, 1
        %v1881 = vrot.slane %v1565, 1
        %v1882 = vsel %vm1702, %v1880, %v1881
        %v1883 = vrot.slane %v1566, 1
        %v1884 = vrot.slane %v1567, 1
        %v1885 = vsel %vm1702, %v1883, %v1884
        %v1886 = vrot.slane %v1568, 1
        %v1887 = vrot.slane %v1569, 1
        %v1888 = vsel %vm1702, %v1886, %v1887
        %v1889 = vrot.slane %v1570, 1
        %v1890 = vrot.slane %v1571, 1
        %v1891 = vsel %vm1702, %v1889, %v1890
        %v1892 = vrot.slane %v1572, 1
        %v1893 = vrot.slane %v1573, 1
        %v1894 = vsel %vm1702, %v1892, %v1893
        %v1959 = vadd.f32 %v1378, %v1705
        %v1960 = vadd.f32 %v1379, %v1708
        %v1961 = vadd.f32 %v1380, %v1711
        %v1962 = vadd.f32 %v1381, %v1714
        %v1963 = vadd.f32 %v1382, %v1717
        %v1964 = vadd.f32 %v1383, %v1720
        %v1965 = vadd.f32 %v1384, %v1723
        %v1966 = vadd.f32 %v1385, %v1726
        %v1967 = vadd.f32 %v1386, %v1729
        %v1968 = vadd.f32 %v1387, %v1732
        %v1969 = vadd.f32 %v1388, %v1735
        %v1970 = vadd.f32 %v1389, %v1738
        %v1971 = vadd.f32 %v1390, %v1741
        %v1972 = vadd.f32 %v1391, %v1744
        %v1973 = vadd.f32 %v1392, %v1747
        %v1974 = vadd.f32 %v1393, %v1750
        %v1975 = vadd.f32 %v1394, %v1753
        %v1976 = vadd.f32 %v1395, %v1756
        %v1977 = vadd.f32 %v1396, %v1759
        %v1978 = vadd.f32 %v1397, %v1762
        %v1979 = vadd.f32 %v1398, %v1765
        %v1980 = vadd.f32 %v1399, %v1768
        %v1981 = vadd.f32 %v1400, %v1771
        %v1982 = vadd.f32 %v1401, %v1774
        %v1983 = vadd.f32 %v1402, %v1777
        %v1984 = vadd.f32 %v1403, %v1780
        %v1985 = vadd.f32 %v1404, %v1783
        %v1986 = vadd.f32 %v1405, %v1786
        %v1987 = vadd.f32 %v1406, %v1789
        %v1988 = vadd.f32 %v1407, %v1792
        %v1989 = vadd.f32 %v1408, %v1795
        %v1990 = vadd.f32 %v1409, %v1798
        %v1991 = vadd.f32 %v1410, %v1801
        %v1992 = vadd.f32 %v1411, %v1804
        %v1993 = vadd.f32 %v1412, %v1807
        %v1994 = vadd.f32 %v1413, %v1810
        %v1995 = vadd.f32 %v1414, %v1813
        %v1996 = vadd.f32 %v1415, %v1816
        %v1997 = vadd.f32 %v1416, %v1819
        %v1998 = vadd.f32 %v1417, %v1822
        %v1999 = vadd.f32 %v1418, %v1825
        %v2000 = vadd.f32 %v1419, %v1828
        %v2001 = vadd.f32 %v1420, %v1831
        %v2002 = vadd.f32 %v1421, %v1834
        %v2003 = vadd.f32 %v1422, %v1837
        %v2004 = vadd.f32 %v1423, %v1840
        %v2005 = vadd.f32 %v1424, %v1843
        %v2006 = vadd.f32 %v1425, %v1846
        %v2007 = vadd.f32 %v1426, %v1849
        %v2008 = vadd.f32 %v1427, %v1852
        %v2009 = vadd.f32 %v1428, %v1855
        %v2010 = vadd.f32 %v1429, %v1858
        %v2011 = vadd.f32 %v1430, %v1861
        %v2012 = vadd.f32 %v1431, %v1864
        %v2013 = vadd.f32 %v1432, %v1867
        %v2014 = vadd.f32 %v1433, %v1870
        %v2015 = vadd.f32 %v1434, %v1873
        %v2016 = vadd.f32 %v1435, %v1876
        %v2017 = vadd.f32 %v1436, %v1879
        %v2018 = vadd.f32 %v1437, %v1882
        %v2019 = vadd.f32 %v1438, %v1885
        %v2020 = vadd.f32 %v1439, %v1888
        %v2021 = vadd.f32 %v1440, %v1891
        %v2022 = vadd.f32 %v1441, %v1894
        %v2023 = vlaneseq
        %v2024 = vshrl.u32 %v2023, 7
        %v2025 = vsub.s32 2, %v2024
        %v2026 = vrot.slane %v1299, %v2025
        %v2027 = vmul.f32 %v1099, %v2026
        %v2028 = vmul.f32 %v1100, %v2026
        %v2029 = vmul.f32 %v1101, %v2026
        %v2030 = vmul.f32 %v1102, %v2026
        %v2031 = vmul.f32 %v1103, %v2026
        %v2032 = vmul.f32 %v1104, %v2026
        %v2033 = vmul.f32 %v1105, %v2026
        %v2034 = vmul.f32 %v1106, %v2026
        %v2035 = vmul.f32 %v1107, %v2026
        %v2036 = vmul.f32 %v1108, %v2026
        %v2037 = vmul.f32 %v1109, %v2026
        %v2038 = vmul.f32 %v1110, %v2026
        %v2039 = vmul.f32 %v1111, %v2026
        %v2040 = vmul.f32 %v1112, %v2026
        %v2041 = vmul.f32 %v1113, %v2026
        %v2042 = vmul.f32 %v1114, %v2026
        %v2043 = vmul.f32 %v1119, %v2026
        %v2044 = vmul.f32 %v1120, %v2026
        %v2045 = vmul.f32 %v1121, %v2026
        %v2046 = vmul.f32 %v1122, %v2026
        %v2047 = vmul.f32 %v1123, %v2026
        %v2048 = vmul.f32 %v1124, %v2026
        %v2049 = vmul.f32 %v1125, %v2026
        %v2050 = vmul.f32 %v1126, %v2026
        %v2051 = vmul.f32 %v1127, %v2026
        %v2052 = vmul.f32 %v1128, %v2026
        %v2053 = vmul.f32 %v1129, %v2026
        %v2054 = vmul.f32 %v1130, %v2026
        %v2055 = vmul.f32 %v1131, %v2026
        %v2056 = vmul.f32 %v1132, %v2026
        %v2057 = vmul.f32 %v1133, %v2026
        %v2058 = vmul.f32 %v1134, %v2026
        %v2059 = vmul.f32 %v1139, %v2026
        %v2060 = vmul.f32 %v1140, %v2026
        %v2061 = vmul.f32 %v1141, %v2026
        %v2062 = vmul.f32 %v1142, %v2026
        %v2063 = vmul.f32 %v1143, %v2026
        %v2064 = vmul.f32 %v1144, %v2026
        %v2065 = vmul.f32 %v1145, %v2026
        %v2066 = vmul.f32 %v1146, %v2026
        %v2067 = vmul.f32 %v1147, %v2026
        %v2068 = vmul.f32 %v1148, %v2026
        %v2069 = vmul.f32 %v1149, %v2026
        %v2070 = vmul.f32 %v1150, %v2026
        %v2071 = vmul.f32 %v1151, %v2026
        %v2072 = vmul.f32 %v1152, %v2026
        %v2073 = vmul.f32 %v1153, %v2026
        %v2074 = vmul.f32 %v1154, %v2026
        %v2075 = vmul.f32 %v1159, %v2026
        %v2076 = vmul.f32 %v1160, %v2026
        %v2077 = vmul.f32 %v1161, %v2026
        %v2078 = vmul.f32 %v1162, %v2026
        %v2079 = vmul.f32 %v1163, %v2026
        %v2080 = vmul.f32 %v1164, %v2026
        %v2081 = vmul.f32 %v1165, %v2026
        %v2082 = vmul.f32 %v1166, %v2026
        %v2083 = vmul.f32 %v1167, %v2026
        %v2084 = vmul.f32 %v1168, %v2026
        %v2085 = vmul.f32 %v1169, %v2026
        %v2086 = vmul.f32 %v1170, %v2026
        %v2087 = vmul.f32 %v1171, %v2026
        %v2088 = vmul.f32 %v1172, %v2026
        %v2089 = vmul.f32 %v1173, %v2026
        %v2090 = vmul.f32 %v1174, %v2026
        %v2091 = vmul.f32 %v1179, %v2026
        %v2092 = vmul.f32 %v1180, %v2026
        %v2093 = vmul.f32 %v1181, %v2026
        %v2094 = vmul.f32 %v1182, %v2026
        %v2095 = vmul.f32 %v1183, %v2026
        %v2096 = vmul.f32 %v1184, %v2026
        %v2097 = vmul.f32 %v1185, %v2026
        %v2098 = vmul.f32 %v1186, %v2026
        %v2099 = vmul.f32 %v1187, %v2026
        %v2100 = vmul.f32 %v1188, %v2026
        %v2101 = vmul.f32 %v1189, %v2026
        %v2102 = vmul.f32 %v1190, %v2026
        %v2103 = vmul.f32 %v1191, %v2026
        %v2104 = vmul.f32 %v1192, %v2026
        %v2105 = vmul.f32 %v1193, %v2026
        %v2106 = vmul.f32 %v1194, %v2026
        %v2107 = vmul.f32 %v1199, %v2026
        %v2108 = vmul.f32 %v1200, %v2026
        %v2109 = vmul.f32 %v1201, %v2026
        %v2110 = vmul.f32 %v1202, %v2026
        %v2111 = vmul.f32 %v1203, %v2026
        %v2112 = vmul.f32 %v1204, %v2026
        %v2113 = vmul.f32 %v1205, %v2026
        %v2114 = vmul.f32 %v1206, %v2026
        %v2115 = vmul.f32 %v1207, %v2026
        %v2116 = vmul.f32 %v1208, %v2026
        %v2117 = vmul.f32 %v1209, %v2026
        %v2118 = vmul.f32 %v1210, %v2026
        %v2119 = vmul.f32 %v1211, %v2026
        %v2120 = vmul.f32 %v1212, %v2026
        %v2121 = vmul.f32 %v1213, %v2026
        %v2122 = vmul.f32 %v1214, %v2026
        %v2123 = vmul.f32 %v1219, %v2026
        %v2124 = vmul.f32 %v1220, %v2026
        %v2125 = vmul.f32 %v1221, %v2026
        %v2126 = vmul.f32 %v1222, %v2026
        %v2127 = vmul.f32 %v1223, %v2026
        %v2128 = vmul.f32 %v1224, %v2026
        %v2129 = vmul.f32 %v1225, %v2026
        %v2130 = vmul.f32 %v1226, %v2026
        %v2131 = vmul.f32 %v1227, %v2026
        %v2132 = vmul.f32 %v1228, %v2026
        %v2133 = vmul.f32 %v1229, %v2026
        %v2134 = vmul.f32 %v1230, %v2026
        %v2135 = vmul.f32 %v1231, %v2026
        %v2136 = vmul.f32 %v1232, %v2026
        %v2137 = vmul.f32 %v1233, %v2026
        %v2138 = vmul.f32 %v1234, %v2026
        %v2139 = vmul.f32 %v1239, %v2026
        %v2140 = vmul.f32 %v1240, %v2026
        %v2141 = vmul.f32 %v1241, %v2026
        %v2142 = vmul.f32 %v1242, %v2026
        %v2143 = vmul.f32 %v1243, %v2026
        %v2144 = vmul.f32 %v1244, %v2026
        %v2145 = vmul.f32 %v1245, %v2026
        %v2146 = vmul.f32 %v1246, %v2026
        %v2147 = vmul.f32 %v1247, %v2026
        %v2148 = vmul.f32 %v1248, %v2026
        %v2149 = vmul.f32 %v1249, %v2026
        %v2150 = vmul.f32 %v1250, %v2026
        %v2151 = vmul.f32 %v1251, %v2026
        %v2152 = vmul.f32 %v1252, %v2026
        %v2153 = vmul.f32 %v1253, %v2026
        %v2154 = vmul.f32 %v1254, %v2026
        %vm2283 = vcmask 1045504
        %v2284 = vrot.slane %v2027, 2
        %v2285 = vrot.slane %v2028, 2
        %v2286 = vsel %vm2283, %v2284, %v2285
        %v2287 = vrot.slane %v2029, 2
        %v2288 = vrot.slane %v2030, 2
        %v2289 = vsel %vm2283, %v2287, %v2288
        %v2290 = vrot.slane %v2031, 2
        %v2291 = vrot.slane %v2032, 2
        %v2292 = vsel %vm2283, %v2290, %v2291
        %v2293 = vrot.slane %v2033, 2
        %v2294 = vrot.slane %v2034, 2
        %v2295 = vsel %vm2283, %v2293, %v2294
        %v2296 = vrot.slane %v2035, 2
        %v2297 = vrot.slane %v2036, 2
        %v2298 = vsel %vm2283, %v2296, %v2297
        %v2299 = vrot.slane %v2037, 2
        %v2300 = vrot.slane %v2038, 2
        %v2301 = vsel %vm2283, %v2299, %v2300
        %v2302 = vrot.slane %v2039, 2
        %v2303 = vrot.slane %v2040, 2
        %v2304 = vsel %vm2283, %v2302, %v2303
        %v2305 = vrot.slane %v2041, 2
        %v2306 = vrot.slane %v2042, 2
        %v2307 = vsel %vm2283, %v2305, %v2306
        %v2308 = vrot.slane %v2043, 2
        %v2309 = vrot.slane %v2044, 2
        %v2310 = vsel %vm2283, %v2308, %v2309
        %v2311 = vrot.slane %v2045, 2
        %v2312 = vrot.slane %v2046, 2
        %v2313 = vsel %vm2283, %v2311, %v2312
        %v2314 = vrot.slane %v2047, 2
        %v2315 = vrot.slane %v2048, 2
        %v2316 = vsel %vm2283, %v2314, %v2315
        %v2317 = vrot.slane %v2049, 2
        %v2318 = vrot.slane %v2050, 2
        %v2319 = vsel %vm2283, %v2317, %v2318
        %v2320 = vrot.slane %v2051, 2
        %v2321 = vrot.slane %v2052, 2
        %v2322 = vsel %vm2283, %v2320, %v2321
        %v2323 = vrot.slane %v2053, 2
        %v2324 = vrot.slane %v2054, 2
        %v2325 = vsel %vm2283, %v2323, %v2324
        %v2326 = vrot.slane %v2055, 2
        %v2327 = vrot.slane %v2056, 2
        %v2328 = vsel %vm2283, %v2326, %v2327
        %v2329 = vrot.slane %v2057, 2
        %v2330 = vrot.slane %v2058, 2
        %v2331 = vsel %vm2283, %v2329, %v2330
        %v2332 = vrot.slane %v2059, 2
        %v2333 = vrot.slane %v2060, 2
        %v2334 = vsel %vm2283, %v2332, %v2333
        %v2335 = vrot.slane %v2061, 2
        %v2336 = vrot.slane %v2062, 2
        %v2337 = vsel %vm2283, %v2335, %v2336
        %v2338 = vrot.slane %v2063, 2
        %v2339 = vrot.slane %v2064, 2
        %v2340 = vsel %vm2283, %v2338, %v2339
        %v2341 = vrot.slane %v2065, 2
        %v2342 = vrot.slane %v2066, 2
        %v2343 = vsel %vm2283, %v2341, %v2342
        %v2344 = vrot.slane %v2067, 2
        %v2345 = vrot.slane %v2068, 2
        %v2346 = vsel %vm2283, %v2344, %v2345
        %v2347 = vrot.slane %v2069, 2
        %v2348 = vrot.slane %v2070, 2
        %v2349 = vsel %vm2283, %v2347, %v2348
        %v2350 = vrot.slane %v2071, 2
        %v2351 = vrot.slane %v2072, 2
        %v2352 = vsel %vm2283, %v2350, %v2351
        %v2353 = vrot.slane %v2073, 2
        %v2354 = vrot.slane %v2074, 2
        %v2355 = vsel %vm2283, %v2353, %v2354
        %v2356 = vrot.slane %v2075, 2
        %v2357 = vrot.slane %v2076, 2
        %v2358 = vsel %vm2283, %v2356, %v2357
        %v2359 = vrot.slane %v2077, 2
        %v2360 = vrot.slane %v2078, 2
        %v2361 = vsel %vm2283, %v2359, %v2360
        %v2362 = vrot.slane %v2079, 2
        %v2363 = vrot.slane %v2080, 2
        %v2364 = vsel %vm2283, %v2362, %v2363
        %v2365 = vrot.slane %v2081, 2
        %v2366 = vrot.slane %v2082, 2
        %v2367 = vsel %vm2283, %v2365, %v2366
        %v2368 = vrot.slane %v2083, 2
        %v2369 = vrot.slane %v2084, 2
        %v2370 = vsel %vm2283, %v2368, %v2369
        %v2371 = vrot.slane %v2085, 2
        %v2372 = vrot.slane %v2086, 2
        %v2373 = vsel %vm2283, %v2371, %v2372
        %v2374 = vrot.slane %v2087, 2
        %v2375 = vrot.slane %v2088, 2
        %v2376 = vsel %vm2283, %v2374, %v2375
        %v2377 = vrot.slane %v2089, 2
        %v2378 = vrot.slane %v2090, 2
        %v2379 = vsel %vm2283, %v2377, %v2378
        %v2380 = vrot.slane %v2091, 2
        %v2381 = vrot.slane %v2092, 2
        %v2382 = vsel %vm2283, %v2380, %v2381
        %v2383 = vrot.slane %v2093, 2
        %v2384 = vrot.slane %v2094, 2
        %v2385 = vsel %vm2283, %v2383, %v2384
        %v2386 = vrot.slane %v2095, 2
        %v2387 = vrot.slane %v2096, 2
        %v2388 = vsel %vm2283, %v2386, %v2387
        %v2389 = vrot.slane %v2097, 2
        %v2390 = vrot.slane %v2098, 2
        %v2391 = vsel %vm2283, %v2389, %v2390
        %v2392 = vrot.slane %v2099, 2
        %v2393 = vrot.slane %v2100, 2
        %v2394 = vsel %vm2283, %v2392, %v2393
        %v2395 = vrot.slane %v2101, 2
        %v2396 = vrot.slane %v2102, 2
        %v2397 = vsel %vm2283, %v2395, %v2396
        %v2398 = vrot.slane %v2103, 2
        %v2399 = vrot.slane %v2104, 2
        %v2400 = vsel %vm2283, %v2398, %v2399
        %v2401 = vrot.slane %v2105, 2
        %v2402 = vrot.slane %v2106, 2
        %v2403 = vsel %vm2283, %v2401, %v2402
        %v2404 = vrot.slane %v2107, 2
        %v2405 = vrot.slane %v2108, 2
        %v2406 = vsel %vm2283, %v2404, %v2405
        %v2407 = vrot.slane %v2109, 2
        %v2408 = vrot.slane %v2110, 2
        %v2409 = vsel %vm2283, %v2407, %v2408
        %v2410 = vrot.slane %v2111, 2
        %v2411 = vrot.slane %v2112, 2
        %v2412 = vsel %vm2283, %v2410, %v2411
        %v2413 = vrot.slane %v2113, 2
        %v2414 = vrot.slane %v2114, 2
        %v2415 = vsel %vm2283, %v2413, %v2414
        %v2416 = vrot.slane %v2115, 2
        %v2417 = vrot.slane %v2116, 2
        %v2418 = vsel %vm2283, %v2416, %v2417
        %v2419 = vrot.slane %v2117, 2
        %v2420 = vrot.slane %v2118, 2
        %v2421 = vsel %vm2283, %v2419, %v2420
        %v2422 = vrot.slane %v2119, 2
        %v2423 = vrot.slane %v2120, 2
        %v2424 = vsel %vm2283, %v2422, %v2423
        %v2425 = vrot.slane %v2121, 2
        %v2426 = vrot.slane %v2122, 2
        %v2427 = vsel %vm2283, %v2425, %v2426
        %v2428 = vrot.slane %v2123, 2
        %v2429 = vrot.slane %v2124, 2
        %v2430 = vsel %vm2283, %v2428, %v2429
        %v2431 = vrot.slane %v2125, 2
        %v2432 = vrot.slane %v2126, 2
        %v2433 = vsel %vm2283, %v2431, %v2432
        %v2434 = vrot.slane %v2127, 2
        %v2435 = vrot.slane %v2128, 2
        %v2436 = vsel %vm2283, %v2434, %v2435
        %v2437 = vrot.slane %v2129, 2
        %v2438 = vrot.slane %v2130, 2
        %v2439 = vsel %vm2283, %v2437, %v2438
        %v2440 = vrot.slane %v2131, 2
        %v2441 = vrot.slane %v2132, 2
        %v2442 = vsel %vm2283, %v2440, %v2441
        %v2443 = vrot.slane %v2133, 2
        %v2444 = vrot.slane %v2134, 2
        %v2445 = vsel %vm2283, %v2443, %v2444
        %v2446 = vrot.slane %v2135, 2
        %v2447 = vrot.slane %v2136, 2
        %v2448 = vsel %vm2283, %v2446, %v2447
        %v2449 = vrot.slane %v2137, 2
        %v2450 = vrot.slane %v2138, 2
        %v2451 = vsel %vm2283, %v2449, %v2450
        %v2452 = vrot.slane %v2139, 2
        %v2453 = vrot.slane %v2140, 2
        %v2454 = vsel %vm2283, %v2452, %v2453
        %v2455 = vrot.slane %v2141, 2
        %v2456 = vrot.slane %v2142, 2
        %v2457 = vsel %vm2283, %v2455, %v2456
        %v2458 = vrot.slane %v2143, 2
        %v2459 = vrot.slane %v2144, 2
        %v2460 = vsel %vm2283, %v2458, %v2459
        %v2461 = vrot.slane %v2145, 2
        %v2462 = vrot.slane %v2146, 2
        %v2463 = vsel %vm2283, %v2461, %v2462
        %v2464 = vrot.slane %v2147, 2
        %v2465 = vrot.slane %v2148, 2
        %v2466 = vsel %vm2283, %v2464, %v2465
        %v2467 = vrot.slane %v2149, 2
        %v2468 = vrot.slane %v2150, 2
        %v2469 = vsel %vm2283, %v2467, %v2468
        %v2470 = vrot.slane %v2151, 2
        %v2471 = vrot.slane %v2152, 2
        %v2472 = vsel %vm2283, %v2470, %v2471
        %v2473 = vrot.slane %v2153, 2
        %v2474 = vrot.slane %v2154, 2
        %v2475 = vsel %vm2283, %v2473, %v2474
        %v2540 = vadd.f32 %v1959, %v2286
        %v2541 = vadd.f32 %v1960, %v2289
        %v2542 = vadd.f32 %v1961, %v2292
        %v2543 = vadd.f32 %v1962, %v2295
        %v2544 = vadd.f32 %v1963, %v2298
        %v2545 = vadd.f32 %v1964, %v2301
        %v2546 = vadd.f32 %v1965, %v2304
        %v2547 = vadd.f32 %v1966, %v2307
        %v2548 = vadd.f32 %v1967, %v2310
        %v2549 = vadd.f32 %v1968, %v2313
        %v2550 = vadd.f32 %v1969, %v2316
        %v2551 = vadd.f32 %v1970, %v2319
        %v2552 = vadd.f32 %v1971, %v2322
        %v2553 = vadd.f32 %v1972, %v2325
        %v2554 = vadd.f32 %v1973, %v2328
        %v2555 = vadd.f32 %v1974, %v2331
        %v2556 = vadd.f32 %v1975, %v2334
        %v2557 = vadd.f32 %v1976, %v2337
        %v2558 = vadd.f32 %v1977, %v2340
        %v2559 = vadd.f32 %v1978, %v2343
        %v2560 = vadd.f32 %v1979, %v2346
        %v2561 = vadd.f32 %v1980, %v2349
        %v2562 = vadd.f32 %v1981, %v2352
        %v2563 = vadd.f32 %v1982, %v2355
        %v2564 = vadd.f32 %v1983, %v2358
        %v2565 = vadd.f32 %v1984, %v2361
        %v2566 = vadd.f32 %v1985, %v2364
        %v2567 = vadd.f32 %v1986, %v2367
        %v2568 = vadd.f32 %v1987, %v2370
        %v2569 = vadd.f32 %v1988, %v2373
        %v2570 = vadd.f32 %v1989, %v2376
        %v2571 = vadd.f32 %v1990, %v2379
        %v2572 = vadd.f32 %v1991, %v2382
        %v2573 = vadd.f32 %v1992, %v2385
        %v2574 = vadd.f32 %v1993, %v2388
        %v2575 = vadd.f32 %v1994, %v2391
        %v2576 = vadd.f32 %v1995, %v2394
        %v2577 = vadd.f32 %v1996, %v2397
        %v2578 = vadd.f32 %v1997, %v2400
        %v2579 = vadd.f32 %v1998, %v2403
        %v2580 = vadd.f32 %v1999, %v2406
        %v2581 = vadd.f32 %v2000, %v2409
        %v2582 = vadd.f32 %v2001, %v2412
        %v2583 = vadd.f32 %v2002, %v2415
        %v2584 = vadd.f32 %v2003, %v2418
        %v2585 = vadd.f32 %v2004, %v2421
        %v2586 = vadd.f32 %v2005, %v2424
        %v2587 = vadd.f32 %v2006, %v2427
        %v2588 = vadd.f32 %v2007, %v2430
        %v2589 = vadd.f32 %v2008, %v2433
        %v2590 = vadd.f32 %v2009, %v2436
        %v2591 = vadd.f32 %v2010, %v2439
        %v2592 = vadd.f32 %v2011, %v2442
        %v2593 = vadd.f32 %v2012, %v2445
        %v2594 = vadd.f32 %v2013, %v2448
        %v2595 = vadd.f32 %v2014, %v2451
        %v2596 = vadd.f32 %v2015, %v2454
        %v2597 = vadd.f32 %v2016, %v2457
        %v2598 = vadd.f32 %v2017, %v2460
        %v2599 = vadd.f32 %v2018, %v2463
        %v2600 = vadd.f32 %v2019, %v2466
        %v2601 = vadd.f32 %v2020, %v2469
        %v2602 = vadd.f32 %v2021, %v2472
        %v2603 = vadd.f32 %v2022, %v2475
        %v2604 = vlaneseq
        %v2605 = vshrl.u32 %v2604, 7
        %v2606 = vsub.s32 3, %v2605
        %v2607 = vrot.slane %v1299, %v2606
        %v2608 = vmul.f32 %v1101, %v2607
        %v2609 = vmul.f32 %v1103, %v2607
        %v2610 = vmul.f32 %v1105, %v2607
        %v2611 = vmul.f32 %v1107, %v2607
        %v2612 = vmul.f32 %v1109, %v2607
        %v2613 = vmul.f32 %v1111, %v2607
        %v2614 = vmul.f32 %v1113, %v2607
        %v2615 = vmul.f32 %v1115, %v2607
        %v2616 = vmul.f32 %v1121, %v2607
        %v2617 = vmul.f32 %v1123, %v2607
        %v2618 = vmul.f32 %v1125, %v2607
        %v2619 = vmul.f32 %v1127, %v2607
        %v2620 = vmul.f32 %v1129, %v2607
        %v2621 = vmul.f32 %v1131, %v2607
        %v2622 = vmul.f32 %v1133, %v2607
        %v2623 = vmul.f32 %v1135, %v2607
        %v2624 = vmul.f32 %v1141, %v2607
        %v2625 = vmul.f32 %v1143, %v2607
        %v2626 = vmul.f32 %v1145, %v2607
        %v2627 = vmul.f32 %v1147, %v2607
        %v2628 = vmul.f32 %v1149, %v2607
        %v2629 = vmul.f32 %v1151, %v2607
        %v2630 = vmul.f32 %v1153, %v2607
        %v2631 = vmul.f32 %v1155, %v2607
        %v2632 = vmul.f32 %v1161, %v2607
        %v2633 = vmul.f32 %v1163, %v2607
        %v2634 = vmul.f32 %v1165, %v2607
        %v2635 = vmul.f32 %v1167, %v2607
        %v2636 = vmul.f32 %v1169, %v2607
        %v2637 = vmul.f32 %v1171, %v2607
        %v2638 = vmul.f32 %v1173, %v2607
        %v2639 = vmul.f32 %v1175, %v2607
        %v2640 = vmul.f32 %v1181, %v2607
        %v2641 = vmul.f32 %v1183, %v2607
        %v2642 = vmul.f32 %v1185, %v2607
        %v2643 = vmul.f32 %v1187, %v2607
        %v2644 = vmul.f32 %v1189, %v2607
        %v2645 = vmul.f32 %v1191, %v2607
        %v2646 = vmul.f32 %v1193, %v2607
        %v2647 = vmul.f32 %v1195, %v2607
        %v2648 = vmul.f32 %v1201, %v2607
        %v2649 = vmul.f32 %v1203, %v2607
        %v2650 = vmul.f32 %v1205, %v2607
        %v2651 = vmul.f32 %v1207, %v2607
        %v2652 = vmul.f32 %v1209, %v2607
        %v2653 = vmul.f32 %v1211, %v2607
        %v2654 = vmul.f32 %v1213, %v2607
        %v2655 = vmul.f32 %v1215, %v2607
        %v2656 = vmul.f32 %v1221, %v2607
        %v2657 = vmul.f32 %v1223, %v2607
        %v2658 = vmul.f32 %v1225, %v2607
        %v2659 = vmul.f32 %v1227, %v2607
        %v2660 = vmul.f32 %v1229, %v2607
        %v2661 = vmul.f32 %v1231, %v2607
        %v2662 = vmul.f32 %v1233, %v2607
        %v2663 = vmul.f32 %v1235, %v2607
        %v2664 = vmul.f32 %v1241, %v2607
        %v2665 = vmul.f32 %v1243, %v2607
        %v2666 = vmul.f32 %v1245, %v2607
        %v2667 = vmul.f32 %v1247, %v2607
        %v2668 = vmul.f32 %v1249, %v2607
        %v2669 = vmul.f32 %v1251, %v2607
        %v2670 = vmul.f32 %v1253, %v2607
        %v2671 = vmul.f32 %v1255, %v2607
        %v2672 = vadd.f32 %v2540, %v2608
        %v2673 = vadd.f32 %v2541, %v2609
        %v2674 = vadd.f32 %v2542, %v2610
        %v2675 = vadd.f32 %v2543, %v2611
        %v2676 = vadd.f32 %v2544, %v2612
        %v2677 = vadd.f32 %v2545, %v2613
        %v2678 = vadd.f32 %v2546, %v2614
        %v2679 = vadd.f32 %v2547, %v2615
        %v2680 = vadd.f32 %v2548, %v2616
        %v2681 = vadd.f32 %v2549, %v2617
        %v2682 = vadd.f32 %v2550, %v2618
        %v2683 = vadd.f32 %v2551, %v2619
        %v2684 = vadd.f32 %v2552, %v2620
        %v2685 = vadd.f32 %v2553, %v2621
        %v2686 = vadd.f32 %v2554, %v2622
        %v2687 = vadd.f32 %v2555, %v2623
        %v2688 = vadd.f32 %v2556, %v2624
        %v2689 = vadd.f32 %v2557, %v2625
        %v2690 = vadd.f32 %v2558, %v2626
        %v2691 = vadd.f32 %v2559, %v2627
        %v2692 = vadd.f32 %v2560, %v2628
        %v2693 = vadd.f32 %v2561, %v2629
        %v2694 = vadd.f32 %v2562, %v2630
        %v2695 = vadd.f32 %v2563, %v2631
        %v2696 = vadd.f32 %v2564, %v2632
        %v2697 = vadd.f32 %v2565, %v2633
        %v2698 = vadd.f32 %v2566, %v2634
        %v2699 = vadd.f32 %v2567, %v2635
        %v2700 = vadd.f32 %v2568, %v2636
        %v2701 = vadd.f32 %v2569, %v2637
        %v2702 = vadd.f32 %v2570, %v2638
        %v2703 = vadd.f32 %v2571, %v2639
        %v2704 = vadd.f32 %v2572, %v2640
        %v2705 = vadd.f32 %v2573, %v2641
        %v2706 = vadd.f32 %v2574, %v2642
        %v2707 = vadd.f32 %v2575, %v2643
        %v2708 = vadd.f32 %v2576, %v2644
        %v2709 = vadd.f32 %v2577, %v2645
        %v2710 = vadd.f32 %v2578, %v2646
        %v2711 = vadd.f32 %v2579, %v2647
        %v2712 = vadd.f32 %v2580, %v2648
        %v2713 = vadd.f32 %v2581, %v2649
        %v2714 = vadd.f32 %v2582, %v2650
        %v2715 = vadd.f32 %v2583, %v2651
        %v2716 = vadd.f32 %v2584, %v2652
        %v2717 = vadd.f32 %v2585, %v2653
        %v2718 = vadd.f32 %v2586, %v2654
        %v2719 = vadd.f32 %v2587, %v2655
        %v2720 = vadd.f32 %v2588, %v2656
        %v2721 = vadd.f32 %v2589, %v2657
        %v2722 = vadd.f32 %v2590, %v2658
        %v2723 = vadd.f32 %v2591, %v2659
        %v2724 = vadd.f32 %v2592, %v2660
        %v2725 = vadd.f32 %v2593, %v2661
        %v2726 = vadd.f32 %v2594, %v2662
        %v2727 = vadd.f32 %v2595, %v2663
        %v2728 = vadd.f32 %v2596, %v2664
        %v2729 = vadd.f32 %v2597, %v2665
        %v2730 = vadd.f32 %v2598, %v2666
        %v2731 = vadd.f32 %v2599, %v2667
        %v2732 = vadd.f32 %v2600, %v2668
        %v2733 = vadd.f32 %v2601, %v2669
        %v2734 = vadd.f32 %v2602, %v2670
        %v2735 = vadd.f32 %v2603, %v2671
        %v2736 = vlaneseq
        %v2737 = vshrl.u32 %v2736, 7
        %v2738 = vsub.s32 4, %v2737
        %v2739 = vrot.slane %v1299, %v2738
        %v2740 = vmul.f32 %v1101, %v2739
        %v2741 = vmul.f32 %v1102, %v2739
        %v2742 = vmul.f32 %v1103, %v2739
        %v2743 = vmul.f32 %v1104, %v2739
        %v2744 = vmul.f32 %v1105, %v2739
        %v2745 = vmul.f32 %v1106, %v2739
        %v2746 = vmul.f32 %v1107, %v2739
        %v2747 = vmul.f32 %v1108, %v2739
        %v2748 = vmul.f32 %v1109, %v2739
        %v2749 = vmul.f32 %v1110, %v2739
        %v2750 = vmul.f32 %v1111, %v2739
        %v2751 = vmul.f32 %v1112, %v2739
        %v2752 = vmul.f32 %v1113, %v2739
        %v2753 = vmul.f32 %v1114, %v2739
        %v2754 = vmul.f32 %v1115, %v2739
        %v2755 = vmul.f32 %v1116, %v2739
        %v2756 = vmul.f32 %v1121, %v2739
        %v2757 = vmul.f32 %v1122, %v2739
        %v2758 = vmul.f32 %v1123, %v2739
        %v2759 = vmul.f32 %v1124, %v2739
        %v2760 = vmul.f32 %v1125, %v2739
        %v2761 = vmul.f32 %v1126, %v2739
        %v2762 = vmul.f32 %v1127, %v2739
        %v2763 = vmul.f32 %v1128, %v2739
        %v2764 = vmul.f32 %v1129, %v2739
        %v2765 = vmul.f32 %v1130, %v2739
        %v2766 = vmul.f32 %v1131, %v2739
        %v2767 = vmul.f32 %v1132, %v2739
        %v2768 = vmul.f32 %v1133, %v2739
        %v2769 = vmul.f32 %v1134, %v2739
        %v2770 = vmul.f32 %v1135, %v2739
        %v2771 = vmul.f32 %v1136, %v2739
        %v2772 = vmul.f32 %v1141, %v2739
        %v2773 = vmul.f32 %v1142, %v2739
        %v2774 = vmul.f32 %v1143, %v2739
        %v2775 = vmul.f32 %v1144, %v2739
        %v2776 = vmul.f32 %v1145, %v2739
        %v2777 = vmul.f32 %v1146, %v2739
        %v2778 = vmul.f32 %v1147, %v2739
        %v2779 = vmul.f32 %v1148, %v2739
        %v2780 = vmul.f32 %v1149, %v2739
        %v2781 = vmul.f32 %v1150, %v2739
        %v2782 = vmul.f32 %v1151, %v2739
        %v2783 = vmul.f32 %v1152, %v2739
        %v2784 = vmul.f32 %v1153, %v2739
        %v2785 = vmul.f32 %v1154, %v2739
        %v2786 = vmul.f32 %v1155, %v2739
        %v2787 = vmul.f32 %v1156, %v2739
        %v2788 = vmul.f32 %v1161, %v2739
        %v2789 = vmul.f32 %v1162, %v2739
        %v2790 = vmul.f32 %v1163, %v2739
        %v2791 = vmul.f32 %v1164, %v2739
        %v2792 = vmul.f32 %v1165, %v2739
        %v2793 = vmul.f32 %v1166, %v2739
        %v2794 = vmul.f32 %v1167, %v2739
        %v2795 = vmul.f32 %v1168, %v2739
        %v2796 = vmul.f32 %v1169, %v2739
        %v2797 = vmul.f32 %v1170, %v2739
        %v2798 = vmul.f32 %v1171, %v2739
        %v2799 = vmul.f32 %v1172, %v2739
        %v2800 = vmul.f32 %v1173, %v2739
        %v2801 = vmul.f32 %v1174, %v2739
        %v2802 = vmul.f32 %v1175, %v2739
        %v2803 = vmul.f32 %v1176, %v2739
        %v2804 = vmul.f32 %v1181, %v2739
        %v2805 = vmul.f32 %v1182, %v2739
        %v2806 = vmul.f32 %v1183, %v2739
        %v2807 = vmul.f32 %v1184, %v2739
        %v2808 = vmul.f32 %v1185, %v2739
        %v2809 = vmul.f32 %v1186, %v2739
        %v2810 = vmul.f32 %v1187, %v2739
        %v2811 = vmul.f32 %v1188, %v2739
        %v2812 = vmul.f32 %v1189, %v2739
        %v2813 = vmul.f32 %v1190, %v2739
        %v2814 = vmul.f32 %v1191, %v2739
        %v2815 = vmul.f32 %v1192, %v2739
        %v2816 = vmul.f32 %v1193, %v2739
        %v2817 = vmul.f32 %v1194, %v2739
        %v2818 = vmul.f32 %v1195, %v2739
        %v2819 = vmul.f32 %v1196, %v2739
        %v2820 = vmul.f32 %v1201, %v2739
        %v2821 = vmul.f32 %v1202, %v2739
        %v2822 = vmul.f32 %v1203, %v2739
        %v2823 = vmul.f32 %v1204, %v2739
        %v2824 = vmul.f32 %v1205, %v2739
        %v2825 = vmul.f32 %v1206, %v2739
        %v2826 = vmul.f32 %v1207, %v2739
        %v2827 = vmul.f32 %v1208, %v2739
        %v2828 = vmul.f32 %v1209, %v2739
        %v2829 = vmul.f32 %v1210, %v2739
        %v2830 = vmul.f32 %v1211, %v2739
        %v2831 = vmul.f32 %v1212, %v2739
        %v2832 = vmul.f32 %v1213, %v2739
        %v2833 = vmul.f32 %v1214, %v2739
        %v2834 = vmul.f32 %v1215, %v2739
        %v2835 = vmul.f32 %v1216, %v2739
        %v2836 = vmul.f32 %v1221, %v2739
        %v2837 = vmul.f32 %v1222, %v2739
        %v2838 = vmul.f32 %v1223, %v2739
        %v2839 = vmul.f32 %v1224, %v2739
        %v2840 = vmul.f32 %v1225, %v2739
        %v2841 = vmul.f32 %v1226, %v2739
        %v2842 = vmul.f32 %v1227, %v2739
        %v2843 = vmul.f32 %v1228, %v2739
        %v2844 = vmul.f32 %v1229, %v2739
        %v2845 = vmul.f32 %v1230, %v2739
        %v2846 = vmul.f32 %v1231, %v2739
        %v2847 = vmul.f32 %v1232, %v2739
        %v2848 = vmul.f32 %v1233, %v2739
        %v2849 = vmul.f32 %v1234, %v2739
        %v2850 = vmul.f32 %v1235, %v2739
        %v2851 = vmul.f32 %v1236, %v2739
        %v2852 = vmul.f32 %v1241, %v2739
        %v2853 = vmul.f32 %v1242, %v2739
        %v2854 = vmul.f32 %v1243, %v2739
        %v2855 = vmul.f32 %v1244, %v2739
        %v2856 = vmul.f32 %v1245, %v2739
        %v2857 = vmul.f32 %v1246, %v2739
        %v2858 = vmul.f32 %v1247, %v2739
        %v2859 = vmul.f32 %v1248, %v2739
        %v2860 = vmul.f32 %v1249, %v2739
        %v2861 = vmul.f32 %v1250, %v2739
        %v2862 = vmul.f32 %v1251, %v2739
        %v2863 = vmul.f32 %v1252, %v2739
        %v2864 = vmul.f32 %v1253, %v2739
        %v2865 = vmul.f32 %v1254, %v2739
        %v2866 = vmul.f32 %v1255, %v2739
        %v2867 = vmul.f32 %v1256, %v2739
        %v2996 = vrot.slane %v2740, 1
        %v2997 = vrot.slane %v2741, 1
        %v2998 = vsel %vm1702, %v2996, %v2997
        %v2999 = vrot.slane %v2742, 1
        %v3000 = vrot.slane %v2743, 1
        %v3001 = vsel %vm1702, %v2999, %v3000
        %v3002 = vrot.slane %v2744, 1
        %v3003 = vrot.slane %v2745, 1
        %v3004 = vsel %vm1702, %v3002, %v3003
        %v3005 = vrot.slane %v2746, 1
        %v3006 = vrot.slane %v2747, 1
        %v3007 = vsel %vm1702, %v3005, %v3006
        %v3008 = vrot.slane %v2748, 1
        %v3009 = vrot.slane %v2749, 1
        %v3010 = vsel %vm1702, %v3008, %v3009
        %v3011 = vrot.slane %v2750, 1
        %v3012 = vrot.slane %v2751, 1
        %v3013 = vsel %vm1702, %v3011, %v3012
        %v3014 = vrot.slane %v2752, 1
        %v3015 = vrot.slane %v2753, 1
        %v3016 = vsel %vm1702, %v3014, %v3015
        %v3017 = vrot.slane %v2754, 1
        %v3018 = vrot.slane %v2755, 1
        %v3019 = vsel %vm1702, %v3017, %v3018
        %v3020 = vrot.slane %v2756, 1
        %v3021 = vrot.slane %v2757, 1
        %v3022 = vsel %vm1702, %v3020, %v3021
        %v3023 = vrot.slane %v2758, 1
        %v3024 = vrot.slane %v2759, 1
        %v3025 = vsel %vm1702, %v3023, %v3024
        %v3026 = vrot.slane %v2760, 1
        %v3027 = vrot.slane %v2761, 1
        %v3028 = vsel %vm1702, %v3026, %v3027
        %v3029 = vrot.slane %v2762, 1
        %v3030 = vrot.slane %v2763, 1
        %v3031 = vsel %vm1702, %v3029, %v3030
        %v3032 = vrot.slane %v2764, 1
        %v3033 = vrot.slane %v2765, 1
        %v3034 = vsel %vm1702, %v3032, %v3033
        %v3035 = vrot.slane %v2766, 1
        %v3036 = vrot.slane %v2767, 1
        %v3037 = vsel %vm1702, %v3035, %v3036
        %v3038 = vrot.slane %v2768, 1
        %v3039 = vrot.slane %v2769, 1
        %v3040 = vsel %vm1702, %v3038, %v3039
        %v3041 = vrot.slane %v2770, 1
        %v3042 = vrot.slane %v2771, 1
        %v3043 = vsel %vm1702, %v3041, %v3042
        %v3044 = vrot.slane %v2772, 1
        %v3045 = vrot.slane %v2773, 1
        %v3046 = vsel %vm1702, %v3044, %v3045
        %v3047 = vrot.slane %v2774, 1
        %v3048 = vrot.slane %v2775, 1
        %v3049 = vsel %vm1702, %v3047, %v3048
        %v3050 = vrot.slane %v2776, 1
        %v3051 = vrot.slane %v2777, 1
        %v3052 = vsel %vm1702, %v3050, %v3051
        %v3053 = vrot.slane %v2778, 1
        %v3054 = vrot.slane %v2779, 1
        %v3055 = vsel %vm1702, %v3053, %v3054
        %v3056 = vrot.slane %v2780, 1
        %v3057 = vrot.slane %v2781, 1
        %v3058 = vsel %vm1702, %v3056, %v3057
        %v3059 = vrot.slane %v2782, 1
        %v3060 = vrot.slane %v2783, 1
        %v3061 = vsel %vm1702, %v3059, %v3060
        %v3062 = vrot.slane %v2784, 1
        %v3063 = vrot.slane %v2785, 1
        %v3064 = vsel %vm1702, %v3062, %v3063
        %v3065 = vrot.slane %v2786, 1
        %v3066 = vrot.slane %v2787, 1
        %v3067 = vsel %vm1702, %v3065, %v3066
        %v3068 = vrot.slane %v2788, 1
        %v3069 = vrot.slane %v2789, 1
        %v3070 = vsel %vm1702, %v3068, %v3069
        %v3071 = vrot.slane %v2790, 1
        %v3072 = vrot.slane %v2791, 1
        %v3073 = vsel %vm1702, %v3071, %v3072
        %v3074 = vrot.slane %v2792, 1
        %v3075 = vrot.slane %v2793, 1
        %v3076 = vsel %vm1702, %v3074, %v3075
        %v3077 = vrot.slane %v2794, 1
        %v3078 = vrot.slane %v2795, 1
        %v3079 = vsel %vm1702, %v3077, %v3078
        %v3080 = vrot.slane %v2796, 1
        %v3081 = vrot.slane %v2797, 1
        %v3082 = vsel %vm1702, %v3080, %v3081
        %v3083 = vrot.slane %v2798, 1
        %v3084 = vrot.slane %v2799, 1
        %v3085 = vsel %vm1702, %v3083, %v3084
        %v3086 = vrot.slane %v2800, 1
        %v3087 = vrot.slane %v2801, 1
        %v3088 = vsel %vm1702, %v3086, %v3087
        %v3089 = vrot.slane %v2802, 1
        %v3090 = vrot.slane %v2803, 1
        %v3091 = vsel %vm1702, %v3089, %v3090
        %v3092 = vrot.slane %v2804, 1
        %v3093 = vrot.slane %v2805, 1
        %v3094 = vsel %vm1702, %v3092, %v3093
        %v3095 = vrot.slane %v2806, 1
        %v3096 = vrot.slane %v2807, 1
        %v3097 = vsel %vm1702, %v3095, %v3096
        %v3098 = vrot.slane %v2808, 1
        %v3099 = vrot.slane %v2809, 1
        %v3100 = vsel %vm1702, %v3098, %v3099
        %v3101 = vrot.slane %v2810, 1
        %v3102 = vrot.slane %v2811, 1
        %v3103 = vsel %vm1702, %v3101, %v3102
        %v3104 = vrot.slane %v2812, 1
        %v3105 = vrot.slane %v2813, 1
        %v3106 = vsel %vm1702, %v3104, %v3105
        %v3107 = vrot.slane %v2814, 1
        %v3108 = vrot.slane %v2815, 1
        %v3109 = vsel %vm1702, %v3107, %v3108
        %v3110 = vrot.slane %v2816, 1
        %v3111 = vrot.slane %v2817, 1
        %v3112 = vsel %vm1702, %v3110, %v3111
        %v3113 = vrot.slane %v2818, 1
        %v3114 = vrot.slane %v2819, 1
        %v3115 = vsel %vm1702, %v3113, %v3114
        %v3116 = vrot.slane %v2820, 1
        %v3117 = vrot.slane %v2821, 1
        %v3118 = vsel %vm1702, %v3116, %v3117
        %v3119 = vrot.slane %v2822, 1
        %v3120 = vrot.slane %v2823, 1
        %v3121 = vsel %vm1702, %v3119, %v3120
        %v3122 = vrot.slane %v2824, 1
        %v3123 = vrot.slane %v2825, 1
        %v3124 = vsel %vm1702, %v3122, %v3123
        %v3125 = vrot.slane %v2826, 1
        %v3126 = vrot.slane %v2827, 1
        %v3127 = vsel %vm1702, %v3125, %v3126
        %v3128 = vrot.slane %v2828, 1
        %v3129 = vrot.slane %v2829, 1
        %v3130 = vsel %vm1702, %v3128, %v3129
        %v3131 = vrot.slane %v2830, 1
        %v3132 = vrot.slane %v2831, 1
        %v3133 = vsel %vm1702, %v3131, %v3132
        %v3134 = vrot.slane %v2832, 1
        %v3135 = vrot.slane %v2833, 1
        %v3136 = vsel %vm1702, %v3134, %v3135
        %v3137 = vrot.slane %v2834, 1
        %v3138 = vrot.slane %v2835, 1
        %v3139 = vsel %vm1702, %v3137, %v3138
        %v3140 = vrot.slane %v2836, 1
        %v3141 = vrot.slane %v2837, 1
        %v3142 = vsel %vm1702, %v3140, %v3141
        %v3143 = vrot.slane %v2838, 1
        %v3144 = vrot.slane %v2839, 1
        %v3145 = vsel %vm1702, %v3143, %v3144
        %v3146 = vrot.slane %v2840, 1
        %v3147 = vrot.slane %v2841, 1
        %v3148 = vsel %vm1702, %v3146, %v3147
        %v3149 = vrot.slane %v2842, 1
        %v3150 = vrot.slane %v2843, 1
        %v3151 = vsel %vm1702, %v3149, %v3150
        %v3152 = vrot.slane %v2844, 1
        %v3153 = vrot.slane %v2845, 1
        %v3154 = vsel %vm1702, %v3152, %v3153
        %v3155 = vrot.slane %v2846, 1
        %v3156 = vrot.slane %v2847, 1
        %v3157 = vsel %vm1702, %v3155, %v3156
        %v3158 = vrot.slane %v2848, 1
        %v3159 = vrot.slane %v2849, 1
        %v3160 = vsel %vm1702, %v3158, %v3159
        %v3161 = vrot.slane %v2850, 1
        %v3162 = vrot.slane %v2851, 1
        %v3163 = vsel %vm1702, %v3161, %v3162
        %v3164 = vrot.slane %v2852, 1
        %v3165 = vrot.slane %v2853, 1
        %v3166 = vsel %vm1702, %v3164, %v3165
        %v3167 = vrot.slane %v2854, 1
        %v3168 = vrot.slane %v2855, 1
        %v3169 = vsel %vm1702, %v3167, %v3168
        %v3170 = vrot.slane %v2856, 1
        %v3171 = vrot.slane %v2857, 1
        %v3172 = vsel %vm1702, %v3170, %v3171
        %v3173 = vrot.slane %v2858, 1
        %v3174 = vrot.slane %v2859, 1
        %v3175 = vsel %vm1702, %v3173, %v3174
        %v3176 = vrot.slane %v2860, 1
        %v3177 = vrot.slane %v2861, 1
        %v3178 = vsel %vm1702, %v3176, %v3177
        %v3179 = vrot.slane %v2862, 1
        %v3180 = vrot.slane %v2863, 1
        %v3181 = vsel %vm1702, %v3179, %v3180
        %v3182 = vrot.slane %v2864, 1
        %v3183 = vrot.slane %v2865, 1
        %v3184 = vsel %vm1702, %v3182, %v3183
        %v3185 = vrot.slane %v2866, 1
        %v3186 = vrot.slane %v2867, 1
        %v3187 = vsel %vm1702, %v3185, %v3186
        %v3252 = vadd.f32 %v2672, %v2998
        %v3253 = vadd.f32 %v2673, %v3001
        %v3254 = vadd.f32 %v2674, %v3004
        %v3255 = vadd.f32 %v2675, %v3007
        %v3256 = vadd.f32 %v2676, %v3010
        %v3257 = vadd.f32 %v2677, %v3013
        %v3258 = vadd.f32 %v2678, %v3016
        %v3259 = vadd.f32 %v2679, %v3019
        %v3260 = vadd.f32 %v2680, %v3022
        %v3261 = vadd.f32 %v2681, %v3025
        %v3262 = vadd.f32 %v2682, %v3028
        %v3263 = vadd.f32 %v2683, %v3031
        %v3264 = vadd.f32 %v2684, %v3034
        %v3265 = vadd.f32 %v2685, %v3037
        %v3266 = vadd.f32 %v2686, %v3040
        %v3267 = vadd.f32 %v2687, %v3043
        %v3268 = vadd.f32 %v2688, %v3046
        %v3269 = vadd.f32 %v2689, %v3049
        %v3270 = vadd.f32 %v2690, %v3052
        %v3271 = vadd.f32 %v2691, %v3055
        %v3272 = vadd.f32 %v2692, %v3058
        %v3273 = vadd.f32 %v2693, %v3061
        %v3274 = vadd.f32 %v2694, %v3064
        %v3275 = vadd.f32 %v2695, %v3067
        %v3276 = vadd.f32 %v2696, %v3070
        %v3277 = vadd.f32 %v2697, %v3073
        %v3278 = vadd.f32 %v2698, %v3076
        %v3279 = vadd.f32 %v2699, %v3079
        %v3280 = vadd.f32 %v2700, %v3082
        %v3281 = vadd.f32 %v2701, %v3085
        %v3282 = vadd.f32 %v2702, %v3088
        %v3283 = vadd.f32 %v2703, %v3091
        %v3284 = vadd.f32 %v2704, %v3094
        %v3285 = vadd.f32 %v2705, %v3097
        %v3286 = vadd.f32 %v2706, %v3100
        %v3287 = vadd.f32 %v2707, %v3103
        %v3288 = vadd.f32 %v2708, %v3106
        %v3289 = vadd.f32 %v2709, %v3109
        %v3290 = vadd.f32 %v2710, %v3112
        %v3291 = vadd.f32 %v2711, %v3115
        %v3292 = vadd.f32 %v2712, %v3118
        %v3293 = vadd.f32 %v2713, %v3121
        %v3294 = vadd.f32 %v2714, %v3124
        %v3295 = vadd.f32 %v2715, %v3127
        %v3296 = vadd.f32 %v2716, %v3130
        %v3297 = vadd.f32 %v2717, %v3133
        %v3298 = vadd.f32 %v2718, %v3136
        %v3299 = vadd.f32 %v2719, %v3139
        %v3300 = vadd.f32 %v2720, %v3142
        %v3301 = vadd.f32 %v2721, %v3145
        %v3302 = vadd.f32 %v2722, %v3148
        %v3303 = vadd.f32 %v2723, %v3151
        %v3304 = vadd.f32 %v2724, %v3154
        %v3305 = vadd.f32 %v2725, %v3157
        %v3306 = vadd.f32 %v2726, %v3160
        %v3307 = vadd.f32 %v2727, %v3163
        %v3308 = vadd.f32 %v2728, %v3166
        %v3309 = vadd.f32 %v2729, %v3169
        %v3310 = vadd.f32 %v2730, %v3172
        %v3311 = vadd.f32 %v2731, %v3175
        %v3312 = vadd.f32 %v2732, %v3178
        %v3313 = vadd.f32 %v2733, %v3181
        %v3314 = vadd.f32 %v2734, %v3184
        %v3315 = vadd.f32 %v2735, %v3187
        %v3316 = vlaneseq
        %v3317 = vshrl.u32 %v3316, 7
        %v3318 = vsub.s32 5, %v3317
        %v3319 = vrot.slane %v1299, %v3318
        %v3320 = vmul.f32 %v1101, %v3319
        %v3321 = vmul.f32 %v1102, %v3319
        %v3322 = vmul.f32 %v1103, %v3319
        %v3323 = vmul.f32 %v1104, %v3319
        %v3324 = vmul.f32 %v1105, %v3319
        %v3325 = vmul.f32 %v1106, %v3319
        %v3326 = vmul.f32 %v1107, %v3319
        %v3327 = vmul.f32 %v1108, %v3319
        %v3328 = vmul.f32 %v1109, %v3319
        %v3329 = vmul.f32 %v1110, %v3319
        %v3330 = vmul.f32 %v1111, %v3319
        %v3331 = vmul.f32 %v1112, %v3319
        %v3332 = vmul.f32 %v1113, %v3319
        %v3333 = vmul.f32 %v1114, %v3319
        %v3334 = vmul.f32 %v1115, %v3319
        %v3335 = vmul.f32 %v1116, %v3319
        %v3336 = vmul.f32 %v1121, %v3319
        %v3337 = vmul.f32 %v1122, %v3319
        %v3338 = vmul.f32 %v1123, %v3319
        %v3339 = vmul.f32 %v1124, %v3319
        %v3340 = vmul.f32 %v1125, %v3319
        %v3341 = vmul.f32 %v1126, %v3319
        %v3342 = vmul.f32 %v1127, %v3319
        %v3343 = vmul.f32 %v1128, %v3319
        %v3344 = vmul.f32 %v1129, %v3319
        %v3345 = vmul.f32 %v1130, %v3319
        %v3346 = vmul.f32 %v1131, %v3319
        %v3347 = vmul.f32 %v1132, %v3319
        %v3348 = vmul.f32 %v1133, %v3319
        %v3349 = vmul.f32 %v1134, %v3319
        %v3350 = vmul.f32 %v1135, %v3319
        %v3351 = vmul.f32 %v1136, %v3319
        %v3352 = vmul.f32 %v1141, %v3319
        %v3353 = vmul.f32 %v1142, %v3319
        %v3354 = vmul.f32 %v1143, %v3319
        %v3355 = vmul.f32 %v1144, %v3319
        %v3356 = vmul.f32 %v1145, %v3319
        %v3357 = vmul.f32 %v1146, %v3319
        %v3358 = vmul.f32 %v1147, %v3319
        %v3359 = vmul.f32 %v1148, %v3319
        %v3360 = vmul.f32 %v1149, %v3319
        %v3361 = vmul.f32 %v1150, %v3319
        %v3362 = vmul.f32 %v1151, %v3319
        %v3363 = vmul.f32 %v1152, %v3319
        %v3364 = vmul.f32 %v1153, %v3319
        %v3365 = vmul.f32 %v1154, %v3319
        %v3366 = vmul.f32 %v1155, %v3319
        %v3367 = vmul.f32 %v1156, %v3319
        %v3368 = vmul.f32 %v1161, %v3319
        %v3369 = vmul.f32 %v1162, %v3319
        %v3370 = vmul.f32 %v1163, %v3319
        %v3371 = vmul.f32 %v1164, %v3319
        %v3372 = vmul.f32 %v1165, %v3319
        %v3373 = vmul.f32 %v1166, %v3319
        %v3374 = vmul.f32 %v1167, %v3319
        %v3375 = vmul.f32 %v1168, %v3319
        %v3376 = vmul.f32 %v1169, %v3319
        %v3377 = vmul.f32 %v1170, %v3319
        %v3378 = vmul.f32 %v1171, %v3319
        %v3379 = vmul.f32 %v1172, %v3319
        %v3380 = vmul.f32 %v1173, %v3319
        %v3381 = vmul.f32 %v1174, %v3319
        %v3382 = vmul.f32 %v1175, %v3319
        %v3383 = vmul.f32 %v1176, %v3319
        %v3384 = vmul.f32 %v1181, %v3319
        %v3385 = vmul.f32 %v1182, %v3319
        %v3386 = vmul.f32 %v1183, %v3319
        %v3387 = vmul.f32 %v1184, %v3319
        %v3388 = vmul.f32 %v1185, %v3319
        %v3389 = vmul.f32 %v1186, %v3319
        %v3390 = vmul.f32 %v1187, %v3319
        %v3391 = vmul.f32 %v1188, %v3319
        %v3392 = vmul.f32 %v1189, %v3319
        %v3393 = vmul.f32 %v1190, %v3319
        %v3394 = vmul.f32 %v1191, %v3319
        %v3395 = vmul.f32 %v1192, %v3319
        %v3396 = vmul.f32 %v1193, %v3319
        %v3397 = vmul.f32 %v1194, %v3319
        %v3398 = vmul.f32 %v1195, %v3319
        %v3399 = vmul.f32 %v1196, %v3319
        %v3400 = vmul.f32 %v1201, %v3319
        %v3401 = vmul.f32 %v1202, %v3319
        %v3402 = vmul.f32 %v1203, %v3319
        %v3403 = vmul.f32 %v1204, %v3319
        %v3404 = vmul.f32 %v1205, %v3319
        %v3405 = vmul.f32 %v1206, %v3319
        %v3406 = vmul.f32 %v1207, %v3319
        %v3407 = vmul.f32 %v1208, %v3319
        %v3408 = vmul.f32 %v1209, %v3319
        %v3409 = vmul.f32 %v1210, %v3319
        %v3410 = vmul.f32 %v1211, %v3319
        %v3411 = vmul.f32 %v1212, %v3319
        %v3412 = vmul.f32 %v1213, %v3319
        %v3413 = vmul.f32 %v1214, %v3319
        %v3414 = vmul.f32 %v1215, %v3319
        %v3415 = vmul.f32 %v1216, %v3319
        %v3416 = vmul.f32 %v1221, %v3319
        %v3417 = vmul.f32 %v1222, %v3319
        %v3418 = vmul.f32 %v1223, %v3319
        %v3419 = vmul.f32 %v1224, %v3319
        %v3420 = vmul.f32 %v1225, %v3319
        %v3421 = vmul.f32 %v1226, %v3319
        %v3422 = vmul.f32 %v1227, %v3319
        %v3423 = vmul.f32 %v1228, %v3319
        %v3424 = vmul.f32 %v1229, %v3319
        %v3425 = vmul.f32 %v1230, %v3319
        %v3426 = vmul.f32 %v1231, %v3319
        %v3427 = vmul.f32 %v1232, %v3319
        %v3428 = vmul.f32 %v1233, %v3319
        %v3429 = vmul.f32 %v1234, %v3319
        %v3430 = vmul.f32 %v1235, %v3319
        %v3431 = vmul.f32 %v1236, %v3319
        %v3432 = vmul.f32 %v1241, %v3319
        %v3433 = vmul.f32 %v1242, %v3319
        %v3434 = vmul.f32 %v1243, %v3319
        %v3435 = vmul.f32 %v1244, %v3319
        %v3436 = vmul.f32 %v1245, %v3319
        %v3437 = vmul.f32 %v1246, %v3319
        %v3438 = vmul.f32 %v1247, %v3319
        %v3439 = vmul.f32 %v1248, %v3319
        %v3440 = vmul.f32 %v1249, %v3319
        %v3441 = vmul.f32 %v1250, %v3319
        %v3442 = vmul.f32 %v1251, %v3319
        %v3443 = vmul.f32 %v1252, %v3319
        %v3444 = vmul.f32 %v1253, %v3319
        %v3445 = vmul.f32 %v1254, %v3319
        %v3446 = vmul.f32 %v1255, %v3319
        %v3447 = vmul.f32 %v1256, %v3319
        %v3576 = vrot.slane %v3320, 2
        %v3577 = vrot.slane %v3321, 2
        %v3578 = vsel %vm2283, %v3576, %v3577
        %v3579 = vrot.slane %v3322, 2
        %v3580 = vrot.slane %v3323, 2
        %v3581 = vsel %vm2283, %v3579, %v3580
        %v3582 = vrot.slane %v3324, 2
        %v3583 = vrot.slane %v3325, 2
        %v3584 = vsel %vm2283, %v3582, %v3583
        %v3585 = vrot.slane %v3326, 2
        %v3586 = vrot.slane %v3327, 2
        %v3587 = vsel %vm2283, %v3585, %v3586
        %v3588 = vrot.slane %v3328, 2
        %v3589 = vrot.slane %v3329, 2
        %v3590 = vsel %vm2283, %v3588, %v3589
        %v3591 = vrot.slane %v3330, 2
        %v3592 = vrot.slane %v3331, 2
        %v3593 = vsel %vm2283, %v3591, %v3592
        %v3594 = vrot.slane %v3332, 2
        %v3595 = vrot.slane %v3333, 2
        %v3596 = vsel %vm2283, %v3594, %v3595
        %v3597 = vrot.slane %v3334, 2
        %v3598 = vrot.slane %v3335, 2
        %v3599 = vsel %vm2283, %v3597, %v3598
        %v3600 = vrot.slane %v3336, 2
        %v3601 = vrot.slane %v3337, 2
        %v3602 = vsel %vm2283, %v3600, %v3601
        %v3603 = vrot.slane %v3338, 2
        %v3604 = vrot.slane %v3339, 2
        %v3605 = vsel %vm2283, %v3603, %v3604
        %v3606 = vrot.slane %v3340, 2
        %v3607 = vrot.slane %v3341, 2
        %v3608 = vsel %vm2283, %v3606, %v3607
        %v3609 = vrot.slane %v3342, 2
        %v3610 = vrot.slane %v3343, 2
        %v3611 = vsel %vm2283, %v3609, %v3610
        %v3612 = vrot.slane %v3344, 2
        %v3613 = vrot.slane %v3345, 2
        %v3614 = vsel %vm2283, %v3612, %v3613
        %v3615 = vrot.slane %v3346, 2
        %v3616 = vrot.slane %v3347, 2
        %v3617 = vsel %vm2283, %v3615, %v3616
        %v3618 = vrot.slane %v3348, 2
        %v3619 = vrot.slane %v3349, 2
        %v3620 = vsel %vm2283, %v3618, %v3619
        %v3621 = vrot.slane %v3350, 2
        %v3622 = vrot.slane %v3351, 2
        %v3623 = vsel %vm2283, %v3621, %v3622
        %v3624 = vrot.slane %v3352, 2
        %v3625 = vrot.slane %v3353, 2
        %v3626 = vsel %vm2283, %v3624, %v3625
        %v3627 = vrot.slane %v3354, 2
        %v3628 = vrot.slane %v3355, 2
        %v3629 = vsel %vm2283, %v3627, %v3628
        %v3630 = vrot.slane %v3356, 2
        %v3631 = vrot.slane %v3357, 2
        %v3632 = vsel %vm2283, %v3630, %v3631
        %v3633 = vrot.slane %v3358, 2
        %v3634 = vrot.slane %v3359, 2
        %v3635 = vsel %vm2283, %v3633, %v3634
        %v3636 = vrot.slane %v3360, 2
        %v3637 = vrot.slane %v3361, 2
        %v3638 = vsel %vm2283, %v3636, %v3637
        %v3639 = vrot.slane %v3362, 2
        %v3640 = vrot.slane %v3363, 2
        %v3641 = vsel %vm2283, %v3639, %v3640
        %v3642 = vrot.slane %v3364, 2
        %v3643 = vrot.slane %v3365, 2
        %v3644 = vsel %vm2283, %v3642, %v3643
        %v3645 = vrot.slane %v3366, 2
        %v3646 = vrot.slane %v3367, 2
        %v3647 = vsel %vm2283, %v3645, %v3646
        %v3648 = vrot.slane %v3368, 2
        %v3649 = vrot.slane %v3369, 2
        %v3650 = vsel %vm2283, %v3648, %v3649
        %v3651 = vrot.slane %v3370, 2
        %v3652 = vrot.slane %v3371, 2
        %v3653 = vsel %vm2283, %v3651, %v3652
        %v3654 = vrot.slane %v3372, 2
        %v3655 = vrot.slane %v3373, 2
        %v3656 = vsel %vm2283, %v3654, %v3655
        %v3657 = vrot.slane %v3374, 2
        %v3658 = vrot.slane %v3375, 2
        %v3659 = vsel %vm2283, %v3657, %v3658
        %v3660 = vrot.slane %v3376, 2
        %v3661 = vrot.slane %v3377, 2
        %v3662 = vsel %vm2283, %v3660, %v3661
        %v3663 = vrot.slane %v3378, 2
        %v3664 = vrot.slane %v3379, 2
        %v3665 = vsel %vm2283, %v3663, %v3664
        %v3666 = vrot.slane %v3380, 2
        %v3667 = vrot.slane %v3381, 2
        %v3668 = vsel %vm2283, %v3666, %v3667
        %v3669 = vrot.slane %v3382, 2
        %v3670 = vrot.slane %v3383, 2
        %v3671 = vsel %vm2283, %v3669, %v3670
        %v3672 = vrot.slane %v3384, 2
        %v3673 = vrot.slane %v3385, 2
        %v3674 = vsel %vm2283, %v3672, %v3673
        %v3675 = vrot.slane %v3386, 2
        %v3676 = vrot.slane %v3387, 2
        %v3677 = vsel %vm2283, %v3675, %v3676
        %v3678 = vrot.slane %v3388, 2
        %v3679 = vrot.slane %v3389, 2
        %v3680 = vsel %vm2283, %v3678, %v3679
        %v3681 = vrot.slane %v3390, 2
        %v3682 = vrot.slane %v3391, 2
        %v3683 = vsel %vm2283, %v3681, %v3682
        %v3684 = vrot.slane %v3392, 2
        %v3685 = vrot.slane %v3393, 2
        %v3686 = vsel %vm2283, %v3684, %v3685
        %v3687 = vrot.slane %v3394, 2
        %v3688 = vrot.slane %v3395, 2
        %v3689 = vsel %vm2283, %v3687, %v3688
        %v3690 = vrot.slane %v3396, 2
        %v3691 = vrot.slane %v3397, 2
        %v3692 = vsel %vm2283, %v3690, %v3691
        %v3693 = vrot.slane %v3398, 2
        %v3694 = vrot.slane %v3399, 2
        %v3695 = vsel %vm2283, %v3693, %v3694
        %v3696 = vrot.slane %v3400, 2
        %v3697 = vrot.slane %v3401, 2
        %v3698 = vsel %vm2283, %v3696, %v3697
        %v3699 = vrot.slane %v3402, 2
        %v3700 = vrot.slane %v3403, 2
        %v3701 = vsel %vm2283, %v3699, %v3700
        %v3702 = vrot.slane %v3404, 2
        %v3703 = vrot.slane %v3405, 2
        %v3704 = vsel %vm2283, %v3702, %v3703
        %v3705 = vrot.slane %v3406, 2
        %v3706 = vrot.slane %v3407, 2
        %v3707 = vsel %vm2283, %v3705, %v3706
        %v3708 = vrot.slane %v3408, 2
        %v3709 = vrot.slane %v3409, 2
        %v3710 = vsel %vm2283, %v3708, %v3709
        %v3711 = vrot.slane %v3410, 2
        %v3712 = vrot.slane %v3411, 2
        %v3713 = vsel %vm2283, %v3711, %v3712
        %v3714 = vrot.slane %v3412, 2
        %v3715 = vrot.slane %v3413, 2
        %v3716 = vsel %vm2283, %v3714, %v3715
        %v3717 = vrot.slane %v3414, 2
        %v3718 = vrot.slane %v3415, 2
        %v3719 = vsel %vm2283, %v3717, %v3718
        %v3720 = vrot.slane %v3416, 2
        %v3721 = vrot.slane %v3417, 2
        %v3722 = vsel %vm2283, %v3720, %v3721
        %v3723 = vrot.slane %v3418, 2
        %v3724 = vrot.slane %v3419, 2
        %v3725 = vsel %vm2283, %v3723, %v3724
        %v3726 = vrot.slane %v3420, 2
        %v3727 = vrot.slane %v3421, 2
        %v3728 = vsel %vm2283, %v3726, %v3727
        %v3729 = vrot.slane %v3422, 2
        %v3730 = vrot.slane %v3423, 2
        %v3731 = vsel %vm2283, %v3729, %v3730
        %v3732 = vrot.slane %v3424, 2
        %v3733 = vrot.slane %v3425, 2
        %v3734 = vsel %vm2283, %v3732, %v3733
        %v3735 = vrot.slane %v3426, 2
        %v3736 = vrot.slane %v3427, 2
        %v3737 = vsel %vm2283, %v3735, %v3736
        %v3738 = vrot.slane %v3428, 2
        %v3739 = vrot.slane %v3429, 2
        %v3740 = vsel %vm2283, %v3738, %v3739
        %v3741 = vrot.slane %v3430, 2
        %v3742 = vrot.slane %v3431, 2
        %v3743 = vsel %vm2283, %v3741, %v3742
        %v3744 = vrot.slane %v3432, 2
        %v3745 = vrot.slane %v3433, 2
        %v3746 = vsel %vm2283, %v3744, %v3745
        %v3747 = vrot.slane %v3434, 2
        %v3748 = vrot.slane %v3435, 2
        %v3749 = vsel %vm2283, %v3747, %v3748
        %v3750 = vrot.slane %v3436, 2
        %v3751 = vrot.slane %v3437, 2
        %v3752 = vsel %vm2283, %v3750, %v3751
        %v3753 = vrot.slane %v3438, 2
        %v3754 = vrot.slane %v3439, 2
        %v3755 = vsel %vm2283, %v3753, %v3754
        %v3756 = vrot.slane %v3440, 2
        %v3757 = vrot.slane %v3441, 2
        %v3758 = vsel %vm2283, %v3756, %v3757
        %v3759 = vrot.slane %v3442, 2
        %v3760 = vrot.slane %v3443, 2
        %v3761 = vsel %vm2283, %v3759, %v3760
        %v3762 = vrot.slane %v3444, 2
        %v3763 = vrot.slane %v3445, 2
        %v3764 = vsel %vm2283, %v3762, %v3763
        %v3765 = vrot.slane %v3446, 2
        %v3766 = vrot.slane %v3447, 2
        %v3767 = vsel %vm2283, %v3765, %v3766
        %v3832 = vadd.f32 %v3252, %v3578
        %v3833 = vadd.f32 %v3253, %v3581
        %v3834 = vadd.f32 %v3254, %v3584
        %v3835 = vadd.f32 %v3255, %v3587
        %v3836 = vadd.f32 %v3256, %v3590
        %v3837 = vadd.f32 %v3257, %v3593
        %v3838 = vadd.f32 %v3258, %v3596
        %v3839 = vadd.f32 %v3259, %v3599
        %v3840 = vadd.f32 %v3260, %v3602
        %v3841 = vadd.f32 %v3261, %v3605
        %v3842 = vadd.f32 %v3262, %v3608
        %v3843 = vadd.f32 %v3263, %v3611
        %v3844 = vadd.f32 %v3264, %v3614
        %v3845 = vadd.f32 %v3265, %v3617
        %v3846 = vadd.f32 %v3266, %v3620
        %v3847 = vadd.f32 %v3267, %v3623
        %v3848 = vadd.f32 %v3268, %v3626
        %v3849 = vadd.f32 %v3269, %v3629
        %v3850 = vadd.f32 %v3270, %v3632
        %v3851 = vadd.f32 %v3271, %v3635
        %v3852 = vadd.f32 %v3272, %v3638
        %v3853 = vadd.f32 %v3273, %v3641
        %v3854 = vadd.f32 %v3274, %v3644
        %v3855 = vadd.f32 %v3275, %v3647
        %v3856 = vadd.f32 %v3276, %v3650
        %v3857 = vadd.f32 %v3277, %v3653
        %v3858 = vadd.f32 %v3278, %v3656
        %v3859 = vadd.f32 %v3279, %v3659
        %v3860 = vadd.f32 %v3280, %v3662
        %v3861 = vadd.f32 %v3281, %v3665
        %v3862 = vadd.f32 %v3282, %v3668
        %v3863 = vadd.f32 %v3283, %v3671
        %v3864 = vadd.f32 %v3284, %v3674
        %v3865 = vadd.f32 %v3285, %v3677
        %v3866 = vadd.f32 %v3286, %v3680
        %v3867 = vadd.f32 %v3287, %v3683
        %v3868 = vadd.f32 %v3288, %v3686
        %v3869 = vadd.f32 %v3289, %v3689
        %v3870 = vadd.f32 %v3290, %v3692
        %v3871 = vadd.f32 %v3291, %v3695
        %v3872 = vadd.f32 %v3292, %v3698
        %v3873 = vadd.f32 %v3293, %v3701
        %v3874 = vadd.f32 %v3294, %v3704
        %v3875 = vadd.f32 %v3295, %v3707
        %v3876 = vadd.f32 %v3296, %v3710
        %v3877 = vadd.f32 %v3297, %v3713
        %v3878 = vadd.f32 %v3298, %v3716
        %v3879 = vadd.f32 %v3299, %v3719
        %v3880 = vadd.f32 %v3300, %v3722
        %v3881 = vadd.f32 %v3301, %v3725
        %v3882 = vadd.f32 %v3302, %v3728
        %v3883 = vadd.f32 %v3303, %v3731
        %v3884 = vadd.f32 %v3304, %v3734
        %v3885 = vadd.f32 %v3305, %v3737
        %v3886 = vadd.f32 %v3306, %v3740
        %v3887 = vadd.f32 %v3307, %v3743
        %v3888 = vadd.f32 %v3308, %v3746
        %v3889 = vadd.f32 %v3309, %v3749
        %v3890 = vadd.f32 %v3310, %v3752
        %v3891 = vadd.f32 %v3311, %v3755
        %v3892 = vadd.f32 %v3312, %v3758
        %v3893 = vadd.f32 %v3313, %v3761
        %v3894 = vadd.f32 %v3314, %v3764
        %v3895 = vadd.f32 %v3315, %v3767
        %v3896 = vlaneseq
        %v3897 = vshrl.u32 %v3896, 7
        %v3898 = vsub.s32 6, %v3897
        %v3899 = vrot.slane %v1299, %v3898
        %v3900 = vmul.f32 %v1103, %v3899
        %v3901 = vmul.f32 %v1105, %v3899
        %v3902 = vmul.f32 %v1107, %v3899
        %v3903 = vmul.f32 %v1109, %v3899
        %v3904 = vmul.f32 %v1111, %v3899
        %v3905 = vmul.f32 %v1113, %v3899
        %v3906 = vmul.f32 %v1115, %v3899
        %v3907 = vmul.f32 %v1117, %v3899
        %v3908 = vmul.f32 %v1123, %v3899
        %v3909 = vmul.f32 %v1125, %v3899
        %v3910 = vmul.f32 %v1127, %v3899
        %v3911 = vmul.f32 %v1129, %v3899
        %v3912 = vmul.f32 %v1131, %v3899
        %v3913 = vmul.f32 %v1133, %v3899
        %v3914 = vmul.f32 %v1135, %v3899
        %v3915 = vmul.f32 %v1137, %v3899
        %v3916 = vmul.f32 %v1143, %v3899
        %v3917 = vmul.f32 %v1145, %v3899
        %v3918 = vmul.f32 %v1147, %v3899
        %v3919 = vmul.f32 %v1149, %v3899
        %v3920 = vmul.f32 %v1151, %v3899
        %v3921 = vmul.f32 %v1153, %v3899
        %v3922 = vmul.f32 %v1155, %v3899
        %v3923 = vmul.f32 %v1157, %v3899
        %v3924 = vmul.f32 %v1163, %v3899
        %v3925 = vmul.f32 %v1165, %v3899
        %v3926 = vmul.f32 %v1167, %v3899
        %v3927 = vmul.f32 %v1169, %v3899
        %v3928 = vmul.f32 %v1171, %v3899
        %v3929 = vmul.f32 %v1173, %v3899
        %v3930 = vmul.f32 %v1175, %v3899
        %v3931 = vmul.f32 %v1177, %v3899
        %v3932 = vmul.f32 %v1183, %v3899
        %v3933 = vmul.f32 %v1185, %v3899
        %v3934 = vmul.f32 %v1187, %v3899
        %v3935 = vmul.f32 %v1189, %v3899
        %v3936 = vmul.f32 %v1191, %v3899
        %v3937 = vmul.f32 %v1193, %v3899
        %v3938 = vmul.f32 %v1195, %v3899
        %v3939 = vmul.f32 %v1197, %v3899
        %v3940 = vmul.f32 %v1203, %v3899
        %v3941 = vmul.f32 %v1205, %v3899
        %v3942 = vmul.f32 %v1207, %v3899
        %v3943 = vmul.f32 %v1209, %v3899
        %v3944 = vmul.f32 %v1211, %v3899
        %v3945 = vmul.f32 %v1213, %v3899
        %v3946 = vmul.f32 %v1215, %v3899
        %v3947 = vmul.f32 %v1217, %v3899
        %v3948 = vmul.f32 %v1223, %v3899
        %v3949 = vmul.f32 %v1225, %v3899
        %v3950 = vmul.f32 %v1227, %v3899
        %v3951 = vmul.f32 %v1229, %v3899
        %v3952 = vmul.f32 %v1231, %v3899
        %v3953 = vmul.f32 %v1233, %v3899
        %v3954 = vmul.f32 %v1235, %v3899
        %v3955 = vmul.f32 %v1237, %v3899
        %v3956 = vmul.f32 %v1243, %v3899
        %v3957 = vmul.f32 %v1245, %v3899
        %v3958 = vmul.f32 %v1247, %v3899
        %v3959 = vmul.f32 %v1249, %v3899
        %v3960 = vmul.f32 %v1251, %v3899
        %v3961 = vmul.f32 %v1253, %v3899
        %v3962 = vmul.f32 %v1255, %v3899
        %v3963 = vmul.f32 %v1257, %v3899
        %v3964 = vadd.f32 %v3832, %v3900
        %v3965 = vadd.f32 %v3833, %v3901
        %v3966 = vadd.f32 %v3834, %v3902
        %v3967 = vadd.f32 %v3835, %v3903
        %v3968 = vadd.f32 %v3836, %v3904
        %v3969 = vadd.f32 %v3837, %v3905
        %v3970 = vadd.f32 %v3838, %v3906
        %v3971 = vadd.f32 %v3839, %v3907
        %v3972 = vadd.f32 %v3840, %v3908
        %v3973 = vadd.f32 %v3841, %v3909
        %v3974 = vadd.f32 %v3842, %v3910
        %v3975 = vadd.f32 %v3843, %v3911
        %v3976 = vadd.f32 %v3844, %v3912
        %v3977 = vadd.f32 %v3845, %v3913
        %v3978 = vadd.f32 %v3846, %v3914
        %v3979 = vadd.f32 %v3847, %v3915
        %v3980 = vadd.f32 %v3848, %v3916
        %v3981 = vadd.f32 %v3849, %v3917
        %v3982 = vadd.f32 %v3850, %v3918
        %v3983 = vadd.f32 %v3851, %v3919
        %v3984 = vadd.f32 %v3852, %v3920
        %v3985 = vadd.f32 %v3853, %v3921
        %v3986 = vadd.f32 %v3854, %v3922
        %v3987 = vadd.f32 %v3855, %v3923
        %v3988 = vadd.f32 %v3856, %v3924
        %v3989 = vadd.f32 %v3857, %v3925
        %v3990 = vadd.f32 %v3858, %v3926
        %v3991 = vadd.f32 %v3859, %v3927
        %v3992 = vadd.f32 %v3860, %v3928
        %v3993 = vadd.f32 %v3861, %v3929
        %v3994 = vadd.f32 %v3862, %v3930
        %v3995 = vadd.f32 %v3863, %v3931
        %v3996 = vadd.f32 %v3864, %v3932
        %v3997 = vadd.f32 %v3865, %v3933
        %v3998 = vadd.f32 %v3866, %v3934
        %v3999 = vadd.f32 %v3867, %v3935
        %v4000 = vadd.f32 %v3868, %v3936
        %v4001 = vadd.f32 %v3869, %v3937
        %v4002 = vadd.f32 %v3870, %v3938
        %v4003 = vadd.f32 %v3871, %v3939
        %v4004 = vadd.f32 %v3872, %v3940
        %v4005 = vadd.f32 %v3873, %v3941
        %v4006 = vadd.f32 %v3874, %v3942
        %v4007 = vadd.f32 %v3875, %v3943
        %v4008 = vadd.f32 %v3876, %v3944
        %v4009 = vadd.f32 %v3877, %v3945
        %v4010 = vadd.f32 %v3878, %v3946
        %v4011 = vadd.f32 %v3879, %v3947
        %v4012 = vadd.f32 %v3880, %v3948
        %v4013 = vadd.f32 %v3881, %v3949
        %v4014 = vadd.f32 %v3882, %v3950
        %v4015 = vadd.f32 %v3883, %v3951
        %v4016 = vadd.f32 %v3884, %v3952
        %v4017 = vadd.f32 %v3885, %v3953
        %v4018 = vadd.f32 %v3886, %v3954
        %v4019 = vadd.f32 %v3887, %v3955
        %v4020 = vadd.f32 %v3888, %v3956
        %v4021 = vadd.f32 %v3889, %v3957
        %v4022 = vadd.f32 %v3890, %v3958
        %v4023 = vadd.f32 %v3891, %v3959
        %v4024 = vadd.f32 %v3892, %v3960
        %v4025 = vadd.f32 %v3893, %v3961
        %v4026 = vadd.f32 %v3894, %v3962
        %v4027 = vadd.f32 %v3895, %v3963
        %v4028 = vlaneseq
        %v4029 = vshrl.u32 %v4028, 7
        %v4030 = vsub.s32 7, %v4029
        %v4031 = vrot.slane %v1299, %v4030
        %v4032 = vmul.f32 %v1103, %v4031
        %v4033 = vmul.f32 %v1104, %v4031
        %v4034 = vmul.f32 %v1105, %v4031
        %v4035 = vmul.f32 %v1106, %v4031
        %v4036 = vmul.f32 %v1107, %v4031
        %v4037 = vmul.f32 %v1108, %v4031
        %v4038 = vmul.f32 %v1109, %v4031
        %v4039 = vmul.f32 %v1110, %v4031
        %v4040 = vmul.f32 %v1111, %v4031
        %v4041 = vmul.f32 %v1112, %v4031
        %v4042 = vmul.f32 %v1113, %v4031
        %v4043 = vmul.f32 %v1114, %v4031
        %v4044 = vmul.f32 %v1115, %v4031
        %v4045 = vmul.f32 %v1116, %v4031
        %v4046 = vmul.f32 %v1117, %v4031
        %v4047 = vmul.f32 %v1118, %v4031
        %v4048 = vmul.f32 %v1123, %v4031
        %v4049 = vmul.f32 %v1124, %v4031
        %v4050 = vmul.f32 %v1125, %v4031
        %v4051 = vmul.f32 %v1126, %v4031
        %v4052 = vmul.f32 %v1127, %v4031
        %v4053 = vmul.f32 %v1128, %v4031
        %v4054 = vmul.f32 %v1129, %v4031
        %v4055 = vmul.f32 %v1130, %v4031
        %v4056 = vmul.f32 %v1131, %v4031
        %v4057 = vmul.f32 %v1132, %v4031
        %v4058 = vmul.f32 %v1133, %v4031
        %v4059 = vmul.f32 %v1134, %v4031
        %v4060 = vmul.f32 %v1135, %v4031
        %v4061 = vmul.f32 %v1136, %v4031
        %v4062 = vmul.f32 %v1137, %v4031
        %v4063 = vmul.f32 %v1138, %v4031
        %v4064 = vmul.f32 %v1143, %v4031
        %v4065 = vmul.f32 %v1144, %v4031
        %v4066 = vmul.f32 %v1145, %v4031
        %v4067 = vmul.f32 %v1146, %v4031
        %v4068 = vmul.f32 %v1147, %v4031
        %v4069 = vmul.f32 %v1148, %v4031
        %v4070 = vmul.f32 %v1149, %v4031
        %v4071 = vmul.f32 %v1150, %v4031
        %v4072 = vmul.f32 %v1151, %v4031
        %v4073 = vmul.f32 %v1152, %v4031
        %v4074 = vmul.f32 %v1153, %v4031
        %v4075 = vmul.f32 %v1154, %v4031
        %v4076 = vmul.f32 %v1155, %v4031
        %v4077 = vmul.f32 %v1156, %v4031
        %v4078 = vmul.f32 %v1157, %v4031
        %v4079 = vmul.f32 %v1158, %v4031
        %v4080 = vmul.f32 %v1163, %v4031
        %v4081 = vmul.f32 %v1164, %v4031
        %v4082 = vmul.f32 %v1165, %v4031
        %v4083 = vmul.f32 %v1166, %v4031
        %v4084 = vmul.f32 %v1167, %v4031
        %v4085 = vmul.f32 %v1168, %v4031
        %v4086 = vmul.f32 %v1169, %v4031
        %v4087 = vmul.f32 %v1170, %v4031
        %v4088 = vmul.f32 %v1171, %v4031
        %v4089 = vmul.f32 %v1172, %v4031
        %v4090 = vmul.f32 %v1173, %v4031
        %v4091 = vmul.f32 %v1174, %v4031
        %v4092 = vmul.f32 %v1175, %v4031
        %v4093 = vmul.f32 %v1176, %v4031
        %v4094 = vmul.f32 %v1177, %v4031
        %v4095 = vmul.f32 %v1178, %v4031
        %v4096 = vmul.f32 %v1183, %v4031
        %v4097 = vmul.f32 %v1184, %v4031
        %v4098 = vmul.f32 %v1185, %v4031
        %v4099 = vmul.f32 %v1186, %v4031
        %v4100 = vmul.f32 %v1187, %v4031
        %v4101 = vmul.f32 %v1188, %v4031
        %v4102 = vmul.f32 %v1189, %v4031
        %v4103 = vmul.f32 %v1190, %v4031
        %v4104 = vmul.f32 %v1191, %v4031
        %v4105 = vmul.f32 %v1192, %v4031
        %v4106 = vmul.f32 %v1193, %v4031
        %v4107 = vmul.f32 %v1194, %v4031
        %v4108 = vmul.f32 %v1195, %v4031
        %v4109 = vmul.f32 %v1196, %v4031
        %v4110 = vmul.f32 %v1197, %v4031
        %v4111 = vmul.f32 %v1198, %v4031
        %v4112 = vmul.f32 %v1203, %v4031
        %v4113 = vmul.f32 %v1204, %v4031
        %v4114 = vmul.f32 %v1205, %v4031
        %v4115 = vmul.f32 %v1206, %v4031
        %v4116 = vmul.f32 %v1207, %v4031
        %v4117 = vmul.f32 %v1208, %v4031
        %v4118 = vmul.f32 %v1209, %v4031
        %v4119 = vmul.f32 %v1210, %v4031
        %v4120 = vmul.f32 %v1211, %v4031
        %v4121 = vmul.f32 %v1212, %v4031
        %v4122 = vmul.f32 %v1213, %v4031
        %v4123 = vmul.f32 %v1214, %v4031
        %v4124 = vmul.f32 %v1215, %v4031
        %v4125 = vmul.f32 %v1216, %v4031
        %v4126 = vmul.f32 %v1217, %v4031
        %v4127 = vmul.f32 %v1218, %v4031
        %v4128 = vmul.f32 %v1223, %v4031
        %v4129 = vmul.f32 %v1224, %v4031
        %v4130 = vmul.f32 %v1225, %v4031
        %v4131 = vmul.f32 %v1226, %v4031
        %v4132 = vmul.f32 %v1227, %v4031
        %v4133 = vmul.f32 %v1228, %v4031
        %v4134 = vmul.f32 %v1229, %v4031
        %v4135 = vmul.f32 %v1230, %v4031
        %v4136 = vmul.f32 %v1231, %v4031
        %v4137 = vmul.f32 %v1232, %v4031
        %v4138 = vmul.f32 %v1233, %v4031
        %v4139 = vmul.f32 %v1234, %v4031
        %v4140 = vmul.f32 %v1235, %v4031
        %v4141 = vmul.f32 %v1236, %v4031
        %v4142 = vmul.f32 %v1237, %v4031
        %v4143 = vmul.f32 %v1238, %v4031
        %v4144 = vmul.f32 %v1243, %v4031
        %v4145 = vmul.f32 %v1244, %v4031
        %v4146 = vmul.f32 %v1245, %v4031
        %v4147 = vmul.f32 %v1246, %v4031
        %v4148 = vmul.f32 %v1247, %v4031
        %v4149 = vmul.f32 %v1248, %v4031
        %v4150 = vmul.f32 %v1249, %v4031
        %v4151 = vmul.f32 %v1250, %v4031
        %v4152 = vmul.f32 %v1251, %v4031
        %v4153 = vmul.f32 %v1252, %v4031
        %v4154 = vmul.f32 %v1253, %v4031
        %v4155 = vmul.f32 %v1254, %v4031
        %v4156 = vmul.f32 %v1255, %v4031
        %v4157 = vmul.f32 %v1256, %v4031
        %v4158 = vmul.f32 %v1257, %v4031
        %v4159 = vmul.f32 %v1258, %v4031
        %v4288 = vrot.slane %v4032, 1
        %v4289 = vrot.slane %v4033, 1
        %v4290 = vsel %vm1702, %v4288, %v4289
        %v4291 = vrot.slane %v4034, 1
        %v4292 = vrot.slane %v4035, 1
        %v4293 = vsel %vm1702, %v4291, %v4292
        %v4294 = vrot.slane %v4036, 1
        %v4295 = vrot.slane %v4037, 1
        %v4296 = vsel %vm1702, %v4294, %v4295
        %v4297 = vrot.slane %v4038, 1
        %v4298 = vrot.slane %v4039, 1
        %v4299 = vsel %vm1702, %v4297, %v4298
        %v4300 = vrot.slane %v4040, 1
        %v4301 = vrot.slane %v4041, 1
        %v4302 = vsel %vm1702, %v4300, %v4301
        %v4303 = vrot.slane %v4042, 1
        %v4304 = vrot.slane %v4043, 1
        %v4305 = vsel %vm1702, %v4303, %v4304
        %v4306 = vrot.slane %v4044, 1
        %v4307 = vrot.slane %v4045, 1
        %v4308 = vsel %vm1702, %v4306, %v4307
        %v4309 = vrot.slane %v4046, 1
        %v4310 = vrot.slane %v4047, 1
        %v4311 = vsel %vm1702, %v4309, %v4310
        %v4312 = vrot.slane %v4048, 1
        %v4313 = vrot.slane %v4049, 1
        %v4314 = vsel %vm1702, %v4312, %v4313
        %v4315 = vrot.slane %v4050, 1
        %v4316 = vrot.slane %v4051, 1
        %v4317 = vsel %vm1702, %v4315, %v4316
        %v4318 = vrot.slane %v4052, 1
        %v4319 = vrot.slane %v4053, 1
        %v4320 = vsel %vm1702, %v4318, %v4319
        %v4321 = vrot.slane %v4054, 1
        %v4322 = vrot.slane %v4055, 1
        %v4323 = vsel %vm1702, %v4321, %v4322
        %v4324 = vrot.slane %v4056, 1
        %v4325 = vrot.slane %v4057, 1
        %v4326 = vsel %vm1702, %v4324, %v4325
        %v4327 = vrot.slane %v4058, 1
        %v4328 = vrot.slane %v4059, 1
        %v4329 = vsel %vm1702, %v4327, %v4328
        %v4330 = vrot.slane %v4060, 1
        %v4331 = vrot.slane %v4061, 1
        %v4332 = vsel %vm1702, %v4330, %v4331
        %v4333 = vrot.slane %v4062, 1
        %v4334 = vrot.slane %v4063, 1
        %v4335 = vsel %vm1702, %v4333, %v4334
        %v4336 = vrot.slane %v4064, 1
        %v4337 = vrot.slane %v4065, 1
        %v4338 = vsel %vm1702, %v4336, %v4337
        %v4339 = vrot.slane %v4066, 1
        %v4340 = vrot.slane %v4067, 1
        %v4341 = vsel %vm1702, %v4339, %v4340
        %v4342 = vrot.slane %v4068, 1
        %v4343 = vrot.slane %v4069, 1
        %v4344 = vsel %vm1702, %v4342, %v4343
        %v4345 = vrot.slane %v4070, 1
        %v4346 = vrot.slane %v4071, 1
        %v4347 = vsel %vm1702, %v4345, %v4346
        %v4348 = vrot.slane %v4072, 1
        %v4349 = vrot.slane %v4073, 1
        %v4350 = vsel %vm1702, %v4348, %v4349
        %v4351 = vrot.slane %v4074, 1
        %v4352 = vrot.slane %v4075, 1
        %v4353 = vsel %vm1702, %v4351, %v4352
        %v4354 = vrot.slane %v4076, 1
        %v4355 = vrot.slane %v4077, 1
        %v4356 = vsel %vm1702, %v4354, %v4355
        %v4357 = vrot.slane %v4078, 1
        %v4358 = vrot.slane %v4079, 1
        %v4359 = vsel %vm1702, %v4357, %v4358
        %v4360 = vrot.slane %v4080, 1
        %v4361 = vrot.slane %v4081, 1
        %v4362 = vsel %vm1702, %v4360, %v4361
        %v4363 = vrot.slane %v4082, 1
        %v4364 = vrot.slane %v4083, 1
        %v4365 = vsel %vm1702, %v4363, %v4364
        %v4366 = vrot.slane %v4084, 1
        %v4367 = vrot.slane %v4085, 1
        %v4368 = vsel %vm1702, %v4366, %v4367
        %v4369 = vrot.slane %v4086, 1
        %v4370 = vrot.slane %v4087, 1
        %v4371 = vsel %vm1702, %v4369, %v4370
        %v4372 = vrot.slane %v4088, 1
        %v4373 = vrot.slane %v4089, 1
        %v4374 = vsel %vm1702, %v4372, %v4373
        %v4375 = vrot.slane %v4090, 1
        %v4376 = vrot.slane %v4091, 1
        %v4377 = vsel %vm1702, %v4375, %v4376
        %v4378 = vrot.slane %v4092, 1
        %v4379 = vrot.slane %v4093, 1
        %v4380 = vsel %vm1702, %v4378, %v4379
        %v4381 = vrot.slane %v4094, 1
        %v4382 = vrot.slane %v4095, 1
        %v4383 = vsel %vm1702, %v4381, %v4382
        %v4384 = vrot.slane %v4096, 1
        %v4385 = vrot.slane %v4097, 1
        %v4386 = vsel %vm1702, %v4384, %v4385
        %v4387 = vrot.slane %v4098, 1
        %v4388 = vrot.slane %v4099, 1
        %v4389 = vsel %vm1702, %v4387, %v4388
        %v4390 = vrot.slane %v4100, 1
        %v4391 = vrot.slane %v4101, 1
        %v4392 = vsel %vm1702, %v4390, %v4391
        %v4393 = vrot.slane %v4102, 1
        %v4394 = vrot.slane %v4103, 1
        %v4395 = vsel %vm1702, %v4393, %v4394
        %v4396 = vrot.slane %v4104, 1
        %v4397 = vrot.slane %v4105, 1
        %v4398 = vsel %vm1702, %v4396, %v4397
        %v4399 = vrot.slane %v4106, 1
        %v4400 = vrot.slane %v4107, 1
        %v4401 = vsel %vm1702, %v4399, %v4400
        %v4402 = vrot.slane %v4108, 1
        %v4403 = vrot.slane %v4109, 1
        %v4404 = vsel %vm1702, %v4402, %v4403
        %v4405 = vrot.slane %v4110, 1
        %v4406 = vrot.slane %v4111, 1
        %v4407 = vsel %vm1702, %v4405, %v4406
        %v4408 = vrot.slane %v4112, 1
        %v4409 = vrot.slane %v4113, 1
        %v4410 = vsel %vm1702, %v4408, %v4409
        %v4411 = vrot.slane %v4114, 1
        %v4412 = vrot.slane %v4115, 1
        %v4413 = vsel %vm1702, %v4411, %v4412
        %v4414 = vrot.slane %v4116, 1
        %v4415 = vrot.slane %v4117, 1
        %v4416 = vsel %vm1702, %v4414, %v4415
        %v4417 = vrot.slane %v4118, 1
        %v4418 = vrot.slane %v4119, 1
        %v4419 = vsel %vm1702, %v4417, %v4418
        %v4420 = vrot.slane %v4120, 1
        %v4421 = vrot.slane %v4121, 1
        %v4422 = vsel %vm1702, %v4420, %v4421
        %v4423 = vrot.slane %v4122, 1
        %v4424 = vrot.slane %v4123, 1
        %v4425 = vsel %vm1702, %v4423, %v4424
        %v4426 = vrot.slane %v4124, 1
        %v4427 = vrot.slane %v4125, 1
        %v4428 = vsel %vm1702, %v4426, %v4427
        %v4429 = vrot.slane %v4126, 1
        %v4430 = vrot.slane %v4127, 1
        %v4431 = vsel %vm1702, %v4429, %v4430
        %v4432 = vrot.slane %v4128, 1
        %v4433 = vrot.slane %v4129, 1
        %v4434 = vsel %vm1702, %v4432, %v4433
        %v4435 = vrot.slane %v4130, 1
        %v4436 = vrot.slane %v4131, 1
        %v4437 = vsel %vm1702, %v4435, %v4436
        %v4438 = vrot.slane %v4132, 1
        %v4439 = vrot.slane %v4133, 1
        %v4440 = vsel %vm1702, %v4438, %v4439
        %v4441 = vrot.slane %v4134, 1
        %v4442 = vrot.slane %v4135, 1
        %v4443 = vsel %vm1702, %v4441, %v4442
        %v4444 = vrot.slane %v4136, 1
        %v4445 = vrot.slane %v4137, 1
        %v4446 = vsel %vm1702, %v4444, %v4445
        %v4447 = vrot.slane %v4138, 1
        %v4448 = vrot.slane %v4139, 1
        %v4449 = vsel %vm1702, %v4447, %v4448
        %v4450 = vrot.slane %v4140, 1
        %v4451 = vrot.slane %v4141, 1
        %v4452 = vsel %vm1702, %v4450, %v4451
        %v4453 = vrot.slane %v4142, 1
        %v4454 = vrot.slane %v4143, 1
        %v4455 = vsel %vm1702, %v4453, %v4454
        %v4456 = vrot.slane %v4144, 1
        %v4457 = vrot.slane %v4145, 1
        %v4458 = vsel %vm1702, %v4456, %v4457
        %v4459 = vrot.slane %v4146, 1
        %v4460 = vrot.slane %v4147, 1
        %v4461 = vsel %vm1702, %v4459, %v4460
        %v4462 = vrot.slane %v4148, 1
        %v4463 = vrot.slane %v4149, 1
        %v4464 = vsel %vm1702, %v4462, %v4463
        %v4465 = vrot.slane %v4150, 1
        %v4466 = vrot.slane %v4151, 1
        %v4467 = vsel %vm1702, %v4465, %v4466
        %v4468 = vrot.slane %v4152, 1
        %v4469 = vrot.slane %v4153, 1
        %v4470 = vsel %vm1702, %v4468, %v4469
        %v4471 = vrot.slane %v4154, 1
        %v4472 = vrot.slane %v4155, 1
        %v4473 = vsel %vm1702, %v4471, %v4472
        %v4474 = vrot.slane %v4156, 1
        %v4475 = vrot.slane %v4157, 1
        %v4476 = vsel %vm1702, %v4474, %v4475
        %v4477 = vrot.slane %v4158, 1
        %v4478 = vrot.slane %v4159, 1
        %v4479 = vsel %vm1702, %v4477, %v4478
        %v4544 = vadd.f32 %v3964, %v4290
        %v4545 = vadd.f32 %v3965, %v4293
        %v4546 = vadd.f32 %v3966, %v4296
        %v4547 = vadd.f32 %v3967, %v4299
        %v4548 = vadd.f32 %v3968, %v4302
        %v4549 = vadd.f32 %v3969, %v4305
        %v4550 = vadd.f32 %v3970, %v4308
        %v4551 = vadd.f32 %v3971, %v4311
        %v4552 = vadd.f32 %v3972, %v4314
        %v4553 = vadd.f32 %v3973, %v4317
        %v4554 = vadd.f32 %v3974, %v4320
        %v4555 = vadd.f32 %v3975, %v4323
        %v4556 = vadd.f32 %v3976, %v4326
        %v4557 = vadd.f32 %v3977, %v4329
        %v4558 = vadd.f32 %v3978, %v4332
        %v4559 = vadd.f32 %v3979, %v4335
        %v4560 = vadd.f32 %v3980, %v4338
        %v4561 = vadd.f32 %v3981, %v4341
        %v4562 = vadd.f32 %v3982, %v4344
        %v4563 = vadd.f32 %v3983, %v4347
        %v4564 = vadd.f32 %v3984, %v4350
        %v4565 = vadd.f32 %v3985, %v4353
        %v4566 = vadd.f32 %v3986, %v4356
        %v4567 = vadd.f32 %v3987, %v4359
        %v4568 = vadd.f32 %v3988, %v4362
        %v4569 = vadd.f32 %v3989, %v4365
        %v4570 = vadd.f32 %v3990, %v4368
        %v4571 = vadd.f32 %v3991, %v4371
        %v4572 = vadd.f32 %v3992, %v4374
        %v4573 = vadd.f32 %v3993, %v4377
        %v4574 = vadd.f32 %v3994, %v4380
        %v4575 = vadd.f32 %v3995, %v4383
        %v4576 = vadd.f32 %v3996, %v4386
        %v4577 = vadd.f32 %v3997, %v4389
        %v4578 = vadd.f32 %v3998, %v4392
        %v4579 = vadd.f32 %v3999, %v4395
        %v4580 = vadd.f32 %v4000, %v4398
        %v4581 = vadd.f32 %v4001, %v4401
        %v4582 = vadd.f32 %v4002, %v4404
        %v4583 = vadd.f32 %v4003, %v4407
        %v4584 = vadd.f32 %v4004, %v4410
        %v4585 = vadd.f32 %v4005, %v4413
        %v4586 = vadd.f32 %v4006, %v4416
        %v4587 = vadd.f32 %v4007, %v4419
        %v4588 = vadd.f32 %v4008, %v4422
        %v4589 = vadd.f32 %v4009, %v4425
        %v4590 = vadd.f32 %v4010, %v4428
        %v4591 = vadd.f32 %v4011, %v4431
        %v4592 = vadd.f32 %v4012, %v4434
        %v4593 = vadd.f32 %v4013, %v4437
        %v4594 = vadd.f32 %v4014, %v4440
        %v4595 = vadd.f32 %v4015, %v4443
        %v4596 = vadd.f32 %v4016, %v4446
        %v4597 = vadd.f32 %v4017, %v4449
        %v4598 = vadd.f32 %v4018, %v4452
        %v4599 = vadd.f32 %v4019, %v4455
        %v4600 = vadd.f32 %v4020, %v4458
        %v4601 = vadd.f32 %v4021, %v4461
        %v4602 = vadd.f32 %v4022, %v4464
        %v4603 = vadd.f32 %v4023, %v4467
        %v4604 = vadd.f32 %v4024, %v4470
        %v4605 = vadd.f32 %v4025, %v4473
        %v4606 = vadd.f32 %v4026, %v4476
        %v4607 = vadd.f32 %v4027, %v4479
        %v4608 = vlaneseq
        %v4609 = vshrl.u32 %v4608, 7
        %v4610 = vsub.s32 0, %v4609
        %v4611 = vrot.slane %v1300, %v4610
        %v4612 = vmul.f32 %v1103, %v4611
        %v4613 = vmul.f32 %v1104, %v4611
        %v4614 = vmul.f32 %v1105, %v4611
        %v4615 = vmul.f32 %v1106, %v4611
        %v4616 = vmul.f32 %v1107, %v4611
        %v4617 = vmul.f32 %v1108, %v4611
        %v4618 = vmul.f32 %v1109, %v4611
        %v4619 = vmul.f32 %v1110, %v4611
        %v4620 = vmul.f32 %v1111, %v4611
        %v4621 = vmul.f32 %v1112, %v4611
        %v4622 = vmul.f32 %v1113, %v4611
        %v4623 = vmul.f32 %v1114, %v4611
        %v4624 = vmul.f32 %v1115, %v4611
        %v4625 = vmul.f32 %v1116, %v4611
        %v4626 = vmul.f32 %v1117, %v4611
        %v4627 = vmul.f32 %v1118, %v4611
        %v4628 = vmul.f32 %v1123, %v4611
        %v4629 = vmul.f32 %v1124, %v4611
        %v4630 = vmul.f32 %v1125, %v4611
        %v4631 = vmul.f32 %v1126, %v4611
        %v4632 = vmul.f32 %v1127, %v4611
        %v4633 = vmul.f32 %v1128, %v4611
        %v4634 = vmul.f32 %v1129, %v4611
        %v4635 = vmul.f32 %v1130, %v4611
        %v4636 = vmul.f32 %v1131, %v4611
        %v4637 = vmul.f32 %v1132, %v4611
        %v4638 = vmul.f32 %v1133, %v4611
        %v4639 = vmul.f32 %v1134, %v4611
        %v4640 = vmul.f32 %v1135, %v4611
        %v4641 = vmul.f32 %v1136, %v4611
        %v4642 = vmul.f32 %v1137, %v4611
        %v4643 = vmul.f32 %v1138, %v4611
        %v4644 = vmul.f32 %v1143, %v4611
        %v4645 = vmul.f32 %v1144, %v4611
        %v4646 = vmul.f32 %v1145, %v4611
        %v4647 = vmul.f32 %v1146, %v4611
        %v4648 = vmul.f32 %v1147, %v4611
        %v4649 = vmul.f32 %v1148, %v4611
        %v4650 = vmul.f32 %v1149, %v4611
        %v4651 = vmul.f32 %v1150, %v4611
        %v4652 = vmul.f32 %v1151, %v4611
        %v4653 = vmul.f32 %v1152, %v4611
        %v4654 = vmul.f32 %v1153, %v4611
        %v4655 = vmul.f32 %v1154, %v4611
        %v4656 = vmul.f32 %v1155, %v4611
        %v4657 = vmul.f32 %v1156, %v4611
        %v4658 = vmul.f32 %v1157, %v4611
        %v4659 = vmul.f32 %v1158, %v4611
        %v4660 = vmul.f32 %v1163, %v4611
        %v4661 = vmul.f32 %v1164, %v4611
        %v4662 = vmul.f32 %v1165, %v4611
        %v4663 = vmul.f32 %v1166, %v4611
        %v4664 = vmul.f32 %v1167, %v4611
        %v4665 = vmul.f32 %v1168, %v4611
        %v4666 = vmul.f32 %v1169, %v4611
        %v4667 = vmul.f32 %v1170, %v4611
        %v4668 = vmul.f32 %v1171, %v4611
        %v4669 = vmul.f32 %v1172, %v4611
        %v4670 = vmul.f32 %v1173, %v4611
        %v4671 = vmul.f32 %v1174, %v4611
        %v4672 = vmul.f32 %v1175, %v4611
        %v4673 = vmul.f32 %v1176, %v4611
        %v4674 = vmul.f32 %v1177, %v4611
        %v4675 = vmul.f32 %v1178, %v4611
        %v4676 = vmul.f32 %v1183, %v4611
        %v4677 = vmul.f32 %v1184, %v4611
        %v4678 = vmul.f32 %v1185, %v4611
        %v4679 = vmul.f32 %v1186, %v4611
        %v4680 = vmul.f32 %v1187, %v4611
        %v4681 = vmul.f32 %v1188, %v4611
        %v4682 = vmul.f32 %v1189, %v4611
        %v4683 = vmul.f32 %v1190, %v4611
        %v4684 = vmul.f32 %v1191, %v4611
        %v4685 = vmul.f32 %v1192, %v4611
        %v4686 = vmul.f32 %v1193, %v4611
        %v4687 = vmul.f32 %v1194, %v4611
        %v4688 = vmul.f32 %v1195, %v4611
        %v4689 = vmul.f32 %v1196, %v4611
        %v4690 = vmul.f32 %v1197, %v4611
        %v4691 = vmul.f32 %v1198, %v4611
        %v4692 = vmul.f32 %v1203, %v4611
        %v4693 = vmul.f32 %v1204, %v4611
        %v4694 = vmul.f32 %v1205, %v4611
        %v4695 = vmul.f32 %v1206, %v4611
        %v4696 = vmul.f32 %v1207, %v4611
        %v4697 = vmul.f32 %v1208, %v4611
        %v4698 = vmul.f32 %v1209, %v4611
        %v4699 = vmul.f32 %v1210, %v4611
        %v4700 = vmul.f32 %v1211, %v4611
        %v4701 = vmul.f32 %v1212, %v4611
        %v4702 = vmul.f32 %v1213, %v4611
        %v4703 = vmul.f32 %v1214, %v4611
        %v4704 = vmul.f32 %v1215, %v4611
        %v4705 = vmul.f32 %v1216, %v4611
        %v4706 = vmul.f32 %v1217, %v4611
        %v4707 = vmul.f32 %v1218, %v4611
        %v4708 = vmul.f32 %v1223, %v4611
        %v4709 = vmul.f32 %v1224, %v4611
        %v4710 = vmul.f32 %v1225, %v4611
        %v4711 = vmul.f32 %v1226, %v4611
        %v4712 = vmul.f32 %v1227, %v4611
        %v4713 = vmul.f32 %v1228, %v4611
        %v4714 = vmul.f32 %v1229, %v4611
        %v4715 = vmul.f32 %v1230, %v4611
        %v4716 = vmul.f32 %v1231, %v4611
        %v4717 = vmul.f32 %v1232, %v4611
        %v4718 = vmul.f32 %v1233, %v4611
        %v4719 = vmul.f32 %v1234, %v4611
        %v4720 = vmul.f32 %v1235, %v4611
        %v4721 = vmul.f32 %v1236, %v4611
        %v4722 = vmul.f32 %v1237, %v4611
        %v4723 = vmul.f32 %v1238, %v4611
        %v4724 = vmul.f32 %v1243, %v4611
        %v4725 = vmul.f32 %v1244, %v4611
        %v4726 = vmul.f32 %v1245, %v4611
        %v4727 = vmul.f32 %v1246, %v4611
        %v4728 = vmul.f32 %v1247, %v4611
        %v4729 = vmul.f32 %v1248, %v4611
        %v4730 = vmul.f32 %v1249, %v4611
        %v4731 = vmul.f32 %v1250, %v4611
        %v4732 = vmul.f32 %v1251, %v4611
        %v4733 = vmul.f32 %v1252, %v4611
        %v4734 = vmul.f32 %v1253, %v4611
        %v4735 = vmul.f32 %v1254, %v4611
        %v4736 = vmul.f32 %v1255, %v4611
        %v4737 = vmul.f32 %v1256, %v4611
        %v4738 = vmul.f32 %v1257, %v4611
        %v4739 = vmul.f32 %v1258, %v4611
        %v4868 = vrot.slane %v4612, 2
        %v4869 = vrot.slane %v4613, 2
        %v4870 = vsel %vm2283, %v4868, %v4869
        %v4871 = vrot.slane %v4614, 2
        %v4872 = vrot.slane %v4615, 2
        %v4873 = vsel %vm2283, %v4871, %v4872
        %v4874 = vrot.slane %v4616, 2
        %v4875 = vrot.slane %v4617, 2
        %v4876 = vsel %vm2283, %v4874, %v4875
        %v4877 = vrot.slane %v4618, 2
        %v4878 = vrot.slane %v4619, 2
        %v4879 = vsel %vm2283, %v4877, %v4878
        %v4880 = vrot.slane %v4620, 2
        %v4881 = vrot.slane %v4621, 2
        %v4882 = vsel %vm2283, %v4880, %v4881
        %v4883 = vrot.slane %v4622, 2
        %v4884 = vrot.slane %v4623, 2
        %v4885 = vsel %vm2283, %v4883, %v4884
        %v4886 = vrot.slane %v4624, 2
        %v4887 = vrot.slane %v4625, 2
        %v4888 = vsel %vm2283, %v4886, %v4887
        %v4889 = vrot.slane %v4626, 2
        %v4890 = vrot.slane %v4627, 2
        %v4891 = vsel %vm2283, %v4889, %v4890
        %v4892 = vrot.slane %v4628, 2
        %v4893 = vrot.slane %v4629, 2
        %v4894 = vsel %vm2283, %v4892, %v4893
        %v4895 = vrot.slane %v4630, 2
        %v4896 = vrot.slane %v4631, 2
        %v4897 = vsel %vm2283, %v4895, %v4896
        %v4898 = vrot.slane %v4632, 2
        %v4899 = vrot.slane %v4633, 2
        %v4900 = vsel %vm2283, %v4898, %v4899
        %v4901 = vrot.slane %v4634, 2
        %v4902 = vrot.slane %v4635, 2
        %v4903 = vsel %vm2283, %v4901, %v4902
        %v4904 = vrot.slane %v4636, 2
        %v4905 = vrot.slane %v4637, 2
        %v4906 = vsel %vm2283, %v4904, %v4905
        %v4907 = vrot.slane %v4638, 2
        %v4908 = vrot.slane %v4639, 2
        %v4909 = vsel %vm2283, %v4907, %v4908
        %v4910 = vrot.slane %v4640, 2
        %v4911 = vrot.slane %v4641, 2
        %v4912 = vsel %vm2283, %v4910, %v4911
        %v4913 = vrot.slane %v4642, 2
        %v4914 = vrot.slane %v4643, 2
        %v4915 = vsel %vm2283, %v4913, %v4914
        %v4916 = vrot.slane %v4644, 2
        %v4917 = vrot.slane %v4645, 2
        %v4918 = vsel %vm2283, %v4916, %v4917
        %v4919 = vrot.slane %v4646, 2
        %v4920 = vrot.slane %v4647, 2
        %v4921 = vsel %vm2283, %v4919, %v4920
        %v4922 = vrot.slane %v4648, 2
        %v4923 = vrot.slane %v4649, 2
        %v4924 = vsel %vm2283, %v4922, %v4923
        %v4925 = vrot.slane %v4650, 2
        %v4926 = vrot.slane %v4651, 2
        %v4927 = vsel %vm2283, %v4925, %v4926
        %v4928 = vrot.slane %v4652, 2
        %v4929 = vrot.slane %v4653, 2
        %v4930 = vsel %vm2283, %v4928, %v4929
        %v4931 = vrot.slane %v4654, 2
        %v4932 = vrot.slane %v4655, 2
        %v4933 = vsel %vm2283, %v4931, %v4932
        %v4934 = vrot.slane %v4656, 2
        %v4935 = vrot.slane %v4657, 2
        %v4936 = vsel %vm2283, %v4934, %v4935
        %v4937 = vrot.slane %v4658, 2
        %v4938 = vrot.slane %v4659, 2
        %v4939 = vsel %vm2283, %v4937, %v4938
        %v4940 = vrot.slane %v4660, 2
        %v4941 = vrot.slane %v4661, 2
        %v4942 = vsel %vm2283, %v4940, %v4941
        %v4943 = vrot.slane %v4662, 2
        %v4944 = vrot.slane %v4663, 2
        %v4945 = vsel %vm2283, %v4943, %v4944
        %v4946 = vrot.slane %v4664, 2
        %v4947 = vrot.slane %v4665, 2
        %v4948 = vsel %vm2283, %v4946, %v4947
        %v4949 = vrot.slane %v4666, 2
        %v4950 = vrot.slane %v4667, 2
        %v4951 = vsel %vm2283, %v4949, %v4950
        %v4952 = vrot.slane %v4668, 2
        %v4953 = vrot.slane %v4669, 2
        %v4954 = vsel %vm2283, %v4952, %v4953
        %v4955 = vrot.slane %v4670, 2
        %v4956 = vrot.slane %v4671, 2
        %v4957 = vsel %vm2283, %v4955, %v4956
        %v4958 = vrot.slane %v4672, 2
        %v4959 = vrot.slane %v4673, 2
        %v4960 = vsel %vm2283, %v4958, %v4959
        %v4961 = vrot.slane %v4674, 2
        %v4962 = vrot.slane %v4675, 2
        %v4963 = vsel %vm2283, %v4961, %v4962
        %v4964 = vrot.slane %v4676, 2
        %v4965 = vrot.slane %v4677, 2
        %v4966 = vsel %vm2283, %v4964, %v4965
        %v4967 = vrot.slane %v4678, 2
        %v4968 = vrot.slane %v4679, 2
        %v4969 = vsel %vm2283, %v4967, %v4968
        %v4970 = vrot.slane %v4680, 2
        %v4971 = vrot.slane %v4681, 2
        %v4972 = vsel %vm2283, %v4970, %v4971
        %v4973 = vrot.slane %v4682, 2
        %v4974 = vrot.slane %v4683, 2
        %v4975 = vsel %vm2283, %v4973, %v4974
        %v4976 = vrot.slane %v4684, 2
        %v4977 = vrot.slane %v4685, 2
        %v4978 = vsel %vm2283, %v4976, %v4977
        %v4979 = vrot.slane %v4686, 2
        %v4980 = vrot.slane %v4687, 2
        %v4981 = vsel %vm2283, %v4979, %v4980
        %v4982 = vrot.slane %v4688, 2
        %v4983 = vrot.slane %v4689, 2
        %v4984 = vsel %vm2283, %v4982, %v4983
        %v4985 = vrot.slane %v4690, 2
        %v4986 = vrot.slane %v4691, 2
        %v4987 = vsel %vm2283, %v4985, %v4986
        %v4988 = vrot.slane %v4692, 2
        %v4989 = vrot.slane %v4693, 2
        %v4990 = vsel %vm2283, %v4988, %v4989
        %v4991 = vrot.slane %v4694, 2
        %v4992 = vrot.slane %v4695, 2
        %v4993 = vsel %vm2283, %v4991, %v4992
        %v4994 = vrot.slane %v4696, 2
        %v4995 = vrot.slane %v4697, 2
        %v4996 = vsel %vm2283, %v4994, %v4995
        %v4997 = vrot.slane %v4698, 2
        %v4998 = vrot.slane %v4699, 2
        %v4999 = vsel %vm2283, %v4997, %v4998
        %v5000 = vrot.slane %v4700, 2
        %v5001 = vrot.slane %v4701, 2
        %v5002 = vsel %vm2283, %v5000, %v5001
        %v5003 = vrot.slane %v4702, 2
        %v5004 = vrot.slane %v4703, 2
        %v5005 = vsel %vm2283, %v5003, %v5004
        %v5006 = vrot.slane %v4704, 2
        %v5007 = vrot.slane %v4705, 2
        %v5008 = vsel %vm2283, %v5006, %v5007
        %v5009 = vrot.slane %v4706, 2
        %v5010 = vrot.slane %v4707, 2
        %v5011 = vsel %vm2283, %v5009, %v5010
        %v5012 = vrot.slane %v4708, 2
        %v5013 = vrot.slane %v4709, 2
        %v5014 = vsel %vm2283, %v5012, %v5013
        %v5015 = vrot.slane %v4710, 2
        %v5016 = vrot.slane %v4711, 2
        %v5017 = vsel %vm2283, %v5015, %v5016
        %v5018 = vrot.slane %v4712, 2
        %v5019 = vrot.slane %v4713, 2
        %v5020 = vsel %vm2283, %v5018, %v5019
        %v5021 = vrot.slane %v4714, 2
        %v5022 = vrot.slane %v4715, 2
        %v5023 = vsel %vm2283, %v5021, %v5022
        %v5024 = vrot.slane %v4716, 2
        %v5025 = vrot.slane %v4717, 2
        %v5026 = vsel %vm2283, %v5024, %v5025
        %v5027 = vrot.slane %v4718, 2
        %v5028 = vrot.slane %v4719, 2
        %v5029 = vsel %vm2283, %v5027, %v5028
        %v5030 = vrot.slane %v4720, 2
        %v5031 = vrot.slane %v4721, 2
        %v5032 = vsel %vm2283, %v5030, %v5031
        %v5033 = vrot.slane %v4722, 2
        %v5034 = vrot.slane %v4723, 2
        %v5035 = vsel %vm2283, %v5033, %v5034
        %v5036 = vrot.slane %v4724, 2
        %v5037 = vrot.slane %v4725, 2
        %v5038 = vsel %vm2283, %v5036, %v5037
        %v5039 = vrot.slane %v4726, 2
        %v5040 = vrot.slane %v4727, 2
        %v5041 = vsel %vm2283, %v5039, %v5040
        %v5042 = vrot.slane %v4728, 2
        %v5043 = vrot.slane %v4729, 2
        %v5044 = vsel %vm2283, %v5042, %v5043
        %v5045 = vrot.slane %v4730, 2
        %v5046 = vrot.slane %v4731, 2
        %v5047 = vsel %vm2283, %v5045, %v5046
        %v5048 = vrot.slane %v4732, 2
        %v5049 = vrot.slane %v4733, 2
        %v5050 = vsel %vm2283, %v5048, %v5049
        %v5051 = vrot.slane %v4734, 2
        %v5052 = vrot.slane %v4735, 2
        %v5053 = vsel %vm2283, %v5051, %v5052
        %v5054 = vrot.slane %v4736, 2
        %v5055 = vrot.slane %v4737, 2
        %v5056 = vsel %vm2283, %v5054, %v5055
        %v5057 = vrot.slane %v4738, 2
        %v5058 = vrot.slane %v4739, 2
        %v5059 = vsel %vm2283, %v5057, %v5058
        %v5124 = vadd.f32 %v4544, %v4870
        %v5125 = vadd.f32 %v4545, %v4873
        %v5126 = vadd.f32 %v4546, %v4876
        %v5127 = vadd.f32 %v4547, %v4879
        %v5128 = vadd.f32 %v4548, %v4882
        %v5129 = vadd.f32 %v4549, %v4885
        %v5130 = vadd.f32 %v4550, %v4888
        %v5131 = vadd.f32 %v4551, %v4891
        %v5132 = vadd.f32 %v4552, %v4894
        %v5133 = vadd.f32 %v4553, %v4897
        %v5134 = vadd.f32 %v4554, %v4900
        %v5135 = vadd.f32 %v4555, %v4903
        %v5136 = vadd.f32 %v4556, %v4906
        %v5137 = vadd.f32 %v4557, %v4909
        %v5138 = vadd.f32 %v4558, %v4912
        %v5139 = vadd.f32 %v4559, %v4915
        %v5140 = vadd.f32 %v4560, %v4918
        %v5141 = vadd.f32 %v4561, %v4921
        %v5142 = vadd.f32 %v4562, %v4924
        %v5143 = vadd.f32 %v4563, %v4927
        %v5144 = vadd.f32 %v4564, %v4930
        %v5145 = vadd.f32 %v4565, %v4933
        %v5146 = vadd.f32 %v4566, %v4936
        %v5147 = vadd.f32 %v4567, %v4939
        %v5148 = vadd.f32 %v4568, %v4942
        %v5149 = vadd.f32 %v4569, %v4945
        %v5150 = vadd.f32 %v4570, %v4948
        %v5151 = vadd.f32 %v4571, %v4951
        %v5152 = vadd.f32 %v4572, %v4954
        %v5153 = vadd.f32 %v4573, %v4957
        %v5154 = vadd.f32 %v4574, %v4960
        %v5155 = vadd.f32 %v4575, %v4963
        %v5156 = vadd.f32 %v4576, %v4966
        %v5157 = vadd.f32 %v4577, %v4969
        %v5158 = vadd.f32 %v4578, %v4972
        %v5159 = vadd.f32 %v4579, %v4975
        %v5160 = vadd.f32 %v4580, %v4978
        %v5161 = vadd.f32 %v4581, %v4981
        %v5162 = vadd.f32 %v4582, %v4984
        %v5163 = vadd.f32 %v4583, %v4987
        %v5164 = vadd.f32 %v4584, %v4990
        %v5165 = vadd.f32 %v4585, %v4993
        %v5166 = vadd.f32 %v4586, %v4996
        %v5167 = vadd.f32 %v4587, %v4999
        %v5168 = vadd.f32 %v4588, %v5002
        %v5169 = vadd.f32 %v4589, %v5005
        %v5170 = vadd.f32 %v4590, %v5008
        %v5171 = vadd.f32 %v4591, %v5011
        %v5172 = vadd.f32 %v4592, %v5014
        %v5173 = vadd.f32 %v4593, %v5017
        %v5174 = vadd.f32 %v4594, %v5020
        %v5175 = vadd.f32 %v4595, %v5023
        %v5176 = vadd.f32 %v4596, %v5026
        %v5177 = vadd.f32 %v4597, %v5029
        %v5178 = vadd.f32 %v4598, %v5032
        %v5179 = vadd.f32 %v4599, %v5035
        %v5180 = vadd.f32 %v4600, %v5038
        %v5181 = vadd.f32 %v4601, %v5041
        %v5182 = vadd.f32 %v4602, %v5044
        %v5183 = vadd.f32 %v4603, %v5047
        %v5184 = vadd.f32 %v4604, %v5050
        %v5185 = vadd.f32 %v4605, %v5053
        %v5186 = vadd.f32 %v4606, %v5056
        %v5187 = vadd.f32 %v4607, %v5059
        %v5188 = vlaneseq
        %v5189 = vshrl.u32 %v5188, 7
        %v5190 = vsub.s32 1, %v5189
        %v5191 = vrot.slane %v1300, %v5190
        %v5192 = vmul.f32 %v1119, %v5191
        %v5193 = vmul.f32 %v1121, %v5191
        %v5194 = vmul.f32 %v1123, %v5191
        %v5195 = vmul.f32 %v1125, %v5191
        %v5196 = vmul.f32 %v1127, %v5191
        %v5197 = vmul.f32 %v1129, %v5191
        %v5198 = vmul.f32 %v1131, %v5191
        %v5199 = vmul.f32 %v1133, %v5191
        %v5200 = vmul.f32 %v1139, %v5191
        %v5201 = vmul.f32 %v1141, %v5191
        %v5202 = vmul.f32 %v1143, %v5191
        %v5203 = vmul.f32 %v1145, %v5191
        %v5204 = vmul.f32 %v1147, %v5191
        %v5205 = vmul.f32 %v1149, %v5191
        %v5206 = vmul.f32 %v1151, %v5191
        %v5207 = vmul.f32 %v1153, %v5191
        %v5208 = vmul.f32 %v1159, %v5191
        %v5209 = vmul.f32 %v1161, %v5191
        %v5210 = vmul.f32 %v1163, %v5191
        %v5211 = vmul.f32 %v1165, %v5191
        %v5212 = vmul.f32 %v1167, %v5191
        %v5213 = vmul.f32 %v1169, %v5191
        %v5214 = vmul.f32 %v1171, %v5191
        %v5215 = vmul.f32 %v1173, %v5191
        %v5216 = vmul.f32 %v1179, %v5191
        %v5217 = vmul.f32 %v1181, %v5191
        %v5218 = vmul.f32 %v1183, %v5191
        %v5219 = vmul.f32 %v1185, %v5191
        %v5220 = vmul.f32 %v1187, %v5191
        %v5221 = vmul.f32 %v1189, %v5191
        %v5222 = vmul.f32 %v1191, %v5191
        %v5223 = vmul.f32 %v1193, %v5191
        %v5224 = vmul.f32 %v1199, %v5191
        %v5225 = vmul.f32 %v1201, %v5191
        %v5226 = vmul.f32 %v1203, %v5191
        %v5227 = vmul.f32 %v1205, %v5191
        %v5228 = vmul.f32 %v1207, %v5191
        %v5229 = vmul.f32 %v1209, %v5191
        %v5230 = vmul.f32 %v1211, %v5191
        %v5231 = vmul.f32 %v1213, %v5191
        %v5232 = vmul.f32 %v1219, %v5191
        %v5233 = vmul.f32 %v1221, %v5191
        %v5234 = vmul.f32 %v1223, %v5191
        %v5235 = vmul.f32 %v1225, %v5191
        %v5236 = vmul.f32 %v1227, %v5191
        %v5237 = vmul.f32 %v1229, %v5191
        %v5238 = vmul.f32 %v1231, %v5191
        %v5239 = vmul.f32 %v1233, %v5191
        %v5240 = vmul.f32 %v1239, %v5191
        %v5241 = vmul.f32 %v1241, %v5191
        %v5242 = vmul.f32 %v1243, %v5191
        %v5243 = vmul.f32 %v1245, %v5191
        %v5244 = vmul.f32 %v1247, %v5191
        %v5245 = vmul.f32 %v1249, %v5191
        %v5246 = vmul.f32 %v1251, %v5191
        %v5247 = vmul.f32 %v1253, %v5191
        %v5248 = vmul.f32 %v1259, %v5191
        %v5249 = vmul.f32 %v1261, %v5191
        %v5250 = vmul.f32 %v1263, %v5191
        %v5251 = vmul.f32 %v1265, %v5191
        %v5252 = vmul.f32 %v1267, %v5191
        %v5253 = vmul.f32 %v1269, %v5191
        %v5254 = vmul.f32 %v1271, %v5191
        %v5255 = vmul.f32 %v1273, %v5191
        %v5256 = vadd.f32 %v5124, %v5192
        %v5257 = vadd.f32 %v5125, %v5193
        %v5258 = vadd.f32 %v5126, %v5194
        %v5259 = vadd.f32 %v5127, %v5195
        %v5260 = vadd.f32 %v5128, %v5196
        %v5261 = vadd.f32 %v5129, %v5197
        %v5262 = vadd.f32 %v5130, %v5198
        %v5263 = vadd.f32 %v5131, %v5199
        %v5264 = vadd.f32 %v5132, %v5200
        %v5265 = vadd.f32 %v5133, %v5201
        %v5266 = vadd.f32 %v5134, %v5202
        %v5267 = vadd.f32 %v5135, %v5203
        %v5268 = vadd.f32 %v5136, %v5204
        %v5269 = vadd.f32 %v5137, %v5205
        %v5270 = vadd.f32 %v5138, %v5206
        %v5271 = vadd.f32 %v5139, %v5207
        %v5272 = vadd.f32 %v5140, %v5208
        %v5273 = vadd.f32 %v5141, %v5209
        %v5274 = vadd.f32 %v5142, %v5210
        %v5275 = vadd.f32 %v5143, %v5211
        %v5276 = vadd.f32 %v5144, %v5212
        %v5277 = vadd.f32 %v5145, %v5213
        %v5278 = vadd.f32 %v5146, %v5214
        %v5279 = vadd.f32 %v5147, %v5215
        %v5280 = vadd.f32 %v5148, %v5216
        %v5281 = vadd.f32 %v5149, %v5217
        %v5282 = vadd.f32 %v5150, %v5218
        %v5283 = vadd.f32 %v5151, %v5219
        %v5284 = vadd.f32 %v5152, %v5220
        %v5285 = vadd.f32 %v5153, %v5221
        %v5286 = vadd.f32 %v5154, %v5222
        %v5287 = vadd.f32 %v5155, %v5223
        %v5288 = vadd.f32 %v5156, %v5224
        %v5289 = vadd.f32 %v5157, %v5225
        %v5290 = vadd.f32 %v5158, %v5226
        %v5291 = vadd.f32 %v5159, %v5227
        %v5292 = vadd.f32 %v5160, %v5228
        %v5293 = vadd.f32 %v5161, %v5229
        %v5294 = vadd.f32 %v5162, %v5230
        %v5295 = vadd.f32 %v5163, %v5231
        %v5296 = vadd.f32 %v5164, %v5232
        %v5297 = vadd.f32 %v5165, %v5233
        %v5298 = vadd.f32 %v5166, %v5234
        %v5299 = vadd.f32 %v5167, %v5235
        %v5300 = vadd.f32 %v5168, %v5236
        %v5301 = vadd.f32 %v5169, %v5237
        %v5302 = vadd.f32 %v5170, %v5238
        %v5303 = vadd.f32 %v5171, %v5239
        %v5304 = vadd.f32 %v5172, %v5240
        %v5305 = vadd.f32 %v5173, %v5241
        %v5306 = vadd.f32 %v5174, %v5242
        %v5307 = vadd.f32 %v5175, %v5243
        %v5308 = vadd.f32 %v5176, %v5244
        %v5309 = vadd.f32 %v5177, %v5245
        %v5310 = vadd.f32 %v5178, %v5246
        %v5311 = vadd.f32 %v5179, %v5247
        %v5312 = vadd.f32 %v5180, %v5248
        %v5313 = vadd.f32 %v5181, %v5249
        %v5314 = vadd.f32 %v5182, %v5250
        %v5315 = vadd.f32 %v5183, %v5251
        %v5316 = vadd.f32 %v5184, %v5252
        %v5317 = vadd.f32 %v5185, %v5253
        %v5318 = vadd.f32 %v5186, %v5254
        %v5319 = vadd.f32 %v5187, %v5255
        %v5320 = vlaneseq
        %v5321 = vshrl.u32 %v5320, 7
        %v5322 = vsub.s32 2, %v5321
        %v5323 = vrot.slane %v1300, %v5322
        %v5324 = vmul.f32 %v1119, %v5323
        %v5325 = vmul.f32 %v1120, %v5323
        %v5326 = vmul.f32 %v1121, %v5323
        %v5327 = vmul.f32 %v1122, %v5323
        %v5328 = vmul.f32 %v1123, %v5323
        %v5329 = vmul.f32 %v1124, %v5323
        %v5330 = vmul.f32 %v1125, %v5323
        %v5331 = vmul.f32 %v1126, %v5323
        %v5332 = vmul.f32 %v1127, %v5323
        %v5333 = vmul.f32 %v1128, %v5323
        %v5334 = vmul.f32 %v1129, %v5323
        %v5335 = vmul.f32 %v1130, %v5323
        %v5336 = vmul.f32 %v1131, %v5323
        %v5337 = vmul.f32 %v1132, %v5323
        %v5338 = vmul.f32 %v1133, %v5323
        %v5339 = vmul.f32 %v1134, %v5323
        %v5340 = vmul.f32 %v1139, %v5323
        %v5341 = vmul.f32 %v1140, %v5323
        %v5342 = vmul.f32 %v1141, %v5323
        %v5343 = vmul.f32 %v1142, %v5323
        %v5344 = vmul.f32 %v1143, %v5323
        %v5345 = vmul.f32 %v1144, %v5323
        %v5346 = vmul.f32 %v1145, %v5323
        %v5347 = vmul.f32 %v1146, %v5323
        %v5348 = vmul.f32 %v1147, %v5323
        %v5349 = vmul.f32 %v1148, %v5323
        %v5350 = vmul.f32 %v1149, %v5323
        %v5351 = vmul.f32 %v1150, %v5323
        %v5352 = vmul.f32 %v1151, %v5323
        %v5353 = vmul.f32 %v1152, %v5323
        %v5354 = vmul.f32 %v1153, %v5323
        %v5355 = vmul.f32 %v1154, %v5323
        %v5356 = vmul.f32 %v1159, %v5323
        %v5357 = vmul.f32 %v1160, %v5323
        %v5358 = vmul.f32 %v1161, %v5323
        %v5359 = vmul.f32 %v1162, %v5323
        %v5360 = vmul.f32 %v1163, %v5323
        %v5361 = vmul.f32 %v1164, %v5323
        %v5362 = vmul.f32 %v1165, %v5323
        %v5363 = vmul.f32 %v1166, %v5323
        %v5364 = vmul.f32 %v1167, %v5323
        %v5365 = vmul.f32 %v1168, %v5323
        %v5366 = vmul.f32 %v1169, %v5323
        %v5367 = vmul.f32 %v1170, %v5323
        %v5368 = vmul.f32 %v1171, %v5323
        %v5369 = vmul.f32 %v1172, %v5323
        %v5370 = vmul.f32 %v1173, %v5323
        %v5371 = vmul.f32 %v1174, %v5323
        %v5372 = vmul.f32 %v1179, %v5323
        %v5373 = vmul.f32 %v1180, %v5323
        %v5374 = vmul.f32 %v1181, %v5323
        %v5375 = vmul.f32 %v1182, %v5323
        %v5376 = vmul.f32 %v1183, %v5323
        %v5377 = vmul.f32 %v1184, %v5323
        %v5378 = vmul.f32 %v1185, %v5323
        %v5379 = vmul.f32 %v1186, %v5323
        %v5380 = vmul.f32 %v1187, %v5323
        %v5381 = vmul.f32 %v1188, %v5323
        %v5382 = vmul.f32 %v1189, %v5323
        %v5383 = vmul.f32 %v1190, %v5323
        %v5384 = vmul.f32 %v1191, %v5323
        %v5385 = vmul.f32 %v1192, %v5323
        %v5386 = vmul.f32 %v1193, %v5323
        %v5387 = vmul.f32 %v1194, %v5323
        %v5388 = vmul.f32 %v1199, %v5323
        %v5389 = vmul.f32 %v1200, %v5323
        %v5390 = vmul.f32 %v1201, %v5323
        %v5391 = vmul.f32 %v1202, %v5323
        %v5392 = vmul.f32 %v1203, %v5323
        %v5393 = vmul.f32 %v1204, %v5323
        %v5394 = vmul.f32 %v1205, %v5323
        %v5395 = vmul.f32 %v1206, %v5323
        %v5396 = vmul.f32 %v1207, %v5323
        %v5397 = vmul.f32 %v1208, %v5323
        %v5398 = vmul.f32 %v1209, %v5323
        %v5399 = vmul.f32 %v1210, %v5323
        %v5400 = vmul.f32 %v1211, %v5323
        %v5401 = vmul.f32 %v1212, %v5323
        %v5402 = vmul.f32 %v1213, %v5323
        %v5403 = vmul.f32 %v1214, %v5323
        %v5404 = vmul.f32 %v1219, %v5323
        %v5405 = vmul.f32 %v1220, %v5323
        %v5406 = vmul.f32 %v1221, %v5323
        %v5407 = vmul.f32 %v1222, %v5323
        %v5408 = vmul.f32 %v1223, %v5323
        %v5409 = vmul.f32 %v1224, %v5323
        %v5410 = vmul.f32 %v1225, %v5323
        %v5411 = vmul.f32 %v1226, %v5323
        %v5412 = vmul.f32 %v1227, %v5323
        %v5413 = vmul.f32 %v1228, %v5323
        %v5414 = vmul.f32 %v1229, %v5323
        %v5415 = vmul.f32 %v1230, %v5323
        %v5416 = vmul.f32 %v1231, %v5323
        %v5417 = vmul.f32 %v1232, %v5323
        %v5418 = vmul.f32 %v1233, %v5323
        %v5419 = vmul.f32 %v1234, %v5323
        %v5420 = vmul.f32 %v1239, %v5323
        %v5421 = vmul.f32 %v1240, %v5323
        %v5422 = vmul.f32 %v1241, %v5323
        %v5423 = vmul.f32 %v1242, %v5323
        %v5424 = vmul.f32 %v1243, %v5323
        %v5425 = vmul.f32 %v1244, %v5323
        %v5426 = vmul.f32 %v1245, %v5323
        %v5427 = vmul.f32 %v1246, %v5323
        %v5428 = vmul.f32 %v1247, %v5323
        %v5429 = vmul.f32 %v1248, %v5323
        %v5430 = vmul.f32 %v1249, %v5323
        %v5431 = vmul.f32 %v1250, %v5323
        %v5432 = vmul.f32 %v1251, %v5323
        %v5433 = vmul.f32 %v1252, %v5323
        %v5434 = vmul.f32 %v1253, %v5323
        %v5435 = vmul.f32 %v1254, %v5323
        %v5436 = vmul.f32 %v1259, %v5323
        %v5437 = vmul.f32 %v1260, %v5323
        %v5438 = vmul.f32 %v1261, %v5323
        %v5439 = vmul.f32 %v1262, %v5323
        %v5440 = vmul.f32 %v1263, %v5323
        %v5441 = vmul.f32 %v1264, %v5323
        %v5442 = vmul.f32 %v1265, %v5323
        %v5443 = vmul.f32 %v1266, %v5323
        %v5444 = vmul.f32 %v1267, %v5323
        %v5445 = vmul.f32 %v1268, %v5323
        %v5446 = vmul.f32 %v1269, %v5323
        %v5447 = vmul.f32 %v1270, %v5323
        %v5448 = vmul.f32 %v1271, %v5323
        %v5449 = vmul.f32 %v1272, %v5323
        %v5450 = vmul.f32 %v1273, %v5323
        %v5451 = vmul.f32 %v1274, %v5323
        %v5580 = vrot.slane %v5324, 1
        %v5581 = vrot.slane %v5325, 1
        %v5582 = vsel %vm1702, %v5580, %v5581
        %v5583 = vrot.slane %v5326, 1
        %v5584 = vrot.slane %v5327, 1
        %v5585 = vsel %vm1702, %v5583, %v5584
        %v5586 = vrot.slane %v5328, 1
        %v5587 = vrot.slane %v5329, 1
        %v5588 = vsel %vm1702, %v5586, %v5587
        %v5589 = vrot.slane %v5330, 1
        %v5590 = vrot.slane %v5331, 1
        %v5591 = vsel %vm1702, %v5589, %v5590
        %v5592 = vrot.slane %v5332, 1
        %v5593 = vrot.slane %v5333, 1
        %v5594 = vsel %vm1702, %v5592, %v5593
        %v5595 = vrot.slane %v5334, 1
        %v5596 = vrot.slane %v5335, 1
        %v5597 = vsel %vm1702, %v5595, %v5596
        %v5598 = vrot.slane %v5336, 1
        %v5599 = vrot.slane %v5337, 1
        %v5600 = vsel %vm1702, %v5598, %v5599
        %v5601 = vrot.slane %v5338, 1
        %v5602 = vrot.slane %v5339, 1
        %v5603 = vsel %vm1702, %v5601, %v5602
        %v5604 = vrot.slane %v5340, 1
        %v5605 = vrot.slane %v5341, 1
        %v5606 = vsel %vm1702, %v5604, %v5605
        %v5607 = vrot.slane %v5342, 1
        %v5608 = vrot.slane %v5343, 1
        %v5609 = vsel %vm1702, %v5607, %v5608
        %v5610 = vrot.slane %v5344, 1
        %v5611 = vrot.slane %v5345, 1
        %v5612 = vsel %vm1702, %v5610, %v5611
        %v5613 = vrot.slane %v5346, 1
        %v5614 = vrot.slane %v5347, 1
        %v5615 = vsel %vm1702, %v5613, %v5614
        %v5616 = vrot.slane %v5348, 1
        %v5617 = vrot.slane %v5349, 1
        %v5618 = vsel %vm1702, %v5616, %v5617
        %v5619 = vrot.slane %v5350, 1
        %v5620 = vrot.slane %v5351, 1
        %v5621 = vsel %vm1702, %v5619, %v5620
        %v5622 = vrot.slane %v5352, 1
        %v5623 = vrot.slane %v5353, 1
        %v5624 = vsel %vm1702, %v5622, %v5623
        %v5625 = vrot.slane %v5354, 1
        %v5626 = vrot.slane %v5355, 1
        %v5627 = vsel %vm1702, %v5625, %v5626
        %v5628 = vrot.slane %v5356, 1
        %v5629 = vrot.slane %v5357, 1
        %v5630 = vsel %vm1702, %v5628, %v5629
        %v5631 = vrot.slane %v5358, 1
        %v5632 = vrot.slane %v5359, 1
        %v5633 = vsel %vm1702, %v5631, %v5632
        %v5634 = vrot.slane %v5360, 1
        %v5635 = vrot.slane %v5361, 1
        %v5636 = vsel %vm1702, %v5634, %v5635
        %v5637 = vrot.slane %v5362, 1
        %v5638 = vrot.slane %v5363, 1
        %v5639 = vsel %vm1702, %v5637, %v5638
        %v5640 = vrot.slane %v5364, 1
        %v5641 = vrot.slane %v5365, 1
        %v5642 = vsel %vm1702, %v5640, %v5641
        %v5643 = vrot.slane %v5366, 1
        %v5644 = vrot.slane %v5367, 1
        %v5645 = vsel %vm1702, %v5643, %v5644
        %v5646 = vrot.slane %v5368, 1
        %v5647 = vrot.slane %v5369, 1
        %v5648 = vsel %vm1702, %v5646, %v5647
        %v5649 = vrot.slane %v5370, 1
        %v5650 = vrot.slane %v5371, 1
        %v5651 = vsel %vm1702, %v5649, %v5650
        %v5652 = vrot.slane %v5372, 1
        %v5653 = vrot.slane %v5373, 1
        %v5654 = vsel %vm1702, %v5652, %v5653
        %v5655 = vrot.slane %v5374, 1
        %v5656 = vrot.slane %v5375, 1
        %v5657 = vsel %vm1702, %v5655, %v5656
        %v5658 = vrot.slane %v5376, 1
        %v5659 = vrot.slane %v5377, 1
        %v5660 = vsel %vm1702, %v5658, %v5659
        %v5661 = vrot.slane %v5378, 1
        %v5662 = vrot.slane %v5379, 1
        %v5663 = vsel %vm1702, %v5661, %v5662
        %v5664 = vrot.slane %v5380, 1
        %v5665 = vrot.slane %v5381, 1
        %v5666 = vsel %vm1702, %v5664, %v5665
        %v5667 = vrot.slane %v5382, 1
        %v5668 = vrot.slane %v5383, 1
        %v5669 = vsel %vm1702, %v5667, %v5668
        %v5670 = vrot.slane %v5384, 1
        %v5671 = vrot.slane %v5385, 1
        %v5672 = vsel %vm1702, %v5670, %v5671
        %v5673 = vrot.slane %v5386, 1
        %v5674 = vrot.slane %v5387, 1
        %v5675 = vsel %vm1702, %v5673, %v5674
        %v5676 = vrot.slane %v5388, 1
        %v5677 = vrot.slane %v5389, 1
        %v5678 = vsel %vm1702, %v5676, %v5677
        %v5679 = vrot.slane %v5390, 1
        %v5680 = vrot.slane %v5391, 1
        %v5681 = vsel %vm1702, %v5679, %v5680
        %v5682 = vrot.slane %v5392, 1
        %v5683 = vrot.slane %v5393, 1
        %v5684 = vsel %vm1702, %v5682, %v5683
        %v5685 = vrot.slane %v5394, 1
        %v5686 = vrot.slane %v5395, 1
        %v5687 = vsel %vm1702, %v5685, %v5686
        %v5688 = vrot.slane %v5396, 1
        %v5689 = vrot.slane %v5397, 1
        %v5690 = vsel %vm1702, %v5688, %v5689
        %v5691 = vrot.slane %v5398, 1
        %v5692 = vrot.slane %v5399, 1
        %v5693 = vsel %vm1702, %v5691, %v5692
        %v5694 = vrot.slane %v5400, 1
        %v5695 = vrot.slane %v5401, 1
        %v5696 = vsel %vm1702, %v5694, %v5695
        %v5697 = vrot.slane %v5402, 1
        %v5698 = vrot.slane %v5403, 1
        %v5699 = vsel %vm1702, %v5697, %v5698
        %v5700 = vrot.slane %v5404, 1
        %v5701 = vrot.slane %v5405, 1
        %v5702 = vsel %vm1702, %v5700, %v5701
        %v5703 = vrot.slane %v5406, 1
        %v5704 = vrot.slane %v5407, 1
        %v5705 = vsel %vm1702, %v5703, %v5704
        %v5706 = vrot.slane %v5408, 1
        %v5707 = vrot.slane %v5409, 1
        %v5708 = vsel %vm1702, %v5706, %v5707
        %v5709 = vrot.slane %v5410, 1
        %v5710 = vrot.slane %v5411, 1
        %v5711 = vsel %vm1702, %v5709, %v5710
        %v5712 = vrot.slane %v5412, 1
        %v5713 = vrot.slane %v5413, 1
        %v5714 = vsel %vm1702, %v5712, %v5713
        %v5715 = vrot.slane %v5414, 1
        %v5716 = vrot.slane %v5415, 1
        %v5717 = vsel %vm1702, %v5715, %v5716
        %v5718 = vrot.slane %v5416, 1
        %v5719 = vrot.slane %v5417, 1
        %v5720 = vsel %vm1702, %v5718, %v5719
        %v5721 = vrot.slane %v5418, 1
        %v5722 = vrot.slane %v5419, 1
        %v5723 = vsel %vm1702, %v5721, %v5722
        %v5724 = vrot.slane %v5420, 1
        %v5725 = vrot.slane %v5421, 1
        %v5726 = vsel %vm1702, %v5724, %v5725
        %v5727 = vrot.slane %v5422, 1
        %v5728 = vrot.slane %v5423, 1
        %v5729 = vsel %vm1702, %v5727, %v5728
        %v5730 = vrot.slane %v5424, 1
        %v5731 = vrot.slane %v5425, 1
        %v5732 = vsel %vm1702, %v5730, %v5731
        %v5733 = vrot.slane %v5426, 1
        %v5734 = vrot.slane %v5427, 1
        %v5735 = vsel %vm1702, %v5733, %v5734
        %v5736 = vrot.slane %v5428, 1
        %v5737 = vrot.slane %v5429, 1
        %v5738 = vsel %vm1702, %v5736, %v5737
        %v5739 = vrot.slane %v5430, 1
        %v5740 = vrot.slane %v5431, 1
        %v5741 = vsel %vm1702, %v5739, %v5740
        %v5742 = vrot.slane %v5432, 1
        %v5743 = vrot.slane %v5433, 1
        %v5744 = vsel %vm1702, %v5742, %v5743
        %v5745 = vrot.slane %v5434, 1
        %v5746 = vrot.slane %v5435, 1
        %v5747 = vsel %vm1702, %v5745, %v5746
        %v5748 = vrot.slane %v5436, 1
        %v5749 = vrot.slane %v5437, 1
        %v5750 = vsel %vm1702, %v5748, %v5749
        %v5751 = vrot.slane %v5438, 1
        %v5752 = vrot.slane %v5439, 1
        %v5753 = vsel %vm1702, %v5751, %v5752
        %v5754 = vrot.slane %v5440, 1
        %v5755 = vrot.slane %v5441, 1
        %v5756 = vsel %vm1702, %v5754, %v5755
        %v5757 = vrot.slane %v5442, 1
        %v5758 = vrot.slane %v5443, 1
        %v5759 = vsel %vm1702, %v5757, %v5758
        %v5760 = vrot.slane %v5444, 1
        %v5761 = vrot.slane %v5445, 1
        %v5762 = vsel %vm1702, %v5760, %v5761
        %v5763 = vrot.slane %v5446, 1
        %v5764 = vrot.slane %v5447, 1
        %v5765 = vsel %vm1702, %v5763, %v5764
        %v5766 = vrot.slane %v5448, 1
        %v5767 = vrot.slane %v5449, 1
        %v5768 = vsel %vm1702, %v5766, %v5767
        %v5769 = vrot.slane %v5450, 1
        %v5770 = vrot.slane %v5451, 1
        %v5771 = vsel %vm1702, %v5769, %v5770
        %v5836 = vadd.f32 %v5256, %v5582
        %v5837 = vadd.f32 %v5257, %v5585
        %v5838 = vadd.f32 %v5258, %v5588
        %v5839 = vadd.f32 %v5259, %v5591
        %v5840 = vadd.f32 %v5260, %v5594
        %v5841 = vadd.f32 %v5261, %v5597
        %v5842 = vadd.f32 %v5262, %v5600
        %v5843 = vadd.f32 %v5263, %v5603
        %v5844 = vadd.f32 %v5264, %v5606
        %v5845 = vadd.f32 %v5265, %v5609
        %v5846 = vadd.f32 %v5266, %v5612
        %v5847 = vadd.f32 %v5267, %v5615
        %v5848 = vadd.f32 %v5268, %v5618
        %v5849 = vadd.f32 %v5269, %v5621
        %v5850 = vadd.f32 %v5270, %v5624
        %v5851 = vadd.f32 %v5271, %v5627
        %v5852 = vadd.f32 %v5272, %v5630
        %v5853 = vadd.f32 %v5273, %v5633
        %v5854 = vadd.f32 %v5274, %v5636
        %v5855 = vadd.f32 %v5275, %v5639
        %v5856 = vadd.f32 %v5276, %v5642
        %v5857 = vadd.f32 %v5277, %v5645
        %v5858 = vadd.f32 %v5278, %v5648
        %v5859 = vadd.f32 %v5279, %v5651
        %v5860 = vadd.f32 %v5280, %v5654
        %v5861 = vadd.f32 %v5281, %v5657
        %v5862 = vadd.f32 %v5282, %v5660
        %v5863 = vadd.f32 %v5283, %v5663
        %v5864 = vadd.f32 %v5284, %v5666
        %v5865 = vadd.f32 %v5285, %v5669
        %v5866 = vadd.f32 %v5286, %v5672
        %v5867 = vadd.f32 %v5287, %v5675
        %v5868 = vadd.f32 %v5288, %v5678
        %v5869 = vadd.f32 %v5289, %v5681
        %v5870 = vadd.f32 %v5290, %v5684
        %v5871 = vadd.f32 %v5291, %v5687
        %v5872 = vadd.f32 %v5292, %v5690
        %v5873 = vadd.f32 %v5293, %v5693
        %v5874 = vadd.f32 %v5294, %v5696
        %v5875 = vadd.f32 %v5295, %v5699
        %v5876 = vadd.f32 %v5296, %v5702
        %v5877 = vadd.f32 %v5297, %v5705
        %v5878 = vadd.f32 %v5298, %v5708
        %v5879 = vadd.f32 %v5299, %v5711
        %v5880 = vadd.f32 %v5300, %v5714
        %v5881 = vadd.f32 %v5301, %v5717
        %v5882 = vadd.f32 %v5302, %v5720
        %v5883 = vadd.f32 %v5303, %v5723
        %v5884 = vadd.f32 %v5304, %v5726
        %v5885 = vadd.f32 %v5305, %v5729
        %v5886 = vadd.f32 %v5306, %v5732
        %v5887 = vadd.f32 %v5307, %v5735
        %v5888 = vadd.f32 %v5308, %v5738
        %v5889 = vadd.f32 %v5309, %v5741
        %v5890 = vadd.f32 %v5310, %v5744
        %v5891 = vadd.f32 %v5311, %v5747
        %v5892 = vadd.f32 %v5312, %v5750
        %v5893 = vadd.f32 %v5313, %v5753
        %v5894 = vadd.f32 %v5314, %v5756
        %v5895 = vadd.f32 %v5315, %v5759
        %v5896 = vadd.f32 %v5316, %v5762
        %v5897 = vadd.f32 %v5317, %v5765
        %v5898 = vadd.f32 %v5318, %v5768
        %v5899 = vadd.f32 %v5319, %v5771
        %v5900 = vlaneseq
        %v5901 = vshrl.u32 %v5900, 7
        %v5902 = vsub.s32 3, %v5901
        %v5903 = vrot.slane %v1300, %v5902
        %v5904 = vmul.f32 %v1119, %v5903
        %v5905 = vmul.f32 %v1120, %v5903
        %v5906 = vmul.f32 %v1121, %v5903
        %v5907 = vmul.f32 %v1122, %v5903
        %v5908 = vmul.f32 %v1123, %v5903
        %v5909 = vmul.f32 %v1124, %v5903
        %v5910 = vmul.f32 %v1125, %v5903
        %v5911 = vmul.f32 %v1126, %v5903
        %v5912 = vmul.f32 %v1127, %v5903
        %v5913 = vmul.f32 %v1128, %v5903
        %v5914 = vmul.f32 %v1129, %v5903
        %v5915 = vmul.f32 %v1130, %v5903
        %v5916 = vmul.f32 %v1131, %v5903
        %v5917 = vmul.f32 %v1132, %v5903
        %v5918 = vmul.f32 %v1133, %v5903
        %v5919 = vmul.f32 %v1134, %v5903
        %v5920 = vmul.f32 %v1139, %v5903
        %v5921 = vmul.f32 %v1140, %v5903
        %v5922 = vmul.f32 %v1141, %v5903
        %v5923 = vmul.f32 %v1142, %v5903
        %v5924 = vmul.f32 %v1143, %v5903
        %v5925 = vmul.f32 %v1144, %v5903
        %v5926 = vmul.f32 %v1145, %v5903
        %v5927 = vmul.f32 %v1146, %v5903
        %v5928 = vmul.f32 %v1147, %v5903
        %v5929 = vmul.f32 %v1148, %v5903
        %v5930 = vmul.f32 %v1149, %v5903
        %v5931 = vmul.f32 %v1150, %v5903
        %v5932 = vmul.f32 %v1151, %v5903
        %v5933 = vmul.f32 %v1152, %v5903
        %v5934 = vmul.f32 %v1153, %v5903
        %v5935 = vmul.f32 %v1154, %v5903
        %v5936 = vmul.f32 %v1159, %v5903
        %v5937 = vmul.f32 %v1160, %v5903
        %v5938 = vmul.f32 %v1161, %v5903
        %v5939 = vmul.f32 %v1162, %v5903
        %v5940 = vmul.f32 %v1163, %v5903
        %v5941 = vmul.f32 %v1164, %v5903
        %v5942 = vmul.f32 %v1165, %v5903
        %v5943 = vmul.f32 %v1166, %v5903
        %v5944 = vmul.f32 %v1167, %v5903
        %v5945 = vmul.f32 %v1168, %v5903
        %v5946 = vmul.f32 %v1169, %v5903
        %v5947 = vmul.f32 %v1170, %v5903
        %v5948 = vmul.f32 %v1171, %v5903
        %v5949 = vmul.f32 %v1172, %v5903
        %v5950 = vmul.f32 %v1173, %v5903
        %v5951 = vmul.f32 %v1174, %v5903
        %v5952 = vmul.f32 %v1179, %v5903
        %v5953 = vmul.f32 %v1180, %v5903
        %v5954 = vmul.f32 %v1181, %v5903
        %v5955 = vmul.f32 %v1182, %v5903
        %v5956 = vmul.f32 %v1183, %v5903
        %v5957 = vmul.f32 %v1184, %v5903
        %v5958 = vmul.f32 %v1185, %v5903
        %v5959 = vmul.f32 %v1186, %v5903
        %v5960 = vmul.f32 %v1187, %v5903
        %v5961 = vmul.f32 %v1188, %v5903
        %v5962 = vmul.f32 %v1189, %v5903
        %v5963 = vmul.f32 %v1190, %v5903
        %v5964 = vmul.f32 %v1191, %v5903
        %v5965 = vmul.f32 %v1192, %v5903
        %v5966 = vmul.f32 %v1193, %v5903
        %v5967 = vmul.f32 %v1194, %v5903
        %v5968 = vmul.f32 %v1199, %v5903
        %v5969 = vmul.f32 %v1200, %v5903
        %v5970 = vmul.f32 %v1201, %v5903
        %v5971 = vmul.f32 %v1202, %v5903
        %v5972 = vmul.f32 %v1203, %v5903
        %v5973 = vmul.f32 %v1204, %v5903
        %v5974 = vmul.f32 %v1205, %v5903
        %v5975 = vmul.f32 %v1206, %v5903
        %v5976 = vmul.f32 %v1207, %v5903
        %v5977 = vmul.f32 %v1208, %v5903
        %v5978 = vmul.f32 %v1209, %v5903
        %v5979 = vmul.f32 %v1210, %v5903
        %v5980 = vmul.f32 %v1211, %v5903
        %v5981 = vmul.f32 %v1212, %v5903
        %v5982 = vmul.f32 %v1213, %v5903
        %v5983 = vmul.f32 %v1214, %v5903
        %v5984 = vmul.f32 %v1219, %v5903
        %v5985 = vmul.f32 %v1220, %v5903
        %v5986 = vmul.f32 %v1221, %v5903
        %v5987 = vmul.f32 %v1222, %v5903
        %v5988 = vmul.f32 %v1223, %v5903
        %v5989 = vmul.f32 %v1224, %v5903
        %v5990 = vmul.f32 %v1225, %v5903
        %v5991 = vmul.f32 %v1226, %v5903
        %v5992 = vmul.f32 %v1227, %v5903
        %v5993 = vmul.f32 %v1228, %v5903
        %v5994 = vmul.f32 %v1229, %v5903
        %v5995 = vmul.f32 %v1230, %v5903
        %v5996 = vmul.f32 %v1231, %v5903
        %v5997 = vmul.f32 %v1232, %v5903
        %v5998 = vmul.f32 %v1233, %v5903
        %v5999 = vmul.f32 %v1234, %v5903
        %v6000 = vmul.f32 %v1239, %v5903
        %v6001 = vmul.f32 %v1240, %v5903
        %v6002 = vmul.f32 %v1241, %v5903
        %v6003 = vmul.f32 %v1242, %v5903
        %v6004 = vmul.f32 %v1243, %v5903
        %v6005 = vmul.f32 %v1244, %v5903
        %v6006 = vmul.f32 %v1245, %v5903
        %v6007 = vmul.f32 %v1246, %v5903
        %v6008 = vmul.f32 %v1247, %v5903
        %v6009 = vmul.f32 %v1248, %v5903
        %v6010 = vmul.f32 %v1249, %v5903
        %v6011 = vmul.f32 %v1250, %v5903
        %v6012 = vmul.f32 %v1251, %v5903
        %v6013 = vmul.f32 %v1252, %v5903
        %v6014 = vmul.f32 %v1253, %v5903
        %v6015 = vmul.f32 %v1254, %v5903
        %v6016 = vmul.f32 %v1259, %v5903
        %v6017 = vmul.f32 %v1260, %v5903
        %v6018 = vmul.f32 %v1261, %v5903
        %v6019 = vmul.f32 %v1262, %v5903
        %v6020 = vmul.f32 %v1263, %v5903
        %v6021 = vmul.f32 %v1264, %v5903
        %v6022 = vmul.f32 %v1265, %v5903
        %v6023 = vmul.f32 %v1266, %v5903
        %v6024 = vmul.f32 %v1267, %v5903
        %v6025 = vmul.f32 %v1268, %v5903
        %v6026 = vmul.f32 %v1269, %v5903
        %v6027 = vmul.f32 %v1270, %v5903
        %v6028 = vmul.f32 %v1271, %v5903
        %v6029 = vmul.f32 %v1272, %v5903
        %v6030 = vmul.f32 %v1273, %v5903
        %v6031 = vmul.f32 %v1274, %v5903
        %v6160 = vrot.slane %v5904, 2
        %v6161 = vrot.slane %v5905, 2
        %v6162 = vsel %vm2283, %v6160, %v6161
        %v6163 = vrot.slane %v5906, 2
        %v6164 = vrot.slane %v5907, 2
        %v6165 = vsel %vm2283, %v6163, %v6164
        %v6166 = vrot.slane %v5908, 2
        %v6167 = vrot.slane %v5909, 2
        %v6168 = vsel %vm2283, %v6166, %v6167
        %v6169 = vrot.slane %v5910, 2
        %v6170 = vrot.slane %v5911, 2
        %v6171 = vsel %vm2283, %v6169, %v6170
        %v6172 = vrot.slane %v5912, 2
        %v6173 = vrot.slane %v5913, 2
        %v6174 = vsel %vm2283, %v6172, %v6173
        %v6175 = vrot.slane %v5914, 2
        %v6176 = vrot.slane %v5915, 2
        %v6177 = vsel %vm2283, %v6175, %v6176
        %v6178 = vrot.slane %v5916, 2
        %v6179 = vrot.slane %v5917, 2
        %v6180 = vsel %vm2283, %v6178, %v6179
        %v6181 = vrot.slane %v5918, 2
        %v6182 = vrot.slane %v5919, 2
        %v6183 = vsel %vm2283, %v6181, %v6182
        %v6184 = vrot.slane %v5920, 2
        %v6185 = vrot.slane %v5921, 2
        %v6186 = vsel %vm2283, %v6184, %v6185
        %v6187 = vrot.slane %v5922, 2
        %v6188 = vrot.slane %v5923, 2
        %v6189 = vsel %vm2283, %v6187, %v6188
        %v6190 = vrot.slane %v5924, 2
        %v6191 = vrot.slane %v5925, 2
        %v6192 = vsel %vm2283, %v6190, %v6191
        %v6193 = vrot.slane %v5926, 2
        %v6194 = vrot.slane %v5927, 2
        %v6195 = vsel %vm2283, %v6193, %v6194
        %v6196 = vrot.slane %v5928, 2
        %v6197 = vrot.slane %v5929, 2
        %v6198 = vsel %vm2283, %v6196, %v6197
        %v6199 = vrot.slane %v5930, 2
        %v6200 = vrot.slane %v5931, 2
        %v6201 = vsel %vm2283, %v6199, %v6200
        %v6202 = vrot.slane %v5932, 2
        %v6203 = vrot.slane %v5933, 2
        %v6204 = vsel %vm2283, %v6202, %v6203
        %v6205 = vrot.slane %v5934, 2
        %v6206 = vrot.slane %v5935, 2
        %v6207 = vsel %vm2283, %v6205, %v6206
        %v6208 = vrot.slane %v5936, 2
        %v6209 = vrot.slane %v5937, 2
        %v6210 = vsel %vm2283, %v6208, %v6209
        %v6211 = vrot.slane %v5938, 2
        %v6212 = vrot.slane %v5939, 2
        %v6213 = vsel %vm2283, %v6211, %v6212
        %v6214 = vrot.slane %v5940, 2
        %v6215 = vrot.slane %v5941, 2
        %v6216 = vsel %vm2283, %v6214, %v6215
        %v6217 = vrot.slane %v5942, 2
        %v6218 = vrot.slane %v5943, 2
        %v6219 = vsel %vm2283, %v6217, %v6218
        %v6220 = vrot.slane %v5944, 2
        %v6221 = vrot.slane %v5945, 2
        %v6222 = vsel %vm2283, %v6220, %v6221
        %v6223 = vrot.slane %v5946, 2
        %v6224 = vrot.slane %v5947, 2
        %v6225 = vsel %vm2283, %v6223, %v6224
        %v6226 = vrot.slane %v5948, 2
        %v6227 = vrot.slane %v5949, 2
        %v6228 = vsel %vm2283, %v6226, %v6227
        %v6229 = vrot.slane %v5950, 2
        %v6230 = vrot.slane %v5951, 2
        %v6231 = vsel %vm2283, %v6229, %v6230
        %v6232 = vrot.slane %v5952, 2
        %v6233 = vrot.slane %v5953, 2
        %v6234 = vsel %vm2283, %v6232, %v6233
        %v6235 = vrot.slane %v5954, 2
        %v6236 = vrot.slane %v5955, 2
        %v6237 = vsel %vm2283, %v6235, %v6236
        %v6238 = vrot.slane %v5956, 2
        %v6239 = vrot.slane %v5957, 2
        %v6240 = vsel %vm2283, %v6238, %v6239
        %v6241 = vrot.slane %v5958, 2
        %v6242 = vrot.slane %v5959, 2
        %v6243 = vsel %vm2283, %v6241, %v6242
        %v6244 = vrot.slane %v5960, 2
        %v6245 = vrot.slane %v5961, 2
        %v6246 = vsel %vm2283, %v6244, %v6245
        %v6247 = vrot.slane %v5962, 2
        %v6248 = vrot.slane %v5963, 2
        %v6249 = vsel %vm2283, %v6247, %v6248
        %v6250 = vrot.slane %v5964, 2
        %v6251 = vrot.slane %v5965, 2
        %v6252 = vsel %vm2283, %v6250, %v6251
        %v6253 = vrot.slane %v5966, 2
        %v6254 = vrot.slane %v5967, 2
        %v6255 = vsel %vm2283, %v6253, %v6254
        %v6256 = vrot.slane %v5968, 2
        %v6257 = vrot.slane %v5969, 2
        %v6258 = vsel %vm2283, %v6256, %v6257
        %v6259 = vrot.slane %v5970, 2
        %v6260 = vrot.slane %v5971, 2
        %v6261 = vsel %vm2283, %v6259, %v6260
        %v6262 = vrot.slane %v5972, 2
        %v6263 = vrot.slane %v5973, 2
        %v6264 = vsel %vm2283, %v6262, %v6263
        %v6265 = vrot.slane %v5974, 2
        %v6266 = vrot.slane %v5975, 2
        %v6267 = vsel %vm2283, %v6265, %v6266
        %v6268 = vrot.slane %v5976, 2
        %v6269 = vrot.slane %v5977, 2
        %v6270 = vsel %vm2283, %v6268, %v6269
        %v6271 = vrot.slane %v5978, 2
        %v6272 = vrot.slane %v5979, 2
        %v6273 = vsel %vm2283, %v6271, %v6272
        %v6274 = vrot.slane %v5980, 2
        %v6275 = vrot.slane %v5981, 2
        %v6276 = vsel %vm2283, %v6274, %v6275
        %v6277 = vrot.slane %v5982, 2
        %v6278 = vrot.slane %v5983, 2
        %v6279 = vsel %vm2283, %v6277, %v6278
        %v6280 = vrot.slane %v5984, 2
        %v6281 = vrot.slane %v5985, 2
        %v6282 = vsel %vm2283, %v6280, %v6281
        %v6283 = vrot.slane %v5986, 2
        %v6284 = vrot.slane %v5987, 2
        %v6285 = vsel %vm2283, %v6283, %v6284
        %v6286 = vrot.slane %v5988, 2
        %v6287 = vrot.slane %v5989, 2
        %v6288 = vsel %vm2283, %v6286, %v6287
        %v6289 = vrot.slane %v5990, 2
        %v6290 = vrot.slane %v5991, 2
        %v6291 = vsel %vm2283, %v6289, %v6290
        %v6292 = vrot.slane %v5992, 2
        %v6293 = vrot.slane %v5993, 2
        %v6294 = vsel %vm2283, %v6292, %v6293
        %v6295 = vrot.slane %v5994, 2
        %v6296 = vrot.slane %v5995, 2
        %v6297 = vsel %vm2283, %v6295, %v6296
        %v6298 = vrot.slane %v5996, 2
        %v6299 = vrot.slane %v5997, 2
        %v6300 = vsel %vm2283, %v6298, %v6299
        %v6301 = vrot.slane %v5998, 2
        %v6302 = vrot.slane %v5999, 2
        %v6303 = vsel %vm2283, %v6301, %v6302
        %v6304 = vrot.slane %v6000, 2
        %v6305 = vrot.slane %v6001, 2
        %v6306 = vsel %vm2283, %v6304, %v6305
        %v6307 = vrot.slane %v6002, 2
        %v6308 = vrot.slane %v6003, 2
        %v6309 = vsel %vm2283, %v6307, %v6308
        %v6310 = vrot.slane %v6004, 2
        %v6311 = vrot.slane %v6005, 2
        %v6312 = vsel %vm2283, %v6310, %v6311
        %v6313 = vrot.slane %v6006, 2
        %v6314 = vrot.slane %v6007, 2
        %v6315 = vsel %vm2283, %v6313, %v6314
        %v6316 = vrot.slane %v6008, 2
        %v6317 = vrot.slane %v6009, 2
        %v6318 = vsel %vm2283, %v6316, %v6317
        %v6319 = vrot.slane %v6010, 2
        %v6320 = vrot.slane %v6011, 2
        %v6321 = vsel %vm2283, %v6319, %v6320
        %v6322 = vrot.slane %v6012, 2
        %v6323 = vrot.slane %v6013, 2
        %v6324 = vsel %vm2283, %v6322, %v6323
        %v6325 = vrot.slane %v6014, 2
        %v6326 = vrot.slane %v6015, 2
        %v6327 = vsel %vm2283, %v6325, %v6326
        %v6328 = vrot.slane %v6016, 2
        %v6329 = vrot.slane %v6017, 2
        %v6330 = vsel %vm2283, %v6328, %v6329
        %v6331 = vrot.slane %v6018, 2
        %v6332 = vrot.slane %v6019, 2
        %v6333 = vsel %vm2283, %v6331, %v6332
        %v6334 = vrot.slane %v6020, 2
        %v6335 = vrot.slane %v6021, 2
        %v6336 = vsel %vm2283, %v6334, %v6335
        %v6337 = vrot.slane %v6022, 2
        %v6338 = vrot.slane %v6023, 2
        %v6339 = vsel %vm2283, %v6337, %v6338
        %v6340 = vrot.slane %v6024, 2
        %v6341 = vrot.slane %v6025, 2
        %v6342 = vsel %vm2283, %v6340, %v6341
        %v6343 = vrot.slane %v6026, 2
        %v6344 = vrot.slane %v6027, 2
        %v6345 = vsel %vm2283, %v6343, %v6344
        %v6346 = vrot.slane %v6028, 2
        %v6347 = vrot.slane %v6029, 2
        %v6348 = vsel %vm2283, %v6346, %v6347
        %v6349 = vrot.slane %v6030, 2
        %v6350 = vrot.slane %v6031, 2
        %v6351 = vsel %vm2283, %v6349, %v6350
        %v6416 = vadd.f32 %v5836, %v6162
        %v6417 = vadd.f32 %v5837, %v6165
        %v6418 = vadd.f32 %v5838, %v6168
        %v6419 = vadd.f32 %v5839, %v6171
        %v6420 = vadd.f32 %v5840, %v6174
        %v6421 = vadd.f32 %v5841, %v6177
        %v6422 = vadd.f32 %v5842, %v6180
        %v6423 = vadd.f32 %v5843, %v6183
        %v6424 = vadd.f32 %v5844, %v6186
        %v6425 = vadd.f32 %v5845, %v6189
        %v6426 = vadd.f32 %v5846, %v6192
        %v6427 = vadd.f32 %v5847, %v6195
        %v6428 = vadd.f32 %v5848, %v6198
        %v6429 = vadd.f32 %v5849, %v6201
        %v6430 = vadd.f32 %v5850, %v6204
        %v6431 = vadd.f32 %v5851, %v6207
        %v6432 = vadd.f32 %v5852, %v6210
        %v6433 = vadd.f32 %v5853, %v6213
        %v6434 = vadd.f32 %v5854, %v6216
        %v6435 = vadd.f32 %v5855, %v6219
        %v6436 = vadd.f32 %v5856, %v6222
        %v6437 = vadd.f32 %v5857, %v6225
        %v6438 = vadd.f32 %v5858, %v6228
        %v6439 = vadd.f32 %v5859, %v6231
        %v6440 = vadd.f32 %v5860, %v6234
        %v6441 = vadd.f32 %v5861, %v6237
        %v6442 = vadd.f32 %v5862, %v6240
        %v6443 = vadd.f32 %v5863, %v6243
        %v6444 = vadd.f32 %v5864, %v6246
        %v6445 = vadd.f32 %v5865, %v6249
        %v6446 = vadd.f32 %v5866, %v6252
        %v6447 = vadd.f32 %v5867, %v6255
        %v6448 = vadd.f32 %v5868, %v6258
        %v6449 = vadd.f32 %v5869, %v6261
        %v6450 = vadd.f32 %v5870, %v6264
        %v6451 = vadd.f32 %v5871, %v6267
        %v6452 = vadd.f32 %v5872, %v6270
        %v6453 = vadd.f32 %v5873, %v6273
        %v6454 = vadd.f32 %v5874, %v6276
        %v6455 = vadd.f32 %v5875, %v6279
        %v6456 = vadd.f32 %v5876, %v6282
        %v6457 = vadd.f32 %v5877, %v6285
        %v6458 = vadd.f32 %v5878, %v6288
        %v6459 = vadd.f32 %v5879, %v6291
        %v6460 = vadd.f32 %v5880, %v6294
        %v6461 = vadd.f32 %v5881, %v6297
        %v6462 = vadd.f32 %v5882, %v6300
        %v6463 = vadd.f32 %v5883, %v6303
        %v6464 = vadd.f32 %v5884, %v6306
        %v6465 = vadd.f32 %v5885, %v6309
        %v6466 = vadd.f32 %v5886, %v6312
        %v6467 = vadd.f32 %v5887, %v6315
        %v6468 = vadd.f32 %v5888, %v6318
        %v6469 = vadd.f32 %v5889, %v6321
        %v6470 = vadd.f32 %v5890, %v6324
        %v6471 = vadd.f32 %v5891, %v6327
        %v6472 = vadd.f32 %v5892, %v6330
        %v6473 = vadd.f32 %v5893, %v6333
        %v6474 = vadd.f32 %v5894, %v6336
        %v6475 = vadd.f32 %v5895, %v6339
        %v6476 = vadd.f32 %v5896, %v6342
        %v6477 = vadd.f32 %v5897, %v6345
        %v6478 = vadd.f32 %v5898, %v6348
        %v6479 = vadd.f32 %v5899, %v6351
        %v6480 = vlaneseq
        %v6481 = vshrl.u32 %v6480, 7
        %v6482 = vsub.s32 4, %v6481
        %v6483 = vrot.slane %v1300, %v6482
        %v6484 = vmul.f32 %v1121, %v6483
        %v6485 = vmul.f32 %v1123, %v6483
        %v6486 = vmul.f32 %v1125, %v6483
        %v6487 = vmul.f32 %v1127, %v6483
        %v6488 = vmul.f32 %v1129, %v6483
        %v6489 = vmul.f32 %v1131, %v6483
        %v6490 = vmul.f32 %v1133, %v6483
        %v6491 = vmul.f32 %v1135, %v6483
        %v6492 = vmul.f32 %v1141, %v6483
        %v6493 = vmul.f32 %v1143, %v6483
        %v6494 = vmul.f32 %v1145, %v6483
        %v6495 = vmul.f32 %v1147, %v6483
        %v6496 = vmul.f32 %v1149, %v6483
        %v6497 = vmul.f32 %v1151, %v6483
        %v6498 = vmul.f32 %v1153, %v6483
        %v6499 = vmul.f32 %v1155, %v6483
        %v6500 = vmul.f32 %v1161, %v6483
        %v6501 = vmul.f32 %v1163, %v6483
        %v6502 = vmul.f32 %v1165, %v6483
        %v6503 = vmul.f32 %v1167, %v6483
        %v6504 = vmul.f32 %v1169, %v6483
        %v6505 = vmul.f32 %v1171, %v6483
        %v6506 = vmul.f32 %v1173, %v6483
        %v6507 = vmul.f32 %v1175, %v6483
        %v6508 = vmul.f32 %v1181, %v6483
        %v6509 = vmul.f32 %v1183, %v6483
        %v6510 = vmul.f32 %v1185, %v6483
        %v6511 = vmul.f32 %v1187, %v6483
        %v6512 = vmul.f32 %v1189, %v6483
        %v6513 = vmul.f32 %v1191, %v6483
        %v6514 = vmul.f32 %v1193, %v6483
        %v6515 = vmul.f32 %v1195, %v6483
        %v6516 = vmul.f32 %v1201, %v6483
        %v6517 = vmul.f32 %v1203, %v6483
        %v6518 = vmul.f32 %v1205, %v6483
        %v6519 = vmul.f32 %v1207, %v6483
        %v6520 = vmul.f32 %v1209, %v6483
        %v6521 = vmul.f32 %v1211, %v6483
        %v6522 = vmul.f32 %v1213, %v6483
        %v6523 = vmul.f32 %v1215, %v6483
        %v6524 = vmul.f32 %v1221, %v6483
        %v6525 = vmul.f32 %v1223, %v6483
        %v6526 = vmul.f32 %v1225, %v6483
        %v6527 = vmul.f32 %v1227, %v6483
        %v6528 = vmul.f32 %v1229, %v6483
        %v6529 = vmul.f32 %v1231, %v6483
        %v6530 = vmul.f32 %v1233, %v6483
        %v6531 = vmul.f32 %v1235, %v6483
        %v6532 = vmul.f32 %v1241, %v6483
        %v6533 = vmul.f32 %v1243, %v6483
        %v6534 = vmul.f32 %v1245, %v6483
        %v6535 = vmul.f32 %v1247, %v6483
        %v6536 = vmul.f32 %v1249, %v6483
        %v6537 = vmul.f32 %v1251, %v6483
        %v6538 = vmul.f32 %v1253, %v6483
        %v6539 = vmul.f32 %v1255, %v6483
        %v6540 = vmul.f32 %v1261, %v6483
        %v6541 = vmul.f32 %v1263, %v6483
        %v6542 = vmul.f32 %v1265, %v6483
        %v6543 = vmul.f32 %v1267, %v6483
        %v6544 = vmul.f32 %v1269, %v6483
        %v6545 = vmul.f32 %v1271, %v6483
        %v6546 = vmul.f32 %v1273, %v6483
        %v6547 = vmul.f32 %v1275, %v6483
        %v6548 = vadd.f32 %v6416, %v6484
        %v6549 = vadd.f32 %v6417, %v6485
        %v6550 = vadd.f32 %v6418, %v6486
        %v6551 = vadd.f32 %v6419, %v6487
        %v6552 = vadd.f32 %v6420, %v6488
        %v6553 = vadd.f32 %v6421, %v6489
        %v6554 = vadd.f32 %v6422, %v6490
        %v6555 = vadd.f32 %v6423, %v6491
        %v6556 = vadd.f32 %v6424, %v6492
        %v6557 = vadd.f32 %v6425, %v6493
        %v6558 = vadd.f32 %v6426, %v6494
        %v6559 = vadd.f32 %v6427, %v6495
        %v6560 = vadd.f32 %v6428, %v6496
        %v6561 = vadd.f32 %v6429, %v6497
        %v6562 = vadd.f32 %v6430, %v6498
        %v6563 = vadd.f32 %v6431, %v6499
        %v6564 = vadd.f32 %v6432, %v6500
        %v6565 = vadd.f32 %v6433, %v6501
        %v6566 = vadd.f32 %v6434, %v6502
        %v6567 = vadd.f32 %v6435, %v6503
        %v6568 = vadd.f32 %v6436, %v6504
        %v6569 = vadd.f32 %v6437, %v6505
        %v6570 = vadd.f32 %v6438, %v6506
        %v6571 = vadd.f32 %v6439, %v6507
        %v6572 = vadd.f32 %v6440, %v6508
        %v6573 = vadd.f32 %v6441, %v6509
        %v6574 = vadd.f32 %v6442, %v6510
        %v6575 = vadd.f32 %v6443, %v6511
        %v6576 = vadd.f32 %v6444, %v6512
        %v6577 = vadd.f32 %v6445, %v6513
        %v6578 = vadd.f32 %v6446, %v6514
        %v6579 = vadd.f32 %v6447, %v6515
        %v6580 = vadd.f32 %v6448, %v6516
        %v6581 = vadd.f32 %v6449, %v6517
        %v6582 = vadd.f32 %v6450, %v6518
        %v6583 = vadd.f32 %v6451, %v6519
        %v6584 = vadd.f32 %v6452, %v6520
        %v6585 = vadd.f32 %v6453, %v6521
        %v6586 = vadd.f32 %v6454, %v6522
        %v6587 = vadd.f32 %v6455, %v6523
        %v6588 = vadd.f32 %v6456, %v6524
        %v6589 = vadd.f32 %v6457, %v6525
        %v6590 = vadd.f32 %v6458, %v6526
        %v6591 = vadd.f32 %v6459, %v6527
        %v6592 = vadd.f32 %v6460, %v6528
        %v6593 = vadd.f32 %v6461, %v6529
        %v6594 = vadd.f32 %v6462, %v6530
        %v6595 = vadd.f32 %v6463, %v6531
        %v6596 = vadd.f32 %v6464, %v6532
        %v6597 = vadd.f32 %v6465, %v6533
        %v6598 = vadd.f32 %v6466, %v6534
        %v6599 = vadd.f32 %v6467, %v6535
        %v6600 = vadd.f32 %v6468, %v6536
        %v6601 = vadd.f32 %v6469, %v6537
        %v6602 = vadd.f32 %v6470, %v6538
        %v6603 = vadd.f32 %v6471, %v6539
        %v6604 = vadd.f32 %v6472, %v6540
        %v6605 = vadd.f32 %v6473, %v6541
        %v6606 = vadd.f32 %v6474, %v6542
        %v6607 = vadd.f32 %v6475, %v6543
        %v6608 = vadd.f32 %v6476, %v6544
        %v6609 = vadd.f32 %v6477, %v6545
        %v6610 = vadd.f32 %v6478, %v6546
        %v6611 = vadd.f32 %v6479, %v6547
        %v6612 = vlaneseq
        %v6613 = vshrl.u32 %v6612, 7
        %v6614 = vsub.s32 5, %v6613
        %v6615 = vrot.slane %v1300, %v6614
        %v6616 = vmul.f32 %v1121, %v6615
        %v6617 = vmul.f32 %v1122, %v6615
        %v6618 = vmul.f32 %v1123, %v6615
        %v6619 = vmul.f32 %v1124, %v6615
        %v6620 = vmul.f32 %v1125, %v6615
        %v6621 = vmul.f32 %v1126, %v6615
        %v6622 = vmul.f32 %v1127, %v6615
        %v6623 = vmul.f32 %v1128, %v6615
        %v6624 = vmul.f32 %v1129, %v6615
        %v6625 = vmul.f32 %v1130, %v6615
        %v6626 = vmul.f32 %v1131, %v6615
        %v6627 = vmul.f32 %v1132, %v6615
        %v6628 = vmul.f32 %v1133, %v6615
        %v6629 = vmul.f32 %v1134, %v6615
        %v6630 = vmul.f32 %v1135, %v6615
        %v6631 = vmul.f32 %v1136, %v6615
        %v6632 = vmul.f32 %v1141, %v6615
        %v6633 = vmul.f32 %v1142, %v6615
        %v6634 = vmul.f32 %v1143, %v6615
        %v6635 = vmul.f32 %v1144, %v6615
        %v6636 = vmul.f32 %v1145, %v6615
        %v6637 = vmul.f32 %v1146, %v6615
        %v6638 = vmul.f32 %v1147, %v6615
        %v6639 = vmul.f32 %v1148, %v6615
        %v6640 = vmul.f32 %v1149, %v6615
        %v6641 = vmul.f32 %v1150, %v6615
        %v6642 = vmul.f32 %v1151, %v6615
        %v6643 = vmul.f32 %v1152, %v6615
        %v6644 = vmul.f32 %v1153, %v6615
        %v6645 = vmul.f32 %v1154, %v6615
        %v6646 = vmul.f32 %v1155, %v6615
        %v6647 = vmul.f32 %v1156, %v6615
        %v6648 = vmul.f32 %v1161, %v6615
        %v6649 = vmul.f32 %v1162, %v6615
        %v6650 = vmul.f32 %v1163, %v6615
        %v6651 = vmul.f32 %v1164, %v6615
        %v6652 = vmul.f32 %v1165, %v6615
        %v6653 = vmul.f32 %v1166, %v6615
        %v6654 = vmul.f32 %v1167, %v6615
        %v6655 = vmul.f32 %v1168, %v6615
        %v6656 = vmul.f32 %v1169, %v6615
        %v6657 = vmul.f32 %v1170, %v6615
        %v6658 = vmul.f32 %v1171, %v6615
        %v6659 = vmul.f32 %v1172, %v6615
        %v6660 = vmul.f32 %v1173, %v6615
        %v6661 = vmul.f32 %v1174, %v6615
        %v6662 = vmul.f32 %v1175, %v6615
        %v6663 = vmul.f32 %v1176, %v6615
        %v6664 = vmul.f32 %v1181, %v6615
        %v6665 = vmul.f32 %v1182, %v6615
        %v6666 = vmul.f32 %v1183, %v6615
        %v6667 = vmul.f32 %v1184, %v6615
        %v6668 = vmul.f32 %v1185, %v6615
        %v6669 = vmul.f32 %v1186, %v6615
        %v6670 = vmul.f32 %v1187, %v6615
        %v6671 = vmul.f32 %v1188, %v6615
        %v6672 = vmul.f32 %v1189, %v6615
        %v6673 = vmul.f32 %v1190, %v6615
        %v6674 = vmul.f32 %v1191, %v6615
        %v6675 = vmul.f32 %v1192, %v6615
        %v6676 = vmul.f32 %v1193, %v6615
        %v6677 = vmul.f32 %v1194, %v6615
        %v6678 = vmul.f32 %v1195, %v6615
        %v6679 = vmul.f32 %v1196, %v6615
        %v6680 = vmul.f32 %v1201, %v6615
        %v6681 = vmul.f32 %v1202, %v6615
        %v6682 = vmul.f32 %v1203, %v6615
        %v6683 = vmul.f32 %v1204, %v6615
        %v6684 = vmul.f32 %v1205, %v6615
        %v6685 = vmul.f32 %v1206, %v6615
        %v6686 = vmul.f32 %v1207, %v6615
        %v6687 = vmul.f32 %v1208, %v6615
        %v6688 = vmul.f32 %v1209, %v6615
        %v6689 = vmul.f32 %v1210, %v6615
        %v6690 = vmul.f32 %v1211, %v6615
        %v6691 = vmul.f32 %v1212, %v6615
        %v6692 = vmul.f32 %v1213, %v6615
        %v6693 = vmul.f32 %v1214, %v6615
        %v6694 = vmul.f32 %v1215, %v6615
        %v6695 = vmul.f32 %v1216, %v6615
        %v6696 = vmul.f32 %v1221, %v6615
        %v6697 = vmul.f32 %v1222, %v6615
        %v6698 = vmul.f32 %v1223, %v6615
        %v6699 = vmul.f32 %v1224, %v6615
        %v6700 = vmul.f32 %v1225, %v6615
        %v6701 = vmul.f32 %v1226, %v6615
        %v6702 = vmul.f32 %v1227, %v6615
        %v6703 = vmul.f32 %v1228, %v6615
        %v6704 = vmul.f32 %v1229, %v6615
        %v6705 = vmul.f32 %v1230, %v6615
        %v6706 = vmul.f32 %v1231, %v6615
        %v6707 = vmul.f32 %v1232, %v6615
        %v6708 = vmul.f32 %v1233, %v6615
        %v6709 = vmul.f32 %v1234, %v6615
        %v6710 = vmul.f32 %v1235, %v6615
        %v6711 = vmul.f32 %v1236, %v6615
        %v6712 = vmul.f32 %v1241, %v6615
        %v6713 = vmul.f32 %v1242, %v6615
        %v6714 = vmul.f32 %v1243, %v6615
        %v6715 = vmul.f32 %v1244, %v6615
        %v6716 = vmul.f32 %v1245, %v6615
        %v6717 = vmul.f32 %v1246, %v6615
        %v6718 = vmul.f32 %v1247, %v6615
        %v6719 = vmul.f32 %v1248, %v6615
        %v6720 = vmul.f32 %v1249, %v6615
        %v6721 = vmul.f32 %v1250, %v6615
        %v6722 = vmul.f32 %v1251, %v6615
        %v6723 = vmul.f32 %v1252, %v6615
        %v6724 = vmul.f32 %v1253, %v6615
        %v6725 = vmul.f32 %v1254, %v6615
        %v6726 = vmul.f32 %v1255, %v6615
        %v6727 = vmul.f32 %v1256, %v6615
        %v6728 = vmul.f32 %v1261, %v6615
        %v6729 = vmul.f32 %v1262, %v6615
        %v6730 = vmul.f32 %v1263, %v6615
        %v6731 = vmul.f32 %v1264, %v6615
        %v6732 = vmul.f32 %v1265, %v6615
        %v6733 = vmul.f32 %v1266, %v6615
        %v6734 = vmul.f32 %v1267, %v6615
        %v6735 = vmul.f32 %v1268, %v6615
        %v6736 = vmul.f32 %v1269, %v6615
        %v6737 = vmul.f32 %v1270, %v6615
        %v6738 = vmul.f32 %v1271, %v6615
        %v6739 = vmul.f32 %v1272, %v6615
        %v6740 = vmul.f32 %v1273, %v6615
        %v6741 = vmul.f32 %v1274, %v6615
        %v6742 = vmul.f32 %v1275, %v6615
        %v6743 = vmul.f32 %v1276, %v6615
        %v6872 = vrot.slane %v6616, 1
        %v6873 = vrot.slane %v6617, 1
        %v6874 = vsel %vm1702, %v6872, %v6873
        %v6875 = vrot.slane %v6618, 1
        %v6876 = vrot.slane %v6619, 1
        %v6877 = vsel %vm1702, %v6875, %v6876
        %v6878 = vrot.slane %v6620, 1
        %v6879 = vrot.slane %v6621, 1
        %v6880 = vsel %vm1702, %v6878, %v6879
        %v6881 = vrot.slane %v6622, 1
        %v6882 = vrot.slane %v6623, 1
        %v6883 = vsel %vm1702, %v6881, %v6882
        %v6884 = vrot.slane %v6624, 1
        %v6885 = vrot.slane %v6625, 1
        %v6886 = vsel %vm1702, %v6884, %v6885
        %v6887 = vrot.slane %v6626, 1
        %v6888 = vrot.slane %v6627, 1
        %v6889 = vsel %vm1702, %v6887, %v6888
        %v6890 = vrot.slane %v6628, 1
        %v6891 = vrot.slane %v6629, 1
        %v6892 = vsel %vm1702, %v6890, %v6891
        %v6893 = vrot.slane %v6630, 1
        %v6894 = vrot.slane %v6631, 1
        %v6895 = vsel %vm1702, %v6893, %v6894
        %v6896 = vrot.slane %v6632, 1
        %v6897 = vrot.slane %v6633, 1
        %v6898 = vsel %vm1702, %v6896, %v6897
        %v6899 = vrot.slane %v6634, 1
        %v6900 = vrot.slane %v6635, 1
        %v6901 = vsel %vm1702, %v6899, %v6900
        %v6902 = vrot.slane %v6636, 1
        %v6903 = vrot.slane %v6637, 1
        %v6904 = vsel %vm1702, %v6902, %v6903
        %v6905 = vrot.slane %v6638, 1
        %v6906 = vrot.slane %v6639, 1
        %v6907 = vsel %vm1702, %v6905, %v6906
        %v6908 = vrot.slane %v6640, 1
        %v6909 = vrot.slane %v6641, 1
        %v6910 = vsel %vm1702, %v6908, %v6909
        %v6911 = vrot.slane %v6642, 1
        %v6912 = vrot.slane %v6643, 1
        %v6913 = vsel %vm1702, %v6911, %v6912
        %v6914 = vrot.slane %v6644, 1
        %v6915 = vrot.slane %v6645, 1
        %v6916 = vsel %vm1702, %v6914, %v6915
        %v6917 = vrot.slane %v6646, 1
        %v6918 = vrot.slane %v6647, 1
        %v6919 = vsel %vm1702, %v6917, %v6918
        %v6920 = vrot.slane %v6648, 1
        %v6921 = vrot.slane %v6649, 1
        %v6922 = vsel %vm1702, %v6920, %v6921
        %v6923 = vrot.slane %v6650, 1
        %v6924 = vrot.slane %v6651, 1
        %v6925 = vsel %vm1702, %v6923, %v6924
        %v6926 = vrot.slane %v6652, 1
        %v6927 = vrot.slane %v6653, 1
        %v6928 = vsel %vm1702, %v6926, %v6927
        %v6929 = vrot.slane %v6654, 1
        %v6930 = vrot.slane %v6655, 1
        %v6931 = vsel %vm1702, %v6929, %v6930
        %v6932 = vrot.slane %v6656, 1
        %v6933 = vrot.slane %v6657, 1
        %v6934 = vsel %vm1702, %v6932, %v6933
        %v6935 = vrot.slane %v6658, 1
        %v6936 = vrot.slane %v6659, 1
        %v6937 = vsel %vm1702, %v6935, %v6936
        %v6938 = vrot.slane %v6660, 1
        %v6939 = vrot.slane %v6661, 1
        %v6940 = vsel %vm1702, %v6938, %v6939
        %v6941 = vrot.slane %v6662, 1
        %v6942 = vrot.slane %v6663, 1
        %v6943 = vsel %vm1702, %v6941, %v6942
        %v6944 = vrot.slane %v6664, 1
        %v6945 = vrot.slane %v6665, 1
        %v6946 = vsel %vm1702, %v6944, %v6945
        %v6947 = vrot.slane %v6666, 1
        %v6948 = vrot.slane %v6667, 1
        %v6949 = vsel %vm1702, %v6947, %v6948
        %v6950 = vrot.slane %v6668, 1
        %v6951 = vrot.slane %v6669, 1
        %v6952 = vsel %vm1702, %v6950, %v6951
        %v6953 = vrot.slane %v6670, 1
        %v6954 = vrot.slane %v6671, 1
        %v6955 = vsel %vm1702, %v6953, %v6954
        %v6956 = vrot.slane %v6672, 1
        %v6957 = vrot.slane %v6673, 1
        %v6958 = vsel %vm1702, %v6956, %v6957
        %v6959 = vrot.slane %v6674, 1
        %v6960 = vrot.slane %v6675, 1
        %v6961 = vsel %vm1702, %v6959, %v6960
        %v6962 = vrot.slane %v6676, 1
        %v6963 = vrot.slane %v6677, 1
        %v6964 = vsel %vm1702, %v6962, %v6963
        %v6965 = vrot.slane %v6678, 1
        %v6966 = vrot.slane %v6679, 1
        %v6967 = vsel %vm1702, %v6965, %v6966
        %v6968 = vrot.slane %v6680, 1
        %v6969 = vrot.slane %v6681, 1
        %v6970 = vsel %vm1702, %v6968, %v6969
        %v6971 = vrot.slane %v6682, 1
        %v6972 = vrot.slane %v6683, 1
        %v6973 = vsel %vm1702, %v6971, %v6972
        %v6974 = vrot.slane %v6684, 1
        %v6975 = vrot.slane %v6685, 1
        %v6976 = vsel %vm1702, %v6974, %v6975
        %v6977 = vrot.slane %v6686, 1
        %v6978 = vrot.slane %v6687, 1
        %v6979 = vsel %vm1702, %v6977, %v6978
        %v6980 = vrot.slane %v6688, 1
        %v6981 = vrot.slane %v6689, 1
        %v6982 = vsel %vm1702, %v6980, %v6981
        %v6983 = vrot.slane %v6690, 1
        %v6984 = vrot.slane %v6691, 1
        %v6985 = vsel %vm1702, %v6983, %v6984
        %v6986 = vrot.slane %v6692, 1
        %v6987 = vrot.slane %v6693, 1
        %v6988 = vsel %vm1702, %v6986, %v6987
        %v6989 = vrot.slane %v6694, 1
        %v6990 = vrot.slane %v6695, 1
        %v6991 = vsel %vm1702, %v6989, %v6990
        %v6992 = vrot.slane %v6696, 1
        %v6993 = vrot.slane %v6697, 1
        %v6994 = vsel %vm1702, %v6992, %v6993
        %v6995 = vrot.slane %v6698, 1
        %v6996 = vrot.slane %v6699, 1
        %v6997 = vsel %vm1702, %v6995, %v6996
        %v6998 = vrot.slane %v6700, 1
        %v6999 = vrot.slane %v6701, 1
        %v7000 = vsel %vm1702, %v6998, %v6999
        %v7001 = vrot.slane %v6702, 1
        %v7002 = vrot.slane %v6703, 1
        %v7003 = vsel %vm1702, %v7001, %v7002
        %v7004 = vrot.slane %v6704, 1
        %v7005 = vrot.slane %v6705, 1
        %v7006 = vsel %vm1702, %v7004, %v7005
        %v7007 = vrot.slane %v6706, 1
        %v7008 = vrot.slane %v6707, 1
        %v7009 = vsel %vm1702, %v7007, %v7008
        %v7010 = vrot.slane %v6708, 1
        %v7011 = vrot.slane %v6709, 1
        %v7012 = vsel %vm1702, %v7010, %v7011
        %v7013 = vrot.slane %v6710, 1
        %v7014 = vrot.slane %v6711, 1
        %v7015 = vsel %vm1702, %v7013, %v7014
        %v7016 = vrot.slane %v6712, 1
        %v7017 = vrot.slane %v6713, 1
        %v7018 = vsel %vm1702, %v7016, %v7017
        %v7019 = vrot.slane %v6714, 1
        %v7020 = vrot.slane %v6715, 1
        %v7021 = vsel %vm1702, %v7019, %v7020
        %v7022 = vrot.slane %v6716, 1
        %v7023 = vrot.slane %v6717, 1
        %v7024 = vsel %vm1702, %v7022, %v7023
        %v7025 = vrot.slane %v6718, 1
        %v7026 = vrot.slane %v6719, 1
        %v7027 = vsel %vm1702, %v7025, %v7026
        %v7028 = vrot.slane %v6720, 1
        %v7029 = vrot.slane %v6721, 1
        %v7030 = vsel %vm1702, %v7028, %v7029
        %v7031 = vrot.slane %v6722, 1
        %v7032 = vrot.slane %v6723, 1
        %v7033 = vsel %vm1702, %v7031, %v7032
        %v7034 = vrot.slane %v6724, 1
        %v7035 = vrot.slane %v6725, 1
        %v7036 = vsel %vm1702, %v7034, %v7035
        %v7037 = vrot.slane %v6726, 1
        %v7038 = vrot.slane %v6727, 1
        %v7039 = vsel %vm1702, %v7037, %v7038
        %v7040 = vrot.slane %v6728, 1
        %v7041 = vrot.slane %v6729, 1
        %v7042 = vsel %vm1702, %v7040, %v7041
        %v7043 = vrot.slane %v6730, 1
        %v7044 = vrot.slane %v6731, 1
        %v7045 = vsel %vm1702, %v7043, %v7044
        %v7046 = vrot.slane %v6732, 1
        %v7047 = vrot.slane %v6733, 1
        %v7048 = vsel %vm1702, %v7046, %v7047
        %v7049 = vrot.slane %v6734, 1
        %v7050 = vrot.slane %v6735, 1
        %v7051 = vsel %vm1702, %v7049, %v7050
        %v7052 = vrot.slane %v6736, 1
        %v7053 = vrot.slane %v6737, 1
        %v7054 = vsel %vm1702, %v7052, %v7053
        %v7055 = vrot.slane %v6738, 1
        %v7056 = vrot.slane %v6739, 1
        %v7057 = vsel %vm1702, %v7055, %v7056
        %v7058 = vrot.slane %v6740, 1
        %v7059 = vrot.slane %v6741, 1
        %v7060 = vsel %vm1702, %v7058, %v7059
        %v7061 = vrot.slane %v6742, 1
        %v7062 = vrot.slane %v6743, 1
        %v7063 = vsel %vm1702, %v7061, %v7062
        %v7128 = vadd.f32 %v6548, %v6874
        %v7129 = vadd.f32 %v6549, %v6877
        %v7130 = vadd.f32 %v6550, %v6880
        %v7131 = vadd.f32 %v6551, %v6883
        %v7132 = vadd.f32 %v6552, %v6886
        %v7133 = vadd.f32 %v6553, %v6889
        %v7134 = vadd.f32 %v6554, %v6892
        %v7135 = vadd.f32 %v6555, %v6895
        %v7136 = vadd.f32 %v6556, %v6898
        %v7137 = vadd.f32 %v6557, %v6901
        %v7138 = vadd.f32 %v6558, %v6904
        %v7139 = vadd.f32 %v6559, %v6907
        %v7140 = vadd.f32 %v6560, %v6910
        %v7141 = vadd.f32 %v6561, %v6913
        %v7142 = vadd.f32 %v6562, %v6916
        %v7143 = vadd.f32 %v6563, %v6919
        %v7144 = vadd.f32 %v6564, %v6922
        %v7145 = vadd.f32 %v6565, %v6925
        %v7146 = vadd.f32 %v6566, %v6928
        %v7147 = vadd.f32 %v6567, %v6931
        %v7148 = vadd.f32 %v6568, %v6934
        %v7149 = vadd.f32 %v6569, %v6937
        %v7150 = vadd.f32 %v6570, %v6940
        %v7151 = vadd.f32 %v6571, %v6943
        %v7152 = vadd.f32 %v6572, %v6946
        %v7153 = vadd.f32 %v6573, %v6949
        %v7154 = vadd.f32 %v6574, %v6952
        %v7155 = vadd.f32 %v6575, %v6955
        %v7156 = vadd.f32 %v6576, %v6958
        %v7157 = vadd.f32 %v6577, %v6961
        %v7158 = vadd.f32 %v6578, %v6964
        %v7159 = vadd.f32 %v6579, %v6967
        %v7160 = vadd.f32 %v6580, %v6970
        %v7161 = vadd.f32 %v6581, %v6973
        %v7162 = vadd.f32 %v6582, %v6976
        %v7163 = vadd.f32 %v6583, %v6979
        %v7164 = vadd.f32 %v6584, %v6982
        %v7165 = vadd.f32 %v6585, %v6985
        %v7166 = vadd.f32 %v6586, %v6988
        %v7167 = vadd.f32 %v6587, %v6991
        %v7168 = vadd.f32 %v6588, %v6994
        %v7169 = vadd.f32 %v6589, %v6997
        %v7170 = vadd.f32 %v6590, %v7000
        %v7171 = vadd.f32 %v6591, %v7003
        %v7172 = vadd.f32 %v6592, %v7006
        %v7173 = vadd.f32 %v6593, %v7009
        %v7174 = vadd.f32 %v6594, %v7012
        %v7175 = vadd.f32 %v6595, %v7015
        %v7176 = vadd.f32 %v6596, %v7018
        %v7177 = vadd.f32 %v6597, %v7021
        %v7178 = vadd.f32 %v6598, %v7024
        %v7179 = vadd.f32 %v6599, %v7027
        %v7180 = vadd.f32 %v6600, %v7030
        %v7181 = vadd.f32 %v6601, %v7033
        %v7182 = vadd.f32 %v6602, %v7036
        %v7183 = vadd.f32 %v6603, %v7039
        %v7184 = vadd.f32 %v6604, %v7042
        %v7185 = vadd.f32 %v6605, %v7045
        %v7186 = vadd.f32 %v6606, %v7048
        %v7187 = vadd.f32 %v6607, %v7051
        %v7188 = vadd.f32 %v6608, %v7054
        %v7189 = vadd.f32 %v6609, %v7057
        %v7190 = vadd.f32 %v6610, %v7060
        %v7191 = vadd.f32 %v6611, %v7063
        %v7192 = vlaneseq
        %v7193 = vshrl.u32 %v7192, 7
        %v7194 = vsub.s32 6, %v7193
        %v7195 = vrot.slane %v1300, %v7194
        %v7196 = vmul.f32 %v1121, %v7195
        %v7197 = vmul.f32 %v1122, %v7195
        %v7198 = vmul.f32 %v1123, %v7195
        %v7199 = vmul.f32 %v1124, %v7195
        %v7200 = vmul.f32 %v1125, %v7195
        %v7201 = vmul.f32 %v1126, %v7195
        %v7202 = vmul.f32 %v1127, %v7195
        %v7203 = vmul.f32 %v1128, %v7195
        %v7204 = vmul.f32 %v1129, %v7195
        %v7205 = vmul.f32 %v1130, %v7195
        %v7206 = vmul.f32 %v1131, %v7195
        %v7207 = vmul.f32 %v1132, %v7195
        %v7208 = vmul.f32 %v1133, %v7195
        %v7209 = vmul.f32 %v1134, %v7195
        %v7210 = vmul.f32 %v1135, %v7195
        %v7211 = vmul.f32 %v1136, %v7195
        %v7212 = vmul.f32 %v1141, %v7195
        %v7213 = vmul.f32 %v1142, %v7195
        %v7214 = vmul.f32 %v1143, %v7195
        %v7215 = vmul.f32 %v1144, %v7195
        %v7216 = vmul.f32 %v1145, %v7195
        %v7217 = vmul.f32 %v1146, %v7195
        %v7218 = vmul.f32 %v1147, %v7195
        %v7219 = vmul.f32 %v1148, %v7195
        %v7220 = vmul.f32 %v1149, %v7195
        %v7221 = vmul.f32 %v1150, %v7195
        %v7222 = vmul.f32 %v1151, %v7195
        %v7223 = vmul.f32 %v1152, %v7195
        %v7224 = vmul.f32 %v1153, %v7195
        %v7225 = vmul.f32 %v1154, %v7195
        %v7226 = vmul.f32 %v1155, %v7195
        %v7227 = vmul.f32 %v1156, %v7195
        %v7228 = vmul.f32 %v1161, %v7195
        %v7229 = vmul.f32 %v1162, %v7195
        %v7230 = vmul.f32 %v1163, %v7195
        %v7231 = vmul.f32 %v1164, %v7195
        %v7232 = vmul.f32 %v1165, %v7195
        %v7233 = vmul.f32 %v1166, %v7195
        %v7234 = vmul.f32 %v1167, %v7195
        %v7235 = vmul.f32 %v1168, %v7195
        %v7236 = vmul.f32 %v1169, %v7195
        %v7237 = vmul.f32 %v1170, %v7195
        %v7238 = vmul.f32 %v1171, %v7195
        %v7239 = vmul.f32 %v1172, %v7195
        %v7240 = vmul.f32 %v1173, %v7195
        %v7241 = vmul.f32 %v1174, %v7195
        %v7242 = vmul.f32 %v1175, %v7195
        %v7243 = vmul.f32 %v1176, %v7195
        %v7244 = vmul.f32 %v1181, %v7195
        %v7245 = vmul.f32 %v1182, %v7195
        %v7246 = vmul.f32 %v1183, %v7195
        %v7247 = vmul.f32 %v1184, %v7195
        %v7248 = vmul.f32 %v1185, %v7195
        %v7249 = vmul.f32 %v1186, %v7195
        %v7250 = vmul.f32 %v1187, %v7195
        %v7251 = vmul.f32 %v1188, %v7195
        %v7252 = vmul.f32 %v1189, %v7195
        %v7253 = vmul.f32 %v1190, %v7195
        %v7254 = vmul.f32 %v1191, %v7195
        %v7255 = vmul.f32 %v1192, %v7195
        %v7256 = vmul.f32 %v1193, %v7195
        %v7257 = vmul.f32 %v1194, %v7195
        %v7258 = vmul.f32 %v1195, %v7195
        %v7259 = vmul.f32 %v1196, %v7195
        %v7260 = vmul.f32 %v1201, %v7195
        %v7261 = vmul.f32 %v1202, %v7195
        %v7262 = vmul.f32 %v1203, %v7195
        %v7263 = vmul.f32 %v1204, %v7195
        %v7264 = vmul.f32 %v1205, %v7195
        %v7265 = vmul.f32 %v1206, %v7195
        %v7266 = vmul.f32 %v1207, %v7195
        %v7267 = vmul.f32 %v1208, %v7195
        %v7268 = vmul.f32 %v1209, %v7195
        %v7269 = vmul.f32 %v1210, %v7195
        %v7270 = vmul.f32 %v1211, %v7195
        %v7271 = vmul.f32 %v1212, %v7195
        %v7272 = vmul.f32 %v1213, %v7195
        %v7273 = vmul.f32 %v1214, %v7195
        %v7274 = vmul.f32 %v1215, %v7195
        %v7275 = vmul.f32 %v1216, %v7195
        %v7276 = vmul.f32 %v1221, %v7195
        %v7277 = vmul.f32 %v1222, %v7195
        %v7278 = vmul.f32 %v1223, %v7195
        %v7279 = vmul.f32 %v1224, %v7195
        %v7280 = vmul.f32 %v1225, %v7195
        %v7281 = vmul.f32 %v1226, %v7195
        %v7282 = vmul.f32 %v1227, %v7195
        %v7283 = vmul.f32 %v1228, %v7195
        %v7284 = vmul.f32 %v1229, %v7195
        %v7285 = vmul.f32 %v1230, %v7195
        %v7286 = vmul.f32 %v1231, %v7195
        %v7287 = vmul.f32 %v1232, %v7195
        %v7288 = vmul.f32 %v1233, %v7195
        %v7289 = vmul.f32 %v1234, %v7195
        %v7290 = vmul.f32 %v1235, %v7195
        %v7291 = vmul.f32 %v1236, %v7195
        %v7292 = vmul.f32 %v1241, %v7195
        %v7293 = vmul.f32 %v1242, %v7195
        %v7294 = vmul.f32 %v1243, %v7195
        %v7295 = vmul.f32 %v1244, %v7195
        %v7296 = vmul.f32 %v1245, %v7195
        %v7297 = vmul.f32 %v1246, %v7195
        %v7298 = vmul.f32 %v1247, %v7195
        %v7299 = vmul.f32 %v1248, %v7195
        %v7300 = vmul.f32 %v1249, %v7195
        %v7301 = vmul.f32 %v1250, %v7195
        %v7302 = vmul.f32 %v1251, %v7195
        %v7303 = vmul.f32 %v1252, %v7195
        %v7304 = vmul.f32 %v1253, %v7195
        %v7305 = vmul.f32 %v1254, %v7195
        %v7306 = vmul.f32 %v1255, %v7195
        %v7307 = vmul.f32 %v1256, %v7195
        %v7308 = vmul.f32 %v1261, %v7195
        %v7309 = vmul.f32 %v1262, %v7195
        %v7310 = vmul.f32 %v1263, %v7195
        %v7311 = vmul.f32 %v1264, %v7195
        %v7312 = vmul.f32 %v1265, %v7195
        %v7313 = vmul.f32 %v1266, %v7195
        %v7314 = vmul.f32 %v1267, %v7195
        %v7315 = vmul.f32 %v1268, %v7195
        %v7316 = vmul.f32 %v1269, %v7195
        %v7317 = vmul.f32 %v1270, %v7195
        %v7318 = vmul.f32 %v1271, %v7195
        %v7319 = vmul.f32 %v1272, %v7195
        %v7320 = vmul.f32 %v1273, %v7195
        %v7321 = vmul.f32 %v1274, %v7195
        %v7322 = vmul.f32 %v1275, %v7195
        %v7323 = vmul.f32 %v1276, %v7195
        %v7452 = vrot.slane %v7196, 2
        %v7453 = vrot.slane %v7197, 2
        %v7454 = vsel %vm2283, %v7452, %v7453
        %v7455 = vrot.slane %v7198, 2
        %v7456 = vrot.slane %v7199, 2
        %v7457 = vsel %vm2283, %v7455, %v7456
        %v7458 = vrot.slane %v7200, 2
        %v7459 = vrot.slane %v7201, 2
        %v7460 = vsel %vm2283, %v7458, %v7459
        %v7461 = vrot.slane %v7202, 2
        %v7462 = vrot.slane %v7203, 2
        %v7463 = vsel %vm2283, %v7461, %v7462
        %v7464 = vrot.slane %v7204, 2
        %v7465 = vrot.slane %v7205, 2
        %v7466 = vsel %vm2283, %v7464, %v7465
        %v7467 = vrot.slane %v7206, 2
        %v7468 = vrot.slane %v7207, 2
        %v7469 = vsel %vm2283, %v7467, %v7468
        %v7470 = vrot.slane %v7208, 2
        %v7471 = vrot.slane %v7209, 2
        %v7472 = vsel %vm2283, %v7470, %v7471
        %v7473 = vrot.slane %v7210, 2
        %v7474 = vrot.slane %v7211, 2
        %v7475 = vsel %vm2283, %v7473, %v7474
        %v7476 = vrot.slane %v7212, 2
        %v7477 = vrot.slane %v7213, 2
        %v7478 = vsel %vm2283, %v7476, %v7477
        %v7479 = vrot.slane %v7214, 2
        %v7480 = vrot.slane %v7215, 2
        %v7481 = vsel %vm2283, %v7479, %v7480
        %v7482 = vrot.slane %v7216, 2
        %v7483 = vrot.slane %v7217, 2
        %v7484 = vsel %vm2283, %v7482, %v7483
        %v7485 = vrot.slane %v7218, 2
        %v7486 = vrot.slane %v7219, 2
        %v7487 = vsel %vm2283, %v7485, %v7486
        %v7488 = vrot.slane %v7220, 2
        %v7489 = vrot.slane %v7221, 2
        %v7490 = vsel %vm2283, %v7488, %v7489
        %v7491 = vrot.slane %v7222, 2
        %v7492 = vrot.slane %v7223, 2
        %v7493 = vsel %vm2283, %v7491, %v7492
        %v7494 = vrot.slane %v7224, 2
        %v7495 = vrot.slane %v7225, 2
        %v7496 = vsel %vm2283, %v7494, %v7495
        %v7497 = vrot.slane %v7226, 2
        %v7498 = vrot.slane %v7227, 2
        %v7499 = vsel %vm2283, %v7497, %v7498
        %v7500 = vrot.slane %v7228, 2
        %v7501 = vrot.slane %v7229, 2
        %v7502 = vsel %vm2283, %v7500, %v7501
        %v7503 = vrot.slane %v7230, 2
        %v7504 = vrot.slane %v7231, 2
        %v7505 = vsel %vm2283, %v7503, %v7504
        %v7506 = vrot.slane %v7232, 2
        %v7507 = vrot.slane %v7233, 2
        %v7508 = vsel %vm2283, %v7506, %v7507
        %v7509 = vrot.slane %v7234, 2
        %v7510 = vrot.slane %v7235, 2
        %v7511 = vsel %vm2283, %v7509, %v7510
        %v7512 = vrot.slane %v7236, 2
        %v7513 = vrot.slane %v7237, 2
        %v7514 = vsel %vm2283, %v7512, %v7513
        %v7515 = vrot.slane %v7238, 2
        %v7516 = vrot.slane %v7239, 2
        %v7517 = vsel %vm2283, %v7515, %v7516
        %v7518 = vrot.slane %v7240, 2
        %v7519 = vrot.slane %v7241, 2
        %v7520 = vsel %vm2283, %v7518, %v7519
        %v7521 = vrot.slane %v7242, 2
        %v7522 = vrot.slane %v7243, 2
        %v7523 = vsel %vm2283, %v7521, %v7522
        %v7524 = vrot.slane %v7244, 2
        %v7525 = vrot.slane %v7245, 2
        %v7526 = vsel %vm2283, %v7524, %v7525
        %v7527 = vrot.slane %v7246, 2
        %v7528 = vrot.slane %v7247, 2
        %v7529 = vsel %vm2283, %v7527, %v7528
        %v7530 = vrot.slane %v7248, 2
        %v7531 = vrot.slane %v7249, 2
        %v7532 = vsel %vm2283, %v7530, %v7531
        %v7533 = vrot.slane %v7250, 2
        %v7534 = vrot.slane %v7251, 2
        %v7535 = vsel %vm2283, %v7533, %v7534
        %v7536 = vrot.slane %v7252, 2
        %v7537 = vrot.slane %v7253, 2
        %v7538 = vsel %vm2283, %v7536, %v7537
        %v7539 = vrot.slane %v7254, 2
        %v7540 = vrot.slane %v7255, 2
        %v7541 = vsel %vm2283, %v7539, %v7540
        %v7542 = vrot.slane %v7256, 2
        %v7543 = vrot.slane %v7257, 2
        %v7544 = vsel %vm2283, %v7542, %v7543
        %v7545 = vrot.slane %v7258, 2
        %v7546 = vrot.slane %v7259, 2
        %v7547 = vsel %vm2283, %v7545, %v7546
        %v7548 = vrot.slane %v7260, 2
        %v7549 = vrot.slane %v7261, 2
        %v7550 = vsel %vm2283, %v7548, %v7549
        %v7551 = vrot.slane %v7262, 2
        %v7552 = vrot.slane %v7263, 2
        %v7553 = vsel %vm2283, %v7551, %v7552
        %v7554 = vrot.slane %v7264, 2
        %v7555 = vrot.slane %v7265, 2
        %v7556 = vsel %vm2283, %v7554, %v7555
        %v7557 = vrot.slane %v7266, 2
        %v7558 = vrot.slane %v7267, 2
        %v7559 = vsel %vm2283, %v7557, %v7558
        %v7560 = vrot.slane %v7268, 2
        %v7561 = vrot.slane %v7269, 2
        %v7562 = vsel %vm2283, %v7560, %v7561
        %v7563 = vrot.slane %v7270, 2
        %v7564 = vrot.slane %v7271, 2
        %v7565 = vsel %vm2283, %v7563, %v7564
        %v7566 = vrot.slane %v7272, 2
        %v7567 = vrot.slane %v7273, 2
        %v7568 = vsel %vm2283, %v7566, %v7567
        %v7569 = vrot.slane %v7274, 2
        %v7570 = vrot.slane %v7275, 2
        %v7571 = vsel %vm2283, %v7569, %v7570
        %v7572 = vrot.slane %v7276, 2
        %v7573 = vrot.slane %v7277, 2
        %v7574 = vsel %vm2283, %v7572, %v7573
        %v7575 = vrot.slane %v7278, 2
        %v7576 = vrot.slane %v7279, 2
        %v7577 = vsel %vm2283, %v7575, %v7576
        %v7578 = vrot.slane %v7280, 2
        %v7579 = vrot.slane %v7281, 2
        %v7580 = vsel %vm2283, %v7578, %v7579
        %v7581 = vrot.slane %v7282, 2
        %v7582 = vrot.slane %v7283, 2
        %v7583 = vsel %vm2283, %v7581, %v7582
        %v7584 = vrot.slane %v7284, 2
        %v7585 = vrot.slane %v7285, 2
        %v7586 = vsel %vm2283, %v7584, %v7585
        %v7587 = vrot.slane %v7286, 2
        %v7588 = vrot.slane %v7287, 2
        %v7589 = vsel %vm2283, %v7587, %v7588
        %v7590 = vrot.slane %v7288, 2
        %v7591 = vrot.slane %v7289, 2
        %v7592 = vsel %vm2283, %v7590, %v7591
        %v7593 = vrot.slane %v7290, 2
        %v7594 = vrot.slane %v7291, 2
        %v7595 = vsel %vm2283, %v7593, %v7594
        %v7596 = vrot.slane %v7292, 2
        %v7597 = vrot.slane %v7293, 2
        %v7598 = vsel %vm2283, %v7596, %v7597
        %v7599 = vrot.slane %v7294, 2
        %v7600 = vrot.slane %v7295, 2
        %v7601 = vsel %vm2283, %v7599, %v7600
        %v7602 = vrot.slane %v7296, 2
        %v7603 = vrot.slane %v7297, 2
        %v7604 = vsel %vm2283, %v7602, %v7603
        %v7605 = vrot.slane %v7298, 2
        %v7606 = vrot.slane %v7299, 2
        %v7607 = vsel %vm2283, %v7605, %v7606
        %v7608 = vrot.slane %v7300, 2
        %v7609 = vrot.slane %v7301, 2
        %v7610 = vsel %vm2283, %v7608, %v7609
        %v7611 = vrot.slane %v7302, 2
        %v7612 = vrot.slane %v7303, 2
        %v7613 = vsel %vm2283, %v7611, %v7612
        %v7614 = vrot.slane %v7304, 2
        %v7615 = vrot.slane %v7305, 2
        %v7616 = vsel %vm2283, %v7614, %v7615
        %v7617 = vrot.slane %v7306, 2
        %v7618 = vrot.slane %v7307, 2
        %v7619 = vsel %vm2283, %v7617, %v7618
        %v7620 = vrot.slane %v7308, 2
        %v7621 = vrot.slane %v7309, 2
        %v7622 = vsel %vm2283, %v7620, %v7621
        %v7623 = vrot.slane %v7310, 2
        %v7624 = vrot.slane %v7311, 2
        %v7625 = vsel %vm2283, %v7623, %v7624
        %v7626 = vrot.slane %v7312, 2
        %v7627 = vrot.slane %v7313, 2
        %v7628 = vsel %vm2283, %v7626, %v7627
        %v7629 = vrot.slane %v7314, 2
        %v7630 = vrot.slane %v7315, 2
        %v7631 = vsel %vm2283, %v7629, %v7630
        %v7632 = vrot.slane %v7316, 2
        %v7633 = vrot.slane %v7317, 2
        %v7634 = vsel %vm2283, %v7632, %v7633
        %v7635 = vrot.slane %v7318, 2
        %v7636 = vrot.slane %v7319, 2
        %v7637 = vsel %vm2283, %v7635, %v7636
        %v7638 = vrot.slane %v7320, 2
        %v7639 = vrot.slane %v7321, 2
        %v7640 = vsel %vm2283, %v7638, %v7639
        %v7641 = vrot.slane %v7322, 2
        %v7642 = vrot.slane %v7323, 2
        %v7643 = vsel %vm2283, %v7641, %v7642
        %v7708 = vadd.f32 %v7128, %v7454
        %v7709 = vadd.f32 %v7129, %v7457
        %v7710 = vadd.f32 %v7130, %v7460
        %v7711 = vadd.f32 %v7131, %v7463
        %v7712 = vadd.f32 %v7132, %v7466
        %v7713 = vadd.f32 %v7133, %v7469
        %v7714 = vadd.f32 %v7134, %v7472
        %v7715 = vadd.f32 %v7135, %v7475
        %v7716 = vadd.f32 %v7136, %v7478
        %v7717 = vadd.f32 %v7137, %v7481
        %v7718 = vadd.f32 %v7138, %v7484
        %v7719 = vadd.f32 %v7139, %v7487
        %v7720 = vadd.f32 %v7140, %v7490
        %v7721 = vadd.f32 %v7141, %v7493
        %v7722 = vadd.f32 %v7142, %v7496
        %v7723 = vadd.f32 %v7143, %v7499
        %v7724 = vadd.f32 %v7144, %v7502
        %v7725 = vadd.f32 %v7145, %v7505
        %v7726 = vadd.f32 %v7146, %v7508
        %v7727 = vadd.f32 %v7147, %v7511
        %v7728 = vadd.f32 %v7148, %v7514
        %v7729 = vadd.f32 %v7149, %v7517
        %v7730 = vadd.f32 %v7150, %v7520
        %v7731 = vadd.f32 %v7151, %v7523
        %v7732 = vadd.f32 %v7152, %v7526
        %v7733 = vadd.f32 %v7153, %v7529
        %v7734 = vadd.f32 %v7154, %v7532
        %v7735 = vadd.f32 %v7155, %v7535
        %v7736 = vadd.f32 %v7156, %v7538
        %v7737 = vadd.f32 %v7157, %v7541
        %v7738 = vadd.f32 %v7158, %v7544
        %v7739 = vadd.f32 %v7159, %v7547
        %v7740 = vadd.f32 %v7160, %v7550
        %v7741 = vadd.f32 %v7161, %v7553
        %v7742 = vadd.f32 %v7162, %v7556
        %v7743 = vadd.f32 %v7163, %v7559
        %v7744 = vadd.f32 %v7164, %v7562
        %v7745 = vadd.f32 %v7165, %v7565
        %v7746 = vadd.f32 %v7166, %v7568
        %v7747 = vadd.f32 %v7167, %v7571
        %v7748 = vadd.f32 %v7168, %v7574
        %v7749 = vadd.f32 %v7169, %v7577
        %v7750 = vadd.f32 %v7170, %v7580
        %v7751 = vadd.f32 %v7171, %v7583
        %v7752 = vadd.f32 %v7172, %v7586
        %v7753 = vadd.f32 %v7173, %v7589
        %v7754 = vadd.f32 %v7174, %v7592
        %v7755 = vadd.f32 %v7175, %v7595
        %v7756 = vadd.f32 %v7176, %v7598
        %v7757 = vadd.f32 %v7177, %v7601
        %v7758 = vadd.f32 %v7178, %v7604
        %v7759 = vadd.f32 %v7179, %v7607
        %v7760 = vadd.f32 %v7180, %v7610
        %v7761 = vadd.f32 %v7181, %v7613
        %v7762 = vadd.f32 %v7182, %v7616
        %v7763 = vadd.f32 %v7183, %v7619
        %v7764 = vadd.f32 %v7184, %v7622
        %v7765 = vadd.f32 %v7185, %v7625
        %v7766 = vadd.f32 %v7186, %v7628
        %v7767 = vadd.f32 %v7187, %v7631
        %v7768 = vadd.f32 %v7188, %v7634
        %v7769 = vadd.f32 %v7189, %v7637
        %v7770 = vadd.f32 %v7190, %v7640
        %v7771 = vadd.f32 %v7191, %v7643
        %v7772 = vlaneseq
        %v7773 = vshrl.u32 %v7772, 7
        %v7774 = vsub.s32 7, %v7773
        %v7775 = vrot.slane %v1300, %v7774
        %v7776 = vmul.f32 %v1123, %v7775
        %v7777 = vmul.f32 %v1125, %v7775
        %v7778 = vmul.f32 %v1127, %v7775
        %v7779 = vmul.f32 %v1129, %v7775
        %v7780 = vmul.f32 %v1131, %v7775
        %v7781 = vmul.f32 %v1133, %v7775
        %v7782 = vmul.f32 %v1135, %v7775
        %v7783 = vmul.f32 %v1137, %v7775
        %v7784 = vmul.f32 %v1143, %v7775
        %v7785 = vmul.f32 %v1145, %v7775
        %v7786 = vmul.f32 %v1147, %v7775
        %v7787 = vmul.f32 %v1149, %v7775
        %v7788 = vmul.f32 %v1151, %v7775
        %v7789 = vmul.f32 %v1153, %v7775
        %v7790 = vmul.f32 %v1155, %v7775
        %v7791 = vmul.f32 %v1157, %v7775
        %v7792 = vmul.f32 %v1163, %v7775
        %v7793 = vmul.f32 %v1165, %v7775
        %v7794 = vmul.f32 %v1167, %v7775
        %v7795 = vmul.f32 %v1169, %v7775
        %v7796 = vmul.f32 %v1171, %v7775
        %v7797 = vmul.f32 %v1173, %v7775
        %v7798 = vmul.f32 %v1175, %v7775
        %v7799 = vmul.f32 %v1177, %v7775
        %v7800 = vmul.f32 %v1183, %v7775
        %v7801 = vmul.f32 %v1185, %v7775
        %v7802 = vmul.f32 %v1187, %v7775
        %v7803 = vmul.f32 %v1189, %v7775
        %v7804 = vmul.f32 %v1191, %v7775
        %v7805 = vmul.f32 %v1193, %v7775
        %v7806 = vmul.f32 %v1195, %v7775
        %v7807 = vmul.f32 %v1197, %v7775
        %v7808 = vmul.f32 %v1203, %v7775
        %v7809 = vmul.f32 %v1205, %v7775
        %v7810 = vmul.f32 %v1207, %v7775
        %v7811 = vmul.f32 %v1209, %v7775
        %v7812 = vmul.f32 %v1211, %v7775
        %v7813 = vmul.f32 %v1213, %v7775
        %v7814 = vmul.f32 %v1215, %v7775
        %v7815 = vmul.f32 %v1217, %v7775
        %v7816 = vmul.f32 %v1223, %v7775
        %v7817 = vmul.f32 %v1225, %v7775
        %v7818 = vmul.f32 %v1227, %v7775
        %v7819 = vmul.f32 %v1229, %v7775
        %v7820 = vmul.f32 %v1231, %v7775
        %v7821 = vmul.f32 %v1233, %v7775
        %v7822 = vmul.f32 %v1235, %v7775
        %v7823 = vmul.f32 %v1237, %v7775
        %v7824 = vmul.f32 %v1243, %v7775
        %v7825 = vmul.f32 %v1245, %v7775
        %v7826 = vmul.f32 %v1247, %v7775
        %v7827 = vmul.f32 %v1249, %v7775
        %v7828 = vmul.f32 %v1251, %v7775
        %v7829 = vmul.f32 %v1253, %v7775
        %v7830 = vmul.f32 %v1255, %v7775
        %v7831 = vmul.f32 %v1257, %v7775
        %v7832 = vmul.f32 %v1263, %v7775
        %v7833 = vmul.f32 %v1265, %v7775
        %v7834 = vmul.f32 %v1267, %v7775
        %v7835 = vmul.f32 %v1269, %v7775
        %v7836 = vmul.f32 %v1271, %v7775
        %v7837 = vmul.f32 %v1273, %v7775
        %v7838 = vmul.f32 %v1275, %v7775
        %v7839 = vmul.f32 %v1277, %v7775
        %v7840 = vadd.f32 %v7708, %v7776
        %v7841 = vadd.f32 %v7709, %v7777
        %v7842 = vadd.f32 %v7710, %v7778
        %v7843 = vadd.f32 %v7711, %v7779
        %v7844 = vadd.f32 %v7712, %v7780
        %v7845 = vadd.f32 %v7713, %v7781
        %v7846 = vadd.f32 %v7714, %v7782
        %v7847 = vadd.f32 %v7715, %v7783
        %v7848 = vadd.f32 %v7716, %v7784
        %v7849 = vadd.f32 %v7717, %v7785
        %v7850 = vadd.f32 %v7718, %v7786
        %v7851 = vadd.f32 %v7719, %v7787
        %v7852 = vadd.f32 %v7720, %v7788
        %v7853 = vadd.f32 %v7721, %v7789
        %v7854 = vadd.f32 %v7722, %v7790
        %v7855 = vadd.f32 %v7723, %v7791
        %v7856 = vadd.f32 %v7724, %v7792
        %v7857 = vadd.f32 %v7725, %v7793
        %v7858 = vadd.f32 %v7726, %v7794
        %v7859 = vadd.f32 %v7727, %v7795
        %v7860 = vadd.f32 %v7728, %v7796
        %v7861 = vadd.f32 %v7729, %v7797
        %v7862 = vadd.f32 %v7730, %v7798
        %v7863 = vadd.f32 %v7731, %v7799
        %v7864 = vadd.f32 %v7732, %v7800
        %v7865 = vadd.f32 %v7733, %v7801
        %v7866 = vadd.f32 %v7734, %v7802
        %v7867 = vadd.f32 %v7735, %v7803
        %v7868 = vadd.f32 %v7736, %v7804
        %v7869 = vadd.f32 %v7737, %v7805
        %v7870 = vadd.f32 %v7738, %v7806
        %v7871 = vadd.f32 %v7739, %v7807
        %v7872 = vadd.f32 %v7740, %v7808
        %v7873 = vadd.f32 %v7741, %v7809
        %v7874 = vadd.f32 %v7742, %v7810
        %v7875 = vadd.f32 %v7743, %v7811
        %v7876 = vadd.f32 %v7744, %v7812
        %v7877 = vadd.f32 %v7745, %v7813
        %v7878 = vadd.f32 %v7746, %v7814
        %v7879 = vadd.f32 %v7747, %v7815
        %v7880 = vadd.f32 %v7748, %v7816
        %v7881 = vadd.f32 %v7749, %v7817
        %v7882 = vadd.f32 %v7750, %v7818
        %v7883 = vadd.f32 %v7751, %v7819
        %v7884 = vadd.f32 %v7752, %v7820
        %v7885 = vadd.f32 %v7753, %v7821
        %v7886 = vadd.f32 %v7754, %v7822
        %v7887 = vadd.f32 %v7755, %v7823
        %v7888 = vadd.f32 %v7756, %v7824
        %v7889 = vadd.f32 %v7757, %v7825
        %v7890 = vadd.f32 %v7758, %v7826
        %v7891 = vadd.f32 %v7759, %v7827
        %v7892 = vadd.f32 %v7760, %v7828
        %v7893 = vadd.f32 %v7761, %v7829
        %v7894 = vadd.f32 %v7762, %v7830
        %v7895 = vadd.f32 %v7763, %v7831
        %v7896 = vadd.f32 %v7764, %v7832
        %v7897 = vadd.f32 %v7765, %v7833
        %v7898 = vadd.f32 %v7766, %v7834
        %v7899 = vadd.f32 %v7767, %v7835
        %v7900 = vadd.f32 %v7768, %v7836
        %v7901 = vadd.f32 %v7769, %v7837
        %v7902 = vadd.f32 %v7770, %v7838
        %v7903 = vadd.f32 %v7771, %v7839
        %v7904 = vlaneseq
        %v7905 = vshrl.u32 %v7904, 7
        %v7906 = vsub.s32 0, %v7905
        %v7907 = vrot.slane %v1301, %v7906
        %v7908 = vmul.f32 %v1123, %v7907
        %v7909 = vmul.f32 %v1124, %v7907
        %v7910 = vmul.f32 %v1125, %v7907
        %v7911 = vmul.f32 %v1126, %v7907
        %v7912 = vmul.f32 %v1127, %v7907
        %v7913 = vmul.f32 %v1128, %v7907
        %v7914 = vmul.f32 %v1129, %v7907
        %v7915 = vmul.f32 %v1130, %v7907
        %v7916 = vmul.f32 %v1131, %v7907
        %v7917 = vmul.f32 %v1132, %v7907
        %v7918 = vmul.f32 %v1133, %v7907
        %v7919 = vmul.f32 %v1134, %v7907
        %v7920 = vmul.f32 %v1135, %v7907
        %v7921 = vmul.f32 %v1136, %v7907
        %v7922 = vmul.f32 %v1137, %v7907
        %v7923 = vmul.f32 %v1138, %v7907
        %v7924 = vmul.f32 %v1143, %v7907
        %v7925 = vmul.f32 %v1144, %v7907
        %v7926 = vmul.f32 %v1145, %v7907
        %v7927 = vmul.f32 %v1146, %v7907
        %v7928 = vmul.f32 %v1147, %v7907
        %v7929 = vmul.f32 %v1148, %v7907
        %v7930 = vmul.f32 %v1149, %v7907
        %v7931 = vmul.f32 %v1150, %v7907
        %v7932 = vmul.f32 %v1151, %v7907
        %v7933 = vmul.f32 %v1152, %v7907
        %v7934 = vmul.f32 %v1153, %v7907
        %v7935 = vmul.f32 %v1154, %v7907
        %v7936 = vmul.f32 %v1155, %v7907
        %v7937 = vmul.f32 %v1156, %v7907
        %v7938 = vmul.f32 %v1157, %v7907
        %v7939 = vmul.f32 %v1158, %v7907
        %v7940 = vmul.f32 %v1163, %v7907
        %v7941 = vmul.f32 %v1164, %v7907
        %v7942 = vmul.f32 %v1165, %v7907
        %v7943 = vmul.f32 %v1166, %v7907
        %v7944 = vmul.f32 %v1167, %v7907
        %v7945 = vmul.f32 %v1168, %v7907
        %v7946 = vmul.f32 %v1169, %v7907
        %v7947 = vmul.f32 %v1170, %v7907
        %v7948 = vmul.f32 %v1171, %v7907
        %v7949 = vmul.f32 %v1172, %v7907
        %v7950 = vmul.f32 %v1173, %v7907
        %v7951 = vmul.f32 %v1174, %v7907
        %v7952 = vmul.f32 %v1175, %v7907
        %v7953 = vmul.f32 %v1176, %v7907
        %v7954 = vmul.f32 %v1177, %v7907
        %v7955 = vmul.f32 %v1178, %v7907
        %v7956 = vmul.f32 %v1183, %v7907
        %v7957 = vmul.f32 %v1184, %v7907
        %v7958 = vmul.f32 %v1185, %v7907
        %v7959 = vmul.f32 %v1186, %v7907
        %v7960 = vmul.f32 %v1187, %v7907
        %v7961 = vmul.f32 %v1188, %v7907
        %v7962 = vmul.f32 %v1189, %v7907
        %v7963 = vmul.f32 %v1190, %v7907
        %v7964 = vmul.f32 %v1191, %v7907
        %v7965 = vmul.f32 %v1192, %v7907
        %v7966 = vmul.f32 %v1193, %v7907
        %v7967 = vmul.f32 %v1194, %v7907
        %v7968 = vmul.f32 %v1195, %v7907
        %v7969 = vmul.f32 %v1196, %v7907
        %v7970 = vmul.f32 %v1197, %v7907
        %v7971 = vmul.f32 %v1198, %v7907
        %v7972 = vmul.f32 %v1203, %v7907
        %v7973 = vmul.f32 %v1204, %v7907
        %v7974 = vmul.f32 %v1205, %v7907
        %v7975 = vmul.f32 %v1206, %v7907
        %v7976 = vmul.f32 %v1207, %v7907
        %v7977 = vmul.f32 %v1208, %v7907
        %v7978 = vmul.f32 %v1209, %v7907
        %v7979 = vmul.f32 %v1210, %v7907
        %v7980 = vmul.f32 %v1211, %v7907
        %v7981 = vmul.f32 %v1212, %v7907
        %v7982 = vmul.f32 %v1213, %v7907
        %v7983 = vmul.f32 %v1214, %v7907
        %v7984 = vmul.f32 %v1215, %v7907
        %v7985 = vmul.f32 %v1216, %v7907
        %v7986 = vmul.f32 %v1217, %v7907
        %v7987 = vmul.f32 %v1218, %v7907
        %v7988 = vmul.f32 %v1223, %v7907
        %v7989 = vmul.f32 %v1224, %v7907
        %v7990 = vmul.f32 %v1225, %v7907
        %v7991 = vmul.f32 %v1226, %v7907
        %v7992 = vmul.f32 %v1227, %v7907
        %v7993 = vmul.f32 %v1228, %v7907
        %v7994 = vmul.f32 %v1229, %v7907
        %v7995 = vmul.f32 %v1230, %v7907
        %v7996 = vmul.f32 %v1231, %v7907
        %v7997 = vmul.f32 %v1232, %v7907
        %v7998 = vmul.f32 %v1233, %v7907
        %v7999 = vmul.f32 %v1234, %v7907
        %v8000 = vmul.f32 %v1235, %v7907
        %v8001 = vmul.f32 %v1236, %v7907
        %v8002 = vmul.f32 %v1237, %v7907
        %v8003 = vmul.f32 %v1238, %v7907
        %v8004 = vmul.f32 %v1243, %v7907
        %v8005 = vmul.f32 %v1244, %v7907
        %v8006 = vmul.f32 %v1245, %v7907
        %v8007 = vmul.f32 %v1246, %v7907
        %v8008 = vmul.f32 %v1247, %v7907
        %v8009 = vmul.f32 %v1248, %v7907
        %v8010 = vmul.f32 %v1249, %v7907
        %v8011 = vmul.f32 %v1250, %v7907
        %v8012 = vmul.f32 %v1251, %v7907
        %v8013 = vmul.f32 %v1252, %v7907
        %v8014 = vmul.f32 %v1253, %v7907
        %v8015 = vmul.f32 %v1254, %v7907
        %v8016 = vmul.f32 %v1255, %v7907
        %v8017 = vmul.f32 %v1256, %v7907
        %v8018 = vmul.f32 %v1257, %v7907
        %v8019 = vmul.f32 %v1258, %v7907
        %v8020 = vmul.f32 %v1263, %v7907
        %v8021 = vmul.f32 %v1264, %v7907
        %v8022 = vmul.f32 %v1265, %v7907
        %v8023 = vmul.f32 %v1266, %v7907
        %v8024 = vmul.f32 %v1267, %v7907
        %v8025 = vmul.f32 %v1268, %v7907
        %v8026 = vmul.f32 %v1269, %v7907
        %v8027 = vmul.f32 %v1270, %v7907
        %v8028 = vmul.f32 %v1271, %v7907
        %v8029 = vmul.f32 %v1272, %v7907
        %v8030 = vmul.f32 %v1273, %v7907
        %v8031 = vmul.f32 %v1274, %v7907
        %v8032 = vmul.f32 %v1275, %v7907
        %v8033 = vmul.f32 %v1276, %v7907
        %v8034 = vmul.f32 %v1277, %v7907
        %v8035 = vmul.f32 %v1278, %v7907
        %v8164 = vrot.slane %v7908, 1
        %v8165 = vrot.slane %v7909, 1
        %v8166 = vsel %vm1702, %v8164, %v8165
        %v8167 = vrot.slane %v7910, 1
        %v8168 = vrot.slane %v7911, 1
        %v8169 = vsel %vm1702, %v8167, %v8168
        %v8170 = vrot.slane %v7912, 1
        %v8171 = vrot.slane %v7913, 1
        %v8172 = vsel %vm1702, %v8170, %v8171
        %v8173 = vrot.slane %v7914, 1
        %v8174 = vrot.slane %v7915, 1
        %v8175 = vsel %vm1702, %v8173, %v8174
        %v8176 = vrot.slane %v7916, 1
        %v8177 = vrot.slane %v7917, 1
        %v8178 = vsel %vm1702, %v8176, %v8177
        %v8179 = vrot.slane %v7918, 1
        %v8180 = vrot.slane %v7919, 1
        %v8181 = vsel %vm1702, %v8179, %v8180
        %v8182 = vrot.slane %v7920, 1
        %v8183 = vrot.slane %v7921, 1
        %v8184 = vsel %vm1702, %v8182, %v8183
        %v8185 = vrot.slane %v7922, 1
        %v8186 = vrot.slane %v7923, 1
        %v8187 = vsel %vm1702, %v8185, %v8186
        %v8188 = vrot.slane %v7924, 1
        %v8189 = vrot.slane %v7925, 1
        %v8190 = vsel %vm1702, %v8188, %v8189
        %v8191 = vrot.slane %v7926, 1
        %v8192 = vrot.slane %v7927, 1
        %v8193 = vsel %vm1702, %v8191, %v8192
        %v8194 = vrot.slane %v7928, 1
        %v8195 = vrot.slane %v7929, 1
        %v8196 = vsel %vm1702, %v8194, %v8195
        %v8197 = vrot.slane %v7930, 1
        %v8198 = vrot.slane %v7931, 1
        %v8199 = vsel %vm1702, %v8197, %v8198
        %v8200 = vrot.slane %v7932, 1
        %v8201 = vrot.slane %v7933, 1
        %v8202 = vsel %vm1702, %v8200, %v8201
        %v8203 = vrot.slane %v7934, 1
        %v8204 = vrot.slane %v7935, 1
        %v8205 = vsel %vm1702, %v8203, %v8204
        %v8206 = vrot.slane %v7936, 1
        %v8207 = vrot.slane %v7937, 1
        %v8208 = vsel %vm1702, %v8206, %v8207
        %v8209 = vrot.slane %v7938, 1
        %v8210 = vrot.slane %v7939, 1
        %v8211 = vsel %vm1702, %v8209, %v8210
        %v8212 = vrot.slane %v7940, 1
        %v8213 = vrot.slane %v7941, 1
        %v8214 = vsel %vm1702, %v8212, %v8213
        %v8215 = vrot.slane %v7942, 1
        %v8216 = vrot.slane %v7943, 1
        %v8217 = vsel %vm1702, %v8215, %v8216
        %v8218 = vrot.slane %v7944, 1
        %v8219 = vrot.slane %v7945, 1
        %v8220 = vsel %vm1702, %v8218, %v8219
        %v8221 = vrot.slane %v7946, 1
        %v8222 = vrot.slane %v7947, 1
        %v8223 = vsel %vm1702, %v8221, %v8222
        %v8224 = vrot.slane %v7948, 1
        %v8225 = vrot.slane %v7949, 1
        %v8226 = vsel %vm1702, %v8224, %v8225
        %v8227 = vrot.slane %v7950, 1
        %v8228 = vrot.slane %v7951, 1
        %v8229 = vsel %vm1702, %v8227, %v8228
        %v8230 = vrot.slane %v7952, 1
        %v8231 = vrot.slane %v7953, 1
        %v8232 = vsel %vm1702, %v8230, %v8231
        %v8233 = vrot.slane %v7954, 1
        %v8234 = vrot.slane %v7955, 1
        %v8235 = vsel %vm1702, %v8233, %v8234
        %v8236 = vrot.slane %v7956, 1
        %v8237 = vrot.slane %v7957, 1
        %v8238 = vsel %vm1702, %v8236, %v8237
        %v8239 = vrot.slane %v7958, 1
        %v8240 = vrot.slane %v7959, 1
        %v8241 = vsel %vm1702, %v8239, %v8240
        %v8242 = vrot.slane %v7960, 1
        %v8243 = vrot.slane %v7961, 1
        %v8244 = vsel %vm1702, %v8242, %v8243
        %v8245 = vrot.slane %v7962, 1
        %v8246 = vrot.slane %v7963, 1
        %v8247 = vsel %vm1702, %v8245, %v8246
        %v8248 = vrot.slane %v7964, 1
        %v8249 = vrot.slane %v7965, 1
        %v8250 = vsel %vm1702, %v8248, %v8249
        %v8251 = vrot.slane %v7966, 1
        %v8252 = vrot.slane %v7967, 1
        %v8253 = vsel %vm1702, %v8251, %v8252
        %v8254 = vrot.slane %v7968, 1
        %v8255 = vrot.slane %v7969, 1
        %v8256 = vsel %vm1702, %v8254, %v8255
        %v8257 = vrot.slane %v7970, 1
        %v8258 = vrot.slane %v7971, 1
        %v8259 = vsel %vm1702, %v8257, %v8258
        %v8260 = vrot.slane %v7972, 1
        %v8261 = vrot.slane %v7973, 1
        %v8262 = vsel %vm1702, %v8260, %v8261
        %v8263 = vrot.slane %v7974, 1
        %v8264 = vrot.slane %v7975, 1
        %v8265 = vsel %vm1702, %v8263, %v8264
        %v8266 = vrot.slane %v7976, 1
        %v8267 = vrot.slane %v7977, 1
        %v8268 = vsel %vm1702, %v8266, %v8267
        %v8269 = vrot.slane %v7978, 1
        %v8270 = vrot.slane %v7979, 1
        %v8271 = vsel %vm1702, %v8269, %v8270
        %v8272 = vrot.slane %v7980, 1
        %v8273 = vrot.slane %v7981, 1
        %v8274 = vsel %vm1702, %v8272, %v8273
        %v8275 = vrot.slane %v7982, 1
        %v8276 = vrot.slane %v7983, 1
        %v8277 = vsel %vm1702, %v8275, %v8276
        %v8278 = vrot.slane %v7984, 1
        %v8279 = vrot.slane %v7985, 1
        %v8280 = vsel %vm1702, %v8278, %v8279
        %v8281 = vrot.slane %v7986, 1
        %v8282 = vrot.slane %v7987, 1
        %v8283 = vsel %vm1702, %v8281, %v8282
        %v8284 = vrot.slane %v7988, 1
        %v8285 = vrot.slane %v7989, 1
        %v8286 = vsel %vm1702, %v8284, %v8285
        %v8287 = vrot.slane %v7990, 1
        %v8288 = vrot.slane %v7991, 1
        %v8289 = vsel %vm1702, %v8287, %v8288
        %v8290 = vrot.slane %v7992, 1
        %v8291 = vrot.slane %v7993, 1
        %v8292 = vsel %vm1702, %v8290, %v8291
        %v8293 = vrot.slane %v7994, 1
        %v8294 = vrot.slane %v7995, 1
        %v8295 = vsel %vm1702, %v8293, %v8294
        %v8296 = vrot.slane %v7996, 1
        %v8297 = vrot.slane %v7997, 1
        %v8298 = vsel %vm1702, %v8296, %v8297
        %v8299 = vrot.slane %v7998, 1
        %v8300 = vrot.slane %v7999, 1
        %v8301 = vsel %vm1702, %v8299, %v8300
        %v8302 = vrot.slane %v8000, 1
        %v8303 = vrot.slane %v8001, 1
        %v8304 = vsel %vm1702, %v8302, %v8303
        %v8305 = vrot.slane %v8002, 1
        %v8306 = vrot.slane %v8003, 1
        %v8307 = vsel %vm1702, %v8305, %v8306
        %v8308 = vrot.slane %v8004, 1
        %v8309 = vrot.slane %v8005, 1
        %v8310 = vsel %vm1702, %v8308, %v8309
        %v8311 = vrot.slane %v8006, 1
        %v8312 = vrot.slane %v8007, 1
        %v8313 = vsel %vm1702, %v8311, %v8312
        %v8314 = vrot.slane %v8008, 1
        %v8315 = vrot.slane %v8009, 1
        %v8316 = vsel %vm1702, %v8314, %v8315
        %v8317 = vrot.slane %v8010, 1
        %v8318 = vrot.slane %v8011, 1
        %v8319 = vsel %vm1702, %v8317, %v8318
        %v8320 = vrot.slane %v8012, 1
        %v8321 = vrot.slane %v8013, 1
        %v8322 = vsel %vm1702, %v8320, %v8321
        %v8323 = vrot.slane %v8014, 1
        %v8324 = vrot.slane %v8015, 1
        %v8325 = vsel %vm1702, %v8323, %v8324
        %v8326 = vrot.slane %v8016, 1
        %v8327 = vrot.slane %v8017, 1
        %v8328 = vsel %vm1702, %v8326, %v8327
        %v8329 = vrot.slane %v8018, 1
        %v8330 = vrot.slane %v8019, 1
        %v8331 = vsel %vm1702, %v8329, %v8330
        %v8332 = vrot.slane %v8020, 1
        %v8333 = vrot.slane %v8021, 1
        %v8334 = vsel %vm1702, %v8332, %v8333
        %v8335 = vrot.slane %v8022, 1
        %v8336 = vrot.slane %v8023, 1
        %v8337 = vsel %vm1702, %v8335, %v8336
        %v8338 = vrot.slane %v8024, 1
        %v8339 = vrot.slane %v8025, 1
        %v8340 = vsel %vm1702, %v8338, %v8339
        %v8341 = vrot.slane %v8026, 1
        %v8342 = vrot.slane %v8027, 1
        %v8343 = vsel %vm1702, %v8341, %v8342
        %v8344 = vrot.slane %v8028, 1
        %v8345 = vrot.slane %v8029, 1
        %v8346 = vsel %vm1702, %v8344, %v8345
        %v8347 = vrot.slane %v8030, 1
        %v8348 = vrot.slane %v8031, 1
        %v8349 = vsel %vm1702, %v8347, %v8348
        %v8350 = vrot.slane %v8032, 1
        %v8351 = vrot.slane %v8033, 1
        %v8352 = vsel %vm1702, %v8350, %v8351
        %v8353 = vrot.slane %v8034, 1
        %v8354 = vrot.slane %v8035, 1
        %v8355 = vsel %vm1702, %v8353, %v8354
        %v8420 = vadd.f32 %v7840, %v8166
        %v8421 = vadd.f32 %v7841, %v8169
        %v8422 = vadd.f32 %v7842, %v8172
        %v8423 = vadd.f32 %v7843, %v8175
        %v8424 = vadd.f32 %v7844, %v8178
        %v8425 = vadd.f32 %v7845, %v8181
        %v8426 = vadd.f32 %v7846, %v8184
        %v8427 = vadd.f32 %v7847, %v8187
        %v8428 = vadd.f32 %v7848, %v8190
        %v8429 = vadd.f32 %v7849, %v8193
        %v8430 = vadd.f32 %v7850, %v8196
        %v8431 = vadd.f32 %v7851, %v8199
        %v8432 = vadd.f32 %v7852, %v8202
        %v8433 = vadd.f32 %v7853, %v8205
        %v8434 = vadd.f32 %v7854, %v8208
        %v8435 = vadd.f32 %v7855, %v8211
        %v8436 = vadd.f32 %v7856, %v8214
        %v8437 = vadd.f32 %v7857, %v8217
        %v8438 = vadd.f32 %v7858, %v8220
        %v8439 = vadd.f32 %v7859, %v8223
        %v8440 = vadd.f32 %v7860, %v8226
        %v8441 = vadd.f32 %v7861, %v8229
        %v8442 = vadd.f32 %v7862, %v8232
        %v8443 = vadd.f32 %v7863, %v8235
        %v8444 = vadd.f32 %v7864, %v8238
        %v8445 = vadd.f32 %v7865, %v8241
        %v8446 = vadd.f32 %v7866, %v8244
        %v8447 = vadd.f32 %v7867, %v8247
        %v8448 = vadd.f32 %v7868, %v8250
        %v8449 = vadd.f32 %v7869, %v8253
        %v8450 = vadd.f32 %v7870, %v8256
        %v8451 = vadd.f32 %v7871, %v8259
        %v8452 = vadd.f32 %v7872, %v8262
        %v8453 = vadd.f32 %v7873, %v8265
        %v8454 = vadd.f32 %v7874, %v8268
        %v8455 = vadd.f32 %v7875, %v8271
        %v8456 = vadd.f32 %v7876, %v8274
        %v8457 = vadd.f32 %v7877, %v8277
        %v8458 = vadd.f32 %v7878, %v8280
        %v8459 = vadd.f32 %v7879, %v8283
        %v8460 = vadd.f32 %v7880, %v8286
        %v8461 = vadd.f32 %v7881, %v8289
        %v8462 = vadd.f32 %v7882, %v8292
        %v8463 = vadd.f32 %v7883, %v8295
        %v8464 = vadd.f32 %v7884, %v8298
        %v8465 = vadd.f32 %v7885, %v8301
        %v8466 = vadd.f32 %v7886, %v8304
        %v8467 = vadd.f32 %v7887, %v8307
        %v8468 = vadd.f32 %v7888, %v8310
        %v8469 = vadd.f32 %v7889, %v8313
        %v8470 = vadd.f32 %v7890, %v8316
        %v8471 = vadd.f32 %v7891, %v8319
        %v8472 = vadd.f32 %v7892, %v8322
        %v8473 = vadd.f32 %v7893, %v8325
        %v8474 = vadd.f32 %v7894, %v8328
        %v8475 = vadd.f32 %v7895, %v8331
        %v8476 = vadd.f32 %v7896, %v8334
        %v8477 = vadd.f32 %v7897, %v8337
        %v8478 = vadd.f32 %v7898, %v8340
        %v8479 = vadd.f32 %v7899, %v8343
        %v8480 = vadd.f32 %v7900, %v8346
        %v8481 = vadd.f32 %v7901, %v8349
        %v8482 = vadd.f32 %v7902, %v8352
        %v8483 = vadd.f32 %v7903, %v8355
        %v8484 = vlaneseq
        %v8485 = vshrl.u32 %v8484, 7
        %v8486 = vsub.s32 1, %v8485
        %v8487 = vrot.slane %v1301, %v8486
        %v8488 = vmul.f32 %v1123, %v8487
        %v8489 = vmul.f32 %v1124, %v8487
        %v8490 = vmul.f32 %v1125, %v8487
        %v8491 = vmul.f32 %v1126, %v8487
        %v8492 = vmul.f32 %v1127, %v8487
        %v8493 = vmul.f32 %v1128, %v8487
        %v8494 = vmul.f32 %v1129, %v8487
        %v8495 = vmul.f32 %v1130, %v8487
        %v8496 = vmul.f32 %v1131, %v8487
        %v8497 = vmul.f32 %v1132, %v8487
        %v8498 = vmul.f32 %v1133, %v8487
        %v8499 = vmul.f32 %v1134, %v8487
        %v8500 = vmul.f32 %v1135, %v8487
        %v8501 = vmul.f32 %v1136, %v8487
        %v8502 = vmul.f32 %v1137, %v8487
        %v8503 = vmul.f32 %v1138, %v8487
        %v8504 = vmul.f32 %v1143, %v8487
        %v8505 = vmul.f32 %v1144, %v8487
        %v8506 = vmul.f32 %v1145, %v8487
        %v8507 = vmul.f32 %v1146, %v8487
        %v8508 = vmul.f32 %v1147, %v8487
        %v8509 = vmul.f32 %v1148, %v8487
        %v8510 = vmul.f32 %v1149, %v8487
        %v8511 = vmul.f32 %v1150, %v8487
        %v8512 = vmul.f32 %v1151, %v8487
        %v8513 = vmul.f32 %v1152, %v8487
        %v8514 = vmul.f32 %v1153, %v8487
        %v8515 = vmul.f32 %v1154, %v8487
        %v8516 = vmul.f32 %v1155, %v8487
        %v8517 = vmul.f32 %v1156, %v8487
        %v8518 = vmul.f32 %v1157, %v8487
        %v8519 = vmul.f32 %v1158, %v8487
        %v8520 = vmul.f32 %v1163, %v8487
        %v8521 = vmul.f32 %v1164, %v8487
        %v8522 = vmul.f32 %v1165, %v8487
        %v8523 = vmul.f32 %v1166, %v8487
        %v8524 = vmul.f32 %v1167, %v8487
        %v8525 = vmul.f32 %v1168, %v8487
        %v8526 = vmul.f32 %v1169, %v8487
        %v8527 = vmul.f32 %v1170, %v8487
        %v8528 = vmul.f32 %v1171, %v8487
        %v8529 = vmul.f32 %v1172, %v8487
        %v8530 = vmul.f32 %v1173, %v8487
        %v8531 = vmul.f32 %v1174, %v8487
        %v8532 = vmul.f32 %v1175, %v8487
        %v8533 = vmul.f32 %v1176, %v8487
        %v8534 = vmul.f32 %v1177, %v8487
        %v8535 = vmul.f32 %v1178, %v8487
        %v8536 = vmul.f32 %v1183, %v8487
        %v8537 = vmul.f32 %v1184, %v8487
        %v8538 = vmul.f32 %v1185, %v8487
        %v8539 = vmul.f32 %v1186, %v8487
        %v8540 = vmul.f32 %v1187, %v8487
        %v8541 = vmul.f32 %v1188, %v8487
        %v8542 = vmul.f32 %v1189, %v8487
        %v8543 = vmul.f32 %v1190, %v8487
        %v8544 = vmul.f32 %v1191, %v8487
        %v8545 = vmul.f32 %v1192, %v8487
        %v8546 = vmul.f32 %v1193, %v8487
        %v8547 = vmul.f32 %v1194, %v8487
        %v8548 = vmul.f32 %v1195, %v8487
        %v8549 = vmul.f32 %v1196, %v8487
        %v8550 = vmul.f32 %v1197, %v8487
        %v8551 = vmul.f32 %v1198, %v8487
        %v8552 = vmul.f32 %v1203, %v8487
        %v8553 = vmul.f32 %v1204, %v8487
        %v8554 = vmul.f32 %v1205, %v8487
        %v8555 = vmul.f32 %v1206, %v8487
        %v8556 = vmul.f32 %v1207, %v8487
        %v8557 = vmul.f32 %v1208, %v8487
        %v8558 = vmul.f32 %v1209, %v8487
        %v8559 = vmul.f32 %v1210, %v8487
        %v8560 = vmul.f32 %v1211, %v8487
        %v8561 = vmul.f32 %v1212, %v8487
        %v8562 = vmul.f32 %v1213, %v8487
        %v8563 = vmul.f32 %v1214, %v8487
        %v8564 = vmul.f32 %v1215, %v8487
        %v8565 = vmul.f32 %v1216, %v8487
        %v8566 = vmul.f32 %v1217, %v8487
        %v8567 = vmul.f32 %v1218, %v8487
        %v8568 = vmul.f32 %v1223, %v8487
        %v8569 = vmul.f32 %v1224, %v8487
        %v8570 = vmul.f32 %v1225, %v8487
        %v8571 = vmul.f32 %v1226, %v8487
        %v8572 = vmul.f32 %v1227, %v8487
        %v8573 = vmul.f32 %v1228, %v8487
        %v8574 = vmul.f32 %v1229, %v8487
        %v8575 = vmul.f32 %v1230, %v8487
        %v8576 = vmul.f32 %v1231, %v8487
        %v8577 = vmul.f32 %v1232, %v8487
        %v8578 = vmul.f32 %v1233, %v8487
        %v8579 = vmul.f32 %v1234, %v8487
        %v8580 = vmul.f32 %v1235, %v8487
        %v8581 = vmul.f32 %v1236, %v8487
        %v8582 = vmul.f32 %v1237, %v8487
        %v8583 = vmul.f32 %v1238, %v8487
        %v8584 = vmul.f32 %v1243, %v8487
        %v8585 = vmul.f32 %v1244, %v8487
        %v8586 = vmul.f32 %v1245, %v8487
        %v8587 = vmul.f32 %v1246, %v8487
        %v8588 = vmul.f32 %v1247, %v8487
        %v8589 = vmul.f32 %v1248, %v8487
        %v8590 = vmul.f32 %v1249, %v8487
        %v8591 = vmul.f32 %v1250, %v8487
        %v8592 = vmul.f32 %v1251, %v8487
        %v8593 = vmul.f32 %v1252, %v8487
        %v8594 = vmul.f32 %v1253, %v8487
        %v8595 = vmul.f32 %v1254, %v8487
        %v8596 = vmul.f32 %v1255, %v8487
        %v8597 = vmul.f32 %v1256, %v8487
        %v8598 = vmul.f32 %v1257, %v8487
        %v8599 = vmul.f32 %v1258, %v8487
        %v8600 = vmul.f32 %v1263, %v8487
        %v8601 = vmul.f32 %v1264, %v8487
        %v8602 = vmul.f32 %v1265, %v8487
        %v8603 = vmul.f32 %v1266, %v8487
        %v8604 = vmul.f32 %v1267, %v8487
        %v8605 = vmul.f32 %v1268, %v8487
        %v8606 = vmul.f32 %v1269, %v8487
        %v8607 = vmul.f32 %v1270, %v8487
        %v8608 = vmul.f32 %v1271, %v8487
        %v8609 = vmul.f32 %v1272, %v8487
        %v8610 = vmul.f32 %v1273, %v8487
        %v8611 = vmul.f32 %v1274, %v8487
        %v8612 = vmul.f32 %v1275, %v8487
        %v8613 = vmul.f32 %v1276, %v8487
        %v8614 = vmul.f32 %v1277, %v8487
        %v8615 = vmul.f32 %v1278, %v8487
        %v8744 = vrot.slane %v8488, 2
        %v8745 = vrot.slane %v8489, 2
        %v8746 = vsel %vm2283, %v8744, %v8745
        %v8747 = vrot.slane %v8490, 2
        %v8748 = vrot.slane %v8491, 2
        %v8749 = vsel %vm2283, %v8747, %v8748
        %v8750 = vrot.slane %v8492, 2
        %v8751 = vrot.slane %v8493, 2
        %v8752 = vsel %vm2283, %v8750, %v8751
        %v8753 = vrot.slane %v8494, 2
        %v8754 = vrot.slane %v8495, 2
        %v8755 = vsel %vm2283, %v8753, %v8754
        %v8756 = vrot.slane %v8496, 2
        %v8757 = vrot.slane %v8497, 2
        %v8758 = vsel %vm2283, %v8756, %v8757
        %v8759 = vrot.slane %v8498, 2
        %v8760 = vrot.slane %v8499, 2
        %v8761 = vsel %vm2283, %v8759, %v8760
        %v8762 = vrot.slane %v8500, 2
        %v8763 = vrot.slane %v8501, 2
        %v8764 = vsel %vm2283, %v8762, %v8763
        %v8765 = vrot.slane %v8502, 2
        %v8766 = vrot.slane %v8503, 2
        %v8767 = vsel %vm2283, %v8765, %v8766
        %v8768 = vrot.slane %v8504, 2
        %v8769 = vrot.slane %v8505, 2
        %v8770 = vsel %vm2283, %v8768, %v8769
        %v8771 = vrot.slane %v8506, 2
        %v8772 = vrot.slane %v8507, 2
        %v8773 = vsel %vm2283, %v8771, %v8772
        %v8774 = vrot.slane %v8508, 2
        %v8775 = vrot.slane %v8509, 2
        %v8776 = vsel %vm2283, %v8774, %v8775
        %v8777 = vrot.slane %v8510, 2
        %v8778 = vrot.slane %v8511, 2
        %v8779 = vsel %vm2283, %v8777, %v8778
        %v8780 = vrot.slane %v8512, 2
        %v8781 = vrot.slane %v8513, 2
        %v8782 = vsel %vm2283, %v8780, %v8781
        %v8783 = vrot.slane %v8514, 2
        %v8784 = vrot.slane %v8515, 2
        %v8785 = vsel %vm2283, %v8783, %v8784
        %v8786 = vrot.slane %v8516, 2
        %v8787 = vrot.slane %v8517, 2
        %v8788 = vsel %vm2283, %v8786, %v8787
        %v8789 = vrot.slane %v8518, 2
        %v8790 = vrot.slane %v8519, 2
        %v8791 = vsel %vm2283, %v8789, %v8790
        %v8792 = vrot.slane %v8520, 2
        %v8793 = vrot.slane %v8521, 2
        %v8794 = vsel %vm2283, %v8792, %v8793
        %v8795 = vrot.slane %v8522, 2
        %v8796 = vrot.slane %v8523, 2
        %v8797 = vsel %vm2283, %v8795, %v8796
        %v8798 = vrot.slane %v8524, 2
        %v8799 = vrot.slane %v8525, 2
        %v8800 = vsel %vm2283, %v8798, %v8799
        %v8801 = vrot.slane %v8526, 2
        %v8802 = vrot.slane %v8527, 2
        %v8803 = vsel %vm2283, %v8801, %v8802
        %v8804 = vrot.slane %v8528, 2
        %v8805 = vrot.slane %v8529, 2
        %v8806 = vsel %vm2283, %v8804, %v8805
        %v8807 = vrot.slane %v8530, 2
        %v8808 = vrot.slane %v8531, 2
        %v8809 = vsel %vm2283, %v8807, %v8808
        %v8810 = vrot.slane %v8532, 2
        %v8811 = vrot.slane %v8533, 2
        %v8812 = vsel %vm2283, %v8810, %v8811
        %v8813 = vrot.slane %v8534, 2
        %v8814 = vrot.slane %v8535, 2
        %v8815 = vsel %vm2283, %v8813, %v8814
        %v8816 = vrot.slane %v8536, 2
        %v8817 = vrot.slane %v8537, 2
        %v8818 = vsel %vm2283, %v8816, %v8817
        %v8819 = vrot.slane %v8538, 2
        %v8820 = vrot.slane %v8539, 2
        %v8821 = vsel %vm2283, %v8819, %v8820
        %v8822 = vrot.slane %v8540, 2
        %v8823 = vrot.slane %v8541, 2
        %v8824 = vsel %vm2283, %v8822, %v8823
        %v8825 = vrot.slane %v8542, 2
        %v8826 = vrot.slane %v8543, 2
        %v8827 = vsel %vm2283, %v8825, %v8826
        %v8828 = vrot.slane %v8544, 2
        %v8829 = vrot.slane %v8545, 2
        %v8830 = vsel %vm2283, %v8828, %v8829
        %v8831 = vrot.slane %v8546, 2
        %v8832 = vrot.slane %v8547, 2
        %v8833 = vsel %vm2283, %v8831, %v8832
        %v8834 = vrot.slane %v8548, 2
        %v8835 = vrot.slane %v8549, 2
        %v8836 = vsel %vm2283, %v8834, %v8835
        %v8837 = vrot.slane %v8550, 2
        %v8838 = vrot.slane %v8551, 2
        %v8839 = vsel %vm2283, %v8837, %v8838
        %v8840 = vrot.slane %v8552, 2
        %v8841 = vrot.slane %v8553, 2
        %v8842 = vsel %vm2283, %v8840, %v8841
        %v8843 = vrot.slane %v8554, 2
        %v8844 = vrot.slane %v8555, 2
        %v8845 = vsel %vm2283, %v8843, %v8844
        %v8846 = vrot.slane %v8556, 2
        %v8847 = vrot.slane %v8557, 2
        %v8848 = vsel %vm2283, %v8846, %v8847
        %v8849 = vrot.slane %v8558, 2
        %v8850 = vrot.slane %v8559, 2
        %v8851 = vsel %vm2283, %v8849, %v8850
        %v8852 = vrot.slane %v8560, 2
        %v8853 = vrot.slane %v8561, 2
        %v8854 = vsel %vm2283, %v8852, %v8853
        %v8855 = vrot.slane %v8562, 2
        %v8856 = vrot.slane %v8563, 2
        %v8857 = vsel %vm2283, %v8855, %v8856
        %v8858 = vrot.slane %v8564, 2
        %v8859 = vrot.slane %v8565, 2
        %v8860 = vsel %vm2283, %v8858, %v8859
        %v8861 = vrot.slane %v8566, 2
        %v8862 = vrot.slane %v8567, 2
        %v8863 = vsel %vm2283, %v8861, %v8862
        %v8864 = vrot.slane %v8568, 2
        %v8865 = vrot.slane %v8569, 2
        %v8866 = vsel %vm2283, %v8864, %v8865
        %v8867 = vrot.slane %v8570, 2
        %v8868 = vrot.slane %v8571, 2
        %v8869 = vsel %vm2283, %v8867, %v8868
        %v8870 = vrot.slane %v8572, 2
        %v8871 = vrot.slane %v8573, 2
        %v8872 = vsel %vm2283, %v8870, %v8871
        %v8873 = vrot.slane %v8574, 2
        %v8874 = vrot.slane %v8575, 2
        %v8875 = vsel %vm2283, %v8873, %v8874
        %v8876 = vrot.slane %v8576, 2
        %v8877 = vrot.slane %v8577, 2
        %v8878 = vsel %vm2283, %v8876, %v8877
        %v8879 = vrot.slane %v8578, 2
        %v8880 = vrot.slane %v8579, 2
        %v8881 = vsel %vm2283, %v8879, %v8880
        %v8882 = vrot.slane %v8580, 2
        %v8883 = vrot.slane %v8581, 2
        %v8884 = vsel %vm2283, %v8882, %v8883
        %v8885 = vrot.slane %v8582, 2
        %v8886 = vrot.slane %v8583, 2
        %v8887 = vsel %vm2283, %v8885, %v8886
        %v8888 = vrot.slane %v8584, 2
        %v8889 = vrot.slane %v8585, 2
        %v8890 = vsel %vm2283, %v8888, %v8889
        %v8891 = vrot.slane %v8586, 2
        %v8892 = vrot.slane %v8587, 2
        %v8893 = vsel %vm2283, %v8891, %v8892
        %v8894 = vrot.slane %v8588, 2
        %v8895 = vrot.slane %v8589, 2
        %v8896 = vsel %vm2283, %v8894, %v8895
        %v8897 = vrot.slane %v8590, 2
        %v8898 = vrot.slane %v8591, 2
        %v8899 = vsel %vm2283, %v8897, %v8898
        %v8900 = vrot.slane %v8592, 2
        %v8901 = vrot.slane %v8593, 2
        %v8902 = vsel %vm2283, %v8900, %v8901
        %v8903 = vrot.slane %v8594, 2
        %v8904 = vrot.slane %v8595, 2
        %v8905 = vsel %vm2283, %v8903, %v8904
        %v8906 = vrot.slane %v8596, 2
        %v8907 = vrot.slane %v8597, 2
        %v8908 = vsel %vm2283, %v8906, %v8907
        %v8909 = vrot.slane %v8598, 2
        %v8910 = vrot.slane %v8599, 2
        %v8911 = vsel %vm2283, %v8909, %v8910
        %v8912 = vrot.slane %v8600, 2
        %v8913 = vrot.slane %v8601, 2
        %v8914 = vsel %vm2283, %v8912, %v8913
        %v8915 = vrot.slane %v8602, 2
        %v8916 = vrot.slane %v8603, 2
        %v8917 = vsel %vm2283, %v8915, %v8916
        %v8918 = vrot.slane %v8604, 2
        %v8919 = vrot.slane %v8605, 2
        %v8920 = vsel %vm2283, %v8918, %v8919
        %v8921 = vrot.slane %v8606, 2
        %v8922 = vrot.slane %v8607, 2
        %v8923 = vsel %vm2283, %v8921, %v8922
        %v8924 = vrot.slane %v8608, 2
        %v8925 = vrot.slane %v8609, 2
        %v8926 = vsel %vm2283, %v8924, %v8925
        %v8927 = vrot.slane %v8610, 2
        %v8928 = vrot.slane %v8611, 2
        %v8929 = vsel %vm2283, %v8927, %v8928
        %v8930 = vrot.slane %v8612, 2
        %v8931 = vrot.slane %v8613, 2
        %v8932 = vsel %vm2283, %v8930, %v8931
        %v8933 = vrot.slane %v8614, 2
        %v8934 = vrot.slane %v8615, 2
        %v8935 = vsel %vm2283, %v8933, %v8934
        %v9000 = vadd.f32 %v8420, %v8746
        %v9001 = vadd.f32 %v8421, %v8749
        %v9002 = vadd.f32 %v8422, %v8752
        %v9003 = vadd.f32 %v8423, %v8755
        %v9004 = vadd.f32 %v8424, %v8758
        %v9005 = vadd.f32 %v8425, %v8761
        %v9006 = vadd.f32 %v8426, %v8764
        %v9007 = vadd.f32 %v8427, %v8767
        %v9008 = vadd.f32 %v8428, %v8770
        %v9009 = vadd.f32 %v8429, %v8773
        %v9010 = vadd.f32 %v8430, %v8776
        %v9011 = vadd.f32 %v8431, %v8779
        %v9012 = vadd.f32 %v8432, %v8782
        %v9013 = vadd.f32 %v8433, %v8785
        %v9014 = vadd.f32 %v8434, %v8788
        %v9015 = vadd.f32 %v8435, %v8791
        %v9016 = vadd.f32 %v8436, %v8794
        %v9017 = vadd.f32 %v8437, %v8797
        %v9018 = vadd.f32 %v8438, %v8800
        %v9019 = vadd.f32 %v8439, %v8803
        %v9020 = vadd.f32 %v8440, %v8806
        %v9021 = vadd.f32 %v8441, %v8809
        %v9022 = vadd.f32 %v8442, %v8812
        %v9023 = vadd.f32 %v8443, %v8815
        %v9024 = vadd.f32 %v8444, %v8818
        %v9025 = vadd.f32 %v8445, %v8821
        %v9026 = vadd.f32 %v8446, %v8824
        %v9027 = vadd.f32 %v8447, %v8827
        %v9028 = vadd.f32 %v8448, %v8830
        %v9029 = vadd.f32 %v8449, %v8833
        %v9030 = vadd.f32 %v8450, %v8836
        %v9031 = vadd.f32 %v8451, %v8839
        %v9032 = vadd.f32 %v8452, %v8842
        %v9033 = vadd.f32 %v8453, %v8845
        %v9034 = vadd.f32 %v8454, %v8848
        %v9035 = vadd.f32 %v8455, %v8851
        %v9036 = vadd.f32 %v8456, %v8854
        %v9037 = vadd.f32 %v8457, %v8857
        %v9038 = vadd.f32 %v8458, %v8860
        %v9039 = vadd.f32 %v8459, %v8863
        %v9040 = vadd.f32 %v8460, %v8866
        %v9041 = vadd.f32 %v8461, %v8869
        %v9042 = vadd.f32 %v8462, %v8872
        %v9043 = vadd.f32 %v8463, %v8875
        %v9044 = vadd.f32 %v8464, %v8878
        %v9045 = vadd.f32 %v8465, %v8881
        %v9046 = vadd.f32 %v8466, %v8884
        %v9047 = vadd.f32 %v8467, %v8887
        %v9048 = vadd.f32 %v8468, %v8890
        %v9049 = vadd.f32 %v8469, %v8893
        %v9050 = vadd.f32 %v8470, %v8896
        %v9051 = vadd.f32 %v8471, %v8899
        %v9052 = vadd.f32 %v8472, %v8902
        %v9053 = vadd.f32 %v8473, %v8905
        %v9054 = vadd.f32 %v8474, %v8908
        %v9055 = vadd.f32 %v8475, %v8911
        %v9056 = vadd.f32 %v8476, %v8914
        %v9057 = vadd.f32 %v8477, %v8917
        %v9058 = vadd.f32 %v8478, %v8920
        %v9059 = vadd.f32 %v8479, %v8923
        %v9060 = vadd.f32 %v8480, %v8926
        %v9061 = vadd.f32 %v8481, %v8929
        %v9062 = vadd.f32 %v8482, %v8932
        %v9063 = vadd.f32 %v8483, %v8935
        %v9064 = vlaneseq
        %v9065 = vshrl.u32 %v9064, 7
        %v9066 = vsub.s32 2, %v9065
        %v9067 = vrot.slane %v1301, %v9066
        %v9068 = vmul.f32 %v1139, %v9067
        %v9069 = vmul.f32 %v1141, %v9067
        %v9070 = vmul.f32 %v1143, %v9067
        %v9071 = vmul.f32 %v1145, %v9067
        %v9072 = vmul.f32 %v1147, %v9067
        %v9073 = vmul.f32 %v1149, %v9067
        %v9074 = vmul.f32 %v1151, %v9067
        %v9075 = vmul.f32 %v1153, %v9067
        %v9076 = vmul.f32 %v1159, %v9067
        %v9077 = vmul.f32 %v1161, %v9067
        %v9078 = vmul.f32 %v1163, %v9067
        %v9079 = vmul.f32 %v1165, %v9067
        %v9080 = vmul.f32 %v1167, %v9067
        %v9081 = vmul.f32 %v1169, %v9067
        %v9082 = vmul.f32 %v1171, %v9067
        %v9083 = vmul.f32 %v1173, %v9067
        %v9084 = vmul.f32 %v1179, %v9067
        %v9085 = vmul.f32 %v1181, %v9067
        %v9086 = vmul.f32 %v1183, %v9067
        %v9087 = vmul.f32 %v1185, %v9067
        %v9088 = vmul.f32 %v1187, %v9067
        %v9089 = vmul.f32 %v1189, %v9067
        %v9090 = vmul.f32 %v1191, %v9067
        %v9091 = vmul.f32 %v1193, %v9067
        %v9092 = vmul.f32 %v1199, %v9067
        %v9093 = vmul.f32 %v1201, %v9067
        %v9094 = vmul.f32 %v1203, %v9067
        %v9095 = vmul.f32 %v1205, %v9067
        %v9096 = vmul.f32 %v1207, %v9067
        %v9097 = vmul.f32 %v1209, %v9067
        %v9098 = vmul.f32 %v1211, %v9067
        %v9099 = vmul.f32 %v1213, %v9067
        %v9100 = vmul.f32 %v1219, %v9067
        %v9101 = vmul.f32 %v1221, %v9067
        %v9102 = vmul.f32 %v1223, %v9067
        %v9103 = vmul.f32 %v1225, %v9067
        %v9104 = vmul.f32 %v1227, %v9067
        %v9105 = vmul.f32 %v1229, %v9067
        %v9106 = vmul.f32 %v1231, %v9067
        %v9107 = vmul.f32 %v1233, %v9067
        %v9108 = vmul.f32 %v1239, %v9067
        %v9109 = vmul.f32 %v1241, %v9067
        %v9110 = vmul.f32 %v1243, %v9067
        %v9111 = vmul.f32 %v1245, %v9067
        %v9112 = vmul.f32 %v1247, %v9067
        %v9113 = vmul.f32 %v1249, %v9067
        %v9114 = vmul.f32 %v1251, %v9067
        %v9115 = vmul.f32 %v1253, %v9067
        %v9116 = vmul.f32 %v1259, %v9067
        %v9117 = vmul.f32 %v1261, %v9067
        %v9118 = vmul.f32 %v1263, %v9067
        %v9119 = vmul.f32 %v1265, %v9067
        %v9120 = vmul.f32 %v1267, %v9067
        %v9121 = vmul.f32 %v1269, %v9067
        %v9122 = vmul.f32 %v1271, %v9067
        %v9123 = vmul.f32 %v1273, %v9067
        %v9124 = vmul.f32 %v1279, %v9067
        %v9125 = vmul.f32 %v1281, %v9067
        %v9126 = vmul.f32 %v1283, %v9067
        %v9127 = vmul.f32 %v1285, %v9067
        %v9128 = vmul.f32 %v1287, %v9067
        %v9129 = vmul.f32 %v1289, %v9067
        %v9130 = vmul.f32 %v1291, %v9067
        %v9131 = vmul.f32 %v1293, %v9067
        %v9132 = vadd.f32 %v9000, %v9068
        %v9133 = vadd.f32 %v9001, %v9069
        %v9134 = vadd.f32 %v9002, %v9070
        %v9135 = vadd.f32 %v9003, %v9071
        %v9136 = vadd.f32 %v9004, %v9072
        %v9137 = vadd.f32 %v9005, %v9073
        %v9138 = vadd.f32 %v9006, %v9074
        %v9139 = vadd.f32 %v9007, %v9075
        %v9140 = vadd.f32 %v9008, %v9076
        %v9141 = vadd.f32 %v9009, %v9077
        %v9142 = vadd.f32 %v9010, %v9078
        %v9143 = vadd.f32 %v9011, %v9079
        %v9144 = vadd.f32 %v9012, %v9080
        %v9145 = vadd.f32 %v9013, %v9081
        %v9146 = vadd.f32 %v9014, %v9082
        %v9147 = vadd.f32 %v9015, %v9083
        %v9148 = vadd.f32 %v9016, %v9084
        %v9149 = vadd.f32 %v9017, %v9085
        %v9150 = vadd.f32 %v9018, %v9086
        %v9151 = vadd.f32 %v9019, %v9087
        %v9152 = vadd.f32 %v9020, %v9088
        %v9153 = vadd.f32 %v9021, %v9089
        %v9154 = vadd.f32 %v9022, %v9090
        %v9155 = vadd.f32 %v9023, %v9091
        %v9156 = vadd.f32 %v9024, %v9092
        %v9157 = vadd.f32 %v9025, %v9093
        %v9158 = vadd.f32 %v9026, %v9094
        %v9159 = vadd.f32 %v9027, %v9095
        %v9160 = vadd.f32 %v9028, %v9096
        %v9161 = vadd.f32 %v9029, %v9097
        %v9162 = vadd.f32 %v9030, %v9098
        %v9163 = vadd.f32 %v9031, %v9099
        %v9164 = vadd.f32 %v9032, %v9100
        %v9165 = vadd.f32 %v9033, %v9101
        %v9166 = vadd.f32 %v9034, %v9102
        %v9167 = vadd.f32 %v9035, %v9103
        %v9168 = vadd.f32 %v9036, %v9104
        %v9169 = vadd.f32 %v9037, %v9105
        %v9170 = vadd.f32 %v9038, %v9106
        %v9171 = vadd.f32 %v9039, %v9107
        %v9172 = vadd.f32 %v9040, %v9108
        %v9173 = vadd.f32 %v9041, %v9109
        %v9174 = vadd.f32 %v9042, %v9110
        %v9175 = vadd.f32 %v9043, %v9111
        %v9176 = vadd.f32 %v9044, %v9112
        %v9177 = vadd.f32 %v9045, %v9113
        %v9178 = vadd.f32 %v9046, %v9114
        %v9179 = vadd.f32 %v9047, %v9115
        %v9180 = vadd.f32 %v9048, %v9116
        %v9181 = vadd.f32 %v9049, %v9117
        %v9182 = vadd.f32 %v9050, %v9118
        %v9183 = vadd.f32 %v9051, %v9119
        %v9184 = vadd.f32 %v9052, %v9120
        %v9185 = vadd.f32 %v9053, %v9121
        %v9186 = vadd.f32 %v9054, %v9122
        %v9187 = vadd.f32 %v9055, %v9123
        %v9188 = vadd.f32 %v9056, %v9124
        %v9189 = vadd.f32 %v9057, %v9125
        %v9190 = vadd.f32 %v9058, %v9126
        %v9191 = vadd.f32 %v9059, %v9127
        %v9192 = vadd.f32 %v9060, %v9128
        %v9193 = vadd.f32 %v9061, %v9129
        %v9194 = vadd.f32 %v9062, %v9130
        %v9195 = vadd.f32 %v9063, %v9131
        %v9196 = vlaneseq
        %v9197 = vshrl.u32 %v9196, 7
        %v9198 = vsub.s32 3, %v9197
        %v9199 = vrot.slane %v1301, %v9198
        %v9200 = vmul.f32 %v1139, %v9199
        %v9201 = vmul.f32 %v1140, %v9199
        %v9202 = vmul.f32 %v1141, %v9199
        %v9203 = vmul.f32 %v1142, %v9199
        %v9204 = vmul.f32 %v1143, %v9199
        %v9205 = vmul.f32 %v1144, %v9199
        %v9206 = vmul.f32 %v1145, %v9199
        %v9207 = vmul.f32 %v1146, %v9199
        %v9208 = vmul.f32 %v1147, %v9199
        %v9209 = vmul.f32 %v1148, %v9199
        %v9210 = vmul.f32 %v1149, %v9199
        %v9211 = vmul.f32 %v1150, %v9199
        %v9212 = vmul.f32 %v1151, %v9199
        %v9213 = vmul.f32 %v1152, %v9199
        %v9214 = vmul.f32 %v1153, %v9199
        %v9215 = vmul.f32 %v1154, %v9199
        %v9216 = vmul.f32 %v1159, %v9199
        %v9217 = vmul.f32 %v1160, %v9199
        %v9218 = vmul.f32 %v1161, %v9199
        %v9219 = vmul.f32 %v1162, %v9199
        %v9220 = vmul.f32 %v1163, %v9199
        %v9221 = vmul.f32 %v1164, %v9199
        %v9222 = vmul.f32 %v1165, %v9199
        %v9223 = vmul.f32 %v1166, %v9199
        %v9224 = vmul.f32 %v1167, %v9199
        %v9225 = vmul.f32 %v1168, %v9199
        %v9226 = vmul.f32 %v1169, %v9199
        %v9227 = vmul.f32 %v1170, %v9199
        %v9228 = vmul.f32 %v1171, %v9199
        %v9229 = vmul.f32 %v1172, %v9199
        %v9230 = vmul.f32 %v1173, %v9199
        %v9231 = vmul.f32 %v1174, %v9199
        %v9232 = vmul.f32 %v1179, %v9199
        %v9233 = vmul.f32 %v1180, %v9199
        %v9234 = vmul.f32 %v1181, %v9199
        %v9235 = vmul.f32 %v1182, %v9199
        %v9236 = vmul.f32 %v1183, %v9199
        %v9237 = vmul.f32 %v1184, %v9199
        %v9238 = vmul.f32 %v1185, %v9199
        %v9239 = vmul.f32 %v1186, %v9199
        %v9240 = vmul.f32 %v1187, %v9199
        %v9241 = vmul.f32 %v1188, %v9199
        %v9242 = vmul.f32 %v1189, %v9199
        %v9243 = vmul.f32 %v1190, %v9199
        %v9244 = vmul.f32 %v1191, %v9199
        %v9245 = vmul.f32 %v1192, %v9199
        %v9246 = vmul.f32 %v1193, %v9199
        %v9247 = vmul.f32 %v1194, %v9199
        %v9248 = vmul.f32 %v1199, %v9199
        %v9249 = vmul.f32 %v1200, %v9199
        %v9250 = vmul.f32 %v1201, %v9199
        %v9251 = vmul.f32 %v1202, %v9199
        %v9252 = vmul.f32 %v1203, %v9199
        %v9253 = vmul.f32 %v1204, %v9199
        %v9254 = vmul.f32 %v1205, %v9199
        %v9255 = vmul.f32 %v1206, %v9199
        %v9256 = vmul.f32 %v1207, %v9199
        %v9257 = vmul.f32 %v1208, %v9199
        %v9258 = vmul.f32 %v1209, %v9199
        %v9259 = vmul.f32 %v1210, %v9199
        %v9260 = vmul.f32 %v1211, %v9199
        %v9261 = vmul.f32 %v1212, %v9199
        %v9262 = vmul.f32 %v1213, %v9199
        %v9263 = vmul.f32 %v1214, %v9199
        %v9264 = vmul.f32 %v1219, %v9199
        %v9265 = vmul.f32 %v1220, %v9199
        %v9266 = vmul.f32 %v1221, %v9199
        %v9267 = vmul.f32 %v1222, %v9199
        %v9268 = vmul.f32 %v1223, %v9199
        %v9269 = vmul.f32 %v1224, %v9199
        %v9270 = vmul.f32 %v1225, %v9199
        %v9271 = vmul.f32 %v1226, %v9199
        %v9272 = vmul.f32 %v1227, %v9199
        %v9273 = vmul.f32 %v1228, %v9199
        %v9274 = vmul.f32 %v1229, %v9199
        %v9275 = vmul.f32 %v1230, %v9199
        %v9276 = vmul.f32 %v1231, %v9199
        %v9277 = vmul.f32 %v1232, %v9199
        %v9278 = vmul.f32 %v1233, %v9199
        %v9279 = vmul.f32 %v1234, %v9199
        %v9280 = vmul.f32 %v1239, %v9199
        %v9281 = vmul.f32 %v1240, %v9199
        %v9282 = vmul.f32 %v1241, %v9199
        %v9283 = vmul.f32 %v1242, %v9199
        %v9284 = vmul.f32 %v1243, %v9199
        %v9285 = vmul.f32 %v1244, %v9199
        %v9286 = vmul.f32 %v1245, %v9199
        %v9287 = vmul.f32 %v1246, %v9199
        %v9288 = vmul.f32 %v1247, %v9199
        %v9289 = vmul.f32 %v1248, %v9199
        %v9290 = vmul.f32 %v1249, %v9199
        %v9291 = vmul.f32 %v1250, %v9199
        %v9292 = vmul.f32 %v1251, %v9199
        %v9293 = vmul.f32 %v1252, %v9199
        %v9294 = vmul.f32 %v1253, %v9199
        %v9295 = vmul.f32 %v1254, %v9199
        %v9296 = vmul.f32 %v1259, %v9199
        %v9297 = vmul.f32 %v1260, %v9199
        %v9298 = vmul.f32 %v1261, %v9199
        %v9299 = vmul.f32 %v1262, %v9199
        %v9300 = vmul.f32 %v1263, %v9199
        %v9301 = vmul.f32 %v1264, %v9199
        %v9302 = vmul.f32 %v1265, %v9199
        %v9303 = vmul.f32 %v1266, %v9199
        %v9304 = vmul.f32 %v1267, %v9199
        %v9305 = vmul.f32 %v1268, %v9199
        %v9306 = vmul.f32 %v1269, %v9199
        %v9307 = vmul.f32 %v1270, %v9199
        %v9308 = vmul.f32 %v1271, %v9199
        %v9309 = vmul.f32 %v1272, %v9199
        %v9310 = vmul.f32 %v1273, %v9199
        %v9311 = vmul.f32 %v1274, %v9199
        %v9312 = vmul.f32 %v1279, %v9199
        %v9313 = vmul.f32 %v1280, %v9199
        %v9314 = vmul.f32 %v1281, %v9199
        %v9315 = vmul.f32 %v1282, %v9199
        %v9316 = vmul.f32 %v1283, %v9199
        %v9317 = vmul.f32 %v1284, %v9199
        %v9318 = vmul.f32 %v1285, %v9199
        %v9319 = vmul.f32 %v1286, %v9199
        %v9320 = vmul.f32 %v1287, %v9199
        %v9321 = vmul.f32 %v1288, %v9199
        %v9322 = vmul.f32 %v1289, %v9199
        %v9323 = vmul.f32 %v1290, %v9199
        %v9324 = vmul.f32 %v1291, %v9199
        %v9325 = vmul.f32 %v1292, %v9199
        %v9326 = vmul.f32 %v1293, %v9199
        %v9327 = vmul.f32 %v1294, %v9199
        %v9456 = vrot.slane %v9200, 1
        %v9457 = vrot.slane %v9201, 1
        %v9458 = vsel %vm1702, %v9456, %v9457
        %v9459 = vrot.slane %v9202, 1
        %v9460 = vrot.slane %v9203, 1
        %v9461 = vsel %vm1702, %v9459, %v9460
        %v9462 = vrot.slane %v9204, 1
        %v9463 = vrot.slane %v9205, 1
        %v9464 = vsel %vm1702, %v9462, %v9463
        %v9465 = vrot.slane %v9206, 1
        %v9466 = vrot.slane %v9207, 1
        %v9467 = vsel %vm1702, %v9465, %v9466
        %v9468 = vrot.slane %v9208, 1
        %v9469 = vrot.slane %v9209, 1
        %v9470 = vsel %vm1702, %v9468, %v9469
        %v9471 = vrot.slane %v9210, 1
        %v9472 = vrot.slane %v9211, 1
        %v9473 = vsel %vm1702, %v9471, %v9472
        %v9474 = vrot.slane %v9212, 1
        %v9475 = vrot.slane %v9213, 1
        %v9476 = vsel %vm1702, %v9474, %v9475
        %v9477 = vrot.slane %v9214, 1
        %v9478 = vrot.slane %v9215, 1
        %v9479 = vsel %vm1702, %v9477, %v9478
        %v9480 = vrot.slane %v9216, 1
        %v9481 = vrot.slane %v9217, 1
        %v9482 = vsel %vm1702, %v9480, %v9481
        %v9483 = vrot.slane %v9218, 1
        %v9484 = vrot.slane %v9219, 1
        %v9485 = vsel %vm1702, %v9483, %v9484
        %v9486 = vrot.slane %v9220, 1
        %v9487 = vrot.slane %v9221, 1
        %v9488 = vsel %vm1702, %v9486, %v9487
        %v9489 = vrot.slane %v9222, 1
        %v9490 = vrot.slane %v9223, 1
        %v9491 = vsel %vm1702, %v9489, %v9490
        %v9492 = vrot.slane %v9224, 1
        %v9493 = vrot.slane %v9225, 1
        %v9494 = vsel %vm1702, %v9492, %v9493
        %v9495 = vrot.slane %v9226, 1
        %v9496 = vrot.slane %v9227, 1
        %v9497 = vsel %vm1702, %v9495, %v9496
        %v9498 = vrot.slane %v9228, 1
        %v9499 = vrot.slane %v9229, 1
        %v9500 = vsel %vm1702, %v9498, %v9499
        %v9501 = vrot.slane %v9230, 1
        %v9502 = vrot.slane %v9231, 1
        %v9503 = vsel %vm1702, %v9501, %v9502
        %v9504 = vrot.slane %v9232, 1
        %v9505 = vrot.slane %v9233, 1
        %v9506 = vsel %vm1702, %v9504, %v9505
        %v9507 = vrot.slane %v9234, 1
        %v9508 = vrot.slane %v9235, 1
        %v9509 = vsel %vm1702, %v9507, %v9508
        %v9510 = vrot.slane %v9236, 1
        %v9511 = vrot.slane %v9237, 1
        %v9512 = vsel %vm1702, %v9510, %v9511
        %v9513 = vrot.slane %v9238, 1
        %v9514 = vrot.slane %v9239, 1
        %v9515 = vsel %vm1702, %v9513, %v9514
        %v9516 = vrot.slane %v9240, 1
        %v9517 = vrot.slane %v9241, 1
        %v9518 = vsel %vm1702, %v9516, %v9517
        %v9519 = vrot.slane %v9242, 1
        %v9520 = vrot.slane %v9243, 1
        %v9521 = vsel %vm1702, %v9519, %v9520
        %v9522 = vrot.slane %v9244, 1
        %v9523 = vrot.slane %v9245, 1
        %v9524 = vsel %vm1702, %v9522, %v9523
        %v9525 = vrot.slane %v9246, 1
        %v9526 = vrot.slane %v9247, 1
        %v9527 = vsel %vm1702, %v9525, %v9526
        %v9528 = vrot.slane %v9248, 1
        %v9529 = vrot.slane %v9249, 1
        %v9530 = vsel %vm1702, %v9528, %v9529
        %v9531 = vrot.slane %v9250, 1
        %v9532 = vrot.slane %v9251, 1
        %v9533 = vsel %vm1702, %v9531, %v9532
        %v9534 = vrot.slane %v9252, 1
        %v9535 = vrot.slane %v9253, 1
        %v9536 = vsel %vm1702, %v9534, %v9535
        %v9537 = vrot.slane %v9254, 1
        %v9538 = vrot.slane %v9255, 1
        %v9539 = vsel %vm1702, %v9537, %v9538
        %v9540 = vrot.slane %v9256, 1
        %v9541 = vrot.slane %v9257, 1
        %v9542 = vsel %vm1702, %v9540, %v9541
        %v9543 = vrot.slane %v9258, 1
        %v9544 = vrot.slane %v9259, 1
        %v9545 = vsel %vm1702, %v9543, %v9544
        %v9546 = vrot.slane %v9260, 1
        %v9547 = vrot.slane %v9261, 1
        %v9548 = vsel %vm1702, %v9546, %v9547
        %v9549 = vrot.slane %v9262, 1
        %v9550 = vrot.slane %v9263, 1
        %v9551 = vsel %vm1702, %v9549, %v9550
        %v9552 = vrot.slane %v9264, 1
        %v9553 = vrot.slane %v9265, 1
        %v9554 = vsel %vm1702, %v9552, %v9553
        %v9555 = vrot.slane %v9266, 1
        %v9556 = vrot.slane %v9267, 1
        %v9557 = vsel %vm1702, %v9555, %v9556
        %v9558 = vrot.slane %v9268, 1
        %v9559 = vrot.slane %v9269, 1
        %v9560 = vsel %vm1702, %v9558, %v9559
        %v9561 = vrot.slane %v9270, 1
        %v9562 = vrot.slane %v9271, 1
        %v9563 = vsel %vm1702, %v9561, %v9562
        %v9564 = vrot.slane %v9272, 1
        %v9565 = vrot.slane %v9273, 1
        %v9566 = vsel %vm1702, %v9564, %v9565
        %v9567 = vrot.slane %v9274, 1
        %v9568 = vrot.slane %v9275, 1
        %v9569 = vsel %vm1702, %v9567, %v9568
        %v9570 = vrot.slane %v9276, 1
        %v9571 = vrot.slane %v9277, 1
        %v9572 = vsel %vm1702, %v9570, %v9571
        %v9573 = vrot.slane %v9278, 1
        %v9574 = vrot.slane %v9279, 1
        %v9575 = vsel %vm1702, %v9573, %v9574
        %v9576 = vrot.slane %v9280, 1
        %v9577 = vrot.slane %v9281, 1
        %v9578 = vsel %vm1702, %v9576, %v9577
        %v9579 = vrot.slane %v9282, 1
        %v9580 = vrot.slane %v9283, 1
        %v9581 = vsel %vm1702, %v9579, %v9580
        %v9582 = vrot.slane %v9284, 1
        %v9583 = vrot.slane %v9285, 1
        %v9584 = vsel %vm1702, %v9582, %v9583
        %v9585 = vrot.slane %v9286, 1
        %v9586 = vrot.slane %v9287, 1
        %v9587 = vsel %vm1702, %v9585, %v9586
        %v9588 = vrot.slane %v9288, 1
        %v9589 = vrot.slane %v9289, 1
        %v9590 = vsel %vm1702, %v9588, %v9589
        %v9591 = vrot.slane %v9290, 1
        %v9592 = vrot.slane %v9291, 1
        %v9593 = vsel %vm1702, %v9591, %v9592
        %v9594 = vrot.slane %v9292, 1
        %v9595 = vrot.slane %v9293, 1
        %v9596 = vsel %vm1702, %v9594, %v9595
        %v9597 = vrot.slane %v9294, 1
        %v9598 = vrot.slane %v9295, 1
        %v9599 = vsel %vm1702, %v9597, %v9598
        %v9600 = vrot.slane %v9296, 1
        %v9601 = vrot.slane %v9297, 1
        %v9602 = vsel %vm1702, %v9600, %v9601
        %v9603 = vrot.slane %v9298, 1
        %v9604 = vrot.slane %v9299, 1
        %v9605 = vsel %vm1702, %v9603, %v9604
        %v9606 = vrot.slane %v9300, 1
        %v9607 = vrot.slane %v9301, 1
        %v9608 = vsel %vm1702, %v9606, %v9607
        %v9609 = vrot.slane %v9302, 1
        %v9610 = vrot.slane %v9303, 1
        %v9611 = vsel %vm1702, %v9609, %v9610
        %v9612 = vrot.slane %v9304, 1
        %v9613 = vrot.slane %v9305, 1
        %v9614 = vsel %vm1702, %v9612, %v9613
        %v9615 = vrot.slane %v9306, 1
        %v9616 = vrot.slane %v9307, 1
        %v9617 = vsel %vm1702, %v9615, %v9616
        %v9618 = vrot.slane %v9308, 1
        %v9619 = vrot.slane %v9309, 1
        %v9620 = vsel %vm1702, %v9618, %v9619
        %v9621 = vrot.slane %v9310, 1
        %v9622 = vrot.slane %v9311, 1
        %v9623 = vsel %vm1702, %v9621, %v9622
        %v9624 = vrot.slane %v9312, 1
        %v9625 = vrot.slane %v9313, 1
        %v9626 = vsel %vm1702, %v9624, %v9625
        %v9627 = vrot.slane %v9314, 1
        %v9628 = vrot.slane %v9315, 1
        %v9629 = vsel %vm1702, %v9627, %v9628
        %v9630 = vrot.slane %v9316, 1
        %v9631 = vrot.slane %v9317, 1
        %v9632 = vsel %vm1702, %v9630, %v9631
        %v9633 = vrot.slane %v9318, 1
        %v9634 = vrot.slane %v9319, 1
        %v9635 = vsel %vm1702, %v9633, %v9634
        %v9636 = vrot.slane %v9320, 1
        %v9637 = vrot.slane %v9321, 1
        %v9638 = vsel %vm1702, %v9636, %v9637
        %v9639 = vrot.slane %v9322, 1
        %v9640 = vrot.slane %v9323, 1
        %v9641 = vsel %vm1702, %v9639, %v9640
        %v9642 = vrot.slane %v9324, 1
        %v9643 = vrot.slane %v9325, 1
        %v9644 = vsel %vm1702, %v9642, %v9643
        %v9645 = vrot.slane %v9326, 1
        %v9646 = vrot.slane %v9327, 1
        %v9647 = vsel %vm1702, %v9645, %v9646
        %v9712 = vadd.f32 %v9132, %v9458
        %v9713 = vadd.f32 %v9133, %v9461
        %v9714 = vadd.f32 %v9134, %v9464
        %v9715 = vadd.f32 %v9135, %v9467
        %v9716 = vadd.f32 %v9136, %v9470
        %v9717 = vadd.f32 %v9137, %v9473
        %v9718 = vadd.f32 %v9138, %v9476
        %v9719 = vadd.f32 %v9139, %v9479
        %v9720 = vadd.f32 %v9140, %v9482
        %v9721 = vadd.f32 %v9141, %v9485
        %v9722 = vadd.f32 %v9142, %v9488
        %v9723 = vadd.f32 %v9143, %v9491
        %v9724 = vadd.f32 %v9144, %v9494
        %v9725 = vadd.f32 %v9145, %v9497
        %v9726 = vadd.f32 %v9146, %v9500
        %v9727 = vadd.f32 %v9147, %v9503
        %v9728 = vadd.f32 %v9148, %v9506
        %v9729 = vadd.f32 %v9149, %v9509
        %v9730 = vadd.f32 %v9150, %v9512
        %v9731 = vadd.f32 %v9151, %v9515
        %v9732 = vadd.f32 %v9152, %v9518
        %v9733 = vadd.f32 %v9153, %v9521
        %v9734 = vadd.f32 %v9154, %v9524
        %v9735 = vadd.f32 %v9155, %v9527
        %v9736 = vadd.f32 %v9156, %v9530
        %v9737 = vadd.f32 %v9157, %v9533
        %v9738 = vadd.f32 %v9158, %v9536
        %v9739 = vadd.f32 %v9159, %v9539
        %v9740 = vadd.f32 %v9160, %v9542
        %v9741 = vadd.f32 %v9161, %v9545
        %v9742 = vadd.f32 %v9162, %v9548
        %v9743 = vadd.f32 %v9163, %v9551
        %v9744 = vadd.f32 %v9164, %v9554
        %v9745 = vadd.f32 %v9165, %v9557
        %v9746 = vadd.f32 %v9166, %v9560
        %v9747 = vadd.f32 %v9167, %v9563
        %v9748 = vadd.f32 %v9168, %v9566
        %v9749 = vadd.f32 %v9169, %v9569
        %v9750 = vadd.f32 %v9170, %v9572
        %v9751 = vadd.f32 %v9171, %v9575
        %v9752 = vadd.f32 %v9172, %v9578
        %v9753 = vadd.f32 %v9173, %v9581
        %v9754 = vadd.f32 %v9174, %v9584
        %v9755 = vadd.f32 %v9175, %v9587
        %v9756 = vadd.f32 %v9176, %v9590
        %v9757 = vadd.f32 %v9177, %v9593
        %v9758 = vadd.f32 %v9178, %v9596
        %v9759 = vadd.f32 %v9179, %v9599
        %v9760 = vadd.f32 %v9180, %v9602
        %v9761 = vadd.f32 %v9181, %v9605
        %v9762 = vadd.f32 %v9182, %v9608
        %v9763 = vadd.f32 %v9183, %v9611
        %v9764 = vadd.f32 %v9184, %v9614
        %v9765 = vadd.f32 %v9185, %v9617
        %v9766 = vadd.f32 %v9186, %v9620
        %v9767 = vadd.f32 %v9187, %v9623
        %v9768 = vadd.f32 %v9188, %v9626
        %v9769 = vadd.f32 %v9189, %v9629
        %v9770 = vadd.f32 %v9190, %v9632
        %v9771 = vadd.f32 %v9191, %v9635
        %v9772 = vadd.f32 %v9192, %v9638
        %v9773 = vadd.f32 %v9193, %v9641
        %v9774 = vadd.f32 %v9194, %v9644
        %v9775 = vadd.f32 %v9195, %v9647
        %v9776 = vlaneseq
        %v9777 = vshrl.u32 %v9776, 7
        %v9778 = vsub.s32 4, %v9777
        %v9779 = vrot.slane %v1301, %v9778
        %v9780 = vmul.f32 %v1139, %v9779
        %v9781 = vmul.f32 %v1140, %v9779
        %v9782 = vmul.f32 %v1141, %v9779
        %v9783 = vmul.f32 %v1142, %v9779
        %v9784 = vmul.f32 %v1143, %v9779
        %v9785 = vmul.f32 %v1144, %v9779
        %v9786 = vmul.f32 %v1145, %v9779
        %v9787 = vmul.f32 %v1146, %v9779
        %v9788 = vmul.f32 %v1147, %v9779
        %v9789 = vmul.f32 %v1148, %v9779
        %v9790 = vmul.f32 %v1149, %v9779
        %v9791 = vmul.f32 %v1150, %v9779
        %v9792 = vmul.f32 %v1151, %v9779
        %v9793 = vmul.f32 %v1152, %v9779
        %v9794 = vmul.f32 %v1153, %v9779
        %v9795 = vmul.f32 %v1154, %v9779
        %v9796 = vmul.f32 %v1159, %v9779
        %v9797 = vmul.f32 %v1160, %v9779
        %v9798 = vmul.f32 %v1161, %v9779
        %v9799 = vmul.f32 %v1162, %v9779
        %v9800 = vmul.f32 %v1163, %v9779
        %v9801 = vmul.f32 %v1164, %v9779
        %v9802 = vmul.f32 %v1165, %v9779
        %v9803 = vmul.f32 %v1166, %v9779
        %v9804 = vmul.f32 %v1167, %v9779
        %v9805 = vmul.f32 %v1168, %v9779
        %v9806 = vmul.f32 %v1169, %v9779
        %v9807 = vmul.f32 %v1170, %v9779
        %v9808 = vmul.f32 %v1171, %v9779
        %v9809 = vmul.f32 %v1172, %v9779
        %v9810 = vmul.f32 %v1173, %v9779
        %v9811 = vmul.f32 %v1174, %v9779
        %v9812 = vmul.f32 %v1179, %v9779
        %v9813 = vmul.f32 %v1180, %v9779
        %v9814 = vmul.f32 %v1181, %v9779
        %v9815 = vmul.f32 %v1182, %v9779
        %v9816 = vmul.f32 %v1183, %v9779
        %v9817 = vmul.f32 %v1184, %v9779
        %v9818 = vmul.f32 %v1185, %v9779
        %v9819 = vmul.f32 %v1186, %v9779
        %v9820 = vmul.f32 %v1187, %v9779
        %v9821 = vmul.f32 %v1188, %v9779
        %v9822 = vmul.f32 %v1189, %v9779
        %v9823 = vmul.f32 %v1190, %v9779
        %v9824 = vmul.f32 %v1191, %v9779
        %v9825 = vmul.f32 %v1192, %v9779
        %v9826 = vmul.f32 %v1193, %v9779
        %v9827 = vmul.f32 %v1194, %v9779
        %v9828 = vmul.f32 %v1199, %v9779
        %v9829 = vmul.f32 %v1200, %v9779
        %v9830 = vmul.f32 %v1201, %v9779
        %v9831 = vmul.f32 %v1202, %v9779
        %v9832 = vmul.f32 %v1203, %v9779
        %v9833 = vmul.f32 %v1204, %v9779
        %v9834 = vmul.f32 %v1205, %v9779
        %v9835 = vmul.f32 %v1206, %v9779
        %v9836 = vmul.f32 %v1207, %v9779
        %v9837 = vmul.f32 %v1208, %v9779
        %v9838 = vmul.f32 %v1209, %v9779
        %v9839 = vmul.f32 %v1210, %v9779
        %v9840 = vmul.f32 %v1211, %v9779
        %v9841 = vmul.f32 %v1212, %v9779
        %v9842 = vmul.f32 %v1213, %v9779
        %v9843 = vmul.f32 %v1214, %v9779
        %v9844 = vmul.f32 %v1219, %v9779
        %v9845 = vmul.f32 %v1220, %v9779
        %v9846 = vmul.f32 %v1221, %v9779
        %v9847 = vmul.f32 %v1222, %v9779
        %v9848 = vmul.f32 %v1223, %v9779
        %v9849 = vmul.f32 %v1224, %v9779
        %v9850 = vmul.f32 %v1225, %v9779
        %v9851 = vmul.f32 %v1226, %v9779
        %v9852 = vmul.f32 %v1227, %v9779
        %v9853 = vmul.f32 %v1228, %v9779
        %v9854 = vmul.f32 %v1229, %v9779
        %v9855 = vmul.f32 %v1230, %v9779
        %v9856 = vmul.f32 %v1231, %v9779
        %v9857 = vmul.f32 %v1232, %v9779
        %v9858 = vmul.f32 %v1233, %v9779
        %v9859 = vmul.f32 %v1234, %v9779
        %v9860 = vmul.f32 %v1239, %v9779
        %v9861 = vmul.f32 %v1240, %v9779
        %v9862 = vmul.f32 %v1241, %v9779
        %v9863 = vmul.f32 %v1242, %v9779
        %v9864 = vmul.f32 %v1243, %v9779
        %v9865 = vmul.f32 %v1244, %v9779
        %v9866 = vmul.f32 %v1245, %v9779
        %v9867 = vmul.f32 %v1246, %v9779
        %v9868 = vmul.f32 %v1247, %v9779
        %v9869 = vmul.f32 %v1248, %v9779
        %v9870 = vmul.f32 %v1249, %v9779
        %v9871 = vmul.f32 %v1250, %v9779
        %v9872 = vmul.f32 %v1251, %v9779
        %v9873 = vmul.f32 %v1252, %v9779
        %v9874 = vmul.f32 %v1253, %v9779
        %v9875 = vmul.f32 %v1254, %v9779
        %v9876 = vmul.f32 %v1259, %v9779
        %v9877 = vmul.f32 %v1260, %v9779
        %v9878 = vmul.f32 %v1261, %v9779
        %v9879 = vmul.f32 %v1262, %v9779
        %v9880 = vmul.f32 %v1263, %v9779
        %v9881 = vmul.f32 %v1264, %v9779
        %v9882 = vmul.f32 %v1265, %v9779
        %v9883 = vmul.f32 %v1266, %v9779
        %v9884 = vmul.f32 %v1267, %v9779
        %v9885 = vmul.f32 %v1268, %v9779
        %v9886 = vmul.f32 %v1269, %v9779
        %v9887 = vmul.f32 %v1270, %v9779
        %v9888 = vmul.f32 %v1271, %v9779
        %v9889 = vmul.f32 %v1272, %v9779
        %v9890 = vmul.f32 %v1273, %v9779
        %v9891 = vmul.f32 %v1274, %v9779
        %v9892 = vmul.f32 %v1279, %v9779
        %v9893 = vmul.f32 %v1280, %v9779
        %v9894 = vmul.f32 %v1281, %v9779
        %v9895 = vmul.f32 %v1282, %v9779
        %v9896 = vmul.f32 %v1283, %v9779
        %v9897 = vmul.f32 %v1284, %v9779
        %v9898 = vmul.f32 %v1285, %v9779
        %v9899 = vmul.f32 %v1286, %v9779
        %v9900 = vmul.f32 %v1287, %v9779
        %v9901 = vmul.f32 %v1288, %v9779
        %v9902 = vmul.f32 %v1289, %v9779
        %v9903 = vmul.f32 %v1290, %v9779
        %v9904 = vmul.f32 %v1291, %v9779
        %v9905 = vmul.f32 %v1292, %v9779
        %v9906 = vmul.f32 %v1293, %v9779
        %v9907 = vmul.f32 %v1294, %v9779
        %v10036 = vrot.slane %v9780, 2
        %v10037 = vrot.slane %v9781, 2
        %v10038 = vsel %vm2283, %v10036, %v10037
        %v10039 = vrot.slane %v9782, 2
        %v10040 = vrot.slane %v9783, 2
        %v10041 = vsel %vm2283, %v10039, %v10040
        %v10042 = vrot.slane %v9784, 2
        %v10043 = vrot.slane %v9785, 2
        %v10044 = vsel %vm2283, %v10042, %v10043
        %v10045 = vrot.slane %v9786, 2
        %v10046 = vrot.slane %v9787, 2
        %v10047 = vsel %vm2283, %v10045, %v10046
        %v10048 = vrot.slane %v9788, 2
        %v10049 = vrot.slane %v9789, 2
        %v10050 = vsel %vm2283, %v10048, %v10049
        %v10051 = vrot.slane %v9790, 2
        %v10052 = vrot.slane %v9791, 2
        %v10053 = vsel %vm2283, %v10051, %v10052
        %v10054 = vrot.slane %v9792, 2
        %v10055 = vrot.slane %v9793, 2
        %v10056 = vsel %vm2283, %v10054, %v10055
        %v10057 = vrot.slane %v9794, 2
        %v10058 = vrot.slane %v9795, 2
        %v10059 = vsel %vm2283, %v10057, %v10058
        %v10060 = vrot.slane %v9796, 2
        %v10061 = vrot.slane %v9797, 2
        %v10062 = vsel %vm2283, %v10060, %v10061
        %v10063 = vrot.slane %v9798, 2
        %v10064 = vrot.slane %v9799, 2
        %v10065 = vsel %vm2283, %v10063, %v10064
        %v10066 = vrot.slane %v9800, 2
        %v10067 = vrot.slane %v9801, 2
        %v10068 = vsel %vm2283, %v10066, %v10067
        %v10069 = vrot.slane %v9802, 2
        %v10070 = vrot.slane %v9803, 2
        %v10071 = vsel %vm2283, %v10069, %v10070
        %v10072 = vrot.slane %v9804, 2
        %v10073 = vrot.slane %v9805, 2
        %v10074 = vsel %vm2283, %v10072, %v10073
        %v10075 = vrot.slane %v9806, 2
        %v10076 = vrot.slane %v9807, 2
        %v10077 = vsel %vm2283, %v10075, %v10076
        %v10078 = vrot.slane %v9808, 2
        %v10079 = vrot.slane %v9809, 2
        %v10080 = vsel %vm2283, %v10078, %v10079
        %v10081 = vrot.slane %v9810, 2
        %v10082 = vrot.slane %v9811, 2
        %v10083 = vsel %vm2283, %v10081, %v10082
        %v10084 = vrot.slane %v9812, 2
        %v10085 = vrot.slane %v9813, 2
        %v10086 = vsel %vm2283, %v10084, %v10085
        %v10087 = vrot.slane %v9814, 2
        %v10088 = vrot.slane %v9815, 2
        %v10089 = vsel %vm2283, %v10087, %v10088
        %v10090 = vrot.slane %v9816, 2
        %v10091 = vrot.slane %v9817, 2
        %v10092 = vsel %vm2283, %v10090, %v10091
        %v10093 = vrot.slane %v9818, 2
        %v10094 = vrot.slane %v9819, 2
        %v10095 = vsel %vm2283, %v10093, %v10094
        %v10096 = vrot.slane %v9820, 2
        %v10097 = vrot.slane %v9821, 2
        %v10098 = vsel %vm2283, %v10096, %v10097
        %v10099 = vrot.slane %v9822, 2
        %v10100 = vrot.slane %v9823, 2
        %v10101 = vsel %vm2283, %v10099, %v10100
        %v10102 = vrot.slane %v9824, 2
        %v10103 = vrot.slane %v9825, 2
        %v10104 = vsel %vm2283, %v10102, %v10103
        %v10105 = vrot.slane %v9826, 2
        %v10106 = vrot.slane %v9827, 2
        %v10107 = vsel %vm2283, %v10105, %v10106
        %v10108 = vrot.slane %v9828, 2
        %v10109 = vrot.slane %v9829, 2
        %v10110 = vsel %vm2283, %v10108, %v10109
        %v10111 = vrot.slane %v9830, 2
        %v10112 = vrot.slane %v9831, 2
        %v10113 = vsel %vm2283, %v10111, %v10112
        %v10114 = vrot.slane %v9832, 2
        %v10115 = vrot.slane %v9833, 2
        %v10116 = vsel %vm2283, %v10114, %v10115
        %v10117 = vrot.slane %v9834, 2
        %v10118 = vrot.slane %v9835, 2
        %v10119 = vsel %vm2283, %v10117, %v10118
        %v10120 = vrot.slane %v9836, 2
        %v10121 = vrot.slane %v9837, 2
        %v10122 = vsel %vm2283, %v10120, %v10121
        %v10123 = vrot.slane %v9838, 2
        %v10124 = vrot.slane %v9839, 2
        %v10125 = vsel %vm2283, %v10123, %v10124
        %v10126 = vrot.slane %v9840, 2
        %v10127 = vrot.slane %v9841, 2
        %v10128 = vsel %vm2283, %v10126, %v10127
        %v10129 = vrot.slane %v9842, 2
        %v10130 = vrot.slane %v9843, 2
        %v10131 = vsel %vm2283, %v10129, %v10130
        %v10132 = vrot.slane %v9844, 2
        %v10133 = vrot.slane %v9845, 2
        %v10134 = vsel %vm2283, %v10132, %v10133
        %v10135 = vrot.slane %v9846, 2
        %v10136 = vrot.slane %v9847, 2
        %v10137 = vsel %vm2283, %v10135, %v10136
        %v10138 = vrot.slane %v9848, 2
        %v10139 = vrot.slane %v9849, 2
        %v10140 = vsel %vm2283, %v10138, %v10139
        %v10141 = vrot.slane %v9850, 2
        %v10142 = vrot.slane %v9851, 2
        %v10143 = vsel %vm2283, %v10141, %v10142
        %v10144 = vrot.slane %v9852, 2
        %v10145 = vrot.slane %v9853, 2
        %v10146 = vsel %vm2283, %v10144, %v10145
        %v10147 = vrot.slane %v9854, 2
        %v10148 = vrot.slane %v9855, 2
        %v10149 = vsel %vm2283, %v10147, %v10148
        %v10150 = vrot.slane %v9856, 2
        %v10151 = vrot.slane %v9857, 2
        %v10152 = vsel %vm2283, %v10150, %v10151
        %v10153 = vrot.slane %v9858, 2
        %v10154 = vrot.slane %v9859, 2
        %v10155 = vsel %vm2283, %v10153, %v10154
        %v10156 = vrot.slane %v9860, 2
        %v10157 = vrot.slane %v9861, 2
        %v10158 = vsel %vm2283, %v10156, %v10157
        %v10159 = vrot.slane %v9862, 2
        %v10160 = vrot.slane %v9863, 2
        %v10161 = vsel %vm2283, %v10159, %v10160
        %v10162 = vrot.slane %v9864, 2
        %v10163 = vrot.slane %v9865, 2
        %v10164 = vsel %vm2283, %v10162, %v10163
        %v10165 = vrot.slane %v9866, 2
        %v10166 = vrot.slane %v9867, 2
        %v10167 = vsel %vm2283, %v10165, %v10166
        %v10168 = vrot.slane %v9868, 2
        %v10169 = vrot.slane %v9869, 2
        %v10170 = vsel %vm2283, %v10168, %v10169
        %v10171 = vrot.slane %v9870, 2
        %v10172 = vrot.slane %v9871, 2
        %v10173 = vsel %vm2283, %v10171, %v10172
        %v10174 = vrot.slane %v9872, 2
        %v10175 = vrot.slane %v9873, 2
        %v10176 = vsel %vm2283, %v10174, %v10175
        %v10177 = vrot.slane %v9874, 2
        %v10178 = vrot.slane %v9875, 2
        %v10179 = vsel %vm2283, %v10177, %v10178
        %v10180 = vrot.slane %v9876, 2
        %v10181 = vrot.slane %v9877, 2
        %v10182 = vsel %vm2283, %v10180, %v10181
        %v10183 = vrot.slane %v9878, 2
        %v10184 = vrot.slane %v9879, 2
        %v10185 = vsel %vm2283, %v10183, %v10184
        %v10186 = vrot.slane %v9880, 2
        %v10187 = vrot.slane %v9881, 2
        %v10188 = vsel %vm2283, %v10186, %v10187
        %v10189 = vrot.slane %v9882, 2
        %v10190 = vrot.slane %v9883, 2
        %v10191 = vsel %vm2283, %v10189, %v10190
        %v10192 = vrot.slane %v9884, 2
        %v10193 = vrot.slane %v9885, 2
        %v10194 = vsel %vm2283, %v10192, %v10193
        %v10195 = vrot.slane %v9886, 2
        %v10196 = vrot.slane %v9887, 2
        %v10197 = vsel %vm2283, %v10195, %v10196
        %v10198 = vrot.slane %v9888, 2
        %v10199 = vrot.slane %v9889, 2
        %v10200 = vsel %vm2283, %v10198, %v10199
        %v10201 = vrot.slane %v9890, 2
        %v10202 = vrot.slane %v9891, 2
        %v10203 = vsel %vm2283, %v10201, %v10202
        %v10204 = vrot.slane %v9892, 2
        %v10205 = vrot.slane %v9893, 2
        %v10206 = vsel %vm2283, %v10204, %v10205
        %v10207 = vrot.slane %v9894, 2
        %v10208 = vrot.slane %v9895, 2
        %v10209 = vsel %vm2283, %v10207, %v10208
        %v10210 = vrot.slane %v9896, 2
        %v10211 = vrot.slane %v9897, 2
        %v10212 = vsel %vm2283, %v10210, %v10211
        %v10213 = vrot.slane %v9898, 2
        %v10214 = vrot.slane %v9899, 2
        %v10215 = vsel %vm2283, %v10213, %v10214
        %v10216 = vrot.slane %v9900, 2
        %v10217 = vrot.slane %v9901, 2
        %v10218 = vsel %vm2283, %v10216, %v10217
        %v10219 = vrot.slane %v9902, 2
        %v10220 = vrot.slane %v9903, 2
        %v10221 = vsel %vm2283, %v10219, %v10220
        %v10222 = vrot.slane %v9904, 2
        %v10223 = vrot.slane %v9905, 2
        %v10224 = vsel %vm2283, %v10222, %v10223
        %v10225 = vrot.slane %v9906, 2
        %v10226 = vrot.slane %v9907, 2
        %v10227 = vsel %vm2283, %v10225, %v10226
        %v10292 = vadd.f32 %v9712, %v10038
        %v10293 = vadd.f32 %v9713, %v10041
        %v10294 = vadd.f32 %v9714, %v10044
        %v10295 = vadd.f32 %v9715, %v10047
        %v10296 = vadd.f32 %v9716, %v10050
        %v10297 = vadd.f32 %v9717, %v10053
        %v10298 = vadd.f32 %v9718, %v10056
        %v10299 = vadd.f32 %v9719, %v10059
        %v10300 = vadd.f32 %v9720, %v10062
        %v10301 = vadd.f32 %v9721, %v10065
        %v10302 = vadd.f32 %v9722, %v10068
        %v10303 = vadd.f32 %v9723, %v10071
        %v10304 = vadd.f32 %v9724, %v10074
        %v10305 = vadd.f32 %v9725, %v10077
        %v10306 = vadd.f32 %v9726, %v10080
        %v10307 = vadd.f32 %v9727, %v10083
        %v10308 = vadd.f32 %v9728, %v10086
        %v10309 = vadd.f32 %v9729, %v10089
        %v10310 = vadd.f32 %v9730, %v10092
        %v10311 = vadd.f32 %v9731, %v10095
        %v10312 = vadd.f32 %v9732, %v10098
        %v10313 = vadd.f32 %v9733, %v10101
        %v10314 = vadd.f32 %v9734, %v10104
        %v10315 = vadd.f32 %v9735, %v10107
        %v10316 = vadd.f32 %v9736, %v10110
        %v10317 = vadd.f32 %v9737, %v10113
        %v10318 = vadd.f32 %v9738, %v10116
        %v10319 = vadd.f32 %v9739, %v10119
        %v10320 = vadd.f32 %v9740, %v10122
        %v10321 = vadd.f32 %v9741, %v10125
        %v10322 = vadd.f32 %v9742, %v10128
        %v10323 = vadd.f32 %v9743, %v10131
        %v10324 = vadd.f32 %v9744, %v10134
        %v10325 = vadd.f32 %v9745, %v10137
        %v10326 = vadd.f32 %v9746, %v10140
        %v10327 = vadd.f32 %v9747, %v10143
        %v10328 = vadd.f32 %v9748, %v10146
        %v10329 = vadd.f32 %v9749, %v10149
        %v10330 = vadd.f32 %v9750, %v10152
        %v10331 = vadd.f32 %v9751, %v10155
        %v10332 = vadd.f32 %v9752, %v10158
        %v10333 = vadd.f32 %v9753, %v10161
        %v10334 = vadd.f32 %v9754, %v10164
        %v10335 = vadd.f32 %v9755, %v10167
        %v10336 = vadd.f32 %v9756, %v10170
        %v10337 = vadd.f32 %v9757, %v10173
        %v10338 = vadd.f32 %v9758, %v10176
        %v10339 = vadd.f32 %v9759, %v10179
        %v10340 = vadd.f32 %v9760, %v10182
        %v10341 = vadd.f32 %v9761, %v10185
        %v10342 = vadd.f32 %v9762, %v10188
        %v10343 = vadd.f32 %v9763, %v10191
        %v10344 = vadd.f32 %v9764, %v10194
        %v10345 = vadd.f32 %v9765, %v10197
        %v10346 = vadd.f32 %v9766, %v10200
        %v10347 = vadd.f32 %v9767, %v10203
        %v10348 = vadd.f32 %v9768, %v10206
        %v10349 = vadd.f32 %v9769, %v10209
        %v10350 = vadd.f32 %v9770, %v10212
        %v10351 = vadd.f32 %v9771, %v10215
        %v10352 = vadd.f32 %v9772, %v10218
        %v10353 = vadd.f32 %v9773, %v10221
        %v10354 = vadd.f32 %v9774, %v10224
        %v10355 = vadd.f32 %v9775, %v10227
        %v10356 = vlaneseq
        %v10357 = vshrl.u32 %v10356, 7
        %v10358 = vsub.s32 5, %v10357
        %v10359 = vrot.slane %v1301, %v10358
        %v10360 = vmul.f32 %v1141, %v10359
        %v10361 = vmul.f32 %v1143, %v10359
        %v10362 = vmul.f32 %v1145, %v10359
        %v10363 = vmul.f32 %v1147, %v10359
        %v10364 = vmul.f32 %v1149, %v10359
        %v10365 = vmul.f32 %v1151, %v10359
        %v10366 = vmul.f32 %v1153, %v10359
        %v10367 = vmul.f32 %v1155, %v10359
        %v10368 = vmul.f32 %v1161, %v10359
        %v10369 = vmul.f32 %v1163, %v10359
        %v10370 = vmul.f32 %v1165, %v10359
        %v10371 = vmul.f32 %v1167, %v10359
        %v10372 = vmul.f32 %v1169, %v10359
        %v10373 = vmul.f32 %v1171, %v10359
        %v10374 = vmul.f32 %v1173, %v10359
        %v10375 = vmul.f32 %v1175, %v10359
        %v10376 = vmul.f32 %v1181, %v10359
        %v10377 = vmul.f32 %v1183, %v10359
        %v10378 = vmul.f32 %v1185, %v10359
        %v10379 = vmul.f32 %v1187, %v10359
        %v10380 = vmul.f32 %v1189, %v10359
        %v10381 = vmul.f32 %v1191, %v10359
        %v10382 = vmul.f32 %v1193, %v10359
        %v10383 = vmul.f32 %v1195, %v10359
        %v10384 = vmul.f32 %v1201, %v10359
        %v10385 = vmul.f32 %v1203, %v10359
        %v10386 = vmul.f32 %v1205, %v10359
        %v10387 = vmul.f32 %v1207, %v10359
        %v10388 = vmul.f32 %v1209, %v10359
        %v10389 = vmul.f32 %v1211, %v10359
        %v10390 = vmul.f32 %v1213, %v10359
        %v10391 = vmul.f32 %v1215, %v10359
        %v10392 = vmul.f32 %v1221, %v10359
        %v10393 = vmul.f32 %v1223, %v10359
        %v10394 = vmul.f32 %v1225, %v10359
        %v10395 = vmul.f32 %v1227, %v10359
        %v10396 = vmul.f32 %v1229, %v10359
        %v10397 = vmul.f32 %v1231, %v10359
        %v10398 = vmul.f32 %v1233, %v10359
        %v10399 = vmul.f32 %v1235, %v10359
        %v10400 = vmul.f32 %v1241, %v10359
        %v10401 = vmul.f32 %v1243, %v10359
        %v10402 = vmul.f32 %v1245, %v10359
        %v10403 = vmul.f32 %v1247, %v10359
        %v10404 = vmul.f32 %v1249, %v10359
        %v10405 = vmul.f32 %v1251, %v10359
        %v10406 = vmul.f32 %v1253, %v10359
        %v10407 = vmul.f32 %v1255, %v10359
        %v10408 = vmul.f32 %v1261, %v10359
        %v10409 = vmul.f32 %v1263, %v10359
        %v10410 = vmul.f32 %v1265, %v10359
        %v10411 = vmul.f32 %v1267, %v10359
        %v10412 = vmul.f32 %v1269, %v10359
        %v10413 = vmul.f32 %v1271, %v10359
        %v10414 = vmul.f32 %v1273, %v10359
        %v10415 = vmul.f32 %v1275, %v10359
        %v10416 = vmul.f32 %v1281, %v10359
        %v10417 = vmul.f32 %v1283, %v10359
        %v10418 = vmul.f32 %v1285, %v10359
        %v10419 = vmul.f32 %v1287, %v10359
        %v10420 = vmul.f32 %v1289, %v10359
        %v10421 = vmul.f32 %v1291, %v10359
        %v10422 = vmul.f32 %v1293, %v10359
        %v10423 = vmul.f32 %v1295, %v10359
        %v10424 = vadd.f32 %v10292, %v10360
        %v10425 = vadd.f32 %v10293, %v10361
        %v10426 = vadd.f32 %v10294, %v10362
        %v10427 = vadd.f32 %v10295, %v10363
        %v10428 = vadd.f32 %v10296, %v10364
        %v10429 = vadd.f32 %v10297, %v10365
        %v10430 = vadd.f32 %v10298, %v10366
        %v10431 = vadd.f32 %v10299, %v10367
        %v10432 = vadd.f32 %v10300, %v10368
        %v10433 = vadd.f32 %v10301, %v10369
        %v10434 = vadd.f32 %v10302, %v10370
        %v10435 = vadd.f32 %v10303, %v10371
        %v10436 = vadd.f32 %v10304, %v10372
        %v10437 = vadd.f32 %v10305, %v10373
        %v10438 = vadd.f32 %v10306, %v10374
        %v10439 = vadd.f32 %v10307, %v10375
        %v10440 = vadd.f32 %v10308, %v10376
        %v10441 = vadd.f32 %v10309, %v10377
        %v10442 = vadd.f32 %v10310, %v10378
        %v10443 = vadd.f32 %v10311, %v10379
        %v10444 = vadd.f32 %v10312, %v10380
        %v10445 = vadd.f32 %v10313, %v10381
        %v10446 = vadd.f32 %v10314, %v10382
        %v10447 = vadd.f32 %v10315, %v10383
        %v10448 = vadd.f32 %v10316, %v10384
        %v10449 = vadd.f32 %v10317, %v10385
        %v10450 = vadd.f32 %v10318, %v10386
        %v10451 = vadd.f32 %v10319, %v10387
        %v10452 = vadd.f32 %v10320, %v10388
        %v10453 = vadd.f32 %v10321, %v10389
        %v10454 = vadd.f32 %v10322, %v10390
        %v10455 = vadd.f32 %v10323, %v10391
        %v10456 = vadd.f32 %v10324, %v10392
        %v10457 = vadd.f32 %v10325, %v10393
        %v10458 = vadd.f32 %v10326, %v10394
        %v10459 = vadd.f32 %v10327, %v10395
        %v10460 = vadd.f32 %v10328, %v10396
        %v10461 = vadd.f32 %v10329, %v10397
        %v10462 = vadd.f32 %v10330, %v10398
        %v10463 = vadd.f32 %v10331, %v10399
        %v10464 = vadd.f32 %v10332, %v10400
        %v10465 = vadd.f32 %v10333, %v10401
        %v10466 = vadd.f32 %v10334, %v10402
        %v10467 = vadd.f32 %v10335, %v10403
        %v10468 = vadd.f32 %v10336, %v10404
        %v10469 = vadd.f32 %v10337, %v10405
        %v10470 = vadd.f32 %v10338, %v10406
        %v10471 = vadd.f32 %v10339, %v10407
        %v10472 = vadd.f32 %v10340, %v10408
        %v10473 = vadd.f32 %v10341, %v10409
        %v10474 = vadd.f32 %v10342, %v10410
        %v10475 = vadd.f32 %v10343, %v10411
        %v10476 = vadd.f32 %v10344, %v10412
        %v10477 = vadd.f32 %v10345, %v10413
        %v10478 = vadd.f32 %v10346, %v10414
        %v10479 = vadd.f32 %v10347, %v10415
        %v10480 = vadd.f32 %v10348, %v10416
        %v10481 = vadd.f32 %v10349, %v10417
        %v10482 = vadd.f32 %v10350, %v10418
        %v10483 = vadd.f32 %v10351, %v10419
        %v10484 = vadd.f32 %v10352, %v10420
        %v10485 = vadd.f32 %v10353, %v10421
        %v10486 = vadd.f32 %v10354, %v10422
        %v10487 = vadd.f32 %v10355, %v10423
        %v10488 = vlaneseq
        %v10489 = vshrl.u32 %v10488, 7
        %v10490 = vsub.s32 6, %v10489
        %v10491 = vrot.slane %v1301, %v10490
        %v10492 = vmul.f32 %v1141, %v10491
        %v10493 = vmul.f32 %v1142, %v10491
        %v10494 = vmul.f32 %v1143, %v10491
        %v10495 = vmul.f32 %v1144, %v10491
        %v10496 = vmul.f32 %v1145, %v10491
        %v10497 = vmul.f32 %v1146, %v10491
        %v10498 = vmul.f32 %v1147, %v10491
        %v10499 = vmul.f32 %v1148, %v10491
        %v10500 = vmul.f32 %v1149, %v10491
        %v10501 = vmul.f32 %v1150, %v10491
        %v10502 = vmul.f32 %v1151, %v10491
        %v10503 = vmul.f32 %v1152, %v10491
        %v10504 = vmul.f32 %v1153, %v10491
        %v10505 = vmul.f32 %v1154, %v10491
        %v10506 = vmul.f32 %v1155, %v10491
        %v10507 = vmul.f32 %v1156, %v10491
        %v10508 = vmul.f32 %v1161, %v10491
        %v10509 = vmul.f32 %v1162, %v10491
        %v10510 = vmul.f32 %v1163, %v10491
        %v10511 = vmul.f32 %v1164, %v10491
        %v10512 = vmul.f32 %v1165, %v10491
        %v10513 = vmul.f32 %v1166, %v10491
        %v10514 = vmul.f32 %v1167, %v10491
        %v10515 = vmul.f32 %v1168, %v10491
        %v10516 = vmul.f32 %v1169, %v10491
        %v10517 = vmul.f32 %v1170, %v10491
        %v10518 = vmul.f32 %v1171, %v10491
        %v10519 = vmul.f32 %v1172, %v10491
        %v10520 = vmul.f32 %v1173, %v10491
        %v10521 = vmul.f32 %v1174, %v10491
        %v10522 = vmul.f32 %v1175, %v10491
        %v10523 = vmul.f32 %v1176, %v10491
        %v10524 = vmul.f32 %v1181, %v10491
        %v10525 = vmul.f32 %v1182, %v10491
        %v10526 = vmul.f32 %v1183, %v10491
        %v10527 = vmul.f32 %v1184, %v10491
        %v10528 = vmul.f32 %v1185, %v10491
        %v10529 = vmul.f32 %v1186, %v10491
        %v10530 = vmul.f32 %v1187, %v10491
        %v10531 = vmul.f32 %v1188, %v10491
        %v10532 = vmul.f32 %v1189, %v10491
        %v10533 = vmul.f32 %v1190, %v10491
        %v10534 = vmul.f32 %v1191, %v10491
        %v10535 = vmul.f32 %v1192, %v10491
        %v10536 = vmul.f32 %v1193, %v10491
        %v10537 = vmul.f32 %v1194, %v10491
        %v10538 = vmul.f32 %v1195, %v10491
        %v10539 = vmul.f32 %v1196, %v10491
        %v10540 = vmul.f32 %v1201, %v10491
        %v10541 = vmul.f32 %v1202, %v10491
        %v10542 = vmul.f32 %v1203, %v10491
        %v10543 = vmul.f32 %v1204, %v10491
        %v10544 = vmul.f32 %v1205, %v10491
        %v10545 = vmul.f32 %v1206, %v10491
        %v10546 = vmul.f32 %v1207, %v10491
        %v10547 = vmul.f32 %v1208, %v10491
        %v10548 = vmul.f32 %v1209, %v10491
        %v10549 = vmul.f32 %v1210, %v10491
        %v10550 = vmul.f32 %v1211, %v10491
        %v10551 = vmul.f32 %v1212, %v10491
        %v10552 = vmul.f32 %v1213, %v10491
        %v10553 = vmul.f32 %v1214, %v10491
        %v10554 = vmul.f32 %v1215, %v10491
        %v10555 = vmul.f32 %v1216, %v10491
        %v10556 = vmul.f32 %v1221, %v10491
        %v10557 = vmul.f32 %v1222, %v10491
        %v10558 = vmul.f32 %v1223, %v10491
        %v10559 = vmul.f32 %v1224, %v10491
        %v10560 = vmul.f32 %v1225, %v10491
        %v10561 = vmul.f32 %v1226, %v10491
        %v10562 = vmul.f32 %v1227, %v10491
        %v10563 = vmul.f32 %v1228, %v10491
        %v10564 = vmul.f32 %v1229, %v10491
        %v10565 = vmul.f32 %v1230, %v10491
        %v10566 = vmul.f32 %v1231, %v10491
        %v10567 = vmul.f32 %v1232, %v10491
        %v10568 = vmul.f32 %v1233, %v10491
        %v10569 = vmul.f32 %v1234, %v10491
        %v10570 = vmul.f32 %v1235, %v10491
        %v10571 = vmul.f32 %v1236, %v10491
        %v10572 = vmul.f32 %v1241, %v10491
        %v10573 = vmul.f32 %v1242, %v10491
        %v10574 = vmul.f32 %v1243, %v10491
        %v10575 = vmul.f32 %v1244, %v10491
        %v10576 = vmul.f32 %v1245, %v10491
        %v10577 = vmul.f32 %v1246, %v10491
        %v10578 = vmul.f32 %v1247, %v10491
        %v10579 = vmul.f32 %v1248, %v10491
        %v10580 = vmul.f32 %v1249, %v10491
        %v10581 = vmul.f32 %v1250, %v10491
        %v10582 = vmul.f32 %v1251, %v10491
        %v10583 = vmul.f32 %v1252, %v10491
        %v10584 = vmul.f32 %v1253, %v10491
        %v10585 = vmul.f32 %v1254, %v10491
        %v10586 = vmul.f32 %v1255, %v10491
        %v10587 = vmul.f32 %v1256, %v10491
        %v10588 = vmul.f32 %v1261, %v10491
        %v10589 = vmul.f32 %v1262, %v10491
        %v10590 = vmul.f32 %v1263, %v10491
        %v10591 = vmul.f32 %v1264, %v10491
        %v10592 = vmul.f32 %v1265, %v10491
        %v10593 = vmul.f32 %v1266, %v10491
        %v10594 = vmul.f32 %v1267, %v10491
        %v10595 = vmul.f32 %v1268, %v10491
        %v10596 = vmul.f32 %v1269, %v10491
        %v10597 = vmul.f32 %v1270, %v10491
        %v10598 = vmul.f32 %v1271, %v10491
        %v10599 = vmul.f32 %v1272, %v10491
        %v10600 = vmul.f32 %v1273, %v10491
        %v10601 = vmul.f32 %v1274, %v10491
        %v10602 = vmul.f32 %v1275, %v10491
        %v10603 = vmul.f32 %v1276, %v10491
        %v10604 = vmul.f32 %v1281, %v10491
        %v10605 = vmul.f32 %v1282, %v10491
        %v10606 = vmul.f32 %v1283, %v10491
        %v10607 = vmul.f32 %v1284, %v10491
        %v10608 = vmul.f32 %v1285, %v10491
        %v10609 = vmul.f32 %v1286, %v10491
        %v10610 = vmul.f32 %v1287, %v10491
        %v10611 = vmul.f32 %v1288, %v10491
        %v10612 = vmul.f32 %v1289, %v10491
        %v10613 = vmul.f32 %v1290, %v10491
        %v10614 = vmul.f32 %v1291, %v10491
        %v10615 = vmul.f32 %v1292, %v10491
        %v10616 = vmul.f32 %v1293, %v10491
        %v10617 = vmul.f32 %v1294, %v10491
        %v10618 = vmul.f32 %v1295, %v10491
        %v10619 = vmul.f32 %v1296, %v10491
        %v10748 = vrot.slane %v10492, 1
        %v10749 = vrot.slane %v10493, 1
        %v10750 = vsel %vm1702, %v10748, %v10749
        %v10751 = vrot.slane %v10494, 1
        %v10752 = vrot.slane %v10495, 1
        %v10753 = vsel %vm1702, %v10751, %v10752
        %v10754 = vrot.slane %v10496, 1
        %v10755 = vrot.slane %v10497, 1
        %v10756 = vsel %vm1702, %v10754, %v10755
        %v10757 = vrot.slane %v10498, 1
        %v10758 = vrot.slane %v10499, 1
        %v10759 = vsel %vm1702, %v10757, %v10758
        %v10760 = vrot.slane %v10500, 1
        %v10761 = vrot.slane %v10501, 1
        %v10762 = vsel %vm1702, %v10760, %v10761
        %v10763 = vrot.slane %v10502, 1
        %v10764 = vrot.slane %v10503, 1
        %v10765 = vsel %vm1702, %v10763, %v10764
        %v10766 = vrot.slane %v10504, 1
        %v10767 = vrot.slane %v10505, 1
        %v10768 = vsel %vm1702, %v10766, %v10767
        %v10769 = vrot.slane %v10506, 1
        %v10770 = vrot.slane %v10507, 1
        %v10771 = vsel %vm1702, %v10769, %v10770
        %v10772 = vrot.slane %v10508, 1
        %v10773 = vrot.slane %v10509, 1
        %v10774 = vsel %vm1702, %v10772, %v10773
        %v10775 = vrot.slane %v10510, 1
        %v10776 = vrot.slane %v10511, 1
        %v10777 = vsel %vm1702, %v10775, %v10776
        %v10778 = vrot.slane %v10512, 1
        %v10779 = vrot.slane %v10513, 1
        %v10780 = vsel %vm1702, %v10778, %v10779
        %v10781 = vrot.slane %v10514, 1
        %v10782 = vrot.slane %v10515, 1
        %v10783 = vsel %vm1702, %v10781, %v10782
        %v10784 = vrot.slane %v10516, 1
        %v10785 = vrot.slane %v10517, 1
        %v10786 = vsel %vm1702, %v10784, %v10785
        %v10787 = vrot.slane %v10518, 1
        %v10788 = vrot.slane %v10519, 1
        %v10789 = vsel %vm1702, %v10787, %v10788
        %v10790 = vrot.slane %v10520, 1
        %v10791 = vrot.slane %v10521, 1
        %v10792 = vsel %vm1702, %v10790, %v10791
        %v10793 = vrot.slane %v10522, 1
        %v10794 = vrot.slane %v10523, 1
        %v10795 = vsel %vm1702, %v10793, %v10794
        %v10796 = vrot.slane %v10524, 1
        %v10797 = vrot.slane %v10525, 1
        %v10798 = vsel %vm1702, %v10796, %v10797
        %v10799 = vrot.slane %v10526, 1
        %v10800 = vrot.slane %v10527, 1
        %v10801 = vsel %vm1702, %v10799, %v10800
        %v10802 = vrot.slane %v10528, 1
        %v10803 = vrot.slane %v10529, 1
        %v10804 = vsel %vm1702, %v10802, %v10803
        %v10805 = vrot.slane %v10530, 1
        %v10806 = vrot.slane %v10531, 1
        %v10807 = vsel %vm1702, %v10805, %v10806
        %v10808 = vrot.slane %v10532, 1
        %v10809 = vrot.slane %v10533, 1
        %v10810 = vsel %vm1702, %v10808, %v10809
        %v10811 = vrot.slane %v10534, 1
        %v10812 = vrot.slane %v10535, 1
        %v10813 = vsel %vm1702, %v10811, %v10812
        %v10814 = vrot.slane %v10536, 1
        %v10815 = vrot.slane %v10537, 1
        %v10816 = vsel %vm1702, %v10814, %v10815
        %v10817 = vrot.slane %v10538, 1
        %v10818 = vrot.slane %v10539, 1
        %v10819 = vsel %vm1702, %v10817, %v10818
        %v10820 = vrot.slane %v10540, 1
        %v10821 = vrot.slane %v10541, 1
        %v10822 = vsel %vm1702, %v10820, %v10821
        %v10823 = vrot.slane %v10542, 1
        %v10824 = vrot.slane %v10543, 1
        %v10825 = vsel %vm1702, %v10823, %v10824
        %v10826 = vrot.slane %v10544, 1
        %v10827 = vrot.slane %v10545, 1
        %v10828 = vsel %vm1702, %v10826, %v10827
        %v10829 = vrot.slane %v10546, 1
        %v10830 = vrot.slane %v10547, 1
        %v10831 = vsel %vm1702, %v10829, %v10830
        %v10832 = vrot.slane %v10548, 1
        %v10833 = vrot.slane %v10549, 1
        %v10834 = vsel %vm1702, %v10832, %v10833
        %v10835 = vrot.slane %v10550, 1
        %v10836 = vrot.slane %v10551, 1
        %v10837 = vsel %vm1702, %v10835, %v10836
        %v10838 = vrot.slane %v10552, 1
        %v10839 = vrot.slane %v10553, 1
        %v10840 = vsel %vm1702, %v10838, %v10839
        %v10841 = vrot.slane %v10554, 1
        %v10842 = vrot.slane %v10555, 1
        %v10843 = vsel %vm1702, %v10841, %v10842
        %v10844 = vrot.slane %v10556, 1
        %v10845 = vrot.slane %v10557, 1
        %v10846 = vsel %vm1702, %v10844, %v10845
        %v10847 = vrot.slane %v10558, 1
        %v10848 = vrot.slane %v10559, 1
        %v10849 = vsel %vm1702, %v10847, %v10848
        %v10850 = vrot.slane %v10560, 1
        %v10851 = vrot.slane %v10561, 1
        %v10852 = vsel %vm1702, %v10850, %v10851
        %v10853 = vrot.slane %v10562, 1
        %v10854 = vrot.slane %v10563, 1
        %v10855 = vsel %vm1702, %v10853, %v10854
        %v10856 = vrot.slane %v10564, 1
        %v10857 = vrot.slane %v10565, 1
        %v10858 = vsel %vm1702, %v10856, %v10857
        %v10859 = vrot.slane %v10566, 1
        %v10860 = vrot.slane %v10567, 1
        %v10861 = vsel %vm1702, %v10859, %v10860
        %v10862 = vrot.slane %v10568, 1
        %v10863 = vrot.slane %v10569, 1
        %v10864 = vsel %vm1702, %v10862, %v10863
        %v10865 = vrot.slane %v10570, 1
        %v10866 = vrot.slane %v10571, 1
        %v10867 = vsel %vm1702, %v10865, %v10866
        %v10868 = vrot.slane %v10572, 1
        %v10869 = vrot.slane %v10573, 1
        %v10870 = vsel %vm1702, %v10868, %v10869
        %v10871 = vrot.slane %v10574, 1
        %v10872 = vrot.slane %v10575, 1
        %v10873 = vsel %vm1702, %v10871, %v10872
        %v10874 = vrot.slane %v10576, 1
        %v10875 = vrot.slane %v10577, 1
        %v10876 = vsel %vm1702, %v10874, %v10875
        %v10877 = vrot.slane %v10578, 1
        %v10878 = vrot.slane %v10579, 1
        %v10879 = vsel %vm1702, %v10877, %v10878
        %v10880 = vrot.slane %v10580, 1
        %v10881 = vrot.slane %v10581, 1
        %v10882 = vsel %vm1702, %v10880, %v10881
        %v10883 = vrot.slane %v10582, 1
        %v10884 = vrot.slane %v10583, 1
        %v10885 = vsel %vm1702, %v10883, %v10884
        %v10886 = vrot.slane %v10584, 1
        %v10887 = vrot.slane %v10585, 1
        %v10888 = vsel %vm1702, %v10886, %v10887
        %v10889 = vrot.slane %v10586, 1
        %v10890 = vrot.slane %v10587, 1
        %v10891 = vsel %vm1702, %v10889, %v10890
        %v10892 = vrot.slane %v10588, 1
        %v10893 = vrot.slane %v10589, 1
        %v10894 = vsel %vm1702, %v10892, %v10893
        %v10895 = vrot.slane %v10590, 1
        %v10896 = vrot.slane %v10591, 1
        %v10897 = vsel %vm1702, %v10895, %v10896
        %v10898 = vrot.slane %v10592, 1
        %v10899 = vrot.slane %v10593, 1
        %v10900 = vsel %vm1702, %v10898, %v10899
        %v10901 = vrot.slane %v10594, 1
        %v10902 = vrot.slane %v10595, 1
        %v10903 = vsel %vm1702, %v10901, %v10902
        %v10904 = vrot.slane %v10596, 1
        %v10905 = vrot.slane %v10597, 1
        %v10906 = vsel %vm1702, %v10904, %v10905
        %v10907 = vrot.slane %v10598, 1
        %v10908 = vrot.slane %v10599, 1
        %v10909 = vsel %vm1702, %v10907, %v10908
        %v10910 = vrot.slane %v10600, 1
        %v10911 = vrot.slane %v10601, 1
        %v10912 = vsel %vm1702, %v10910, %v10911
        %v10913 = vrot.slane %v10602, 1
        %v10914 = vrot.slane %v10603, 1
        %v10915 = vsel %vm1702, %v10913, %v10914
        %v10916 = vrot.slane %v10604, 1
        %v10917 = vrot.slane %v10605, 1
        %v10918 = vsel %vm1702, %v10916, %v10917
        %v10919 = vrot.slane %v10606, 1
        %v10920 = vrot.slane %v10607, 1
        %v10921 = vsel %vm1702, %v10919, %v10920
        %v10922 = vrot.slane %v10608, 1
        %v10923 = vrot.slane %v10609, 1
        %v10924 = vsel %vm1702, %v10922, %v10923
        %v10925 = vrot.slane %v10610, 1
        %v10926 = vrot.slane %v10611, 1
        %v10927 = vsel %vm1702, %v10925, %v10926
        %v10928 = vrot.slane %v10612, 1
        %v10929 = vrot.slane %v10613, 1
        %v10930 = vsel %vm1702, %v10928, %v10929
        %v10931 = vrot.slane %v10614, 1
        %v10932 = vrot.slane %v10615, 1
        %v10933 = vsel %vm1702, %v10931, %v10932
        %v10934 = vrot.slane %v10616, 1
        %v10935 = vrot.slane %v10617, 1
        %v10936 = vsel %vm1702, %v10934, %v10935
        %v10937 = vrot.slane %v10618, 1
        %v10938 = vrot.slane %v10619, 1
        %v10939 = vsel %vm1702, %v10937, %v10938
        %v11004 = vadd.f32 %v10424, %v10750
        %v11005 = vadd.f32 %v10425, %v10753
        %v11006 = vadd.f32 %v10426, %v10756
        %v11007 = vadd.f32 %v10427, %v10759
        %v11008 = vadd.f32 %v10428, %v10762
        %v11009 = vadd.f32 %v10429, %v10765
        %v11010 = vadd.f32 %v10430, %v10768
        %v11011 = vadd.f32 %v10431, %v10771
        %v11012 = vadd.f32 %v10432, %v10774
        %v11013 = vadd.f32 %v10433, %v10777
        %v11014 = vadd.f32 %v10434, %v10780
        %v11015 = vadd.f32 %v10435, %v10783
        %v11016 = vadd.f32 %v10436, %v10786
        %v11017 = vadd.f32 %v10437, %v10789
        %v11018 = vadd.f32 %v10438, %v10792
        %v11019 = vadd.f32 %v10439, %v10795
        %v11020 = vadd.f32 %v10440, %v10798
        %v11021 = vadd.f32 %v10441, %v10801
        %v11022 = vadd.f32 %v10442, %v10804
        %v11023 = vadd.f32 %v10443, %v10807
        %v11024 = vadd.f32 %v10444, %v10810
        %v11025 = vadd.f32 %v10445, %v10813
        %v11026 = vadd.f32 %v10446, %v10816
        %v11027 = vadd.f32 %v10447, %v10819
        %v11028 = vadd.f32 %v10448, %v10822
        %v11029 = vadd.f32 %v10449, %v10825
        %v11030 = vadd.f32 %v10450, %v10828
        %v11031 = vadd.f32 %v10451, %v10831
        %v11032 = vadd.f32 %v10452, %v10834
        %v11033 = vadd.f32 %v10453, %v10837
        %v11034 = vadd.f32 %v10454, %v10840
        %v11035 = vadd.f32 %v10455, %v10843
        %v11036 = vadd.f32 %v10456, %v10846
        %v11037 = vadd.f32 %v10457, %v10849
        %v11038 = vadd.f32 %v10458, %v10852
        %v11039 = vadd.f32 %v10459, %v10855
        %v11040 = vadd.f32 %v10460, %v10858
        %v11041 = vadd.f32 %v10461, %v10861
        %v11042 = vadd.f32 %v10462, %v10864
        %v11043 = vadd.f32 %v10463, %v10867
        %v11044 = vadd.f32 %v10464, %v10870
        %v11045 = vadd.f32 %v10465, %v10873
        %v11046 = vadd.f32 %v10466, %v10876
        %v11047 = vadd.f32 %v10467, %v10879
        %v11048 = vadd.f32 %v10468, %v10882
        %v11049 = vadd.f32 %v10469, %v10885
        %v11050 = vadd.f32 %v10470, %v10888
        %v11051 = vadd.f32 %v10471, %v10891
        %v11052 = vadd.f32 %v10472, %v10894
        %v11053 = vadd.f32 %v10473, %v10897
        %v11054 = vadd.f32 %v10474, %v10900
        %v11055 = vadd.f32 %v10475, %v10903
        %v11056 = vadd.f32 %v10476, %v10906
        %v11057 = vadd.f32 %v10477, %v10909
        %v11058 = vadd.f32 %v10478, %v10912
        %v11059 = vadd.f32 %v10479, %v10915
        %v11060 = vadd.f32 %v10480, %v10918
        %v11061 = vadd.f32 %v10481, %v10921
        %v11062 = vadd.f32 %v10482, %v10924
        %v11063 = vadd.f32 %v10483, %v10927
        %v11064 = vadd.f32 %v10484, %v10930
        %v11065 = vadd.f32 %v10485, %v10933
        %v11066 = vadd.f32 %v10486, %v10936
        %v11067 = vadd.f32 %v10487, %v10939
        %v11068 = vlaneseq
        %v11069 = vshrl.u32 %v11068, 7
        %v11070 = vsub.s32 7, %v11069
        %v11071 = vrot.slane %v1301, %v11070
        %v11072 = vmul.f32 %v1141, %v11071
        %v11073 = vmul.f32 %v1142, %v11071
        %v11074 = vmul.f32 %v1143, %v11071
        %v11075 = vmul.f32 %v1144, %v11071
        %v11076 = vmul.f32 %v1145, %v11071
        %v11077 = vmul.f32 %v1146, %v11071
        %v11078 = vmul.f32 %v1147, %v11071
        %v11079 = vmul.f32 %v1148, %v11071
        %v11080 = vmul.f32 %v1149, %v11071
        %v11081 = vmul.f32 %v1150, %v11071
        %v11082 = vmul.f32 %v1151, %v11071
        %v11083 = vmul.f32 %v1152, %v11071
        %v11084 = vmul.f32 %v1153, %v11071
        %v11085 = vmul.f32 %v1154, %v11071
        %v11086 = vmul.f32 %v1155, %v11071
        %v11087 = vmul.f32 %v1156, %v11071
        %v11088 = vmul.f32 %v1161, %v11071
        %v11089 = vmul.f32 %v1162, %v11071
        %v11090 = vmul.f32 %v1163, %v11071
        %v11091 = vmul.f32 %v1164, %v11071
        %v11092 = vmul.f32 %v1165, %v11071
        %v11093 = vmul.f32 %v1166, %v11071
        %v11094 = vmul.f32 %v1167, %v11071
        %v11095 = vmul.f32 %v1168, %v11071
        %v11096 = vmul.f32 %v1169, %v11071
        %v11097 = vmul.f32 %v1170, %v11071
        %v11098 = vmul.f32 %v1171, %v11071
        %v11099 = vmul.f32 %v1172, %v11071
        %v11100 = vmul.f32 %v1173, %v11071
        %v11101 = vmul.f32 %v1174, %v11071
        %v11102 = vmul.f32 %v1175, %v11071
        %v11103 = vmul.f32 %v1176, %v11071
        %v11104 = vmul.f32 %v1181, %v11071
        %v11105 = vmul.f32 %v1182, %v11071
        %v11106 = vmul.f32 %v1183, %v11071
        %v11107 = vmul.f32 %v1184, %v11071
        %v11108 = vmul.f32 %v1185, %v11071
        %v11109 = vmul.f32 %v1186, %v11071
        %v11110 = vmul.f32 %v1187, %v11071
        %v11111 = vmul.f32 %v1188, %v11071
        %v11112 = vmul.f32 %v1189, %v11071
        %v11113 = vmul.f32 %v1190, %v11071
        %v11114 = vmul.f32 %v1191, %v11071
        %v11115 = vmul.f32 %v1192, %v11071
        %v11116 = vmul.f32 %v1193, %v11071
        %v11117 = vmul.f32 %v1194, %v11071
        %v11118 = vmul.f32 %v1195, %v11071
        %v11119 = vmul.f32 %v1196, %v11071
        %v11120 = vmul.f32 %v1201, %v11071
        %v11121 = vmul.f32 %v1202, %v11071
        %v11122 = vmul.f32 %v1203, %v11071
        %v11123 = vmul.f32 %v1204, %v11071
        %v11124 = vmul.f32 %v1205, %v11071
        %v11125 = vmul.f32 %v1206, %v11071
        %v11126 = vmul.f32 %v1207, %v11071
        %v11127 = vmul.f32 %v1208, %v11071
        %v11128 = vmul.f32 %v1209, %v11071
        %v11129 = vmul.f32 %v1210, %v11071
        %v11130 = vmul.f32 %v1211, %v11071
        %v11131 = vmul.f32 %v1212, %v11071
        %v11132 = vmul.f32 %v1213, %v11071
        %v11133 = vmul.f32 %v1214, %v11071
        %v11134 = vmul.f32 %v1215, %v11071
        %v11135 = vmul.f32 %v1216, %v11071
        %v11136 = vmul.f32 %v1221, %v11071
        %v11137 = vmul.f32 %v1222, %v11071
        %v11138 = vmul.f32 %v1223, %v11071
        %v11139 = vmul.f32 %v1224, %v11071
        %v11140 = vmul.f32 %v1225, %v11071
        %v11141 = vmul.f32 %v1226, %v11071
        %v11142 = vmul.f32 %v1227, %v11071
        %v11143 = vmul.f32 %v1228, %v11071
        %v11144 = vmul.f32 %v1229, %v11071
        %v11145 = vmul.f32 %v1230, %v11071
        %v11146 = vmul.f32 %v1231, %v11071
        %v11147 = vmul.f32 %v1232, %v11071
        %v11148 = vmul.f32 %v1233, %v11071
        %v11149 = vmul.f32 %v1234, %v11071
        %v11150 = vmul.f32 %v1235, %v11071
        %v11151 = vmul.f32 %v1236, %v11071
        %v11152 = vmul.f32 %v1241, %v11071
        %v11153 = vmul.f32 %v1242, %v11071
        %v11154 = vmul.f32 %v1243, %v11071
        %v11155 = vmul.f32 %v1244, %v11071
        %v11156 = vmul.f32 %v1245, %v11071
        %v11157 = vmul.f32 %v1246, %v11071
        %v11158 = vmul.f32 %v1247, %v11071
        %v11159 = vmul.f32 %v1248, %v11071
        %v11160 = vmul.f32 %v1249, %v11071
        %v11161 = vmul.f32 %v1250, %v11071
        %v11162 = vmul.f32 %v1251, %v11071
        %v11163 = vmul.f32 %v1252, %v11071
        %v11164 = vmul.f32 %v1253, %v11071
        %v11165 = vmul.f32 %v1254, %v11071
        %v11166 = vmul.f32 %v1255, %v11071
        %v11167 = vmul.f32 %v1256, %v11071
        %v11168 = vmul.f32 %v1261, %v11071
        %v11169 = vmul.f32 %v1262, %v11071
        %v11170 = vmul.f32 %v1263, %v11071
        %v11171 = vmul.f32 %v1264, %v11071
        %v11172 = vmul.f32 %v1265, %v11071
        %v11173 = vmul.f32 %v1266, %v11071
        %v11174 = vmul.f32 %v1267, %v11071
        %v11175 = vmul.f32 %v1268, %v11071
        %v11176 = vmul.f32 %v1269, %v11071
        %v11177 = vmul.f32 %v1270, %v11071
        %v11178 = vmul.f32 %v1271, %v11071
        %v11179 = vmul.f32 %v1272, %v11071
        %v11180 = vmul.f32 %v1273, %v11071
        %v11181 = vmul.f32 %v1274, %v11071
        %v11182 = vmul.f32 %v1275, %v11071
        %v11183 = vmul.f32 %v1276, %v11071
        %v11184 = vmul.f32 %v1281, %v11071
        %v11185 = vmul.f32 %v1282, %v11071
        %v11186 = vmul.f32 %v1283, %v11071
        %v11187 = vmul.f32 %v1284, %v11071
        %v11188 = vmul.f32 %v1285, %v11071
        %v11189 = vmul.f32 %v1286, %v11071
        %v11190 = vmul.f32 %v1287, %v11071
        %v11191 = vmul.f32 %v1288, %v11071
        %v11192 = vmul.f32 %v1289, %v11071
        %v11193 = vmul.f32 %v1290, %v11071
        %v11194 = vmul.f32 %v1291, %v11071
        %v11195 = vmul.f32 %v1292, %v11071
        %v11196 = vmul.f32 %v1293, %v11071
        %v11197 = vmul.f32 %v1294, %v11071
        %v11198 = vmul.f32 %v1295, %v11071
        %v11199 = vmul.f32 %v1296, %v11071
        %v11328 = vrot.slane %v11072, 2
        %v11329 = vrot.slane %v11073, 2
        %v11330 = vsel %vm2283, %v11328, %v11329
        %v11331 = vrot.slane %v11074, 2
        %v11332 = vrot.slane %v11075, 2
        %v11333 = vsel %vm2283, %v11331, %v11332
        %v11334 = vrot.slane %v11076, 2
        %v11335 = vrot.slane %v11077, 2
        %v11336 = vsel %vm2283, %v11334, %v11335
        %v11337 = vrot.slane %v11078, 2
        %v11338 = vrot.slane %v11079, 2
        %v11339 = vsel %vm2283, %v11337, %v11338
        %v11340 = vrot.slane %v11080, 2
        %v11341 = vrot.slane %v11081, 2
        %v11342 = vsel %vm2283, %v11340, %v11341
        %v11343 = vrot.slane %v11082, 2
        %v11344 = vrot.slane %v11083, 2
        %v11345 = vsel %vm2283, %v11343, %v11344
        %v11346 = vrot.slane %v11084, 2
        %v11347 = vrot.slane %v11085, 2
        %v11348 = vsel %vm2283, %v11346, %v11347
        %v11349 = vrot.slane %v11086, 2
        %v11350 = vrot.slane %v11087, 2
        %v11351 = vsel %vm2283, %v11349, %v11350
        %v11352 = vrot.slane %v11088, 2
        %v11353 = vrot.slane %v11089, 2
        %v11354 = vsel %vm2283, %v11352, %v11353
        %v11355 = vrot.slane %v11090, 2
        %v11356 = vrot.slane %v11091, 2
        %v11357 = vsel %vm2283, %v11355, %v11356
        %v11358 = vrot.slane %v11092, 2
        %v11359 = vrot.slane %v11093, 2
        %v11360 = vsel %vm2283, %v11358, %v11359
        %v11361 = vrot.slane %v11094, 2
        %v11362 = vrot.slane %v11095, 2
        %v11363 = vsel %vm2283, %v11361, %v11362
        %v11364 = vrot.slane %v11096, 2
        %v11365 = vrot.slane %v11097, 2
        %v11366 = vsel %vm2283, %v11364, %v11365
        %v11367 = vrot.slane %v11098, 2
        %v11368 = vrot.slane %v11099, 2
        %v11369 = vsel %vm2283, %v11367, %v11368
        %v11370 = vrot.slane %v11100, 2
        %v11371 = vrot.slane %v11101, 2
        %v11372 = vsel %vm2283, %v11370, %v11371
        %v11373 = vrot.slane %v11102, 2
        %v11374 = vrot.slane %v11103, 2
        %v11375 = vsel %vm2283, %v11373, %v11374
        %v11376 = vrot.slane %v11104, 2
        %v11377 = vrot.slane %v11105, 2
        %v11378 = vsel %vm2283, %v11376, %v11377
        %v11379 = vrot.slane %v11106, 2
        %v11380 = vrot.slane %v11107, 2
        %v11381 = vsel %vm2283, %v11379, %v11380
        %v11382 = vrot.slane %v11108, 2
        %v11383 = vrot.slane %v11109, 2
        %v11384 = vsel %vm2283, %v11382, %v11383
        %v11385 = vrot.slane %v11110, 2
        %v11386 = vrot.slane %v11111, 2
        %v11387 = vsel %vm2283, %v11385, %v11386
        %v11388 = vrot.slane %v11112, 2
        %v11389 = vrot.slane %v11113, 2
        %v11390 = vsel %vm2283, %v11388, %v11389
        %v11391 = vrot.slane %v11114, 2
        %v11392 = vrot.slane %v11115, 2
        %v11393 = vsel %vm2283, %v11391, %v11392
        %v11394 = vrot.slane %v11116, 2
        %v11395 = vrot.slane %v11117, 2
        %v11396 = vsel %vm2283, %v11394, %v11395
        %v11397 = vrot.slane %v11118, 2
        %v11398 = vrot.slane %v11119, 2
        %v11399 = vsel %vm2283, %v11397, %v11398
        %v11400 = vrot.slane %v11120, 2
        %v11401 = vrot.slane %v11121, 2
        %v11402 = vsel %vm2283, %v11400, %v11401
        %v11403 = vrot.slane %v11122, 2
        %v11404 = vrot.slane %v11123, 2
        %v11405 = vsel %vm2283, %v11403, %v11404
        %v11406 = vrot.slane %v11124, 2
        %v11407 = vrot.slane %v11125, 2
        %v11408 = vsel %vm2283, %v11406, %v11407
        %v11409 = vrot.slane %v11126, 2
        %v11410 = vrot.slane %v11127, 2
        %v11411 = vsel %vm2283, %v11409, %v11410
        %v11412 = vrot.slane %v11128, 2
        %v11413 = vrot.slane %v11129, 2
        %v11414 = vsel %vm2283, %v11412, %v11413
        %v11415 = vrot.slane %v11130, 2
        %v11416 = vrot.slane %v11131, 2
        %v11417 = vsel %vm2283, %v11415, %v11416
        %v11418 = vrot.slane %v11132, 2
        %v11419 = vrot.slane %v11133, 2
        %v11420 = vsel %vm2283, %v11418, %v11419
        %v11421 = vrot.slane %v11134, 2
        %v11422 = vrot.slane %v11135, 2
        %v11423 = vsel %vm2283, %v11421, %v11422
        %v11424 = vrot.slane %v11136, 2
        %v11425 = vrot.slane %v11137, 2
        %v11426 = vsel %vm2283, %v11424, %v11425
        %v11427 = vrot.slane %v11138, 2
        %v11428 = vrot.slane %v11139, 2
        %v11429 = vsel %vm2283, %v11427, %v11428
        %v11430 = vrot.slane %v11140, 2
        %v11431 = vrot.slane %v11141, 2
        %v11432 = vsel %vm2283, %v11430, %v11431
        %v11433 = vrot.slane %v11142, 2
        %v11434 = vrot.slane %v11143, 2
        %v11435 = vsel %vm2283, %v11433, %v11434
        %v11436 = vrot.slane %v11144, 2
        %v11437 = vrot.slane %v11145, 2
        %v11438 = vsel %vm2283, %v11436, %v11437
        %v11439 = vrot.slane %v11146, 2
        %v11440 = vrot.slane %v11147, 2
        %v11441 = vsel %vm2283, %v11439, %v11440
        %v11442 = vrot.slane %v11148, 2
        %v11443 = vrot.slane %v11149, 2
        %v11444 = vsel %vm2283, %v11442, %v11443
        %v11445 = vrot.slane %v11150, 2
        %v11446 = vrot.slane %v11151, 2
        %v11447 = vsel %vm2283, %v11445, %v11446
        %v11448 = vrot.slane %v11152, 2
        %v11449 = vrot.slane %v11153, 2
        %v11450 = vsel %vm2283, %v11448, %v11449
        %v11451 = vrot.slane %v11154, 2
        %v11452 = vrot.slane %v11155, 2
        %v11453 = vsel %vm2283, %v11451, %v11452
        %v11454 = vrot.slane %v11156, 2
        %v11455 = vrot.slane %v11157, 2
        %v11456 = vsel %vm2283, %v11454, %v11455
        %v11457 = vrot.slane %v11158, 2
        %v11458 = vrot.slane %v11159, 2
        %v11459 = vsel %vm2283, %v11457, %v11458
        %v11460 = vrot.slane %v11160, 2
        %v11461 = vrot.slane %v11161, 2
        %v11462 = vsel %vm2283, %v11460, %v11461
        %v11463 = vrot.slane %v11162, 2
        %v11464 = vrot.slane %v11163, 2
        %v11465 = vsel %vm2283, %v11463, %v11464
        %v11466 = vrot.slane %v11164, 2
        %v11467 = vrot.slane %v11165, 2
        %v11468 = vsel %vm2283, %v11466, %v11467
        %v11469 = vrot.slane %v11166, 2
        %v11470 = vrot.slane %v11167, 2
        %v11471 = vsel %vm2283, %v11469, %v11470
        %v11472 = vrot.slane %v11168, 2
        %v11473 = vrot.slane %v11169, 2
        %v11474 = vsel %vm2283, %v11472, %v11473
        %v11475 = vrot.slane %v11170, 2
        %v11476 = vrot.slane %v11171, 2
        %v11477 = vsel %vm2283, %v11475, %v11476
        %v11478 = vrot.slane %v11172, 2
        %v11479 = vrot.slane %v11173, 2
        %v11480 = vsel %vm2283, %v11478, %v11479
        %v11481 = vrot.slane %v11174, 2
        %v11482 = vrot.slane %v11175, 2
        %v11483 = vsel %vm2283, %v11481, %v11482
        %v11484 = vrot.slane %v11176, 2
        %v11485 = vrot.slane %v11177, 2
        %v11486 = vsel %vm2283, %v11484, %v11485
        %v11487 = vrot.slane %v11178, 2
        %v11488 = vrot.slane %v11179, 2
        %v11489 = vsel %vm2283, %v11487, %v11488
        %v11490 = vrot.slane %v11180, 2
        %v11491 = vrot.slane %v11181, 2
        %v11492 = vsel %vm2283, %v11490, %v11491
        %v11493 = vrot.slane %v11182, 2
        %v11494 = vrot.slane %v11183, 2
        %v11495 = vsel %vm2283, %v11493, %v11494
        %v11496 = vrot.slane %v11184, 2
        %v11497 = vrot.slane %v11185, 2
        %v11498 = vsel %vm2283, %v11496, %v11497
        %v11499 = vrot.slane %v11186, 2
        %v11500 = vrot.slane %v11187, 2
        %v11501 = vsel %vm2283, %v11499, %v11500
        %v11502 = vrot.slane %v11188, 2
        %v11503 = vrot.slane %v11189, 2
        %v11504 = vsel %vm2283, %v11502, %v11503
        %v11505 = vrot.slane %v11190, 2
        %v11506 = vrot.slane %v11191, 2
        %v11507 = vsel %vm2283, %v11505, %v11506
        %v11508 = vrot.slane %v11192, 2
        %v11509 = vrot.slane %v11193, 2
        %v11510 = vsel %vm2283, %v11508, %v11509
        %v11511 = vrot.slane %v11194, 2
        %v11512 = vrot.slane %v11195, 2
        %v11513 = vsel %vm2283, %v11511, %v11512
        %v11514 = vrot.slane %v11196, 2
        %v11515 = vrot.slane %v11197, 2
        %v11516 = vsel %vm2283, %v11514, %v11515
        %v11517 = vrot.slane %v11198, 2
        %v11518 = vrot.slane %v11199, 2
        %v11519 = vsel %vm2283, %v11517, %v11518
        %v11584 = vadd.f32 %v11004, %v11330
        %v11585 = vadd.f32 %v11005, %v11333
        %v11586 = vadd.f32 %v11006, %v11336
        %v11587 = vadd.f32 %v11007, %v11339
        %v11588 = vadd.f32 %v11008, %v11342
        %v11589 = vadd.f32 %v11009, %v11345
        %v11590 = vadd.f32 %v11010, %v11348
        %v11591 = vadd.f32 %v11011, %v11351
        %v11592 = vadd.f32 %v11012, %v11354
        %v11593 = vadd.f32 %v11013, %v11357
        %v11594 = vadd.f32 %v11014, %v11360
        %v11595 = vadd.f32 %v11015, %v11363
        %v11596 = vadd.f32 %v11016, %v11366
        %v11597 = vadd.f32 %v11017, %v11369
        %v11598 = vadd.f32 %v11018, %v11372
        %v11599 = vadd.f32 %v11019, %v11375
        %v11600 = vadd.f32 %v11020, %v11378
        %v11601 = vadd.f32 %v11021, %v11381
        %v11602 = vadd.f32 %v11022, %v11384
        %v11603 = vadd.f32 %v11023, %v11387
        %v11604 = vadd.f32 %v11024, %v11390
        %v11605 = vadd.f32 %v11025, %v11393
        %v11606 = vadd.f32 %v11026, %v11396
        %v11607 = vadd.f32 %v11027, %v11399
        %v11608 = vadd.f32 %v11028, %v11402
        %v11609 = vadd.f32 %v11029, %v11405
        %v11610 = vadd.f32 %v11030, %v11408
        %v11611 = vadd.f32 %v11031, %v11411
        %v11612 = vadd.f32 %v11032, %v11414
        %v11613 = vadd.f32 %v11033, %v11417
        %v11614 = vadd.f32 %v11034, %v11420
        %v11615 = vadd.f32 %v11035, %v11423
        %v11616 = vadd.f32 %v11036, %v11426
        %v11617 = vadd.f32 %v11037, %v11429
        %v11618 = vadd.f32 %v11038, %v11432
        %v11619 = vadd.f32 %v11039, %v11435
        %v11620 = vadd.f32 %v11040, %v11438
        %v11621 = vadd.f32 %v11041, %v11441
        %v11622 = vadd.f32 %v11042, %v11444
        %v11623 = vadd.f32 %v11043, %v11447
        %v11624 = vadd.f32 %v11044, %v11450
        %v11625 = vadd.f32 %v11045, %v11453
        %v11626 = vadd.f32 %v11046, %v11456
        %v11627 = vadd.f32 %v11047, %v11459
        %v11628 = vadd.f32 %v11048, %v11462
        %v11629 = vadd.f32 %v11049, %v11465
        %v11630 = vadd.f32 %v11050, %v11468
        %v11631 = vadd.f32 %v11051, %v11471
        %v11632 = vadd.f32 %v11052, %v11474
        %v11633 = vadd.f32 %v11053, %v11477
        %v11634 = vadd.f32 %v11054, %v11480
        %v11635 = vadd.f32 %v11055, %v11483
        %v11636 = vadd.f32 %v11056, %v11486
        %v11637 = vadd.f32 %v11057, %v11489
        %v11638 = vadd.f32 %v11058, %v11492
        %v11639 = vadd.f32 %v11059, %v11495
        %v11640 = vadd.f32 %v11060, %v11498
        %v11641 = vadd.f32 %v11061, %v11501
        %v11642 = vadd.f32 %v11062, %v11504
        %v11643 = vadd.f32 %v11063, %v11507
        %v11644 = vadd.f32 %v11064, %v11510
        %v11645 = vadd.f32 %v11065, %v11513
        %v11646 = vadd.f32 %v11066, %v11516
        %v11647 = vadd.f32 %v11067, %v11519
        %v11648 = vlaneseq
        %v11649 = vshrl.u32 %v11648, 7
        %v11650 = vsub.s32 0, %v11649
        %v11651 = vrot.slane %v1302, %v11650
        %v11652 = vmul.f32 %v1143, %v11651
        %v11653 = vmul.f32 %v1145, %v11651
        %v11654 = vmul.f32 %v1147, %v11651
        %v11655 = vmul.f32 %v1149, %v11651
        %v11656 = vmul.f32 %v1151, %v11651
        %v11657 = vmul.f32 %v1153, %v11651
        %v11658 = vmul.f32 %v1155, %v11651
        %v11659 = vmul.f32 %v1157, %v11651
        %v11660 = vmul.f32 %v1163, %v11651
        %v11661 = vmul.f32 %v1165, %v11651
        %v11662 = vmul.f32 %v1167, %v11651
        %v11663 = vmul.f32 %v1169, %v11651
        %v11664 = vmul.f32 %v1171, %v11651
        %v11665 = vmul.f32 %v1173, %v11651
        %v11666 = vmul.f32 %v1175, %v11651
        %v11667 = vmul.f32 %v1177, %v11651
        %v11668 = vmul.f32 %v1183, %v11651
        %v11669 = vmul.f32 %v1185, %v11651
        %v11670 = vmul.f32 %v1187, %v11651
        %v11671 = vmul.f32 %v1189, %v11651
        %v11672 = vmul.f32 %v1191, %v11651
        %v11673 = vmul.f32 %v1193, %v11651
        %v11674 = vmul.f32 %v1195, %v11651
        %v11675 = vmul.f32 %v1197, %v11651
        %v11676 = vmul.f32 %v1203, %v11651
        %v11677 = vmul.f32 %v1205, %v11651
        %v11678 = vmul.f32 %v1207, %v11651
        %v11679 = vmul.f32 %v1209, %v11651
        %v11680 = vmul.f32 %v1211, %v11651
        %v11681 = vmul.f32 %v1213, %v11651
        %v11682 = vmul.f32 %v1215, %v11651
        %v11683 = vmul.f32 %v1217, %v11651
        %v11684 = vmul.f32 %v1223, %v11651
        %v11685 = vmul.f32 %v1225, %v11651
        %v11686 = vmul.f32 %v1227, %v11651
        %v11687 = vmul.f32 %v1229, %v11651
        %v11688 = vmul.f32 %v1231, %v11651
        %v11689 = vmul.f32 %v1233, %v11651
        %v11690 = vmul.f32 %v1235, %v11651
        %v11691 = vmul.f32 %v1237, %v11651
        %v11692 = vmul.f32 %v1243, %v11651
        %v11693 = vmul.f32 %v1245, %v11651
        %v11694 = vmul.f32 %v1247, %v11651
        %v11695 = vmul.f32 %v1249, %v11651
        %v11696 = vmul.f32 %v1251, %v11651
        %v11697 = vmul.f32 %v1253, %v11651
        %v11698 = vmul.f32 %v1255, %v11651
        %v11699 = vmul.f32 %v1257, %v11651
        %v11700 = vmul.f32 %v1263, %v11651
        %v11701 = vmul.f32 %v1265, %v11651
        %v11702 = vmul.f32 %v1267, %v11651
        %v11703 = vmul.f32 %v1269, %v11651
        %v11704 = vmul.f32 %v1271, %v11651
        %v11705 = vmul.f32 %v1273, %v11651
        %v11706 = vmul.f32 %v1275, %v11651
        %v11707 = vmul.f32 %v1277, %v11651
        %v11708 = vmul.f32 %v1283, %v11651
        %v11709 = vmul.f32 %v1285, %v11651
        %v11710 = vmul.f32 %v1287, %v11651
        %v11711 = vmul.f32 %v1289, %v11651
        %v11712 = vmul.f32 %v1291, %v11651
        %v11713 = vmul.f32 %v1293, %v11651
        %v11714 = vmul.f32 %v1295, %v11651
        %v11715 = vmul.f32 %v1297, %v11651
        %v11716 = vadd.f32 %v11584, %v11652
        %v11717 = vadd.f32 %v11585, %v11653
        %v11718 = vadd.f32 %v11586, %v11654
        %v11719 = vadd.f32 %v11587, %v11655
        %v11720 = vadd.f32 %v11588, %v11656
        %v11721 = vadd.f32 %v11589, %v11657
        %v11722 = vadd.f32 %v11590, %v11658
        %v11723 = vadd.f32 %v11591, %v11659
        %v11724 = vadd.f32 %v11592, %v11660
        %v11725 = vadd.f32 %v11593, %v11661
        %v11726 = vadd.f32 %v11594, %v11662
        %v11727 = vadd.f32 %v11595, %v11663
        %v11728 = vadd.f32 %v11596, %v11664
        %v11729 = vadd.f32 %v11597, %v11665
        %v11730 = vadd.f32 %v11598, %v11666
        %v11731 = vadd.f32 %v11599, %v11667
        %v11732 = vadd.f32 %v11600, %v11668
        %v11733 = vadd.f32 %v11601, %v11669
        %v11734 = vadd.f32 %v11602, %v11670
        %v11735 = vadd.f32 %v11603, %v11671
        %v11736 = vadd.f32 %v11604, %v11672
        %v11737 = vadd.f32 %v11605, %v11673
        %v11738 = vadd.f32 %v11606, %v11674
        %v11739 = vadd.f32 %v11607, %v11675
        %v11740 = vadd.f32 %v11608, %v11676
        %v11741 = vadd.f32 %v11609, %v11677
        %v11742 = vadd.f32 %v11610, %v11678
        %v11743 = vadd.f32 %v11611, %v11679
        %v11744 = vadd.f32 %v11612, %v11680
        %v11745 = vadd.f32 %v11613, %v11681
        %v11746 = vadd.f32 %v11614, %v11682
        %v11747 = vadd.f32 %v11615, %v11683
        %v11748 = vadd.f32 %v11616, %v11684
        %v11749 = vadd.f32 %v11617, %v11685
        %v11750 = vadd.f32 %v11618, %v11686
        %v11751 = vadd.f32 %v11619, %v11687
        %v11752 = vadd.f32 %v11620, %v11688
        %v11753 = vadd.f32 %v11621, %v11689
        %v11754 = vadd.f32 %v11622, %v11690
        %v11755 = vadd.f32 %v11623, %v11691
        %v11756 = vadd.f32 %v11624, %v11692
        %v11757 = vadd.f32 %v11625, %v11693
        %v11758 = vadd.f32 %v11626, %v11694
        %v11759 = vadd.f32 %v11627, %v11695
        %v11760 = vadd.f32 %v11628, %v11696
        %v11761 = vadd.f32 %v11629, %v11697
        %v11762 = vadd.f32 %v11630, %v11698
        %v11763 = vadd.f32 %v11631, %v11699
        %v11764 = vadd.f32 %v11632, %v11700
        %v11765 = vadd.f32 %v11633, %v11701
        %v11766 = vadd.f32 %v11634, %v11702
        %v11767 = vadd.f32 %v11635, %v11703
        %v11768 = vadd.f32 %v11636, %v11704
        %v11769 = vadd.f32 %v11637, %v11705
        %v11770 = vadd.f32 %v11638, %v11706
        %v11771 = vadd.f32 %v11639, %v11707
        %v11772 = vadd.f32 %v11640, %v11708
        %v11773 = vadd.f32 %v11641, %v11709
        %v11774 = vadd.f32 %v11642, %v11710
        %v11775 = vadd.f32 %v11643, %v11711
        %v11776 = vadd.f32 %v11644, %v11712
        %v11777 = vadd.f32 %v11645, %v11713
        %v11778 = vadd.f32 %v11646, %v11714
        %v11779 = vadd.f32 %v11647, %v11715
        %v11780 = vlaneseq
        %v11781 = vshrl.u32 %v11780, 7
        %v11782 = vsub.s32 1, %v11781
        %v11783 = vrot.slane %v1302, %v11782
        %v11784 = vmul.f32 %v1143, %v11783
        %v11785 = vmul.f32 %v1144, %v11783
        %v11786 = vmul.f32 %v1145, %v11783
        %v11787 = vmul.f32 %v1146, %v11783
        %v11788 = vmul.f32 %v1147, %v11783
        %v11789 = vmul.f32 %v1148, %v11783
        %v11790 = vmul.f32 %v1149, %v11783
        %v11791 = vmul.f32 %v1150, %v11783
        %v11792 = vmul.f32 %v1151, %v11783
        %v11793 = vmul.f32 %v1152, %v11783
        %v11794 = vmul.f32 %v1153, %v11783
        %v11795 = vmul.f32 %v1154, %v11783
        %v11796 = vmul.f32 %v1155, %v11783
        %v11797 = vmul.f32 %v1156, %v11783
        %v11798 = vmul.f32 %v1157, %v11783
        %v11799 = vmul.f32 %v1158, %v11783
        %v11800 = vmul.f32 %v1163, %v11783
        %v11801 = vmul.f32 %v1164, %v11783
        %v11802 = vmul.f32 %v1165, %v11783
        %v11803 = vmul.f32 %v1166, %v11783
        %v11804 = vmul.f32 %v1167, %v11783
        %v11805 = vmul.f32 %v1168, %v11783
        %v11806 = vmul.f32 %v1169, %v11783
        %v11807 = vmul.f32 %v1170, %v11783
        %v11808 = vmul.f32 %v1171, %v11783
        %v11809 = vmul.f32 %v1172, %v11783
        %v11810 = vmul.f32 %v1173, %v11783
        %v11811 = vmul.f32 %v1174, %v11783
        %v11812 = vmul.f32 %v1175, %v11783
        %v11813 = vmul.f32 %v1176, %v11783
        %v11814 = vmul.f32 %v1177, %v11783
        %v11815 = vmul.f32 %v1178, %v11783
        %v11816 = vmul.f32 %v1183, %v11783
        %v11817 = vmul.f32 %v1184, %v11783
        %v11818 = vmul.f32 %v1185, %v11783
        %v11819 = vmul.f32 %v1186, %v11783
        %v11820 = vmul.f32 %v1187, %v11783
        %v11821 = vmul.f32 %v1188, %v11783
        %v11822 = vmul.f32 %v1189, %v11783
        %v11823 = vmul.f32 %v1190, %v11783
        %v11824 = vmul.f32 %v1191, %v11783
        %v11825 = vmul.f32 %v1192, %v11783
        %v11826 = vmul.f32 %v1193, %v11783
        %v11827 = vmul.f32 %v1194, %v11783
        %v11828 = vmul.f32 %v1195, %v11783
        %v11829 = vmul.f32 %v1196, %v11783
        %v11830 = vmul.f32 %v1197, %v11783
        %v11831 = vmul.f32 %v1198, %v11783
        %v11832 = vmul.f32 %v1203, %v11783
        %v11833 = vmul.f32 %v1204, %v11783
        %v11834 = vmul.f32 %v1205, %v11783
        %v11835 = vmul.f32 %v1206, %v11783
        %v11836 = vmul.f32 %v1207, %v11783
        %v11837 = vmul.f32 %v1208, %v11783
        %v11838 = vmul.f32 %v1209, %v11783
        %v11839 = vmul.f32 %v1210, %v11783
        %v11840 = vmul.f32 %v1211, %v11783
        %v11841 = vmul.f32 %v1212, %v11783
        %v11842 = vmul.f32 %v1213, %v11783
        %v11843 = vmul.f32 %v1214, %v11783
        %v11844 = vmul.f32 %v1215, %v11783
        %v11845 = vmul.f32 %v1216, %v11783
        %v11846 = vmul.f32 %v1217, %v11783
        %v11847 = vmul.f32 %v1218, %v11783
        %v11848 = vmul.f32 %v1223, %v11783
        %v11849 = vmul.f32 %v1224, %v11783
        %v11850 = vmul.f32 %v1225, %v11783
        %v11851 = vmul.f32 %v1226, %v11783
        %v11852 = vmul.f32 %v1227, %v11783
        %v11853 = vmul.f32 %v1228, %v11783
        %v11854 = vmul.f32 %v1229, %v11783
        %v11855 = vmul.f32 %v1230, %v11783
        %v11856 = vmul.f32 %v1231, %v11783
        %v11857 = vmul.f32 %v1232, %v11783
        %v11858 = vmul.f32 %v1233, %v11783
        %v11859 = vmul.f32 %v1234, %v11783
        %v11860 = vmul.f32 %v1235, %v11783
        %v11861 = vmul.f32 %v1236, %v11783
        %v11862 = vmul.f32 %v1237, %v11783
        %v11863 = vmul.f32 %v1238, %v11783
        %v11864 = vmul.f32 %v1243, %v11783
        %v11865 = vmul.f32 %v1244, %v11783
        %v11866 = vmul.f32 %v1245, %v11783
        %v11867 = vmul.f32 %v1246, %v11783
        %v11868 = vmul.f32 %v1247, %v11783
        %v11869 = vmul.f32 %v1248, %v11783
        %v11870 = vmul.f32 %v1249, %v11783
        %v11871 = vmul.f32 %v1250, %v11783
        %v11872 = vmul.f32 %v1251, %v11783
        %v11873 = vmul.f32 %v1252, %v11783
        %v11874 = vmul.f32 %v1253, %v11783
        %v11875 = vmul.f32 %v1254, %v11783
        %v11876 = vmul.f32 %v1255, %v11783
        %v11877 = vmul.f32 %v1256, %v11783
        %v11878 = vmul.f32 %v1257, %v11783
        %v11879 = vmul.f32 %v1258, %v11783
        %v11880 = vmul.f32 %v1263, %v11783
        %v11881 = vmul.f32 %v1264, %v11783
        %v11882 = vmul.f32 %v1265, %v11783
        %v11883 = vmul.f32 %v1266, %v11783
        %v11884 = vmul.f32 %v1267, %v11783
        %v11885 = vmul.f32 %v1268, %v11783
        %v11886 = vmul.f32 %v1269, %v11783
        %v11887 = vmul.f32 %v1270, %v11783
        %v11888 = vmul.f32 %v1271, %v11783
        %v11889 = vmul.f32 %v1272, %v11783
        %v11890 = vmul.f32 %v1273, %v11783
        %v11891 = vmul.f32 %v1274, %v11783
        %v11892 = vmul.f32 %v1275, %v11783
        %v11893 = vmul.f32 %v1276, %v11783
        %v11894 = vmul.f32 %v1277, %v11783
        %v11895 = vmul.f32 %v1278, %v11783
        %v11896 = vmul.f32 %v1283, %v11783
        %v11897 = vmul.f32 %v1284, %v11783
        %v11898 = vmul.f32 %v1285, %v11783
        %v11899 = vmul.f32 %v1286, %v11783
        %v11900 = vmul.f32 %v1287, %v11783
        %v11901 = vmul.f32 %v1288, %v11783
        %v11902 = vmul.f32 %v1289, %v11783
        %v11903 = vmul.f32 %v1290, %v11783
        %v11904 = vmul.f32 %v1291, %v11783
        %v11905 = vmul.f32 %v1292, %v11783
        %v11906 = vmul.f32 %v1293, %v11783
        %v11907 = vmul.f32 %v1294, %v11783
        %v11908 = vmul.f32 %v1295, %v11783
        %v11909 = vmul.f32 %v1296, %v11783
        %v11910 = vmul.f32 %v1297, %v11783
        %v11911 = vmul.f32 %v1298, %v11783
        %v12040 = vrot.slane %v11784, 1
        %v12041 = vrot.slane %v11785, 1
        %v12042 = vsel %vm1702, %v12040, %v12041
        %v12043 = vrot.slane %v11786, 1
        %v12044 = vrot.slane %v11787, 1
        %v12045 = vsel %vm1702, %v12043, %v12044
        %v12046 = vrot.slane %v11788, 1
        %v12047 = vrot.slane %v11789, 1
        %v12048 = vsel %vm1702, %v12046, %v12047
        %v12049 = vrot.slane %v11790, 1
        %v12050 = vrot.slane %v11791, 1
        %v12051 = vsel %vm1702, %v12049, %v12050
        %v12052 = vrot.slane %v11792, 1
        %v12053 = vrot.slane %v11793, 1
        %v12054 = vsel %vm1702, %v12052, %v12053
        %v12055 = vrot.slane %v11794, 1
        %v12056 = vrot.slane %v11795, 1
        %v12057 = vsel %vm1702, %v12055, %v12056
        %v12058 = vrot.slane %v11796, 1
        %v12059 = vrot.slane %v11797, 1
        %v12060 = vsel %vm1702, %v12058, %v12059
        %v12061 = vrot.slane %v11798, 1
        %v12062 = vrot.slane %v11799, 1
        %v12063 = vsel %vm1702, %v12061, %v12062
        %v12064 = vrot.slane %v11800, 1
        %v12065 = vrot.slane %v11801, 1
        %v12066 = vsel %vm1702, %v12064, %v12065
        %v12067 = vrot.slane %v11802, 1
        %v12068 = vrot.slane %v11803, 1
        %v12069 = vsel %vm1702, %v12067, %v12068
        %v12070 = vrot.slane %v11804, 1
        %v12071 = vrot.slane %v11805, 1
        %v12072 = vsel %vm1702, %v12070, %v12071
        %v12073 = vrot.slane %v11806, 1
        %v12074 = vrot.slane %v11807, 1
        %v12075 = vsel %vm1702, %v12073, %v12074
        %v12076 = vrot.slane %v11808, 1
        %v12077 = vrot.slane %v11809, 1
        %v12078 = vsel %vm1702, %v12076, %v12077
        %v12079 = vrot.slane %v11810, 1
        %v12080 = vrot.slane %v11811, 1
        %v12081 = vsel %vm1702, %v12079, %v12080
        %v12082 = vrot.slane %v11812, 1
        %v12083 = vrot.slane %v11813, 1
        %v12084 = vsel %vm1702, %v12082, %v12083
        %v12085 = vrot.slane %v11814, 1
        %v12086 = vrot.slane %v11815, 1
        %v12087 = vsel %vm1702, %v12085, %v12086
        %v12088 = vrot.slane %v11816, 1
        %v12089 = vrot.slane %v11817, 1
        %v12090 = vsel %vm1702, %v12088, %v12089
        %v12091 = vrot.slane %v11818, 1
        %v12092 = vrot.slane %v11819, 1
        %v12093 = vsel %vm1702, %v12091, %v12092
        %v12094 = vrot.slane %v11820, 1
        %v12095 = vrot.slane %v11821, 1
        %v12096 = vsel %vm1702, %v12094, %v12095
        %v12097 = vrot.slane %v11822, 1
        %v12098 = vrot.slane %v11823, 1
        %v12099 = vsel %vm1702, %v12097, %v12098
        %v12100 = vrot.slane %v11824, 1
        %v12101 = vrot.slane %v11825, 1
        %v12102 = vsel %vm1702, %v12100, %v12101
        %v12103 = vrot.slane %v11826, 1
        %v12104 = vrot.slane %v11827, 1
        %v12105 = vsel %vm1702, %v12103, %v12104
        %v12106 = vrot.slane %v11828, 1
        %v12107 = vrot.slane %v11829, 1
        %v12108 = vsel %vm1702, %v12106, %v12107
        %v12109 = vrot.slane %v11830, 1
        %v12110 = vrot.slane %v11831, 1
        %v12111 = vsel %vm1702, %v12109, %v12110
        %v12112 = vrot.slane %v11832, 1
        %v12113 = vrot.slane %v11833, 1
        %v12114 = vsel %vm1702, %v12112, %v12113
        %v12115 = vrot.slane %v11834, 1
        %v12116 = vrot.slane %v11835, 1
        %v12117 = vsel %vm1702, %v12115, %v12116
        %v12118 = vrot.slane %v11836, 1
        %v12119 = vrot.slane %v11837, 1
        %v12120 = vsel %vm1702, %v12118, %v12119
        %v12121 = vrot.slane %v11838, 1
        %v12122 = vrot.slane %v11839, 1
        %v12123 = vsel %vm1702, %v12121, %v12122
        %v12124 = vrot.slane %v11840, 1
        %v12125 = vrot.slane %v11841, 1
        %v12126 = vsel %vm1702, %v12124, %v12125
        %v12127 = vrot.slane %v11842, 1
        %v12128 = vrot.slane %v11843, 1
        %v12129 = vsel %vm1702, %v12127, %v12128
        %v12130 = vrot.slane %v11844, 1
        %v12131 = vrot.slane %v11845, 1
        %v12132 = vsel %vm1702, %v12130, %v12131
        %v12133 = vrot.slane %v11846, 1
        %v12134 = vrot.slane %v11847, 1
        %v12135 = vsel %vm1702, %v12133, %v12134
        %v12136 = vrot.slane %v11848, 1
        %v12137 = vrot.slane %v11849, 1
        %v12138 = vsel %vm1702, %v12136, %v12137
        %v12139 = vrot.slane %v11850, 1
        %v12140 = vrot.slane %v11851, 1
        %v12141 = vsel %vm1702, %v12139, %v12140
        %v12142 = vrot.slane %v11852, 1
        %v12143 = vrot.slane %v11853, 1
        %v12144 = vsel %vm1702, %v12142, %v12143
        %v12145 = vrot.slane %v11854, 1
        %v12146 = vrot.slane %v11855, 1
        %v12147 = vsel %vm1702, %v12145, %v12146
        %v12148 = vrot.slane %v11856, 1
        %v12149 = vrot.slane %v11857, 1
        %v12150 = vsel %vm1702, %v12148, %v12149
        %v12151 = vrot.slane %v11858, 1
        %v12152 = vrot.slane %v11859, 1
        %v12153 = vsel %vm1702, %v12151, %v12152
        %v12154 = vrot.slane %v11860, 1
        %v12155 = vrot.slane %v11861, 1
        %v12156 = vsel %vm1702, %v12154, %v12155
        %v12157 = vrot.slane %v11862, 1
        %v12158 = vrot.slane %v11863, 1
        %v12159 = vsel %vm1702, %v12157, %v12158
        %v12160 = vrot.slane %v11864, 1
        %v12161 = vrot.slane %v11865, 1
        %v12162 = vsel %vm1702, %v12160, %v12161
        %v12163 = vrot.slane %v11866, 1
        %v12164 = vrot.slane %v11867, 1
        %v12165 = vsel %vm1702, %v12163, %v12164
        %v12166 = vrot.slane %v11868, 1
        %v12167 = vrot.slane %v11869, 1
        %v12168 = vsel %vm1702, %v12166, %v12167
        %v12169 = vrot.slane %v11870, 1
        %v12170 = vrot.slane %v11871, 1
        %v12171 = vsel %vm1702, %v12169, %v12170
        %v12172 = vrot.slane %v11872, 1
        %v12173 = vrot.slane %v11873, 1
        %v12174 = vsel %vm1702, %v12172, %v12173
        %v12175 = vrot.slane %v11874, 1
        %v12176 = vrot.slane %v11875, 1
        %v12177 = vsel %vm1702, %v12175, %v12176
        %v12178 = vrot.slane %v11876, 1
        %v12179 = vrot.slane %v11877, 1
        %v12180 = vsel %vm1702, %v12178, %v12179
        %v12181 = vrot.slane %v11878, 1
        %v12182 = vrot.slane %v11879, 1
        %v12183 = vsel %vm1702, %v12181, %v12182
        %v12184 = vrot.slane %v11880, 1
        %v12185 = vrot.slane %v11881, 1
        %v12186 = vsel %vm1702, %v12184, %v12185
        %v12187 = vrot.slane %v11882, 1
        %v12188 = vrot.slane %v11883, 1
        %v12189 = vsel %vm1702, %v12187, %v12188
        %v12190 = vrot.slane %v11884, 1
        %v12191 = vrot.slane %v11885, 1
        %v12192 = vsel %vm1702, %v12190, %v12191
        %v12193 = vrot.slane %v11886, 1
        %v12194 = vrot.slane %v11887, 1
        %v12195 = vsel %vm1702, %v12193, %v12194
        %v12196 = vrot.slane %v11888, 1
        %v12197 = vrot.slane %v11889, 1
        %v12198 = vsel %vm1702, %v12196, %v12197
        %v12199 = vrot.slane %v11890, 1
        %v12200 = vrot.slane %v11891, 1
        %v12201 = vsel %vm1702, %v12199, %v12200
        %v12202 = vrot.slane %v11892, 1
        %v12203 = vrot.slane %v11893, 1
        %v12204 = vsel %vm1702, %v12202, %v12203
        %v12205 = vrot.slane %v11894, 1
        %v12206 = vrot.slane %v11895, 1
        %v12207 = vsel %vm1702, %v12205, %v12206
        %v12208 = vrot.slane %v11896, 1
        %v12209 = vrot.slane %v11897, 1
        %v12210 = vsel %vm1702, %v12208, %v12209
        %v12211 = vrot.slane %v11898, 1
        %v12212 = vrot.slane %v11899, 1
        %v12213 = vsel %vm1702, %v12211, %v12212
        %v12214 = vrot.slane %v11900, 1
        %v12215 = vrot.slane %v11901, 1
        %v12216 = vsel %vm1702, %v12214, %v12215
        %v12217 = vrot.slane %v11902, 1
        %v12218 = vrot.slane %v11903, 1
        %v12219 = vsel %vm1702, %v12217, %v12218
        %v12220 = vrot.slane %v11904, 1
        %v12221 = vrot.slane %v11905, 1
        %v12222 = vsel %vm1702, %v12220, %v12221
        %v12223 = vrot.slane %v11906, 1
        %v12224 = vrot.slane %v11907, 1
        %v12225 = vsel %vm1702, %v12223, %v12224
        %v12226 = vrot.slane %v11908, 1
        %v12227 = vrot.slane %v11909, 1
        %v12228 = vsel %vm1702, %v12226, %v12227
        %v12229 = vrot.slane %v11910, 1
        %v12230 = vrot.slane %v11911, 1
        %v12231 = vsel %vm1702, %v12229, %v12230
        %v12296 = vadd.f32 %v11716, %v12042
        %v12297 = vadd.f32 %v11717, %v12045
        %v12298 = vadd.f32 %v11718, %v12048
        %v12299 = vadd.f32 %v11719, %v12051
        %v12300 = vadd.f32 %v11720, %v12054
        %v12301 = vadd.f32 %v11721, %v12057
        %v12302 = vadd.f32 %v11722, %v12060
        %v12303 = vadd.f32 %v11723, %v12063
        %v12304 = vadd.f32 %v11724, %v12066
        %v12305 = vadd.f32 %v11725, %v12069
        %v12306 = vadd.f32 %v11726, %v12072
        %v12307 = vadd.f32 %v11727, %v12075
        %v12308 = vadd.f32 %v11728, %v12078
        %v12309 = vadd.f32 %v11729, %v12081
        %v12310 = vadd.f32 %v11730, %v12084
        %v12311 = vadd.f32 %v11731, %v12087
        %v12312 = vadd.f32 %v11732, %v12090
        %v12313 = vadd.f32 %v11733, %v12093
        %v12314 = vadd.f32 %v11734, %v12096
        %v12315 = vadd.f32 %v11735, %v12099
        %v12316 = vadd.f32 %v11736, %v12102
        %v12317 = vadd.f32 %v11737, %v12105
        %v12318 = vadd.f32 %v11738, %v12108
        %v12319 = vadd.f32 %v11739, %v12111
        %v12320 = vadd.f32 %v11740, %v12114
        %v12321 = vadd.f32 %v11741, %v12117
        %v12322 = vadd.f32 %v11742, %v12120
        %v12323 = vadd.f32 %v11743, %v12123
        %v12324 = vadd.f32 %v11744, %v12126
        %v12325 = vadd.f32 %v11745, %v12129
        %v12326 = vadd.f32 %v11746, %v12132
        %v12327 = vadd.f32 %v11747, %v12135
        %v12328 = vadd.f32 %v11748, %v12138
        %v12329 = vadd.f32 %v11749, %v12141
        %v12330 = vadd.f32 %v11750, %v12144
        %v12331 = vadd.f32 %v11751, %v12147
        %v12332 = vadd.f32 %v11752, %v12150
        %v12333 = vadd.f32 %v11753, %v12153
        %v12334 = vadd.f32 %v11754, %v12156
        %v12335 = vadd.f32 %v11755, %v12159
        %v12336 = vadd.f32 %v11756, %v12162
        %v12337 = vadd.f32 %v11757, %v12165
        %v12338 = vadd.f32 %v11758, %v12168
        %v12339 = vadd.f32 %v11759, %v12171
        %v12340 = vadd.f32 %v11760, %v12174
        %v12341 = vadd.f32 %v11761, %v12177
        %v12342 = vadd.f32 %v11762, %v12180
        %v12343 = vadd.f32 %v11763, %v12183
        %v12344 = vadd.f32 %v11764, %v12186
        %v12345 = vadd.f32 %v11765, %v12189
        %v12346 = vadd.f32 %v11766, %v12192
        %v12347 = vadd.f32 %v11767, %v12195
        %v12348 = vadd.f32 %v11768, %v12198
        %v12349 = vadd.f32 %v11769, %v12201
        %v12350 = vadd.f32 %v11770, %v12204
        %v12351 = vadd.f32 %v11771, %v12207
        %v12352 = vadd.f32 %v11772, %v12210
        %v12353 = vadd.f32 %v11773, %v12213
        %v12354 = vadd.f32 %v11774, %v12216
        %v12355 = vadd.f32 %v11775, %v12219
        %v12356 = vadd.f32 %v11776, %v12222
        %v12357 = vadd.f32 %v11777, %v12225
        %v12358 = vadd.f32 %v11778, %v12228
        %v12359 = vadd.f32 %v11779, %v12231
        %v12360 = vlaneseq
        %v12361 = vshrl.u32 %v12360, 7
        %v12362 = vsub.s32 2, %v12361
        %v12363 = vrot.slane %v1302, %v12362
        %v12364 = vmul.f32 %v1143, %v12363
        %v12365 = vmul.f32 %v1144, %v12363
        %v12366 = vmul.f32 %v1145, %v12363
        %v12367 = vmul.f32 %v1146, %v12363
        %v12368 = vmul.f32 %v1147, %v12363
        %v12369 = vmul.f32 %v1148, %v12363
        %v12370 = vmul.f32 %v1149, %v12363
        %v12371 = vmul.f32 %v1150, %v12363
        %v12372 = vmul.f32 %v1151, %v12363
        %v12373 = vmul.f32 %v1152, %v12363
        %v12374 = vmul.f32 %v1153, %v12363
        %v12375 = vmul.f32 %v1154, %v12363
        %v12376 = vmul.f32 %v1155, %v12363
        %v12377 = vmul.f32 %v1156, %v12363
        %v12378 = vmul.f32 %v1157, %v12363
        %v12379 = vmul.f32 %v1158, %v12363
        %v12380 = vmul.f32 %v1163, %v12363
        %v12381 = vmul.f32 %v1164, %v12363
        %v12382 = vmul.f32 %v1165, %v12363
        %v12383 = vmul.f32 %v1166, %v12363
        %v12384 = vmul.f32 %v1167, %v12363
        %v12385 = vmul.f32 %v1168, %v12363
        %v12386 = vmul.f32 %v1169, %v12363
        %v12387 = vmul.f32 %v1170, %v12363
        %v12388 = vmul.f32 %v1171, %v12363
        %v12389 = vmul.f32 %v1172, %v12363
        %v12390 = vmul.f32 %v1173, %v12363
        %v12391 = vmul.f32 %v1174, %v12363
        %v12392 = vmul.f32 %v1175, %v12363
        %v12393 = vmul.f32 %v1176, %v12363
        %v12394 = vmul.f32 %v1177, %v12363
        %v12395 = vmul.f32 %v1178, %v12363
        %v12396 = vmul.f32 %v1183, %v12363
        %v12397 = vmul.f32 %v1184, %v12363
        %v12398 = vmul.f32 %v1185, %v12363
        %v12399 = vmul.f32 %v1186, %v12363
        %v12400 = vmul.f32 %v1187, %v12363
        %v12401 = vmul.f32 %v1188, %v12363
        %v12402 = vmul.f32 %v1189, %v12363
        %v12403 = vmul.f32 %v1190, %v12363
        %v12404 = vmul.f32 %v1191, %v12363
        %v12405 = vmul.f32 %v1192, %v12363
        %v12406 = vmul.f32 %v1193, %v12363
        %v12407 = vmul.f32 %v1194, %v12363
        %v12408 = vmul.f32 %v1195, %v12363
        %v12409 = vmul.f32 %v1196, %v12363
        %v12410 = vmul.f32 %v1197, %v12363
        %v12411 = vmul.f32 %v1198, %v12363
        %v12412 = vmul.f32 %v1203, %v12363
        %v12413 = vmul.f32 %v1204, %v12363
        %v12414 = vmul.f32 %v1205, %v12363
        %v12415 = vmul.f32 %v1206, %v12363
        %v12416 = vmul.f32 %v1207, %v12363
        %v12417 = vmul.f32 %v1208, %v12363
        %v12418 = vmul.f32 %v1209, %v12363
        %v12419 = vmul.f32 %v1210, %v12363
        %v12420 = vmul.f32 %v1211, %v12363
        %v12421 = vmul.f32 %v1212, %v12363
        %v12422 = vmul.f32 %v1213, %v12363
        %v12423 = vmul.f32 %v1214, %v12363
        %v12424 = vmul.f32 %v1215, %v12363
        %v12425 = vmul.f32 %v1216, %v12363
        %v12426 = vmul.f32 %v1217, %v12363
        %v12427 = vmul.f32 %v1218, %v12363
        %v12428 = vmul.f32 %v1223, %v12363
        %v12429 = vmul.f32 %v1224, %v12363
        %v12430 = vmul.f32 %v1225, %v12363
        %v12431 = vmul.f32 %v1226, %v12363
        %v12432 = vmul.f32 %v1227, %v12363
        %v12433 = vmul.f32 %v1228, %v12363
        %v12434 = vmul.f32 %v1229, %v12363
        %v12435 = vmul.f32 %v1230, %v12363
        %v12436 = vmul.f32 %v1231, %v12363
        %v12437 = vmul.f32 %v1232, %v12363
        %v12438 = vmul.f32 %v1233, %v12363
        %v12439 = vmul.f32 %v1234, %v12363
        %v12440 = vmul.f32 %v1235, %v12363
        %v12441 = vmul.f32 %v1236, %v12363
        %v12442 = vmul.f32 %v1237, %v12363
        %v12443 = vmul.f32 %v1238, %v12363
        %v12444 = vmul.f32 %v1243, %v12363
        %v12445 = vmul.f32 %v1244, %v12363
        %v12446 = vmul.f32 %v1245, %v12363
        %v12447 = vmul.f32 %v1246, %v12363
        %v12448 = vmul.f32 %v1247, %v12363
        %v12449 = vmul.f32 %v1248, %v12363
        %v12450 = vmul.f32 %v1249, %v12363
        %v12451 = vmul.f32 %v1250, %v12363
        %v12452 = vmul.f32 %v1251, %v12363
        %v12453 = vmul.f32 %v1252, %v12363
        %v12454 = vmul.f32 %v1253, %v12363
        %v12455 = vmul.f32 %v1254, %v12363
        %v12456 = vmul.f32 %v1255, %v12363
        %v12457 = vmul.f32 %v1256, %v12363
        %v12458 = vmul.f32 %v1257, %v12363
        %v12459 = vmul.f32 %v1258, %v12363
        %v12460 = vmul.f32 %v1263, %v12363
        %v12461 = vmul.f32 %v1264, %v12363
        %v12462 = vmul.f32 %v1265, %v12363
        %v12463 = vmul.f32 %v1266, %v12363
        %v12464 = vmul.f32 %v1267, %v12363
        %v12465 = vmul.f32 %v1268, %v12363
        %v12466 = vmul.f32 %v1269, %v12363
        %v12467 = vmul.f32 %v1270, %v12363
        %v12468 = vmul.f32 %v1271, %v12363
        %v12469 = vmul.f32 %v1272, %v12363
        %v12470 = vmul.f32 %v1273, %v12363
        %v12471 = vmul.f32 %v1274, %v12363
        %v12472 = vmul.f32 %v1275, %v12363
        %v12473 = vmul.f32 %v1276, %v12363
        %v12474 = vmul.f32 %v1277, %v12363
        %v12475 = vmul.f32 %v1278, %v12363
        %v12476 = vmul.f32 %v1283, %v12363
        %v12477 = vmul.f32 %v1284, %v12363
        %v12478 = vmul.f32 %v1285, %v12363
        %v12479 = vmul.f32 %v1286, %v12363
        %v12480 = vmul.f32 %v1287, %v12363
        %v12481 = vmul.f32 %v1288, %v12363
        %v12482 = vmul.f32 %v1289, %v12363
        %v12483 = vmul.f32 %v1290, %v12363
        %v12484 = vmul.f32 %v1291, %v12363
        %v12485 = vmul.f32 %v1292, %v12363
        %v12486 = vmul.f32 %v1293, %v12363
        %v12487 = vmul.f32 %v1294, %v12363
        %v12488 = vmul.f32 %v1295, %v12363
        %v12489 = vmul.f32 %v1296, %v12363
        %v12490 = vmul.f32 %v1297, %v12363
        %v12491 = vmul.f32 %v1298, %v12363
        %v12620 = vrot.slane %v12364, 2
        %v12621 = vrot.slane %v12365, 2
        %v12622 = vsel %vm2283, %v12620, %v12621
        %v12623 = vrot.slane %v12366, 2
        %v12624 = vrot.slane %v12367, 2
        %v12625 = vsel %vm2283, %v12623, %v12624
        %v12626 = vrot.slane %v12368, 2
        %v12627 = vrot.slane %v12369, 2
        %v12628 = vsel %vm2283, %v12626, %v12627
        %v12629 = vrot.slane %v12370, 2
        %v12630 = vrot.slane %v12371, 2
        %v12631 = vsel %vm2283, %v12629, %v12630
        %v12632 = vrot.slane %v12372, 2
        %v12633 = vrot.slane %v12373, 2
        %v12634 = vsel %vm2283, %v12632, %v12633
        %v12635 = vrot.slane %v12374, 2
        %v12636 = vrot.slane %v12375, 2
        %v12637 = vsel %vm2283, %v12635, %v12636
        %v12638 = vrot.slane %v12376, 2
        %v12639 = vrot.slane %v12377, 2
        %v12640 = vsel %vm2283, %v12638, %v12639
        %v12641 = vrot.slane %v12378, 2
        %v12642 = vrot.slane %v12379, 2
        %v12643 = vsel %vm2283, %v12641, %v12642
        %v12644 = vrot.slane %v12380, 2
        %v12645 = vrot.slane %v12381, 2
        %v12646 = vsel %vm2283, %v12644, %v12645
        %v12647 = vrot.slane %v12382, 2
        %v12648 = vrot.slane %v12383, 2
        %v12649 = vsel %vm2283, %v12647, %v12648
        %v12650 = vrot.slane %v12384, 2
        %v12651 = vrot.slane %v12385, 2
        %v12652 = vsel %vm2283, %v12650, %v12651
        %v12653 = vrot.slane %v12386, 2
        %v12654 = vrot.slane %v12387, 2
        %v12655 = vsel %vm2283, %v12653, %v12654
        %v12656 = vrot.slane %v12388, 2
        %v12657 = vrot.slane %v12389, 2
        %v12658 = vsel %vm2283, %v12656, %v12657
        %v12659 = vrot.slane %v12390, 2
        %v12660 = vrot.slane %v12391, 2
        %v12661 = vsel %vm2283, %v12659, %v12660
        %v12662 = vrot.slane %v12392, 2
        %v12663 = vrot.slane %v12393, 2
        %v12664 = vsel %vm2283, %v12662, %v12663
        %v12665 = vrot.slane %v12394, 2
        %v12666 = vrot.slane %v12395, 2
        %v12667 = vsel %vm2283, %v12665, %v12666
        %v12668 = vrot.slane %v12396, 2
        %v12669 = vrot.slane %v12397, 2
        %v12670 = vsel %vm2283, %v12668, %v12669
        %v12671 = vrot.slane %v12398, 2
        %v12672 = vrot.slane %v12399, 2
        %v12673 = vsel %vm2283, %v12671, %v12672
        %v12674 = vrot.slane %v12400, 2
        %v12675 = vrot.slane %v12401, 2
        %v12676 = vsel %vm2283, %v12674, %v12675
        %v12677 = vrot.slane %v12402, 2
        %v12678 = vrot.slane %v12403, 2
        %v12679 = vsel %vm2283, %v12677, %v12678
        %v12680 = vrot.slane %v12404, 2
        %v12681 = vrot.slane %v12405, 2
        %v12682 = vsel %vm2283, %v12680, %v12681
        %v12683 = vrot.slane %v12406, 2
        %v12684 = vrot.slane %v12407, 2
        %v12685 = vsel %vm2283, %v12683, %v12684
        %v12686 = vrot.slane %v12408, 2
        %v12687 = vrot.slane %v12409, 2
        %v12688 = vsel %vm2283, %v12686, %v12687
        %v12689 = vrot.slane %v12410, 2
        %v12690 = vrot.slane %v12411, 2
        %v12691 = vsel %vm2283, %v12689, %v12690
        %v12692 = vrot.slane %v12412, 2
        %v12693 = vrot.slane %v12413, 2
        %v12694 = vsel %vm2283, %v12692, %v12693
        %v12695 = vrot.slane %v12414, 2
        %v12696 = vrot.slane %v12415, 2
        %v12697 = vsel %vm2283, %v12695, %v12696
        %v12698 = vrot.slane %v12416, 2
        %v12699 = vrot.slane %v12417, 2
        %v12700 = vsel %vm2283, %v12698, %v12699
        %v12701 = vrot.slane %v12418, 2
        %v12702 = vrot.slane %v12419, 2
        %v12703 = vsel %vm2283, %v12701, %v12702
        %v12704 = vrot.slane %v12420, 2
        %v12705 = vrot.slane %v12421, 2
        %v12706 = vsel %vm2283, %v12704, %v12705
        %v12707 = vrot.slane %v12422, 2
        %v12708 = vrot.slane %v12423, 2
        %v12709 = vsel %vm2283, %v12707, %v12708
        %v12710 = vrot.slane %v12424, 2
        %v12711 = vrot.slane %v12425, 2
        %v12712 = vsel %vm2283, %v12710, %v12711
        %v12713 = vrot.slane %v12426, 2
        %v12714 = vrot.slane %v12427, 2
        %v12715 = vsel %vm2283, %v12713, %v12714
        %v12716 = vrot.slane %v12428, 2
        %v12717 = vrot.slane %v12429, 2
        %v12718 = vsel %vm2283, %v12716, %v12717
        %v12719 = vrot.slane %v12430, 2
        %v12720 = vrot.slane %v12431, 2
        %v12721 = vsel %vm2283, %v12719, %v12720
        %v12722 = vrot.slane %v12432, 2
        %v12723 = vrot.slane %v12433, 2
        %v12724 = vsel %vm2283, %v12722, %v12723
        %v12725 = vrot.slane %v12434, 2
        %v12726 = vrot.slane %v12435, 2
        %v12727 = vsel %vm2283, %v12725, %v12726
        %v12728 = vrot.slane %v12436, 2
        %v12729 = vrot.slane %v12437, 2
        %v12730 = vsel %vm2283, %v12728, %v12729
        %v12731 = vrot.slane %v12438, 2
        %v12732 = vrot.slane %v12439, 2
        %v12733 = vsel %vm2283, %v12731, %v12732
        %v12734 = vrot.slane %v12440, 2
        %v12735 = vrot.slane %v12441, 2
        %v12736 = vsel %vm2283, %v12734, %v12735
        %v12737 = vrot.slane %v12442, 2
        %v12738 = vrot.slane %v12443, 2
        %v12739 = vsel %vm2283, %v12737, %v12738
        %v12740 = vrot.slane %v12444, 2
        %v12741 = vrot.slane %v12445, 2
        %v12742 = vsel %vm2283, %v12740, %v12741
        %v12743 = vrot.slane %v12446, 2
        %v12744 = vrot.slane %v12447, 2
        %v12745 = vsel %vm2283, %v12743, %v12744
        %v12746 = vrot.slane %v12448, 2
        %v12747 = vrot.slane %v12449, 2
        %v12748 = vsel %vm2283, %v12746, %v12747
        %v12749 = vrot.slane %v12450, 2
        %v12750 = vrot.slane %v12451, 2
        %v12751 = vsel %vm2283, %v12749, %v12750
        %v12752 = vrot.slane %v12452, 2
        %v12753 = vrot.slane %v12453, 2
        %v12754 = vsel %vm2283, %v12752, %v12753
        %v12755 = vrot.slane %v12454, 2
        %v12756 = vrot.slane %v12455, 2
        %v12757 = vsel %vm2283, %v12755, %v12756
        %v12758 = vrot.slane %v12456, 2
        %v12759 = vrot.slane %v12457, 2
        %v12760 = vsel %vm2283, %v12758, %v12759
        %v12761 = vrot.slane %v12458, 2
        %v12762 = vrot.slane %v12459, 2
        %v12763 = vsel %vm2283, %v12761, %v12762
        %v12764 = vrot.slane %v12460, 2
        %v12765 = vrot.slane %v12461, 2
        %v12766 = vsel %vm2283, %v12764, %v12765
        %v12767 = vrot.slane %v12462, 2
        %v12768 = vrot.slane %v12463, 2
        %v12769 = vsel %vm2283, %v12767, %v12768
        %v12770 = vrot.slane %v12464, 2
        %v12771 = vrot.slane %v12465, 2
        %v12772 = vsel %vm2283, %v12770, %v12771
        %v12773 = vrot.slane %v12466, 2
        %v12774 = vrot.slane %v12467, 2
        %v12775 = vsel %vm2283, %v12773, %v12774
        %v12776 = vrot.slane %v12468, 2
        %v12777 = vrot.slane %v12469, 2
        %v12778 = vsel %vm2283, %v12776, %v12777
        %v12779 = vrot.slane %v12470, 2
        %v12780 = vrot.slane %v12471, 2
        %v12781 = vsel %vm2283, %v12779, %v12780
        %v12782 = vrot.slane %v12472, 2
        %v12783 = vrot.slane %v12473, 2
        %v12784 = vsel %vm2283, %v12782, %v12783
        %v12785 = vrot.slane %v12474, 2
        %v12786 = vrot.slane %v12475, 2
        %v12787 = vsel %vm2283, %v12785, %v12786
        %v12788 = vrot.slane %v12476, 2
        %v12789 = vrot.slane %v12477, 2
        %v12790 = vsel %vm2283, %v12788, %v12789
        %v12791 = vrot.slane %v12478, 2
        %v12792 = vrot.slane %v12479, 2
        %v12793 = vsel %vm2283, %v12791, %v12792
        %v12794 = vrot.slane %v12480, 2
        %v12795 = vrot.slane %v12481, 2
        %v12796 = vsel %vm2283, %v12794, %v12795
        %v12797 = vrot.slane %v12482, 2
        %v12798 = vrot.slane %v12483, 2
        %v12799 = vsel %vm2283, %v12797, %v12798
        %v12800 = vrot.slane %v12484, 2
        %v12801 = vrot.slane %v12485, 2
        %v12802 = vsel %vm2283, %v12800, %v12801
        %v12803 = vrot.slane %v12486, 2
        %v12804 = vrot.slane %v12487, 2
        %v12805 = vsel %vm2283, %v12803, %v12804
        %v12806 = vrot.slane %v12488, 2
        %v12807 = vrot.slane %v12489, 2
        %v12808 = vsel %vm2283, %v12806, %v12807
        %v12809 = vrot.slane %v12490, 2
        %v12810 = vrot.slane %v12491, 2
        %v12811 = vsel %vm2283, %v12809, %v12810
        %v12876 = vadd.f32 %v12296, %v12622
        %v12877 = vadd.f32 %v12297, %v12625
        %v12878 = vadd.f32 %v12298, %v12628
        %v12879 = vadd.f32 %v12299, %v12631
        %v12880 = vadd.f32 %v12300, %v12634
        %v12881 = vadd.f32 %v12301, %v12637
        %v12882 = vadd.f32 %v12302, %v12640
        %v12883 = vadd.f32 %v12303, %v12643
        %v12884 = vadd.f32 %v12304, %v12646
        %v12885 = vadd.f32 %v12305, %v12649
        %v12886 = vadd.f32 %v12306, %v12652
        %v12887 = vadd.f32 %v12307, %v12655
        %v12888 = vadd.f32 %v12308, %v12658
        %v12889 = vadd.f32 %v12309, %v12661
        %v12890 = vadd.f32 %v12310, %v12664
        %v12891 = vadd.f32 %v12311, %v12667
        %v12892 = vadd.f32 %v12312, %v12670
        %v12893 = vadd.f32 %v12313, %v12673
        %v12894 = vadd.f32 %v12314, %v12676
        %v12895 = vadd.f32 %v12315, %v12679
        %v12896 = vadd.f32 %v12316, %v12682
        %v12897 = vadd.f32 %v12317, %v12685
        %v12898 = vadd.f32 %v12318, %v12688
        %v12899 = vadd.f32 %v12319, %v12691
        %v12900 = vadd.f32 %v12320, %v12694
        %v12901 = vadd.f32 %v12321, %v12697
        %v12902 = vadd.f32 %v12322, %v12700
        %v12903 = vadd.f32 %v12323, %v12703
        %v12904 = vadd.f32 %v12324, %v12706
        %v12905 = vadd.f32 %v12325, %v12709
        %v12906 = vadd.f32 %v12326, %v12712
        %v12907 = vadd.f32 %v12327, %v12715
        %v12908 = vadd.f32 %v12328, %v12718
        %v12909 = vadd.f32 %v12329, %v12721
        %v12910 = vadd.f32 %v12330, %v12724
        %v12911 = vadd.f32 %v12331, %v12727
        %v12912 = vadd.f32 %v12332, %v12730
        %v12913 = vadd.f32 %v12333, %v12733
        %v12914 = vadd.f32 %v12334, %v12736
        %v12915 = vadd.f32 %v12335, %v12739
        %v12916 = vadd.f32 %v12336, %v12742
        %v12917 = vadd.f32 %v12337, %v12745
        %v12918 = vadd.f32 %v12338, %v12748
        %v12919 = vadd.f32 %v12339, %v12751
        %v12920 = vadd.f32 %v12340, %v12754
        %v12921 = vadd.f32 %v12341, %v12757
        %v12922 = vadd.f32 %v12342, %v12760
        %v12923 = vadd.f32 %v12343, %v12763
        %v12924 = vadd.f32 %v12344, %v12766
        %v12925 = vadd.f32 %v12345, %v12769
        %v12926 = vadd.f32 %v12346, %v12772
        %v12927 = vadd.f32 %v12347, %v12775
        %v12928 = vadd.f32 %v12348, %v12778
        %v12929 = vadd.f32 %v12349, %v12781
        %v12930 = vadd.f32 %v12350, %v12784
        %v12931 = vadd.f32 %v12351, %v12787
        %v12932 = vadd.f32 %v12352, %v12790
        %v12933 = vadd.f32 %v12353, %v12793
        %v12934 = vadd.f32 %v12354, %v12796
        %v12935 = vadd.f32 %v12355, %v12799
        %v12936 = vadd.f32 %v12356, %v12802
        %v12937 = vadd.f32 %v12357, %v12805
        %v12938 = vadd.f32 %v12358, %v12808
        %v12939 = vadd.f32 %v12359, %v12811
        %12940 = vst [vmem:[%s1095] sm:$0xff] %v12876
        %12941 = vst [vmem:[%s1095 + $0x8] sm:$0xff] %v12877
        %12942 = vst [vmem:[%s1095 + $0x10] sm:$0xff] %v12878
        %12943 = vst [vmem:[%s1095 + $0x18] sm:$0xff] %v12879
        %12944 = vst [vmem:[%s1095 + $0x20] sm:$0xff] %v12880
        %12945 = vst [vmem:[%s1095 + $0x28] sm:$0xff] %v12881
        %12946 = vst [vmem:[%s1095 + $0x30] sm:$0xff] %v12882
        %12947 = vst [vmem:[%s1095 + $0x38] sm:$0xff] %v12883
        %12948 = vst [vmem:[%s1095 + $0x40] sm:$0xff] %v12884
        %12949 = vst [vmem:[%s1095 + $0x48] sm:$0xff] %v12885
        %12950 = vst [vmem:[%s1095 + $0x50] sm:$0xff] %v12886
        %12951 = vst [vmem:[%s1095 + $0x58] sm:$0xff] %v12887
        %12952 = vst [vmem:[%s1095 + $0x60] sm:$0xff] %v12888
        %12953 = vst [vmem:[%s1095 + $0x68] sm:$0xff] %v12889
        %12954 = vst [vmem:[%s1095 + $0x70] sm:$0xff] %v12890
        %12955 = vst [vmem:[%s1095 + $0x78] sm:$0xff] %v12891
        %12956 = vst [vmem:[%s1095 + $0x80] sm:$0xff] %v12892
        %12957 = vst [vmem:[%s1095 + $0x88] sm:$0xff] %v12893
        %12958 = vst [vmem:[%s1095 + $0x90] sm:$0xff] %v12894
        %12959 = vst [vmem:[%s1095 + $0x98] sm:$0xff] %v12895
        %12960 = vst [vmem:[%s1095 + $0xa0] sm:$0xff] %v12896
        %12961 = vst [vmem:[%s1095 + $0xa8] sm:$0xff] %v12897
        %12962 = vst [vmem:[%s1095 + $0xb0] sm:$0xff] %v12898
        %12963 = vst [vmem:[%s1095 + $0xb8] sm:$0xff] %v12899
        %12964 = vst [vmem:[%s1095 + $0xc0] sm:$0xff] %v12900
        %12965 = vst [vmem:[%s1095 + $0xc8] sm:$0xff] %v12901
        %12966 = vst [vmem:[%s1095 + $0xd0] sm:$0xff] %v12902
        %12967 = vst [vmem:[%s1095 + $0xd8] sm:$0xff] %v12903
        %12968 = vst [vmem:[%s1095 + $0xe0] sm:$0xff] %v12904
        %12969 = vst [vmem:[%s1095 + $0xe8] sm:$0xff] %v12905
        %12970 = vst [vmem:[%s1095 + $0xf0] sm:$0xff] %v12906
        %12971 = vst [vmem:[%s1095 + $0xf8] sm:$0xff] %v12907
        %12972 = vst [vmem:[%s1095 + $0x100] sm:$0xff] %v12908
        %12973 = vst [vmem:[%s1095 + $0x108] sm:$0xff] %v12909
        %12974 = vst [vmem:[%s1095 + $0x110] sm:$0xff] %v12910
        %12975 = vst [vmem:[%s1095 + $0x118] sm:$0xff] %v12911
        %12976 = vst [vmem:[%s1095 + $0x120] sm:$0xff] %v12912
        %12977 = vst [vmem:[%s1095 + $0x128] sm:$0xff] %v12913
        %12978 = vst [vmem:[%s1095 + $0x130] sm:$0xff] %v12914
        %12979 = vst [vmem:[%s1095 + $0x138] sm:$0xff] %v12915
        %12980 = vst [vmem:[%s1095 + $0x140] sm:$0xff] %v12916
        %12981 = vst [vmem:[%s1095 + $0x148] sm:$0xff] %v12917
        %12982 = vst [vmem:[%s1095 + $0x150] sm:$0xff] %v12918
        %12983 = vst [vmem:[%s1095 + $0x158] sm:$0xff] %v12919
        %12984 = vst [vmem:[%s1095 + $0x160] sm:$0xff] %v12920
        %12985 = vst [vmem:[%s1095 + $0x168] sm:$0xff] %v12921
        %12986 = vst [vmem:[%s1095 + $0x170] sm:$0xff] %v12922
        %12987 = vst [vmem:[%s1095 + $0x178] sm:$0xff] %v12923
        %12988 = vst [vmem:[%s1095 + $0x180] sm:$0xff] %v12924
        %12989 = vst [vmem:[%s1095 + $0x188] sm:$0xff] %v12925
        %12990 = vst [vmem:[%s1095 + $0x190] sm:$0xff] %v12926
        %12991 = vst [vmem:[%s1095 + $0x198] sm:$0xff] %v12927
        %12992 = vst [vmem:[%s1095 + $0x1a0] sm:$0xff] %v12928
        %12993 = vst [vmem:[%s1095 + $0x1a8] sm:$0xff] %v12929
        %12994 = vst [vmem:[%s1095 + $0x1b0] sm:$0xff] %v12930
        %12995 = vst [vmem:[%s1095 + $0x1b8] sm:$0xff] %v12931
        %12996 = vst [vmem:[%s1095 + $0x1c0] sm:$0xff] %v12932
        %12997 = vst [vmem:[%s1095 + $0x1c8] sm:$0xff] %v12933
        %12998 = vst [vmem:[%s1095 + $0x1d0] sm:$0xff] %v12934
        %12999 = vst [vmem:[%s1095 + $0x1d8] sm:$0xff] %v12935
        %13000 = vst [vmem:[%s1095 + $0x1e0] sm:$0xff] %v12936
        %13001 = vst [vmem:[%s1095 + $0x1e8] sm:$0xff] %v12937
        %13002 = vst [vmem:[%s1095 + $0x1f0] sm:$0xff] %v12938
        %13003 = vst [vmem:[%s1095 + $0x1f8] sm:$0xff] %v12939
        %s13004 = sand.u32 %s119, 1
        %s13005 = scalar_lea.sflag [#allocation5], %s13004
        %s13006 = sand.u32 %s119, 1
        %s13007 = smul.addr %s13006, 512
        %s13008 = scalar_lea.vmem [#allocation4], %s13007
        // Predicated region
        $region109: #{tpu_custom_call.1} parent=99 // pred_check
          %p13009 = pneg %p129
        $region110: #{tpu_custom_call.1} parent=99 // pred_check_branch
          %13011 = sbr.rel (%p13009) target = $region112
        $region111: #{tpu_custom_call.1} parent=99 // pred_region
          %s13013 = ssub.s32 8192, 8192
          %13014 = vsyncadd %s13005, %s13013
          %s13015 = smul.addr %s21, 192
          %s13016 = sadd.s32 %s22, %s13015
          %s13017 = smul.addr %s13016, 128
          %s13018 = scalar_lea.hbm %s3, %s13017
          %s13019 = sshll.u32 %s13008, 4
          %s13020 = int_to_ptr.vmem [resolvable:$true] %s13019
          %13025 = dma.vmem_to_hbm [thread:$0]  %s13020, 8192, %s13018, %s13005, 128, 384, 8
        $region112: #{tpu_custom_call.1} parent=99 // pred_fallthru
          _
      $region100: #{tpu_custom_call.1} parent=5 // pred_fallthru
        _
      %p13026 = scmp.le.s32.totalorder 2, %s12
      // Predicated region
      $region113: #{tpu_custom_call.1} parent=5 // pred_check
        %p13027 = pneg %p13026
      $region114: #{tpu_custom_call.1} parent=5 // pred_check_branch
        %13029 = sbr.rel (%p13027) target = $region116
      $region115: #{tpu_custom_call.1} parent=5 // pred_region
        %s13030 = ssub.s32 %s12, 2
        // Predicated region
        $region117: #{tpu_custom_call.1} parent=115 // pred_check
          %p13031 = pneg %p135
        $region118: #{tpu_custom_call.1} parent=115 // pred_check_branch
          %13033 = sbr.rel (%p13031) target = $region120
        $region119: #{tpu_custom_call.1} parent=115 // pred_region
          %s13034 = sand.u32 %s120, 1
          %s13035 = scalar_lea.sflag [#allocation5], %s13034
          %s13036 = sand.u32 %s120, 1
          %s13037 = smul.addr %s13036, 512
          %s13038 = scalar_lea.vmem [#allocation4], %s13037
          %13039 = dma.done %s13035, 8192
        $region120: #{tpu_custom_call.1} parent=115 // pred_fallthru
          _
      $region116: #{tpu_custom_call.1} parent=5 // pred_fallthru
        _
    $region6: #{tpu_custom_call.1} parent=1 // loop_footer
      %s16 = sadd.s32 1, %s12
    $region7: #{tpu_custom_call.1} parent=1 // loop_footer_branch
      %11 = sbr.rel target = $region3
    $region8: #{tpu_custom_call.1} parent=1 // loop_exit
      _
    %13040 = vsyncpa [#allocation5], 1
    %s13041 = scalar_lea.sflag [#allocation5], 1
    %13042 = vsyncpa %s13041, 1

</llo_original>
